<compile_context>
chip_gen: v7x
topology: tpu7x:2x2x1
jax: 0.10.0
libtpu: 0.0.40
codegen_flags: <defaults>
</compile_context>

<pallas_src>
import functools

import jax
import jax.numpy as jnp
from jax.experimental import pallas as pl
from jax.experimental.pallas import tpu as pltpu


# ----------------------------------------------------------------------------
# In-kernel helpers (activations are 2-D slabs: rows = N*H, lanes = W*C)
# ----------------------------------------------------------------------------
def _dot(a, b):
    return jnp.dot(a, b, preferred_element_type=jnp.float32)


def _conv3x3(x, b_ref, bias_row, mask_p, mask_n):
    """3x3 'same' conv on a (rows, W*Cin) slab.

    b_ref stacks 3 banded (W*Cin, W*Cout) bf16 lane-side matrices (one per
    kernel row).  Row coupling uses XLU sublane rolls + 0/1 boundary-mask
    columns instead of row-shift matmuls (keeps it off the MXU)."""
    xb = x.astype(jnp.bfloat16)
    y0 = _dot(xb, b_ref[0])
    y1 = _dot(xb, b_ref[1])
    y2 = _dot(xb, b_ref[2])
    rows = y0.shape[0]
    up = pltpu.roll(y0, shift=1, axis=0)           # up[h] = y0[h-1]
    dn = pltpu.roll(y2, shift=rows - 1, axis=0)    # dn[h] = y2[h+1]
    return y1 + mask_p * up + mask_n * dn + bias_row


def _batchnorm(y, pc, pct, gamma, beta, inv_count):
    """Single-pass training-mode BatchNorm2d with pre-folded scale/shift.
    pc pools lanes -> channels, pct scatters channels -> lanes (both 0/1, bf16)."""
    s1 = jnp.sum(y, axis=0, keepdims=True)
    s2 = jnp.sum(y * y, axis=0, keepdims=True)
    sum_c = _dot(s1.astype(jnp.bfloat16), pc)
    sq_c = _dot(s2.astype(jnp.bfloat16), pc)
    mean_c = sum_c * inv_count
    var_c = jnp.maximum(sq_c * inv_count - mean_c * mean_c, 0.0)
    scale_c = gamma * jax.lax.rsqrt(var_c + 1e-5)
    shift_c = beta - mean_c * scale_c
    scale_row = _dot(scale_c.astype(jnp.bfloat16), pct)
    shift_row = _dot(shift_c.astype(jnp.bfloat16), pct)
    return y * scale_row + shift_row


def _module(x, b1_ref, b2_ref, bias_ref, bn_ref, pc, pct, mask_p, mask_n,
            inv_count):
    """Conv3x3+bias -> ReLU -> BN -> Conv3x3+bias -> ReLU -> BN."""
    y = _conv3x3(x, b1_ref, bias_ref[0], mask_p, mask_n)
    y = jnp.maximum(y, 0.0)
    y = _batchnorm(y, pc, pct, bn_ref[0], bn_ref[1], inv_count)
    y = _conv3x3(y, b2_ref, bias_ref[1], mask_p, mask_n)
    y = jnp.maximum(y, 0.0)
    y = _batchnorm(y, pc, pct, bn_ref[2], bn_ref[3], inv_count)
    return y


def _expand_module(x_skip, x_up, b1a_ref, b1b_ref, b2_ref, bias_ref, bn_ref,
                   pc, pct, mask_p, mask_n, inv_count):
    """Expanding module over cat([skip, up], channels); the concat is never
    materialized -- the first conv weight is split along Cin instead."""
    xs = x_skip.astype(jnp.bfloat16)
    xu = x_up.astype(jnp.bfloat16)
    y0 = _dot(xs, b1a_ref[0]) + _dot(xu, b1b_ref[0])
    y1 = _dot(xs, b1a_ref[1]) + _dot(xu, b1b_ref[1])
    y2 = _dot(xs, b1a_ref[2]) + _dot(xu, b1b_ref[2])
    rows = y0.shape[0]
    y = (y1 + mask_p * pltpu.roll(y0, shift=1, axis=0)
            + mask_n * pltpu.roll(y2, shift=rows - 1, axis=0)
            + bias_ref[0])
    y = jnp.maximum(y, 0.0)
    y = _batchnorm(y, pc, pct, bn_ref[0], bn_ref[1], inv_count)
    y = _conv3x3(y, b2_ref, bias_ref[1], mask_p, mask_n)
    y = jnp.maximum(y, 0.0)
    y = _batchnorm(y, pc, pct, bn_ref[2], bn_ref[3], inv_count)
    return y


def _upsample(x_half, u_ref, v_ref, upbias_ref):
    """ConvTranspose2d(k=3, stride=2, pad=1, out_pad=1) via a sub-pixel
    decomposition: 3 banded lane matmuls + 3 tiny 0/1 row-scatter matmuls.
    No zero-stuffing, no wasted MACs."""
    xb = x_half.astype(jnp.bfloat16)
    up = upbias_ref[...]
    for a in range(3):
        up = up + _dot(u_ref[a], _dot(xb, v_ref[a]).astype(jnp.bfloat16))
    return up


# ----------------------------------------------------------------------------
# The single fused Wnet kernel
# ----------------------------------------------------------------------------
def _wnet_kernel(*refs, inv_count_f, inv_count_h):
    x_ref = refs[0]
    o_ref = refs[-1]
    (masks_f, masks_h, pc_f_r, pct_f_r, pc_h_r, pct_h_r, prow_r, pcol_r, up_u,
     e0_b1, e0_b2, e0_bias, e0_bn, e1_b1, e1_b2, e1_bias, e1_bn,
     e_up_v, e_up_bias, e2_b1a, e2_b1b, e2_b2, e2_bias, e2_bn, e_proj, e_mgrp,
     d0_b1, d0_b2, d0_bias, d0_bn, d1_b1, d1_b2, d1_bias, d1_bn,
     d_up_v, d_up_bias, d2_b1a, d2_b1b, d2_b2, d2_bias, d2_bn, d_proj, d_pbias
     ) = refs[1:-1]

    mask_pf, mask_nf = masks_f[0], masks_f[1]
    mask_ph, mask_nh = masks_h[0], masks_h[1]
    pc_f, pct_f = pc_f_r[...], pct_f_r[...]
    pc_h, pct_h = pc_h_r[...], pct_h_r[...]
    prow = prow_r[...]
    pcol0, pcol1 = pcol_r[0], pcol_r[1]

    def unet(x_in, m0, m1, up, m2):
        # contracting module 0 (full resolution)
        x0 = _module(x_in, *m0, pc_f, pct_f, mask_pf, mask_nf, inv_count_f)

        # fused MaxPool2d(2,2):
        #   row pairs  -> XLU sublane roll + max (only even rows are consumed,
        #                 so the roll never mixes images when H is even),
        #   row select -> one 0/1 bf16 matmul,
        #   col pairs  -> two 0/1 bf16 lane-compaction matmuls + max.
        rows_full = x0.shape[0]
        row_max = jnp.maximum(x0, pltpu.roll(x0, shift=rows_full - 1, axis=0))
        rows = _dot(prow, row_max.astype(jnp.bfloat16)).astype(jnp.bfloat16)
        x_pool = jnp.maximum(_dot(rows, pcol0), _dot(rows, pcol1))

        # contracting module 1 (half resolution); dropout == identity.
        x1 = _module(x_pool, *m1, pc_h, pct_h, mask_ph, mask_nh, inv_count_h)

        # ConvTranspose2d(stride=2) upsample.
        x_up = _upsample(x1, *up)

        # expanding module over cat([skip, up], channels).
        return _expand_module(x0, x_up, *m2, pc_f, pct_f, mask_pf, mask_nf,
                              inv_count_f)

    # ---------------- U-enc + conv1 + Softmax2d ----------------
    x = x_ref[...]
    y = unet(x,
             (e0_b1, e0_b2, e0_bias, e0_bn),
             (e1_b1, e1_b2, e1_bias, e1_bn),
             (up_u, e_up_v, e_up_bias),
             (e2_b1a, e2_b1b, e2_b2, e2_bias, e2_bn))

    z = _dot(y.astype(jnp.bfloat16), e_proj[...])          # 1x1 conv, no bias
    z_max = jnp.max(z, axis=-1, keepdims=True)              # row max (>= group max)
    ez = jnp.exp(z - z_max)                                  # bounded <= 1
    denom = _dot(ez.astype(jnp.bfloat16), e_mgrp[...])       # per-pixel group sum
    enc = ez * pl.reciprocal(jnp.maximum(denom, 1e-20), approx=True)

    # ---------------- U-dec + conv2 (+bias) ----------------
    y = unet(enc,
             (d0_b1, d0_b2, d0_bias, d0_bn),
             (d1_b1, d1_b2, d1_bias, d1_bn),
             (up_u, d_up_v, d_up_bias),
             (d2_b1a, d2_b1b, d2_b2, d2_bias, d2_bn))

    # channel-padded 1x1 conv epilogue -> lane-dense HBM store.
    o_ref[...] = _dot(y.astype(jnp.bfloat16), d_proj[...]) + d_pbias[...]


_ARG_ORDER = (
    "masks_f", "masks_h", "pc_f", "pct_f", "pc_h", "pct_h", "prow", "pcol",
    "up_u",
    "e0_b1", "e0_b2", "e0_bias", "e0_bn", "e1_b1", "e1_b2", "e1_bias", "e1_bn",
    "e_up_v", "e_up_bias", "e2_b1a", "e2_b1b", "e2_b2", "e2_bias", "e2_bn",
    "e_proj", "e_mgrp",
    "d0_b1", "d0_b2", "d0_bias", "d0_bn", "d1_b1", "d1_b2", "d1_bias", "d1_bn",
    "d_up_v", "d_up_bias", "d2_b1a", "d2_b1b", "d2_b2", "d2_bias", "d2_bn",
    "d_proj", "d_pbias",
)


def wnet_forward(x_nchw, prep, *, c_out):
    n, c, h, w = x_nchw.shape
    r_full, r_half = n * h, (n * h) // 2
    c_in_pad = prep["e0_b1"].shape[1] // w         # padded input channels (8)
    out_lanes = prep["d_pbias"].shape[1]           # W * padded output channels

    # NCHW -> lane-dense slab (N*H, W*C_pad); channel pad keeps lanes 128-dense.
    x = jnp.pad(x_nchw.astype(jnp.float32),
                ((0, 0), (0, c_in_pad - c), (0, 0), (0, 0)))
    x = jnp.transpose(x, (0, 2, 3, 1)).reshape(r_full, w * c_in_pad)

    kernel = functools.partial(
        _wnet_kernel,
        inv_count_f=1.0 / float(r_full * w),           # BN count at full res
        inv_count_h=1.0 / float(r_half * (w // 2)),    # BN count at half res
    )
    out = pl.pallas_call(
        kernel,
        out_shape=jax.ShapeDtypeStruct((r_full, out_lanes), jnp.float32),
    )(x, *[prep[k] for k in _ARG_ORDER])

    c_out_pad = out_lanes // w
    out = out.reshape(n, h, w, c_out_pad)[..., :c_out]
    return jnp.transpose(out, (0, 3, 1, 2))            # -> NCHW


# ----------------------------------------------------------------------------
# One-time parameter preparation (pure JAX): banded / block-diagonal weight
# matrices and the small 0/1 structural matrices used by the kernel.
# ----------------------------------------------------------------------------
def _band_conv(w, width):
    """Conv2d weight (Cout, Cin, 3, 3) -> (3, width*Cin, width*Cout) bf16,
    one banded lane-side matrix per kernel row."""
    cout, cin = w.shape[0], w.shape[1]
    win = jnp.arange(width)[:, None]
    wout = jnp.arange(width)[None, :]
    kw = win - wout + 1
    mats = []
    for kh in range(3):
        taps = w[:, :, kh, :]                                   # (Cout, Cin, 3)
        blk = jnp.where((kw >= 0) & (kw <= 2),
                        taps[:, :, jnp.clip(kw, 0, 2)], 0.0)    # (Cout,Cin,W,W)
        mats.append(jnp.transpose(blk, (2, 1, 3, 0))
                    .reshape(width * cin, width * cout))
    return jnp.stack(mats).astype(jnp.bfloat16)


def _band_convT(w, width_out):
    """ConvTranspose2d weight (Cin, Cout, 3, 3), stride 2, pad 1, out_pad 1
    -> (3, (width_out//2)*Cin, width_out*Cout) bf16 banded matrices."""
    cin, cout = w.shape[0], w.shape[1]
    j = jnp.arange(width_out // 2)[:, None]
    q = jnp.arange(width_out)[None, :]
    kw = q - 2 * j + 1
    mats = []
    for kh in range(3):
        taps = w[:, :, kh, :]                                   # (Cin, Cout, 3)
        blk = jnp.where((kw >= 0) & (kw <= 2),
                        taps[:, :, jnp.clip(kw, 0, 2)], 0.0)    # (Cin,Cout,W/2,W)
        mats.append(jnp.transpose(blk, (2, 0, 3, 1))
                    .reshape((width_out // 2) * cin, width_out * cout))
    return jnp.stack(mats).astype(jnp.bfloat16)


def _up_rows(n_img, h_out):
    """0/1 row-scatter matrices (3, N*H, N*H/2) for the stride-2 transposed
    conv sub-pixel decomposition (kernel row kh -> rows p = 2i + kh - 1)."""
    p = jnp.arange(h_out)[:, None]
    i = jnp.arange(h_out // 2)[None, :]
    mats = []
    for kh in range(3):
        blk = (p == 2 * i + kh - 1).astype(jnp.float32)
        mats.append(jnp.kron(jnp.eye(n_img, dtype=jnp.float32), blk))
    return jnp.stack(mats).astype(jnp.bfloat16)


def _boundary_masks(n_img, h):
    """(2, N*h, 1) f32 masks zeroing rolled rows that cross image boundaries."""
    r = jnp.arange(n_img * h)
    mask_prev = (r % h != 0).astype(jnp.float32)[:, None]
    mask_next = (r % h != h - 1).astype(jnp.float32)[:, None]
    return jnp.stack([mask_prev, mask_next])


def _pool_rows(n_img, h):
    """0/1 even-row selection (N*h/2, N*h) for the 2x2 max-pool, bf16."""
    hp = jnp.arange(h // 2)[:, None]
    r = jnp.arange(h)[None, :]
    blk = (r == 2 * hp).astype(jnp.float32)
    return jnp.kron(jnp.eye(n_img, dtype=jnp.float32), blk).astype(jnp.bfloat16)


def _pool_cols(width, c):
    """0/1 lane-compaction (2, width*c, (width//2)*c) for the max-pool column
    step: [a] selects lane (2*w' + a)*c + ch."""
    lin = jnp.arange(width * c)
    lout = jnp.arange((width // 2) * c)
    mats = []
    for a in range(2):
        mats.append((((lin[:, None] // c) == 2 * (lout[None, :] // c) + a) &
                     ((lin[:, None] % c) == (lout[None, :] % c))
                     ).astype(jnp.float32))
    return jnp.stack(mats).astype(jnp.bfloat16)


def _chan_pool(width, c):
    """lane->channel pool (width*c, c) and its transpose, bf16 (exact 0/1)."""
    lane = jnp.arange(width * c)
    pc = (lane[:, None] % c == jnp.arange(c)[None, :]).astype(jnp.float32)
    return pc.astype(jnp.bfloat16), pc.T.astype(jnp.bfloat16)


def _bias_row(v, width):
    return jnp.tile(v.astype(jnp.float32), width)[None, :]


def _proj_mat(w, width, cout_pad=None):
    """1x1 conv weight (Cout, Cin, 1, 1) -> block-diagonal
    (width*Cin, width*Cout[_pad]) bf16."""
    cout, cin = w.shape[0], w.shape[1]
    mat = w.reshape(cout, cin).T                          # (Cin, Cout)
    if cout_pad is not None and cout_pad > cout:
        mat = jnp.pad(mat, ((0, 0), (0, cout_pad - cout)))
    return jnp.kron(jnp.eye(width, dtype=jnp.float32), mat).astype(jnp.bfloat16)


def _module_args(m, width, cin_pad=None):
    w1 = m["w1"]
    if cin_pad is not None and cin_pad > w1.shape[1]:
        w1 = jnp.pad(w1, ((0, 0), (0, cin_pad - w1.shape[1]), (0, 0), (0, 0)))
    b1 = _band_conv(w1, width)
    b2 = _band_conv(m["w2"], width)
    bias = jnp.stack([_bias_row(m["b1"], width), _bias_row(m["b2"], width)])
    bn = jnp.stack([m["g1"][None, :], m["be1"][None, :],
                    m["g2"][None, :], m["be2"][None, :]])
    return b1, b2, bias, bn


def _expand_args(m, width, c_skip):
    w1 = m["w1"]
    b1a = _band_conv(w1[:, :c_skip], width)
    b1b = _band_conv(w1[:, c_skip:], width)
    b2 = _band_conv(m["w2"], width)
    bias = jnp.stack([_bias_row(m["b1"], width), _bias_row(m["b2"], width)])
    bn = jnp.stack([m["g1"][None, :], m["be1"][None, :],
                    m["g2"][None, :], m["be2"][None, :]])
    return b1a, b1b, b2, bias, bn


def prepare_wnet_params(params, n_img, h, w):
    uenc, udec = params["uenc"], params["udec"]
    c_mid = uenc["modules"][0]["w1"].shape[0]          # 8
    c_in = uenc["modules"][0]["w1"].shape[1]           # 4
    k_cls = params["conv1_w"].shape[0]                 # 4
    c_out = params["conv2_w"].shape[0]                 # 4
    c_in_pad = max(c_in, c_mid)                        # lane-dense input
    c_out_pad = max(c_out, c_mid)                      # lane-dense output store

    pc_f, pct_f = _chan_pool(w, c_mid)
    pc_h, pct_h = _chan_pool(w // 2, c_mid)
    prep = {
        "masks_f": _boundary_masks(n_img, h),
        "masks_h": _boundary_masks(n_img, h // 2),
        "pc_f": pc_f, "pct_f": pct_f, "pc_h": pc_h, "pct_h": pct_h,
        "prow": _pool_rows(n_img, h),
        "pcol": _pool_cols(w, c_mid),
        "up_u": _up_rows(n_img, h),                    # shared by both U-nets
    }

    def fill(tag, u, m0_cin_pad):
        m0, m1, m2 = u["modules"]
        b1, b2, bias, bn = _module_args(m0, w, cin_pad=m0_cin_pad)
        prep[f"{tag}0_b1"], prep[f"{tag}0_b2"] = b1, b2
        prep[f"{tag}0_bias"], prep[f"{tag}0_bn"] = bias, bn
        b1, b2, bias, bn = _module_args(m1, w // 2)
        prep[f"{tag}1_b1"], prep[f"{tag}1_b2"] = b1, b2
        prep[f"{tag}1_bias"], prep[f"{tag}1_bn"] = bias, bn
        prep[f"{tag}_up_v"] = _band_convT(u["up_w"], w)
        prep[f"{tag}_up_bias"] = _bias_row(u["up_b"], w)
        b1a, b1b, b2, bias, bn = _expand_args(m2, w, c_skip=c_mid)
        prep[f"{tag}2_b1a"], prep[f"{tag}2_b1b"], prep[f"{tag}2_b2"] = b1a, b1b, b2
        prep[f"{tag}2_bias"], prep[f"{tag}2_bn"] = bias, bn

    fill("e", uenc, c_in_pad)
    fill("d", udec, None)   # decoder m0 consumes the k-class softmax slab

    prep["e_proj"] = _proj_mat(params["conv1_w"], w)
    prep["e_mgrp"] = jnp.kron(jnp.eye(w, dtype=jnp.float32),
                              jnp.ones((k_cls, k_cls), jnp.float32)
                              ).astype(jnp.bfloat16)
    prep["d_proj"] = _proj_mat(params["conv2_w"], w, cout_pad=c_out_pad)
    prep["d_pbias"] = _bias_row(
        jnp.pad(params["conv2_b"], (0, c_out_pad - c_out)), w)
    return prep


# ----------------------------------------------------------------------------
# Deterministic parameter init (PyTorch-like uniform fan-in scaling)
# ----------------------------------------------------------------------------
def _uniform(key, shape, fan_in):
    s = float(fan_in) ** -0.5
    return jax.random.uniform(key, shape, jnp.float32, -s, s)


def init_module_params(key, cin, cout):
    k1, k2, k3, k4 = jax.random.split(key, 4)
    return {
        "w1": _uniform(k1, (cout, cin, 3, 3), cin * 9),
        "b1": _uniform(k2, (cout,), cin * 9),
        "g1": jnp.ones((cout,), jnp.float32),
        "be1": jnp.zeros((cout,), jnp.float32),
        "w2": _uniform(k3, (cout, cout, 3, 3), cout * 9),
        "b2": _uniform(k4, (cout,), cout * 9),
        "g2": jnp.ones((cout,), jnp.float32),
        "be2": jnp.zeros((cout,), jnp.float32),
    }


def init_unet_params(key, dim_in, dim_out):
    keys = jax.random.split(key, 5)
    mods = [init_module_params(keys[i], dim_in[i], dim_out[i]) for i in range(3)]
    return {
        "modules": mods,
        # ConvTranspose2d(dim_out[1], dim_in[1], 3, stride=2, padding=1, output_padding=1)
        "up_w": _uniform(keys[3], (dim_out[1], dim_in[1], 3, 3), dim_out[1] * 9),
        "up_b": _uniform(keys[4], (dim_in[1],), dim_out[1] * 9),
    }


def init_wnet_params(key, k, dim_in, dim_out):
    k0, k1, k2, k3, k4 = jax.random.split(key, 5)
    dec_dim_in = list(dim_in)
    dec_dim_in[0] = k
    return {
        "uenc": init_unet_params(k0, dim_in, dim_out),
        "conv1_w": _uniform(k1, (k, dim_out[-1], 1, 1), dim_out[-1]),
        "udec": init_unet_params(k2, dec_dim_in, dim_out),
        "conv2_w": _uniform(k3, (dim_in[0], dim_out[-1], 1, 1), dim_out[-1]),
        "conv2_b": _uniform(k4, (dim_in[0],), dim_out[-1]),
    }


if __name__ == "__main__":
    key = jax.random.PRNGKey(0)
    pkey, xkey = jax.random.split(key)

    # Wnet(n_modules=6, k=4, ...) -> each U-net gets 3 modules
    dim_inputs = [4, 8, 16]
    dim_outputs = [8, 8, 8]
    k_classes = 4
    n_img, height, width = 2, 16, 16

    params = init_wnet_params(pkey, k_classes, dim_inputs, dim_outputs)
    prep = prepare_wnet_params(params, n_img, height, width)
    x = jax.random.normal(xkey, (n_img, dim_inputs[0], height, width),
                          jnp.float32)

    fwd = jax.jit(functools.partial(wnet_forward, c_out=dim_inputs[0]))
    out = jax.block_until_ready(fwd(x, prep))

    assert out.shape == (n_img, dim_inputs[0], height, width), out.shape
    assert bool(jnp.all(jnp.isfinite(out)))
    print("KERNEL_OK")
</pallas_src>

<mosaic_0001>
module attributes {stable_mosaic.version = 11 : i64} {
  func.func @_wnet_kernel(%arg0: memref<32x128xf32, #tpu.memory_space<vmem>>, %arg1: memref<2x32x1xf32, #tpu.memory_space<vmem>>, %arg2: memref<2x16x1xf32, #tpu.memory_space<vmem>>, %arg3: memref<128x8xbf16, #tpu.memory_space<vmem>>, %arg4: memref<8x128xbf16, #tpu.memory_space<vmem>>, %arg5: memref<64x8xbf16, #tpu.memory_space<vmem>>, %arg6: memref<8x64xbf16, #tpu.memory_space<vmem>>, %arg7: memref<16x32xbf16, #tpu.memory_space<vmem>>, %arg8: memref<2x128x64xbf16, #tpu.memory_space<vmem>>, %arg9: memref<3x32x16xbf16, #tpu.memory_space<vmem>>, %arg10: memref<3x128x128xbf16, #tpu.memory_space<vmem>>, %arg11: memref<3x128x128xbf16, #tpu.memory_space<vmem>>, %arg12: memref<2x1x128xf32, #tpu.memory_space<vmem>>, %arg13: memref<4x1x8xf32, #tpu.memory_space<vmem>>, %arg14: memref<3x64x64xbf16, #tpu.memory_space<vmem>>, %arg15: memref<3x64x64xbf16, #tpu.memory_space<vmem>>, %arg16: memref<2x1x64xf32, #tpu.memory_space<vmem>>, %arg17: memref<4x1x8xf32, #tpu.memory_space<vmem>>, %arg18: memref<3x64x128xbf16, #tpu.memory_space<vmem>>, %arg19: memref<1x128xf32, #tpu.memory_space<vmem>>, %arg20: memref<3x128x128xbf16, #tpu.memory_space<vmem>>, %arg21: memref<3x128x128xbf16, #tpu.memory_space<vmem>>, %arg22: memref<3x128x128xbf16, #tpu.memory_space<vmem>>, %arg23: memref<2x1x128xf32, #tpu.memory_space<vmem>>, %arg24: memref<4x1x8xf32, #tpu.memory_space<vmem>>, %arg25: memref<128x64xbf16, #tpu.memory_space<vmem>>, %arg26: memref<64x64xbf16, #tpu.memory_space<vmem>>, %arg27: memref<3x64x128xbf16, #tpu.memory_space<vmem>>, %arg28: memref<3x128x128xbf16, #tpu.memory_space<vmem>>, %arg29: memref<2x1x128xf32, #tpu.memory_space<vmem>>, %arg30: memref<4x1x8xf32, #tpu.memory_space<vmem>>, %arg31: memref<3x64x64xbf16, #tpu.memory_space<vmem>>, %arg32: memref<3x64x64xbf16, #tpu.memory_space<vmem>>, %arg33: memref<2x1x64xf32, #tpu.memory_space<vmem>>, %arg34: memref<4x1x8xf32, #tpu.memory_space<vmem>>, %arg35: memref<3x64x128xbf16, #tpu.memory_space<vmem>>, %arg36: memref<1x128xf32, #tpu.memory_space<vmem>>, %arg37: memref<3x128x128xbf16, #tpu.memory_space<vmem>>, %arg38: memref<3x128x128xbf16, #tpu.memory_space<vmem>>, %arg39: memref<3x128x128xbf16, #tpu.memory_space<vmem>>, %arg40: memref<2x1x128xf32, #tpu.memory_space<vmem>>, %arg41: memref<4x1x8xf32, #tpu.memory_space<vmem>>, %arg42: memref<128x128xbf16, #tpu.memory_space<vmem>>, %arg43: memref<1x128xf32, #tpu.memory_space<vmem>>, %arg44: memref<32x128xf32, #tpu.memory_space<vmem>>) attributes {dimension_semantics = [], scalar_prefetch = 0 : i64, scratch_operands = 0 : i64, tpu.core_type = #tpu.core_type<tc>} {
    %c0 = arith.constant 0 : index
    %c0_0 = arith.constant 0 : index
    %c0_1 = arith.constant 0 : index
    %0 = vector.load %arg1[%c0, %c0_0, %c0_1] : memref<2x32x1xf32, #tpu.memory_space<vmem>>, vector<1x32x1xf32>
    %1 = vector.shape_cast %0 : vector<1x32x1xf32> to vector<32x1xf32>
    %c1 = arith.constant 1 : index
    %c0_2 = arith.constant 0 : index
    %c0_3 = arith.constant 0 : index
    %2 = vector.load %arg1[%c1, %c0_2, %c0_3] : memref<2x32x1xf32, #tpu.memory_space<vmem>>, vector<1x32x1xf32>
    %3 = vector.shape_cast %2 : vector<1x32x1xf32> to vector<32x1xf32>
    %c0_4 = arith.constant 0 : index
    %c0_5 = arith.constant 0 : index
    %c0_6 = arith.constant 0 : index
    %4 = vector.load %arg2[%c0_4, %c0_5, %c0_6] : memref<2x16x1xf32, #tpu.memory_space<vmem>>, vector<1x16x1xf32>
    %5 = vector.shape_cast %4 : vector<1x16x1xf32> to vector<16x1xf32>
    %c1_7 = arith.constant 1 : index
    %c0_8 = arith.constant 0 : index
    %c0_9 = arith.constant 0 : index
    %6 = vector.load %arg2[%c1_7, %c0_8, %c0_9] : memref<2x16x1xf32, #tpu.memory_space<vmem>>, vector<1x16x1xf32>
    %7 = vector.shape_cast %6 : vector<1x16x1xf32> to vector<16x1xf32>
    %c0_10 = arith.constant 0 : index
    %c0_11 = arith.constant 0 : index
    %8 = vector.load %arg3[%c0_10, %c0_11] : memref<128x8xbf16, #tpu.memory_space<vmem>>, vector<128x8xbf16>
    %c0_12 = arith.constant 0 : index
    %c0_13 = arith.constant 0 : index
    %9 = vector.load %arg4[%c0_12, %c0_13] : memref<8x128xbf16, #tpu.memory_space<vmem>>, vector<8x128xbf16>
    %c0_14 = arith.constant 0 : index
    %c0_15 = arith.constant 0 : index
    %10 = vector.load %arg5[%c0_14, %c0_15] : memref<64x8xbf16, #tpu.memory_space<vmem>>, vector<64x8xbf16>
    %c0_16 = arith.constant 0 : index
    %c0_17 = arith.constant 0 : index
    %11 = vector.load %arg6[%c0_16, %c0_17] : memref<8x64xbf16, #tpu.memory_space<vmem>>, vector<8x64xbf16>
    %c0_18 = arith.constant 0 : index
    %c0_19 = arith.constant 0 : index
    %12 = vector.load %arg7[%c0_18, %c0_19] : memref<16x32xbf16, #tpu.memory_space<vmem>>, vector<16x32xbf16>
    %c0_20 = arith.constant 0 : index
    %c0_21 = arith.constant 0 : index
    %c0_22 = arith.constant 0 : index
    %13 = vector.load %arg8[%c0_20, %c0_21, %c0_22] : memref<2x128x64xbf16, #tpu.memory_space<vmem>>, vector<1x128x64xbf16>
    %14 = vector.shape_cast %13 : vector<1x128x64xbf16> to vector<128x64xbf16>
    %c1_23 = arith.constant 1 : index
    %c0_24 = arith.constant 0 : index
    %c0_25 = arith.constant 0 : index
    %15 = vector.load %arg8[%c1_23, %c0_24, %c0_25] : memref<2x128x64xbf16, #tpu.memory_space<vmem>>, vector<1x128x64xbf16>
    %16 = vector.shape_cast %15 : vector<1x128x64xbf16> to vector<128x64xbf16>
    %c0_26 = arith.constant 0 : index
    %c0_27 = arith.constant 0 : index
    %17 = vector.load %arg0[%c0_26, %c0_27] : memref<32x128xf32, #tpu.memory_space<vmem>>, vector<32x128xf32>
    %c0_28 = arith.constant 0 : index
    %c0_29 = arith.constant 0 : index
    %c0_30 = arith.constant 0 : index
    %18 = vector.load %arg12[%c0_28, %c0_29, %c0_30] : memref<2x1x128xf32, #tpu.memory_space<vmem>>, vector<1x1x128xf32>
    %19 = vector.shape_cast %18 : vector<1x1x128xf32> to vector<1x128xf32>
    %20 = arith.truncf %17 : vector<32x128xf32> to vector<32x128xbf16>
    %c0_31 = arith.constant 0 : index
    %c0_32 = arith.constant 0 : index
    %c0_33 = arith.constant 0 : index
    %21 = vector.load %arg10[%c0_31, %c0_32, %c0_33] : memref<3x128x128xbf16, #tpu.memory_space<vmem>>, vector<1x128x128xbf16>
    %22 = vector.shape_cast %21 : vector<1x128x128xbf16> to vector<128x128xbf16>
    %cst = arith.constant dense<0.000000e+00> : vector<32x128xf32>
    %23 = tpu.matmul %20, %22, %cst {dimension_numbers = #tpu.dot_dimension_numbers<[1], [0], [0], [1], [0, 0, 1, 1], [], []>} : vector<32x128xbf16>, vector<128x128xbf16>, vector<32x128xf32> -> vector<32x128xf32>
    %c1_34 = arith.constant 1 : index
    %c0_35 = arith.constant 0 : index
    %c0_36 = arith.constant 0 : index
    %24 = vector.load %arg10[%c1_34, %c0_35, %c0_36] : memref<3x128x128xbf16, #tpu.memory_space<vmem>>, vector<1x128x128xbf16>
    %25 = vector.shape_cast %24 : vector<1x128x128xbf16> to vector<128x128xbf16>
    %cst_37 = arith.constant dense<0.000000e+00> : vector<32x128xf32>
    %26 = tpu.matmul %20, %25, %cst_37 {dimension_numbers = #tpu.dot_dimension_numbers<[1], [0], [0], [1], [0, 0, 1, 1], [], []>} : vector<32x128xbf16>, vector<128x128xbf16>, vector<32x128xf32> -> vector<32x128xf32>
    %c2 = arith.constant 2 : index
    %c0_38 = arith.constant 0 : index
    %c0_39 = arith.constant 0 : index
    %27 = vector.load %arg10[%c2, %c0_38, %c0_39] : memref<3x128x128xbf16, #tpu.memory_space<vmem>>, vector<1x128x128xbf16>
    %28 = vector.shape_cast %27 : vector<1x128x128xbf16> to vector<128x128xbf16>
    %cst_40 = arith.constant dense<0.000000e+00> : vector<32x128xf32>
    %29 = tpu.matmul %20, %28, %cst_40 {dimension_numbers = #tpu.dot_dimension_numbers<[1], [0], [0], [1], [0, 0, 1, 1], [], []>} : vector<32x128xbf16>, vector<128x128xbf16>, vector<32x128xf32> -> vector<32x128xf32>
    %c1_i32 = arith.constant 1 : i32
    %30 = tpu.dynamic_rotate %23 by %c1_i32 dim 0 : vector<32x128xf32>, i32 -> vector<32x128xf32>
    %c31_i32 = arith.constant 31 : i32
    %31 = tpu.dynamic_rotate %29 by %c31_i32 dim 0 : vector<32x128xf32>, i32 -> vector<32x128xf32>
    %32 = vector.broadcast %1 : vector<32x1xf32> to vector<32x128xf32>
    %33 = arith.mulf %32, %30 : vector<32x128xf32>
    %34 = arith.addf %26, %33 : vector<32x128xf32>
    %35 = vector.broadcast %3 : vector<32x1xf32> to vector<32x128xf32>
    %36 = arith.mulf %35, %31 : vector<32x128xf32>
    %37 = arith.addf %34, %36 : vector<32x128xf32>
    %38 = vector.broadcast %19 : vector<1x128xf32> to vector<32x128xf32>
    %39 = arith.addf %37, %38 : vector<32x128xf32>
    %cst_41 = arith.constant 0.000000e+00 : f32
    %40 = vector.broadcast %cst_41 : f32 to vector<32x128xf32>
    %41 = arith.maximumf %39, %40 : vector<32x128xf32>
    %c0_42 = arith.constant 0 : index
    %c0_43 = arith.constant 0 : index
    %c0_44 = arith.constant 0 : index
    %42 = vector.load %arg13[%c0_42, %c0_43, %c0_44] : memref<4x1x8xf32, #tpu.memory_space<vmem>>, vector<1x1x8xf32>
    %43 = vector.shape_cast %42 : vector<1x1x8xf32> to vector<1x8xf32>
    %c1_45 = arith.constant 1 : index
    %c0_46 = arith.constant 0 : index
    %c0_47 = arith.constant 0 : index
    %44 = vector.load %arg13[%c1_45, %c0_46, %c0_47] : memref<4x1x8xf32, #tpu.memory_space<vmem>>, vector<1x1x8xf32>
    %45 = vector.shape_cast %44 : vector<1x1x8xf32> to vector<1x8xf32>
    %cst_48 = arith.constant dense<0.000000e+00> : vector<128xf32>
    %46 = vector.multi_reduction <add>, %41, %cst_48 [0] : vector<32x128xf32> to vector<128xf32>
    %47 = vector.shape_cast %46 : vector<128xf32> to vector<1x128xf32>
    %48 = arith.mulf %41, %41 : vector<32x128xf32>
    %cst_49 = arith.constant dense<0.000000e+00> : vector<128xf32>
    %49 = vector.multi_reduction <add>, %48, %cst_49 [0] : vector<32x128xf32> to vector<128xf32>
    %50 = vector.shape_cast %49 : vector<128xf32> to vector<1x128xf32>
    %51 = arith.truncf %47 : vector<1x128xf32> to vector<1x128xbf16>
    %cst_50 = arith.constant dense<0.000000e+00> : vector<1x8xf32>
    %52 = tpu.matmul %51, %8, %cst_50 {dimension_numbers = #tpu.dot_dimension_numbers<[1], [0], [0], [1], [0, 0, 1, 1], [], []>} : vector<1x128xbf16>, vector<128x8xbf16>, vector<1x8xf32> -> vector<1x8xf32>
    %53 = arith.truncf %50 : vector<1x128xf32> to vector<1x128xbf16>
    %cst_51 = arith.constant dense<0.000000e+00> : vector<1x8xf32>
    %54 = tpu.matmul %53, %8, %cst_51 {dimension_numbers = #tpu.dot_dimension_numbers<[1], [0], [0], [1], [0, 0, 1, 1], [], []>} : vector<1x128xbf16>, vector<128x8xbf16>, vector<1x8xf32> -> vector<1x8xf32>
    %cst_52 = arith.constant 0.001953125 : f32
    %55 = vector.broadcast %cst_52 : f32 to vector<1x8xf32>
    %56 = arith.mulf %52, %55 : vector<1x8xf32>
    %cst_53 = arith.constant 0.001953125 : f32
    %57 = vector.broadcast %cst_53 : f32 to vector<1x8xf32>
    %58 = arith.mulf %54, %57 : vector<1x8xf32>
    %59 = arith.mulf %56, %56 : vector<1x8xf32>
    %60 = arith.subf %58, %59 : vector<1x8xf32>
    %cst_54 = arith.constant 0.000000e+00 : f32
    %61 = vector.broadcast %cst_54 : f32 to vector<1x8xf32>
    %62 = arith.maximumf %60, %61 : vector<1x8xf32>
    %cst_55 = arith.constant 9.99999974E-6 : f32
    %63 = vector.broadcast %cst_55 : f32 to vector<1x8xf32>
    %64 = arith.addf %62, %63 : vector<1x8xf32>
    %65 = math.rsqrt %64 : vector<1x8xf32>
    %66 = arith.mulf %43, %65 : vector<1x8xf32>
    %67 = arith.mulf %56, %66 : vector<1x8xf32>
    %68 = arith.subf %45, %67 : vector<1x8xf32>
    %69 = arith.truncf %66 : vector<1x8xf32> to vector<1x8xbf16>
    %cst_56 = arith.constant dense<0.000000e+00> : vector<1x128xf32>
    %70 = tpu.matmul %69, %9, %cst_56 {dimension_numbers = #tpu.dot_dimension_numbers<[1], [0], [0], [1], [0, 0, 1, 1], [], []>} : vector<1x8xbf16>, vector<8x128xbf16>, vector<1x128xf32> -> vector<1x128xf32>
    %71 = arith.truncf %68 : vector<1x8xf32> to vector<1x8xbf16>
    %cst_57 = arith.constant dense<0.000000e+00> : vector<1x128xf32>
    %72 = tpu.matmul %71, %9, %cst_57 {dimension_numbers = #tpu.dot_dimension_numbers<[1], [0], [0], [1], [0, 0, 1, 1], [], []>} : vector<1x8xbf16>, vector<8x128xbf16>, vector<1x128xf32> -> vector<1x128xf32>
    %73 = vector.broadcast %70 : vector<1x128xf32> to vector<32x128xf32>
    %74 = arith.mulf %41, %73 : vector<32x128xf32>
    %75 = vector.broadcast %72 : vector<1x128xf32> to vector<32x128xf32>
    %76 = arith.addf %74, %75 : vector<32x128xf32>
    %c1_58 = arith.constant 1 : index
    %c0_59 = arith.constant 0 : index
    %c0_60 = arith.constant 0 : index
    %77 = vector.load %arg12[%c1_58, %c0_59, %c0_60] : memref<2x1x128xf32, #tpu.memory_space<vmem>>, vector<1x1x128xf32>
    %78 = vector.shape_cast %77 : vector<1x1x128xf32> to vector<1x128xf32>
    %79 = arith.truncf %76 : vector<32x128xf32> to vector<32x128xbf16>
    %c0_61 = arith.constant 0 : index
    %c0_62 = arith.constant 0 : index
    %c0_63 = arith.constant 0 : index
    %80 = vector.load %arg11[%c0_61, %c0_62, %c0_63] : memref<3x128x128xbf16, #tpu.memory_space<vmem>>, vector<1x128x128xbf16>
    %81 = vector.shape_cast %80 : vector<1x128x128xbf16> to vector<128x128xbf16>
    %cst_64 = arith.constant dense<0.000000e+00> : vector<32x128xf32>
    %82 = tpu.matmul %79, %81, %cst_64 {dimension_numbers = #tpu.dot_dimension_numbers<[1], [0], [0], [1], [0, 0, 1, 1], [], []>} : vector<32x128xbf16>, vector<128x128xbf16>, vector<32x128xf32> -> vector<32x128xf32>
    %c1_65 = arith.constant 1 : index
    %c0_66 = arith.constant 0 : index
    %c0_67 = arith.constant 0 : index
    %83 = vector.load %arg11[%c1_65, %c0_66, %c0_67] : memref<3x128x128xbf16, #tpu.memory_space<vmem>>, vector<1x128x128xbf16>
    %84 = vector.shape_cast %83 : vector<1x128x128xbf16> to vector<128x128xbf16>
    %cst_68 = arith.constant dense<0.000000e+00> : vector<32x128xf32>
    %85 = tpu.matmul %79, %84, %cst_68 {dimension_numbers = #tpu.dot_dimension_numbers<[1], [0], [0], [1], [0, 0, 1, 1], [], []>} : vector<32x128xbf16>, vector<128x128xbf16>, vector<32x128xf32> -> vector<32x128xf32>
    %c2_69 = arith.constant 2 : index
    %c0_70 = arith.constant 0 : index
    %c0_71 = arith.constant 0 : index
    %86 = vector.load %arg11[%c2_69, %c0_70, %c0_71] : memref<3x128x128xbf16, #tpu.memory_space<vmem>>, vector<1x128x128xbf16>
    %87 = vector.shape_cast %86 : vector<1x128x128xbf16> to vector<128x128xbf16>
    %cst_72 = arith.constant dense<0.000000e+00> : vector<32x128xf32>
    %88 = tpu.matmul %79, %87, %cst_72 {dimension_numbers = #tpu.dot_dimension_numbers<[1], [0], [0], [1], [0, 0, 1, 1], [], []>} : vector<32x128xbf16>, vector<128x128xbf16>, vector<32x128xf32> -> vector<32x128xf32>
    %c1_i32_73 = arith.constant 1 : i32
    %89 = tpu.dynamic_rotate %82 by %c1_i32_73 dim 0 : vector<32x128xf32>, i32 -> vector<32x128xf32>
    %c31_i32_74 = arith.constant 31 : i32
    %90 = tpu.dynamic_rotate %88 by %c31_i32_74 dim 0 : vector<32x128xf32>, i32 -> vector<32x128xf32>
    %91 = vector.broadcast %1 : vector<32x1xf32> to vector<32x128xf32>
    %92 = arith.mulf %91, %89 : vector<32x128xf32>
    %93 = arith.addf %85, %92 : vector<32x128xf32>
    %94 = vector.broadcast %3 : vector<32x1xf32> to vector<32x128xf32>
    %95 = arith.mulf %94, %90 : vector<32x128xf32>
    %96 = arith.addf %93, %95 : vector<32x128xf32>
    %97 = vector.broadcast %78 : vector<1x128xf32> to vector<32x128xf32>
    %98 = arith.addf %96, %97 : vector<32x128xf32>
    %cst_75 = arith.constant 0.000000e+00 : f32
    %99 = vector.broadcast %cst_75 : f32 to vector<32x128xf32>
    %100 = arith.maximumf %98, %99 : vector<32x128xf32>
    %c2_76 = arith.constant 2 : index
    %c0_77 = arith.constant 0 : index
    %c0_78 = arith.constant 0 : index
    %101 = vector.load %arg13[%c2_76, %c0_77, %c0_78] : memref<4x1x8xf32, #tpu.memory_space<vmem>>, vector<1x1x8xf32>
    %102 = vector.shape_cast %101 : vector<1x1x8xf32> to vector<1x8xf32>
    %c3 = arith.constant 3 : index
    %c0_79 = arith.constant 0 : index
    %c0_80 = arith.constant 0 : index
    %103 = vector.load %arg13[%c3, %c0_79, %c0_80] : memref<4x1x8xf32, #tpu.memory_space<vmem>>, vector<1x1x8xf32>
    %104 = vector.shape_cast %103 : vector<1x1x8xf32> to vector<1x8xf32>
    %cst_81 = arith.constant dense<0.000000e+00> : vector<128xf32>
    %105 = vector.multi_reduction <add>, %100, %cst_81 [0] : vector<32x128xf32> to vector<128xf32>
    %106 = vector.shape_cast %105 : vector<128xf32> to vector<1x128xf32>
    %107 = arith.mulf %100, %100 : vector<32x128xf32>
    %cst_82 = arith.constant dense<0.000000e+00> : vector<128xf32>
    %108 = vector.multi_reduction <add>, %107, %cst_82 [0] : vector<32x128xf32> to vector<128xf32>
    %109 = vector.shape_cast %108 : vector<128xf32> to vector<1x128xf32>
    %110 = arith.truncf %106 : vector<1x128xf32> to vector<1x128xbf16>
    %cst_83 = arith.constant dense<0.000000e+00> : vector<1x8xf32>
    %111 = tpu.matmul %110, %8, %cst_83 {dimension_numbers = #tpu.dot_dimension_numbers<[1], [0], [0], [1], [0, 0, 1, 1], [], []>} : vector<1x128xbf16>, vector<128x8xbf16>, vector<1x8xf32> -> vector<1x8xf32>
    %112 = arith.truncf %109 : vector<1x128xf32> to vector<1x128xbf16>
    %cst_84 = arith.constant dense<0.000000e+00> : vector<1x8xf32>
    %113 = tpu.matmul %112, %8, %cst_84 {dimension_numbers = #tpu.dot_dimension_numbers<[1], [0], [0], [1], [0, 0, 1, 1], [], []>} : vector<1x128xbf16>, vector<128x8xbf16>, vector<1x8xf32> -> vector<1x8xf32>
    %cst_85 = arith.constant 0.001953125 : f32
    %114 = vector.broadcast %cst_85 : f32 to vector<1x8xf32>
    %115 = arith.mulf %111, %114 : vector<1x8xf32>
    %cst_86 = arith.constant 0.001953125 : f32
    %116 = vector.broadcast %cst_86 : f32 to vector<1x8xf32>
    %117 = arith.mulf %113, %116 : vector<1x8xf32>
    %118 = arith.mulf %115, %115 : vector<1x8xf32>
    %119 = arith.subf %117, %118 : vector<1x8xf32>
    %cst_87 = arith.constant 0.000000e+00 : f32
    %120 = vector.broadcast %cst_87 : f32 to vector<1x8xf32>
    %121 = arith.maximumf %119, %120 : vector<1x8xf32>
    %cst_88 = arith.constant 9.99999974E-6 : f32
    %122 = vector.broadcast %cst_88 : f32 to vector<1x8xf32>
    %123 = arith.addf %121, %122 : vector<1x8xf32>
    %124 = math.rsqrt %123 : vector<1x8xf32>
    %125 = arith.mulf %102, %124 : vector<1x8xf32>
    %126 = arith.mulf %115, %125 : vector<1x8xf32>
    %127 = arith.subf %104, %126 : vector<1x8xf32>
    %128 = arith.truncf %125 : vector<1x8xf32> to vector<1x8xbf16>
    %cst_89 = arith.constant dense<0.000000e+00> : vector<1x128xf32>
    %129 = tpu.matmul %128, %9, %cst_89 {dimension_numbers = #tpu.dot_dimension_numbers<[1], [0], [0], [1], [0, 0, 1, 1], [], []>} : vector<1x8xbf16>, vector<8x128xbf16>, vector<1x128xf32> -> vector<1x128xf32>
    %130 = arith.truncf %127 : vector<1x8xf32> to vector<1x8xbf16>
    %cst_90 = arith.constant dense<0.000000e+00> : vector<1x128xf32>
    %131 = tpu.matmul %130, %9, %cst_90 {dimension_numbers = #tpu.dot_dimension_numbers<[1], [0], [0], [1], [0, 0, 1, 1], [], []>} : vector<1x8xbf16>, vector<8x128xbf16>, vector<1x128xf32> -> vector<1x128xf32>
    %132 = vector.broadcast %129 : vector<1x128xf32> to vector<32x128xf32>
    %133 = arith.mulf %100, %132 : vector<32x128xf32>
    %134 = vector.broadcast %131 : vector<1x128xf32> to vector<32x128xf32>
    %135 = arith.addf %133, %134 : vector<32x128xf32>
    %c31_i32_91 = arith.constant 31 : i32
    %136 = tpu.dynamic_rotate %135 by %c31_i32_91 dim 0 : vector<32x128xf32>, i32 -> vector<32x128xf32>
    %137 = arith.maximumf %135, %136 : vector<32x128xf32>
    %138 = arith.truncf %137 : vector<32x128xf32> to vector<32x128xbf16>
    %cst_92 = arith.constant dense<0.000000e+00> : vector<16x128xf32>
    %139 = tpu.matmul %12, %138, %cst_92 {dimension_numbers = #tpu.dot_dimension_numbers<[1], [0], [0], [1], [0, 0, 1, 1], [], []>} : vector<16x32xbf16>, vector<32x128xbf16>, vector<16x128xf32> -> vector<16x128xf32>
    %140 = arith.truncf %139 : vector<16x128xf32> to vector<16x128xbf16>
    %cst_93 = arith.constant dense<0.000000e+00> : vector<16x64xf32>
    %141 = tpu.matmul %140, %14, %cst_93 {dimension_numbers = #tpu.dot_dimension_numbers<[1], [0], [0], [1], [0, 0, 1, 1], [], []>} : vector<16x128xbf16>, vector<128x64xbf16>, vector<16x64xf32> -> vector<16x64xf32>
    %cst_94 = arith.constant dense<0.000000e+00> : vector<16x64xf32>
    %142 = tpu.matmul %140, %16, %cst_94 {dimension_numbers = #tpu.dot_dimension_numbers<[1], [0], [0], [1], [0, 0, 1, 1], [], []>} : vector<16x128xbf16>, vector<128x64xbf16>, vector<16x64xf32> -> vector<16x64xf32>
    %143 = arith.maximumf %141, %142 : vector<16x64xf32>
    %c0_95 = arith.constant 0 : index
    %c0_96 = arith.constant 0 : index
    %c0_97 = arith.constant 0 : index
    %144 = vector.load %arg16[%c0_95, %c0_96, %c0_97] : memref<2x1x64xf32, #tpu.memory_space<vmem>>, vector<1x1x64xf32>
    %145 = vector.shape_cast %144 : vector<1x1x64xf32> to vector<1x64xf32>
    %146 = arith.truncf %143 : vector<16x64xf32> to vector<16x64xbf16>
    %c0_98 = arith.constant 0 : index
    %c0_99 = arith.constant 0 : index
    %c0_100 = arith.constant 0 : index
    %147 = vector.load %arg14[%c0_98, %c0_99, %c0_100] : memref<3x64x64xbf16, #tpu.memory_space<vmem>>, vector<1x64x64xbf16>
    %148 = vector.shape_cast %147 : vector<1x64x64xbf16> to vector<64x64xbf16>
    %cst_101 = arith.constant dense<0.000000e+00> : vector<16x64xf32>
    %149 = tpu.matmul %146, %148, %cst_101 {dimension_numbers = #tpu.dot_dimension_numbers<[1], [0], [0], [1], [0, 0, 1, 1], [], []>} : vector<16x64xbf16>, vector<64x64xbf16>, vector<16x64xf32> -> vector<16x64xf32>
    %c1_102 = arith.constant 1 : index
    %c0_103 = arith.constant 0 : index
    %c0_104 = arith.constant 0 : index
    %150 = vector.load %arg14[%c1_102, %c0_103, %c0_104] : memref<3x64x64xbf16, #tpu.memory_space<vmem>>, vector<1x64x64xbf16>
    %151 = vector.shape_cast %150 : vector<1x64x64xbf16> to vector<64x64xbf16>
    %cst_105 = arith.constant dense<0.000000e+00> : vector<16x64xf32>
    %152 = tpu.matmul %146, %151, %cst_105 {dimension_numbers = #tpu.dot_dimension_numbers<[1], [0], [0], [1], [0, 0, 1, 1], [], []>} : vector<16x64xbf16>, vector<64x64xbf16>, vector<16x64xf32> -> vector<16x64xf32>
    %c2_106 = arith.constant 2 : index
    %c0_107 = arith.constant 0 : index
    %c0_108 = arith.constant 0 : index
    %153 = vector.load %arg14[%c2_106, %c0_107, %c0_108] : memref<3x64x64xbf16, #tpu.memory_space<vmem>>, vector<1x64x64xbf16>
    %154 = vector.shape_cast %153 : vector<1x64x64xbf16> to vector<64x64xbf16>
    %cst_109 = arith.constant dense<0.000000e+00> : vector<16x64xf32>
    %155 = tpu.matmul %146, %154, %cst_109 {dimension_numbers = #tpu.dot_dimension_numbers<[1], [0], [0], [1], [0, 0, 1, 1], [], []>} : vector<16x64xbf16>, vector<64x64xbf16>, vector<16x64xf32> -> vector<16x64xf32>
    %c1_i32_110 = arith.constant 1 : i32
    %156 = tpu.dynamic_rotate %149 by %c1_i32_110 dim 0 : vector<16x64xf32>, i32 -> vector<16x64xf32>
    %c15_i32 = arith.constant 15 : i32
    %157 = tpu.dynamic_rotate %155 by %c15_i32 dim 0 : vector<16x64xf32>, i32 -> vector<16x64xf32>
    %158 = vector.broadcast %5 : vector<16x1xf32> to vector<16x64xf32>
    %159 = arith.mulf %158, %156 : vector<16x64xf32>
    %160 = arith.addf %152, %159 : vector<16x64xf32>
    %161 = vector.broadcast %7 : vector<16x1xf32> to vector<16x64xf32>
    %162 = arith.mulf %161, %157 : vector<16x64xf32>
    %163 = arith.addf %160, %162 : vector<16x64xf32>
    %164 = vector.broadcast %145 : vector<1x64xf32> to vector<16x64xf32>
    %165 = arith.addf %163, %164 : vector<16x64xf32>
    %cst_111 = arith.constant 0.000000e+00 : f32
    %166 = vector.broadcast %cst_111 : f32 to vector<16x64xf32>
    %167 = arith.maximumf %165, %166 : vector<16x64xf32>
    %c0_112 = arith.constant 0 : index
    %c0_113 = arith.constant 0 : index
    %c0_114 = arith.constant 0 : index
    %168 = vector.load %arg17[%c0_112, %c0_113, %c0_114] : memref<4x1x8xf32, #tpu.memory_space<vmem>>, vector<1x1x8xf32>
    %169 = vector.shape_cast %168 : vector<1x1x8xf32> to vector<1x8xf32>
    %c1_115 = arith.constant 1 : index
    %c0_116 = arith.constant 0 : index
    %c0_117 = arith.constant 0 : index
    %170 = vector.load %arg17[%c1_115, %c0_116, %c0_117] : memref<4x1x8xf32, #tpu.memory_space<vmem>>, vector<1x1x8xf32>
    %171 = vector.shape_cast %170 : vector<1x1x8xf32> to vector<1x8xf32>
    %cst_118 = arith.constant dense<0.000000e+00> : vector<64xf32>
    %172 = vector.multi_reduction <add>, %167, %cst_118 [0] : vector<16x64xf32> to vector<64xf32>
    %173 = vector.shape_cast %172 : vector<64xf32> to vector<1x64xf32>
    %174 = arith.mulf %167, %167 : vector<16x64xf32>
    %cst_119 = arith.constant dense<0.000000e+00> : vector<64xf32>
    %175 = vector.multi_reduction <add>, %174, %cst_119 [0] : vector<16x64xf32> to vector<64xf32>
    %176 = vector.shape_cast %175 : vector<64xf32> to vector<1x64xf32>
    %177 = arith.truncf %173 : vector<1x64xf32> to vector<1x64xbf16>
    %cst_120 = arith.constant dense<0.000000e+00> : vector<1x8xf32>
    %178 = tpu.matmul %177, %10, %cst_120 {dimension_numbers = #tpu.dot_dimension_numbers<[1], [0], [0], [1], [0, 0, 1, 1], [], []>} : vector<1x64xbf16>, vector<64x8xbf16>, vector<1x8xf32> -> vector<1x8xf32>
    %179 = arith.truncf %176 : vector<1x64xf32> to vector<1x64xbf16>
    %cst_121 = arith.constant dense<0.000000e+00> : vector<1x8xf32>
    %180 = tpu.matmul %179, %10, %cst_121 {dimension_numbers = #tpu.dot_dimension_numbers<[1], [0], [0], [1], [0, 0, 1, 1], [], []>} : vector<1x64xbf16>, vector<64x8xbf16>, vector<1x8xf32> -> vector<1x8xf32>
    %cst_122 = arith.constant 7.812500e-03 : f32
    %181 = vector.broadcast %cst_122 : f32 to vector<1x8xf32>
    %182 = arith.mulf %178, %181 : vector<1x8xf32>
    %cst_123 = arith.constant 7.812500e-03 : f32
    %183 = vector.broadcast %cst_123 : f32 to vector<1x8xf32>
    %184 = arith.mulf %180, %183 : vector<1x8xf32>
    %185 = arith.mulf %182, %182 : vector<1x8xf32>
    %186 = arith.subf %184, %185 : vector<1x8xf32>
    %cst_124 = arith.constant 0.000000e+00 : f32
    %187 = vector.broadcast %cst_124 : f32 to vector<1x8xf32>
    %188 = arith.maximumf %186, %187 : vector<1x8xf32>
    %cst_125 = arith.constant 9.99999974E-6 : f32
    %189 = vector.broadcast %cst_125 : f32 to vector<1x8xf32>
    %190 = arith.addf %188, %189 : vector<1x8xf32>
    %191 = math.rsqrt %190 : vector<1x8xf32>
    %192 = arith.mulf %169, %191 : vector<1x8xf32>
    %193 = arith.mulf %182, %192 : vector<1x8xf32>
    %194 = arith.subf %171, %193 : vector<1x8xf32>
    %195 = arith.truncf %192 : vector<1x8xf32> to vector<1x8xbf16>
    %cst_126 = arith.constant dense<0.000000e+00> : vector<1x64xf32>
    %196 = tpu.matmul %195, %11, %cst_126 {dimension_numbers = #tpu.dot_dimension_numbers<[1], [0], [0], [1], [0, 0, 1, 1], [], []>} : vector<1x8xbf16>, vector<8x64xbf16>, vector<1x64xf32> -> vector<1x64xf32>
    %197 = arith.truncf %194 : vector<1x8xf32> to vector<1x8xbf16>
    %cst_127 = arith.constant dense<0.000000e+00> : vector<1x64xf32>
    %198 = tpu.matmul %197, %11, %cst_127 {dimension_numbers = #tpu.dot_dimension_numbers<[1], [0], [0], [1], [0, 0, 1, 1], [], []>} : vector<1x8xbf16>, vector<8x64xbf16>, vector<1x64xf32> -> vector<1x64xf32>
    %199 = vector.broadcast %196 : vector<1x64xf32> to vector<16x64xf32>
    %200 = arith.mulf %167, %199 : vector<16x64xf32>
    %201 = vector.broadcast %198 : vector<1x64xf32> to vector<16x64xf32>
    %202 = arith.addf %200, %201 : vector<16x64xf32>
    %c1_128 = arith.constant 1 : index
    %c0_129 = arith.constant 0 : index
    %c0_130 = arith.constant 0 : index
    %203 = vector.load %arg16[%c1_128, %c0_129, %c0_130] : memref<2x1x64xf32, #tpu.memory_space<vmem>>, vector<1x1x64xf32>
    %204 = vector.shape_cast %203 : vector<1x1x64xf32> to vector<1x64xf32>
    %205 = arith.truncf %202 : vector<16x64xf32> to vector<16x64xbf16>
    %c0_131 = arith.constant 0 : index
    %c0_132 = arith.constant 0 : index
    %c0_133 = arith.constant 0 : index
    %206 = vector.load %arg15[%c0_131, %c0_132, %c0_133] : memref<3x64x64xbf16, #tpu.memory_space<vmem>>, vector<1x64x64xbf16>
    %207 = vector.shape_cast %206 : vector<1x64x64xbf16> to vector<64x64xbf16>
    %cst_134 = arith.constant dense<0.000000e+00> : vector<16x64xf32>
    %208 = tpu.matmul %205, %207, %cst_134 {dimension_numbers = #tpu.dot_dimension_numbers<[1], [0], [0], [1], [0, 0, 1, 1], [], []>} : vector<16x64xbf16>, vector<64x64xbf16>, vector<16x64xf32> -> vector<16x64xf32>
    %c1_135 = arith.constant 1 : index
    %c0_136 = arith.constant 0 : index
    %c0_137 = arith.constant 0 : index
    %209 = vector.load %arg15[%c1_135, %c0_136, %c0_137] : memref<3x64x64xbf16, #tpu.memory_space<vmem>>, vector<1x64x64xbf16>
    %210 = vector.shape_cast %209 : vector<1x64x64xbf16> to vector<64x64xbf16>
    %cst_138 = arith.constant dense<0.000000e+00> : vector<16x64xf32>
    %211 = tpu.matmul %205, %210, %cst_138 {dimension_numbers = #tpu.dot_dimension_numbers<[1], [0], [0], [1], [0, 0, 1, 1], [], []>} : vector<16x64xbf16>, vector<64x64xbf16>, vector<16x64xf32> -> vector<16x64xf32>
    %c2_139 = arith.constant 2 : index
    %c0_140 = arith.constant 0 : index
    %c0_141 = arith.constant 0 : index
    %212 = vector.load %arg15[%c2_139, %c0_140, %c0_141] : memref<3x64x64xbf16, #tpu.memory_space<vmem>>, vector<1x64x64xbf16>
    %213 = vector.shape_cast %212 : vector<1x64x64xbf16> to vector<64x64xbf16>
    %cst_142 = arith.constant dense<0.000000e+00> : vector<16x64xf32>
    %214 = tpu.matmul %205, %213, %cst_142 {dimension_numbers = #tpu.dot_dimension_numbers<[1], [0], [0], [1], [0, 0, 1, 1], [], []>} : vector<16x64xbf16>, vector<64x64xbf16>, vector<16x64xf32> -> vector<16x64xf32>
    %c1_i32_143 = arith.constant 1 : i32
    %215 = tpu.dynamic_rotate %208 by %c1_i32_143 dim 0 : vector<16x64xf32>, i32 -> vector<16x64xf32>
    %c15_i32_144 = arith.constant 15 : i32
    %216 = tpu.dynamic_rotate %214 by %c15_i32_144 dim 0 : vector<16x64xf32>, i32 -> vector<16x64xf32>
    %217 = vector.broadcast %5 : vector<16x1xf32> to vector<16x64xf32>
    %218 = arith.mulf %217, %215 : vector<16x64xf32>
    %219 = arith.addf %211, %218 : vector<16x64xf32>
    %220 = vector.broadcast %7 : vector<16x1xf32> to vector<16x64xf32>
    %221 = arith.mulf %220, %216 : vector<16x64xf32>
    %222 = arith.addf %219, %221 : vector<16x64xf32>
    %223 = vector.broadcast %204 : vector<1x64xf32> to vector<16x64xf32>
    %224 = arith.addf %222, %223 : vector<16x64xf32>
    %cst_145 = arith.constant 0.000000e+00 : f32
    %225 = vector.broadcast %cst_145 : f32 to vector<16x64xf32>
    %226 = arith.maximumf %224, %225 : vector<16x64xf32>
    %c2_146 = arith.constant 2 : index
    %c0_147 = arith.constant 0 : index
    %c0_148 = arith.constant 0 : index
    %227 = vector.load %arg17[%c2_146, %c0_147, %c0_148] : memref<4x1x8xf32, #tpu.memory_space<vmem>>, vector<1x1x8xf32>
    %228 = vector.shape_cast %227 : vector<1x1x8xf32> to vector<1x8xf32>
    %c3_149 = arith.constant 3 : index
    %c0_150 = arith.constant 0 : index
    %c0_151 = arith.constant 0 : index
    %229 = vector.load %arg17[%c3_149, %c0_150, %c0_151] : memref<4x1x8xf32, #tpu.memory_space<vmem>>, vector<1x1x8xf32>
    %230 = vector.shape_cast %229 : vector<1x1x8xf32> to vector<1x8xf32>
    %cst_152 = arith.constant dense<0.000000e+00> : vector<64xf32>
    %231 = vector.multi_reduction <add>, %226, %cst_152 [0] : vector<16x64xf32> to vector<64xf32>
    %232 = vector.shape_cast %231 : vector<64xf32> to vector<1x64xf32>
    %233 = arith.mulf %226, %226 : vector<16x64xf32>
    %cst_153 = arith.constant dense<0.000000e+00> : vector<64xf32>
    %234 = vector.multi_reduction <add>, %233, %cst_153 [0] : vector<16x64xf32> to vector<64xf32>
    %235 = vector.shape_cast %234 : vector<64xf32> to vector<1x64xf32>
    %236 = arith.truncf %232 : vector<1x64xf32> to vector<1x64xbf16>
    %cst_154 = arith.constant dense<0.000000e+00> : vector<1x8xf32>
    %237 = tpu.matmul %236, %10, %cst_154 {dimension_numbers = #tpu.dot_dimension_numbers<[1], [0], [0], [1], [0, 0, 1, 1], [], []>} : vector<1x64xbf16>, vector<64x8xbf16>, vector<1x8xf32> -> vector<1x8xf32>
    %238 = arith.truncf %235 : vector<1x64xf32> to vector<1x64xbf16>
    %cst_155 = arith.constant dense<0.000000e+00> : vector<1x8xf32>
    %239 = tpu.matmul %238, %10, %cst_155 {dimension_numbers = #tpu.dot_dimension_numbers<[1], [0], [0], [1], [0, 0, 1, 1], [], []>} : vector<1x64xbf16>, vector<64x8xbf16>, vector<1x8xf32> -> vector<1x8xf32>
    %cst_156 = arith.constant 7.812500e-03 : f32
    %240 = vector.broadcast %cst_156 : f32 to vector<1x8xf32>
    %241 = arith.mulf %237, %240 : vector<1x8xf32>
    %cst_157 = arith.constant 7.812500e-03 : f32
    %242 = vector.broadcast %cst_157 : f32 to vector<1x8xf32>
    %243 = arith.mulf %239, %242 : vector<1x8xf32>
    %244 = arith.mulf %241, %241 : vector<1x8xf32>
    %245 = arith.subf %243, %244 : vector<1x8xf32>
    %cst_158 = arith.constant 0.000000e+00 : f32
    %246 = vector.broadcast %cst_158 : f32 to vector<1x8xf32>
    %247 = arith.maximumf %245, %246 : vector<1x8xf32>
    %cst_159 = arith.constant 9.99999974E-6 : f32
    %248 = vector.broadcast %cst_159 : f32 to vector<1x8xf32>
    %249 = arith.addf %247, %248 : vector<1x8xf32>
    %250 = math.rsqrt %249 : vector<1x8xf32>
    %251 = arith.mulf %228, %250 : vector<1x8xf32>
    %252 = arith.mulf %241, %251 : vector<1x8xf32>
    %253 = arith.subf %230, %252 : vector<1x8xf32>
    %254 = arith.truncf %251 : vector<1x8xf32> to vector<1x8xbf16>
    %cst_160 = arith.constant dense<0.000000e+00> : vector<1x64xf32>
    %255 = tpu.matmul %254, %11, %cst_160 {dimension_numbers = #tpu.dot_dimension_numbers<[1], [0], [0], [1], [0, 0, 1, 1], [], []>} : vector<1x8xbf16>, vector<8x64xbf16>, vector<1x64xf32> -> vector<1x64xf32>
    %256 = arith.truncf %253 : vector<1x8xf32> to vector<1x8xbf16>
    %cst_161 = arith.constant dense<0.000000e+00> : vector<1x64xf32>
    %257 = tpu.matmul %256, %11, %cst_161 {dimension_numbers = #tpu.dot_dimension_numbers<[1], [0], [0], [1], [0, 0, 1, 1], [], []>} : vector<1x8xbf16>, vector<8x64xbf16>, vector<1x64xf32> -> vector<1x64xf32>
    %258 = vector.broadcast %255 : vector<1x64xf32> to vector<16x64xf32>
    %259 = arith.mulf %226, %258 : vector<16x64xf32>
    %260 = vector.broadcast %257 : vector<1x64xf32> to vector<16x64xf32>
    %261 = arith.addf %259, %260 : vector<16x64xf32>
    %262 = arith.truncf %261 : vector<16x64xf32> to vector<16x64xbf16>
    %c0_162 = arith.constant 0 : index
    %c0_163 = arith.constant 0 : index
    %263 = vector.load %arg19[%c0_162, %c0_163] : memref<1x128xf32, #tpu.memory_space<vmem>>, vector<1x128xf32>
    %c0_164 = arith.constant 0 : index
    %c0_165 = arith.constant 0 : index
    %c0_166 = arith.constant 0 : index
    %264 = vector.load %arg9[%c0_164, %c0_165, %c0_166] : memref<3x32x16xbf16, #tpu.memory_space<vmem>>, vector<1x32x16xbf16>
    %265 = vector.shape_cast %264 : vector<1x32x16xbf16> to vector<32x16xbf16>
    %c0_167 = arith.constant 0 : index
    %c0_168 = arith.constant 0 : index
    %c0_169 = arith.constant 0 : index
    %266 = vector.load %arg18[%c0_167, %c0_168, %c0_169] : memref<3x64x128xbf16, #tpu.memory_space<vmem>>, vector<1x64x128xbf16>
    %267 = vector.shape_cast %266 : vector<1x64x128xbf16> to vector<64x128xbf16>
    %cst_170 = arith.constant dense<0.000000e+00> : vector<16x128xf32>
    %268 = tpu.matmul %262, %267, %cst_170 {dimension_numbers = #tpu.dot_dimension_numbers<[1], [0], [0], [1], [0, 0, 1, 1], [], []>} : vector<16x64xbf16>, vector<64x128xbf16>, vector<16x128xf32> -> vector<16x128xf32>
    %269 = arith.truncf %268 : vector<16x128xf32> to vector<16x128xbf16>
    %cst_171 = arith.constant dense<0.000000e+00> : vector<32x128xf32>
    %270 = tpu.matmul %265, %269, %cst_171 {dimension_numbers = #tpu.dot_dimension_numbers<[1], [0], [0], [1], [0, 0, 1, 1], [], []>} : vector<32x16xbf16>, vector<16x128xbf16>, vector<32x128xf32> -> vector<32x128xf32>
    %271 = vector.broadcast %263 : vector<1x128xf32> to vector<32x128xf32>
    %272 = arith.addf %271, %270 : vector<32x128xf32>
    %c1_172 = arith.constant 1 : index
    %c0_173 = arith.constant 0 : index
    %c0_174 = arith.constant 0 : index
    %273 = vector.load %arg9[%c1_172, %c0_173, %c0_174] : memref<3x32x16xbf16, #tpu.memory_space<vmem>>, vector<1x32x16xbf16>
    %274 = vector.shape_cast %273 : vector<1x32x16xbf16> to vector<32x16xbf16>
    %c1_175 = arith.constant 1 : index
    %c0_176 = arith.constant 0 : index
    %c0_177 = arith.constant 0 : index
    %275 = vector.load %arg18[%c1_175, %c0_176, %c0_177] : memref<3x64x128xbf16, #tpu.memory_space<vmem>>, vector<1x64x128xbf16>
    %276 = vector.shape_cast %275 : vector<1x64x128xbf16> to vector<64x128xbf16>
    %cst_178 = arith.constant dense<0.000000e+00> : vector<16x128xf32>
    %277 = tpu.matmul %262, %276, %cst_178 {dimension_numbers = #tpu.dot_dimension_numbers<[1], [0], [0], [1], [0, 0, 1, 1], [], []>} : vector<16x64xbf16>, vector<64x128xbf16>, vector<16x128xf32> -> vector<16x128xf32>
    %278 = arith.truncf %277 : vector<16x128xf32> to vector<16x128xbf16>
    %cst_179 = arith.constant dense<0.000000e+00> : vector<32x128xf32>
    %279 = tpu.matmul %274, %278, %cst_179 {dimension_numbers = #tpu.dot_dimension_numbers<[1], [0], [0], [1], [0, 0, 1, 1], [], []>} : vector<32x16xbf16>, vector<16x128xbf16>, vector<32x128xf32> -> vector<32x128xf32>
    %280 = arith.addf %272, %279 : vector<32x128xf32>
    %c2_180 = arith.constant 2 : index
    %c0_181 = arith.constant 0 : index
    %c0_182 = arith.constant 0 : index
    %281 = vector.load %arg9[%c2_180, %c0_181, %c0_182] : memref<3x32x16xbf16, #tpu.memory_space<vmem>>, vector<1x32x16xbf16>
    %282 = vector.shape_cast %281 : vector<1x32x16xbf16> to vector<32x16xbf16>
    %c2_183 = arith.constant 2 : index
    %c0_184 = arith.constant 0 : index
    %c0_185 = arith.constant 0 : index
    %283 = vector.load %arg18[%c2_183, %c0_184, %c0_185] : memref<3x64x128xbf16, #tpu.memory_space<vmem>>, vector<1x64x128xbf16>
    %284 = vector.shape_cast %283 : vector<1x64x128xbf16> to vector<64x128xbf16>
    %cst_186 = arith.constant dense<0.000000e+00> : vector<16x128xf32>
    %285 = tpu.matmul %262, %284, %cst_186 {dimension_numbers = #tpu.dot_dimension_numbers<[1], [0], [0], [1], [0, 0, 1, 1], [], []>} : vector<16x64xbf16>, vector<64x128xbf16>, vector<16x128xf32> -> vector<16x128xf32>
    %286 = arith.truncf %285 : vector<16x128xf32> to vector<16x128xbf16>
    %cst_187 = arith.constant dense<0.000000e+00> : vector<32x128xf32>
    %287 = tpu.matmul %282, %286, %cst_187 {dimension_numbers = #tpu.dot_dimension_numbers<[1], [0], [0], [1], [0, 0, 1, 1], [], []>} : vector<32x16xbf16>, vector<16x128xbf16>, vector<32x128xf32> -> vector<32x128xf32>
    %288 = arith.addf %280, %287 : vector<32x128xf32>
    %289 = arith.truncf %135 : vector<32x128xf32> to vector<32x128xbf16>
    %290 = arith.truncf %288 : vector<32x128xf32> to vector<32x128xbf16>
    %c0_188 = arith.constant 0 : index
    %c0_189 = arith.constant 0 : index
    %c0_190 = arith.constant 0 : index
    %291 = vector.load %arg20[%c0_188, %c0_189, %c0_190] : memref<3x128x128xbf16, #tpu.memory_space<vmem>>, vector<1x128x128xbf16>
    %292 = vector.shape_cast %291 : vector<1x128x128xbf16> to vector<128x128xbf16>
    %cst_191 = arith.constant dense<0.000000e+00> : vector<32x128xf32>
    %293 = tpu.matmul %289, %292, %cst_191 {dimension_numbers = #tpu.dot_dimension_numbers<[1], [0], [0], [1], [0, 0, 1, 1], [], []>} : vector<32x128xbf16>, vector<128x128xbf16>, vector<32x128xf32> -> vector<32x128xf32>
    %c0_192 = arith.constant 0 : index
    %c0_193 = arith.constant 0 : index
    %c0_194 = arith.constant 0 : index
    %294 = vector.load %arg21[%c0_192, %c0_193, %c0_194] : memref<3x128x128xbf16, #tpu.memory_space<vmem>>, vector<1x128x128xbf16>
    %295 = vector.shape_cast %294 : vector<1x128x128xbf16> to vector<128x128xbf16>
    %cst_195 = arith.constant dense<0.000000e+00> : vector<32x128xf32>
    %296 = tpu.matmul %290, %295, %cst_195 {dimension_numbers = #tpu.dot_dimension_numbers<[1], [0], [0], [1], [0, 0, 1, 1], [], []>} : vector<32x128xbf16>, vector<128x128xbf16>, vector<32x128xf32> -> vector<32x128xf32>
    %297 = arith.addf %293, %296 : vector<32x128xf32>
    %c1_196 = arith.constant 1 : index
    %c0_197 = arith.constant 0 : index
    %c0_198 = arith.constant 0 : index
    %298 = vector.load %arg20[%c1_196, %c0_197, %c0_198] : memref<3x128x128xbf16, #tpu.memory_space<vmem>>, vector<1x128x128xbf16>
    %299 = vector.shape_cast %298 : vector<1x128x128xbf16> to vector<128x128xbf16>
    %cst_199 = arith.constant dense<0.000000e+00> : vector<32x128xf32>
    %300 = tpu.matmul %289, %299, %cst_199 {dimension_numbers = #tpu.dot_dimension_numbers<[1], [0], [0], [1], [0, 0, 1, 1], [], []>} : vector<32x128xbf16>, vector<128x128xbf16>, vector<32x128xf32> -> vector<32x128xf32>
    %c1_200 = arith.constant 1 : index
    %c0_201 = arith.constant 0 : index
    %c0_202 = arith.constant 0 : index
    %301 = vector.load %arg21[%c1_200, %c0_201, %c0_202] : memref<3x128x128xbf16, #tpu.memory_space<vmem>>, vector<1x128x128xbf16>
    %302 = vector.shape_cast %301 : vector<1x128x128xbf16> to vector<128x128xbf16>
    %cst_203 = arith.constant dense<0.000000e+00> : vector<32x128xf32>
    %303 = tpu.matmul %290, %302, %cst_203 {dimension_numbers = #tpu.dot_dimension_numbers<[1], [0], [0], [1], [0, 0, 1, 1], [], []>} : vector<32x128xbf16>, vector<128x128xbf16>, vector<32x128xf32> -> vector<32x128xf32>
    %304 = arith.addf %300, %303 : vector<32x128xf32>
    %c2_204 = arith.constant 2 : index
    %c0_205 = arith.constant 0 : index
    %c0_206 = arith.constant 0 : index
    %305 = vector.load %arg20[%c2_204, %c0_205, %c0_206] : memref<3x128x128xbf16, #tpu.memory_space<vmem>>, vector<1x128x128xbf16>
    %306 = vector.shape_cast %305 : vector<1x128x128xbf16> to vector<128x128xbf16>
    %cst_207 = arith.constant dense<0.000000e+00> : vector<32x128xf32>
    %307 = tpu.matmul %289, %306, %cst_207 {dimension_numbers = #tpu.dot_dimension_numbers<[1], [0], [0], [1], [0, 0, 1, 1], [], []>} : vector<32x128xbf16>, vector<128x128xbf16>, vector<32x128xf32> -> vector<32x128xf32>
    %c2_208 = arith.constant 2 : index
    %c0_209 = arith.constant 0 : index
    %c0_210 = arith.constant 0 : index
    %308 = vector.load %arg21[%c2_208, %c0_209, %c0_210] : memref<3x128x128xbf16, #tpu.memory_space<vmem>>, vector<1x128x128xbf16>
    %309 = vector.shape_cast %308 : vector<1x128x128xbf16> to vector<128x128xbf16>
    %cst_211 = arith.constant dense<0.000000e+00> : vector<32x128xf32>
    %310 = tpu.matmul %290, %309, %cst_211 {dimension_numbers = #tpu.dot_dimension_numbers<[1], [0], [0], [1], [0, 0, 1, 1], [], []>} : vector<32x128xbf16>, vector<128x128xbf16>, vector<32x128xf32> -> vector<32x128xf32>
    %311 = arith.addf %307, %310 : vector<32x128xf32>
    %c1_i32_212 = arith.constant 1 : i32
    %312 = tpu.dynamic_rotate %297 by %c1_i32_212 dim 0 : vector<32x128xf32>, i32 -> vector<32x128xf32>
    %313 = vector.broadcast %1 : vector<32x1xf32> to vector<32x128xf32>
    %314 = arith.mulf %313, %312 : vector<32x128xf32>
    %315 = arith.addf %304, %314 : vector<32x128xf32>
    %c31_i32_213 = arith.constant 31 : i32
    %316 = tpu.dynamic_rotate %311 by %c31_i32_213 dim 0 : vector<32x128xf32>, i32 -> vector<32x128xf32>
    %317 = vector.broadcast %3 : vector<32x1xf32> to vector<32x128xf32>
    %318 = arith.mulf %317, %316 : vector<32x128xf32>
    %319 = arith.addf %315, %318 : vector<32x128xf32>
    %c0_214 = arith.constant 0 : index
    %c0_215 = arith.constant 0 : index
    %c0_216 = arith.constant 0 : index
    %320 = vector.load %arg23[%c0_214, %c0_215, %c0_216] : memref<2x1x128xf32, #tpu.memory_space<vmem>>, vector<1x1x128xf32>
    %321 = vector.shape_cast %320 : vector<1x1x128xf32> to vector<1x128xf32>
    %322 = vector.broadcast %321 : vector<1x128xf32> to vector<32x128xf32>
    %323 = arith.addf %319, %322 : vector<32x128xf32>
    %cst_217 = arith.constant 0.000000e+00 : f32
    %324 = vector.broadcast %cst_217 : f32 to vector<32x128xf32>
    %325 = arith.maximumf %323, %324 : vector<32x128xf32>
    %c0_218 = arith.constant 0 : index
    %c0_219 = arith.constant 0 : index
    %c0_220 = arith.constant 0 : index
    %326 = vector.load %arg24[%c0_218, %c0_219, %c0_220] : memref<4x1x8xf32, #tpu.memory_space<vmem>>, vector<1x1x8xf32>
    %327 = vector.shape_cast %326 : vector<1x1x8xf32> to vector<1x8xf32>
    %c1_221 = arith.constant 1 : index
    %c0_222 = arith.constant 0 : index
    %c0_223 = arith.constant 0 : index
    %328 = vector.load %arg24[%c1_221, %c0_222, %c0_223] : memref<4x1x8xf32, #tpu.memory_space<vmem>>, vector<1x1x8xf32>
    %329 = vector.shape_cast %328 : vector<1x1x8xf32> to vector<1x8xf32>
    %cst_224 = arith.constant dense<0.000000e+00> : vector<128xf32>
    %330 = vector.multi_reduction <add>, %325, %cst_224 [0] : vector<32x128xf32> to vector<128xf32>
    %331 = vector.shape_cast %330 : vector<128xf32> to vector<1x128xf32>
    %332 = arith.mulf %325, %325 : vector<32x128xf32>
    %cst_225 = arith.constant dense<0.000000e+00> : vector<128xf32>
    %333 = vector.multi_reduction <add>, %332, %cst_225 [0] : vector<32x128xf32> to vector<128xf32>
    %334 = vector.shape_cast %333 : vector<128xf32> to vector<1x128xf32>
    %335 = arith.truncf %331 : vector<1x128xf32> to vector<1x128xbf16>
    %cst_226 = arith.constant dense<0.000000e+00> : vector<1x8xf32>
    %336 = tpu.matmul %335, %8, %cst_226 {dimension_numbers = #tpu.dot_dimension_numbers<[1], [0], [0], [1], [0, 0, 1, 1], [], []>} : vector<1x128xbf16>, vector<128x8xbf16>, vector<1x8xf32> -> vector<1x8xf32>
    %337 = arith.truncf %334 : vector<1x128xf32> to vector<1x128xbf16>
    %cst_227 = arith.constant dense<0.000000e+00> : vector<1x8xf32>
    %338 = tpu.matmul %337, %8, %cst_227 {dimension_numbers = #tpu.dot_dimension_numbers<[1], [0], [0], [1], [0, 0, 1, 1], [], []>} : vector<1x128xbf16>, vector<128x8xbf16>, vector<1x8xf32> -> vector<1x8xf32>
    %cst_228 = arith.constant 0.001953125 : f32
    %339 = vector.broadcast %cst_228 : f32 to vector<1x8xf32>
    %340 = arith.mulf %336, %339 : vector<1x8xf32>
    %cst_229 = arith.constant 0.001953125 : f32
    %341 = vector.broadcast %cst_229 : f32 to vector<1x8xf32>
    %342 = arith.mulf %338, %341 : vector<1x8xf32>
    %343 = arith.mulf %340, %340 : vector<1x8xf32>
    %344 = arith.subf %342, %343 : vector<1x8xf32>
    %cst_230 = arith.constant 0.000000e+00 : f32
    %345 = vector.broadcast %cst_230 : f32 to vector<1x8xf32>
    %346 = arith.maximumf %344, %345 : vector<1x8xf32>
    %cst_231 = arith.constant 9.99999974E-6 : f32
    %347 = vector.broadcast %cst_231 : f32 to vector<1x8xf32>
    %348 = arith.addf %346, %347 : vector<1x8xf32>
    %349 = math.rsqrt %348 : vector<1x8xf32>
    %350 = arith.mulf %327, %349 : vector<1x8xf32>
    %351 = arith.mulf %340, %350 : vector<1x8xf32>
    %352 = arith.subf %329, %351 : vector<1x8xf32>
    %353 = arith.truncf %350 : vector<1x8xf32> to vector<1x8xbf16>
    %cst_232 = arith.constant dense<0.000000e+00> : vector<1x128xf32>
    %354 = tpu.matmul %353, %9, %cst_232 {dimension_numbers = #tpu.dot_dimension_numbers<[1], [0], [0], [1], [0, 0, 1, 1], [], []>} : vector<1x8xbf16>, vector<8x128xbf16>, vector<1x128xf32> -> vector<1x128xf32>
    %355 = arith.truncf %352 : vector<1x8xf32> to vector<1x8xbf16>
    %cst_233 = arith.constant dense<0.000000e+00> : vector<1x128xf32>
    %356 = tpu.matmul %355, %9, %cst_233 {dimension_numbers = #tpu.dot_dimension_numbers<[1], [0], [0], [1], [0, 0, 1, 1], [], []>} : vector<1x8xbf16>, vector<8x128xbf16>, vector<1x128xf32> -> vector<1x128xf32>
    %357 = vector.broadcast %354 : vector<1x128xf32> to vector<32x128xf32>
    %358 = arith.mulf %325, %357 : vector<32x128xf32>
    %359 = vector.broadcast %356 : vector<1x128xf32> to vector<32x128xf32>
    %360 = arith.addf %358, %359 : vector<32x128xf32>
    %c1_234 = arith.constant 1 : index
    %c0_235 = arith.constant 0 : index
    %c0_236 = arith.constant 0 : index
    %361 = vector.load %arg23[%c1_234, %c0_235, %c0_236] : memref<2x1x128xf32, #tpu.memory_space<vmem>>, vector<1x1x128xf32>
    %362 = vector.shape_cast %361 : vector<1x1x128xf32> to vector<1x128xf32>
    %363 = arith.truncf %360 : vector<32x128xf32> to vector<32x128xbf16>
    %c0_237 = arith.constant 0 : index
    %c0_238 = arith.constant 0 : index
    %c0_239 = arith.constant 0 : index
    %364 = vector.load %arg22[%c0_237, %c0_238, %c0_239] : memref<3x128x128xbf16, #tpu.memory_space<vmem>>, vector<1x128x128xbf16>
    %365 = vector.shape_cast %364 : vector<1x128x128xbf16> to vector<128x128xbf16>
    %cst_240 = arith.constant dense<0.000000e+00> : vector<32x128xf32>
    %366 = tpu.matmul %363, %365, %cst_240 {dimension_numbers = #tpu.dot_dimension_numbers<[1], [0], [0], [1], [0, 0, 1, 1], [], []>} : vector<32x128xbf16>, vector<128x128xbf16>, vector<32x128xf32> -> vector<32x128xf32>
    %c1_241 = arith.constant 1 : index
    %c0_242 = arith.constant 0 : index
    %c0_243 = arith.constant 0 : index
    %367 = vector.load %arg22[%c1_241, %c0_242, %c0_243] : memref<3x128x128xbf16, #tpu.memory_space<vmem>>, vector<1x128x128xbf16>
    %368 = vector.shape_cast %367 : vector<1x128x128xbf16> to vector<128x128xbf16>
    %cst_244 = arith.constant dense<0.000000e+00> : vector<32x128xf32>
    %369 = tpu.matmul %363, %368, %cst_244 {dimension_numbers = #tpu.dot_dimension_numbers<[1], [0], [0], [1], [0, 0, 1, 1], [], []>} : vector<32x128xbf16>, vector<128x128xbf16>, vector<32x128xf32> -> vector<32x128xf32>
    %c2_245 = arith.constant 2 : index
    %c0_246 = arith.constant 0 : index
    %c0_247 = arith.constant 0 : index
    %370 = vector.load %arg22[%c2_245, %c0_246, %c0_247] : memref<3x128x128xbf16, #tpu.memory_space<vmem>>, vector<1x128x128xbf16>
    %371 = vector.shape_cast %370 : vector<1x128x128xbf16> to vector<128x128xbf16>
    %cst_248 = arith.constant dense<0.000000e+00> : vector<32x128xf32>
    %372 = tpu.matmul %363, %371, %cst_248 {dimension_numbers = #tpu.dot_dimension_numbers<[1], [0], [0], [1], [0, 0, 1, 1], [], []>} : vector<32x128xbf16>, vector<128x128xbf16>, vector<32x128xf32> -> vector<32x128xf32>
    %c1_i32_249 = arith.constant 1 : i32
    %373 = tpu.dynamic_rotate %366 by %c1_i32_249 dim 0 : vector<32x128xf32>, i32 -> vector<32x128xf32>
    %c31_i32_250 = arith.constant 31 : i32
    %374 = tpu.dynamic_rotate %372 by %c31_i32_250 dim 0 : vector<32x128xf32>, i32 -> vector<32x128xf32>
    %375 = vector.broadcast %1 : vector<32x1xf32> to vector<32x128xf32>
    %376 = arith.mulf %375, %373 : vector<32x128xf32>
    %377 = arith.addf %369, %376 : vector<32x128xf32>
    %378 = vector.broadcast %3 : vector<32x1xf32> to vector<32x128xf32>
    %379 = arith.mulf %378, %374 : vector<32x128xf32>
    %380 = arith.addf %377, %379 : vector<32x128xf32>
    %381 = vector.broadcast %362 : vector<1x128xf32> to vector<32x128xf32>
    %382 = arith.addf %380, %381 : vector<32x128xf32>
    %cst_251 = arith.constant 0.000000e+00 : f32
    %383 = vector.broadcast %cst_251 : f32 to vector<32x128xf32>
    %384 = arith.maximumf %382, %383 : vector<32x128xf32>
    %c2_252 = arith.constant 2 : index
    %c0_253 = arith.constant 0 : index
    %c0_254 = arith.constant 0 : index
    %385 = vector.load %arg24[%c2_252, %c0_253, %c0_254] : memref<4x1x8xf32, #tpu.memory_space<vmem>>, vector<1x1x8xf32>
    %386 = vector.shape_cast %385 : vector<1x1x8xf32> to vector<1x8xf32>
    %c3_255 = arith.constant 3 : index
    %c0_256 = arith.constant 0 : index
    %c0_257 = arith.constant 0 : index
    %387 = vector.load %arg24[%c3_255, %c0_256, %c0_257] : memref<4x1x8xf32, #tpu.memory_space<vmem>>, vector<1x1x8xf32>
    %388 = vector.shape_cast %387 : vector<1x1x8xf32> to vector<1x8xf32>
    %cst_258 = arith.constant dense<0.000000e+00> : vector<128xf32>
    %389 = vector.multi_reduction <add>, %384, %cst_258 [0] : vector<32x128xf32> to vector<128xf32>
    %390 = vector.shape_cast %389 : vector<128xf32> to vector<1x128xf32>
    %391 = arith.mulf %384, %384 : vector<32x128xf32>
    %cst_259 = arith.constant dense<0.000000e+00> : vector<128xf32>
    %392 = vector.multi_reduction <add>, %391, %cst_259 [0] : vector<32x128xf32> to vector<128xf32>
    %393 = vector.shape_cast %392 : vector<128xf32> to vector<1x128xf32>
    %394 = arith.truncf %390 : vector<1x128xf32> to vector<1x128xbf16>
    %cst_260 = arith.constant dense<0.000000e+00> : vector<1x8xf32>
    %395 = tpu.matmul %394, %8, %cst_260 {dimension_numbers = #tpu.dot_dimension_numbers<[1], [0], [0], [1], [0, 0, 1, 1], [], []>} : vector<1x128xbf16>, vector<128x8xbf16>, vector<1x8xf32> -> vector<1x8xf32>
    %396 = arith.truncf %393 : vector<1x128xf32> to vector<1x128xbf16>
    %cst_261 = arith.constant dense<0.000000e+00> : vector<1x8xf32>
    %397 = tpu.matmul %396, %8, %cst_261 {dimension_numbers = #tpu.dot_dimension_numbers<[1], [0], [0], [1], [0, 0, 1, 1], [], []>} : vector<1x128xbf16>, vector<128x8xbf16>, vector<1x8xf32> -> vector<1x8xf32>
    %cst_262 = arith.constant 0.001953125 : f32
    %398 = vector.broadcast %cst_262 : f32 to vector<1x8xf32>
    %399 = arith.mulf %395, %398 : vector<1x8xf32>
    %cst_263 = arith.constant 0.001953125 : f32
    %400 = vector.broadcast %cst_263 : f32 to vector<1x8xf32>
    %401 = arith.mulf %397, %400 : vector<1x8xf32>
    %402 = arith.mulf %399, %399 : vector<1x8xf32>
    %403 = arith.subf %401, %402 : vector<1x8xf32>
    %cst_264 = arith.constant 0.000000e+00 : f32
    %404 = vector.broadcast %cst_264 : f32 to vector<1x8xf32>
    %405 = arith.maximumf %403, %404 : vector<1x8xf32>
    %cst_265 = arith.constant 9.99999974E-6 : f32
    %406 = vector.broadcast %cst_265 : f32 to vector<1x8xf32>
    %407 = arith.addf %405, %406 : vector<1x8xf32>
    %408 = math.rsqrt %407 : vector<1x8xf32>
    %409 = arith.mulf %386, %408 : vector<1x8xf32>
    %410 = arith.mulf %399, %409 : vector<1x8xf32>
    %411 = arith.subf %388, %410 : vector<1x8xf32>
    %412 = arith.truncf %409 : vector<1x8xf32> to vector<1x8xbf16>
    %cst_266 = arith.constant dense<0.000000e+00> : vector<1x128xf32>
    %413 = tpu.matmul %412, %9, %cst_266 {dimension_numbers = #tpu.dot_dimension_numbers<[1], [0], [0], [1], [0, 0, 1, 1], [], []>} : vector<1x8xbf16>, vector<8x128xbf16>, vector<1x128xf32> -> vector<1x128xf32>
    %414 = arith.truncf %411 : vector<1x8xf32> to vector<1x8xbf16>
    %cst_267 = arith.constant dense<0.000000e+00> : vector<1x128xf32>
    %415 = tpu.matmul %414, %9, %cst_267 {dimension_numbers = #tpu.dot_dimension_numbers<[1], [0], [0], [1], [0, 0, 1, 1], [], []>} : vector<1x8xbf16>, vector<8x128xbf16>, vector<1x128xf32> -> vector<1x128xf32>
    %416 = vector.broadcast %413 : vector<1x128xf32> to vector<32x128xf32>
    %417 = arith.mulf %384, %416 : vector<32x128xf32>
    %418 = vector.broadcast %415 : vector<1x128xf32> to vector<32x128xf32>
    %419 = arith.addf %417, %418 : vector<32x128xf32>
    %420 = arith.truncf %419 : vector<32x128xf32> to vector<32x128xbf16>
    %c0_268 = arith.constant 0 : index
    %c0_269 = arith.constant 0 : index
    %421 = vector.load %arg25[%c0_268, %c0_269] : memref<128x64xbf16, #tpu.memory_space<vmem>>, vector<128x64xbf16>
    %cst_270 = arith.constant dense<0.000000e+00> : vector<32x64xf32>
    %422 = tpu.matmul %420, %421, %cst_270 {dimension_numbers = #tpu.dot_dimension_numbers<[1], [0], [0], [1], [0, 0, 1, 1], [], []>} : vector<32x128xbf16>, vector<128x64xbf16>, vector<32x64xf32> -> vector<32x64xf32>
    %cst_271 = arith.constant dense<0xFF800000> : vector<32xf32>
    %423 = vector.multi_reduction <maximumf>, %422, %cst_271 [1] : vector<32x64xf32> to vector<32xf32>
    %424 = vector.shape_cast %423 : vector<32xf32> to vector<32x1xf32>
    %425 = vector.broadcast %424 : vector<32x1xf32> to vector<32x64xf32>
    %426 = arith.subf %422, %425 : vector<32x64xf32>
    %427 = math.exp %426 : vector<32x64xf32>
    %428 = arith.truncf %427 : vector<32x64xf32> to vector<32x64xbf16>
    %c0_272 = arith.constant 0 : index
    %c0_273 = arith.constant 0 : index
    %429 = vector.load %arg26[%c0_272, %c0_273] : memref<64x64xbf16, #tpu.memory_space<vmem>>, vector<64x64xbf16>
    %cst_274 = arith.constant dense<0.000000e+00> : vector<32x64xf32>
    %430 = tpu.matmul %428, %429, %cst_274 {dimension_numbers = #tpu.dot_dimension_numbers<[1], [0], [0], [1], [0, 0, 1, 1], [], []>} : vector<32x64xbf16>, vector<64x64xbf16>, vector<32x64xf32> -> vector<32x64xf32>
    %cst_275 = arith.constant 9.99999968E-21 : f32
    %431 = vector.broadcast %cst_275 : f32 to vector<32x64xf32>
    %432 = arith.maximumf %430, %431 : vector<32x64xf32>
    %433 = tpu.reciprocal %432 {approx = true} : vector<32x64xf32> -> vector<32x64xf32>
    %434 = arith.mulf %427, %433 : vector<32x64xf32>
    %c0_276 = arith.constant 0 : index
    %c0_277 = arith.constant 0 : index
    %c0_278 = arith.constant 0 : index
    %435 = vector.load %arg29[%c0_276, %c0_277, %c0_278] : memref<2x1x128xf32, #tpu.memory_space<vmem>>, vector<1x1x128xf32>
    %436 = vector.shape_cast %435 : vector<1x1x128xf32> to vector<1x128xf32>
    %437 = arith.truncf %434 : vector<32x64xf32> to vector<32x64xbf16>
    %c0_279 = arith.constant 0 : index
    %c0_280 = arith.constant 0 : index
    %c0_281 = arith.constant 0 : index
    %438 = vector.load %arg27[%c0_279, %c0_280, %c0_281] : memref<3x64x128xbf16, #tpu.memory_space<vmem>>, vector<1x64x128xbf16>
    %439 = vector.shape_cast %438 : vector<1x64x128xbf16> to vector<64x128xbf16>
    %cst_282 = arith.constant dense<0.000000e+00> : vector<32x128xf32>
    %440 = tpu.matmul %437, %439, %cst_282 {dimension_numbers = #tpu.dot_dimension_numbers<[1], [0], [0], [1], [0, 0, 1, 1], [], []>} : vector<32x64xbf16>, vector<64x128xbf16>, vector<32x128xf32> -> vector<32x128xf32>
    %c1_283 = arith.constant 1 : index
    %c0_284 = arith.constant 0 : index
    %c0_285 = arith.constant 0 : index
    %441 = vector.load %arg27[%c1_283, %c0_284, %c0_285] : memref<3x64x128xbf16, #tpu.memory_space<vmem>>, vector<1x64x128xbf16>
    %442 = vector.shape_cast %441 : vector<1x64x128xbf16> to vector<64x128xbf16>
    %cst_286 = arith.constant dense<0.000000e+00> : vector<32x128xf32>
    %443 = tpu.matmul %437, %442, %cst_286 {dimension_numbers = #tpu.dot_dimension_numbers<[1], [0], [0], [1], [0, 0, 1, 1], [], []>} : vector<32x64xbf16>, vector<64x128xbf16>, vector<32x128xf32> -> vector<32x128xf32>
    %c2_287 = arith.constant 2 : index
    %c0_288 = arith.constant 0 : index
    %c0_289 = arith.constant 0 : index
    %444 = vector.load %arg27[%c2_287, %c0_288, %c0_289] : memref<3x64x128xbf16, #tpu.memory_space<vmem>>, vector<1x64x128xbf16>
    %445 = vector.shape_cast %444 : vector<1x64x128xbf16> to vector<64x128xbf16>
    %cst_290 = arith.constant dense<0.000000e+00> : vector<32x128xf32>
    %446 = tpu.matmul %437, %445, %cst_290 {dimension_numbers = #tpu.dot_dimension_numbers<[1], [0], [0], [1], [0, 0, 1, 1], [], []>} : vector<32x64xbf16>, vector<64x128xbf16>, vector<32x128xf32> -> vector<32x128xf32>
    %c1_i32_291 = arith.constant 1 : i32
    %447 = tpu.dynamic_rotate %440 by %c1_i32_291 dim 0 : vector<32x128xf32>, i32 -> vector<32x128xf32>
    %c31_i32_292 = arith.constant 31 : i32
    %448 = tpu.dynamic_rotate %446 by %c31_i32_292 dim 0 : vector<32x128xf32>, i32 -> vector<32x128xf32>
    %449 = vector.broadcast %1 : vector<32x1xf32> to vector<32x128xf32>
    %450 = arith.mulf %449, %447 : vector<32x128xf32>
    %451 = arith.addf %443, %450 : vector<32x128xf32>
    %452 = vector.broadcast %3 : vector<32x1xf32> to vector<32x128xf32>
    %453 = arith.mulf %452, %448 : vector<32x128xf32>
    %454 = arith.addf %451, %453 : vector<32x128xf32>
    %455 = vector.broadcast %436 : vector<1x128xf32> to vector<32x128xf32>
    %456 = arith.addf %454, %455 : vector<32x128xf32>
    %cst_293 = arith.constant 0.000000e+00 : f32
    %457 = vector.broadcast %cst_293 : f32 to vector<32x128xf32>
    %458 = arith.maximumf %456, %457 : vector<32x128xf32>
    %c0_294 = arith.constant 0 : index
    %c0_295 = arith.constant 0 : index
    %c0_296 = arith.constant 0 : index
    %459 = vector.load %arg30[%c0_294, %c0_295, %c0_296] : memref<4x1x8xf32, #tpu.memory_space<vmem>>, vector<1x1x8xf32>
    %460 = vector.shape_cast %459 : vector<1x1x8xf32> to vector<1x8xf32>
    %c1_297 = arith.constant 1 : index
    %c0_298 = arith.constant 0 : index
    %c0_299 = arith.constant 0 : index
    %461 = vector.load %arg30[%c1_297, %c0_298, %c0_299] : memref<4x1x8xf32, #tpu.memory_space<vmem>>, vector<1x1x8xf32>
    %462 = vector.shape_cast %461 : vector<1x1x8xf32> to vector<1x8xf32>
    %cst_300 = arith.constant dense<0.000000e+00> : vector<128xf32>
    %463 = vector.multi_reduction <add>, %458, %cst_300 [0] : vector<32x128xf32> to vector<128xf32>
    %464 = vector.shape_cast %463 : vector<128xf32> to vector<1x128xf32>
    %465 = arith.mulf %458, %458 : vector<32x128xf32>
    %cst_301 = arith.constant dense<0.000000e+00> : vector<128xf32>
    %466 = vector.multi_reduction <add>, %465, %cst_301 [0] : vector<32x128xf32> to vector<128xf32>
    %467 = vector.shape_cast %466 : vector<128xf32> to vector<1x128xf32>
    %468 = arith.truncf %464 : vector<1x128xf32> to vector<1x128xbf16>
    %cst_302 = arith.constant dense<0.000000e+00> : vector<1x8xf32>
    %469 = tpu.matmul %468, %8, %cst_302 {dimension_numbers = #tpu.dot_dimension_numbers<[1], [0], [0], [1], [0, 0, 1, 1], [], []>} : vector<1x128xbf16>, vector<128x8xbf16>, vector<1x8xf32> -> vector<1x8xf32>
    %470 = arith.truncf %467 : vector<1x128xf32> to vector<1x128xbf16>
    %cst_303 = arith.constant dense<0.000000e+00> : vector<1x8xf32>
    %471 = tpu.matmul %470, %8, %cst_303 {dimension_numbers = #tpu.dot_dimension_numbers<[1], [0], [0], [1], [0, 0, 1, 1], [], []>} : vector<1x128xbf16>, vector<128x8xbf16>, vector<1x8xf32> -> vector<1x8xf32>
    %cst_304 = arith.constant 0.001953125 : f32
    %472 = vector.broadcast %cst_304 : f32 to vector<1x8xf32>
    %473 = arith.mulf %469, %472 : vector<1x8xf32>
    %cst_305 = arith.constant 0.001953125 : f32
    %474 = vector.broadcast %cst_305 : f32 to vector<1x8xf32>
    %475 = arith.mulf %471, %474 : vector<1x8xf32>
    %476 = arith.mulf %473, %473 : vector<1x8xf32>
    %477 = arith.subf %475, %476 : vector<1x8xf32>
    %cst_306 = arith.constant 0.000000e+00 : f32
    %478 = vector.broadcast %cst_306 : f32 to vector<1x8xf32>
    %479 = arith.maximumf %477, %478 : vector<1x8xf32>
    %cst_307 = arith.constant 9.99999974E-6 : f32
    %480 = vector.broadcast %cst_307 : f32 to vector<1x8xf32>
    %481 = arith.addf %479, %480 : vector<1x8xf32>
    %482 = math.rsqrt %481 : vector<1x8xf32>
    %483 = arith.mulf %460, %482 : vector<1x8xf32>
    %484 = arith.mulf %473, %483 : vector<1x8xf32>
    %485 = arith.subf %462, %484 : vector<1x8xf32>
    %486 = arith.truncf %483 : vector<1x8xf32> to vector<1x8xbf16>
    %cst_308 = arith.constant dense<0.000000e+00> : vector<1x128xf32>
    %487 = tpu.matmul %486, %9, %cst_308 {dimension_numbers = #tpu.dot_dimension_numbers<[1], [0], [0], [1], [0, 0, 1, 1], [], []>} : vector<1x8xbf16>, vector<8x128xbf16>, vector<1x128xf32> -> vector<1x128xf32>
    %488 = arith.truncf %485 : vector<1x8xf32> to vector<1x8xbf16>
    %cst_309 = arith.constant dense<0.000000e+00> : vector<1x128xf32>
    %489 = tpu.matmul %488, %9, %cst_309 {dimension_numbers = #tpu.dot_dimension_numbers<[1], [0], [0], [1], [0, 0, 1, 1], [], []>} : vector<1x8xbf16>, vector<8x128xbf16>, vector<1x128xf32> -> vector<1x128xf32>
    %490 = vector.broadcast %487 : vector<1x128xf32> to vector<32x128xf32>
    %491 = arith.mulf %458, %490 : vector<32x128xf32>
    %492 = vector.broadcast %489 : vector<1x128xf32> to vector<32x128xf32>
    %493 = arith.addf %491, %492 : vector<32x128xf32>
    %c1_310 = arith.constant 1 : index
    %c0_311 = arith.constant 0 : index
    %c0_312 = arith.constant 0 : index
    %494 = vector.load %arg29[%c1_310, %c0_311, %c0_312] : memref<2x1x128xf32, #tpu.memory_space<vmem>>, vector<1x1x128xf32>
    %495 = vector.shape_cast %494 : vector<1x1x128xf32> to vector<1x128xf32>
    %496 = arith.truncf %493 : vector<32x128xf32> to vector<32x128xbf16>
    %c0_313 = arith.constant 0 : index
    %c0_314 = arith.constant 0 : index
    %c0_315 = arith.constant 0 : index
    %497 = vector.load %arg28[%c0_313, %c0_314, %c0_315] : memref<3x128x128xbf16, #tpu.memory_space<vmem>>, vector<1x128x128xbf16>
    %498 = vector.shape_cast %497 : vector<1x128x128xbf16> to vector<128x128xbf16>
    %cst_316 = arith.constant dense<0.000000e+00> : vector<32x128xf32>
    %499 = tpu.matmul %496, %498, %cst_316 {dimension_numbers = #tpu.dot_dimension_numbers<[1], [0], [0], [1], [0, 0, 1, 1], [], []>} : vector<32x128xbf16>, vector<128x128xbf16>, vector<32x128xf32> -> vector<32x128xf32>
    %c1_317 = arith.constant 1 : index
    %c0_318 = arith.constant 0 : index
    %c0_319 = arith.constant 0 : index
    %500 = vector.load %arg28[%c1_317, %c0_318, %c0_319] : memref<3x128x128xbf16, #tpu.memory_space<vmem>>, vector<1x128x128xbf16>
    %501 = vector.shape_cast %500 : vector<1x128x128xbf16> to vector<128x128xbf16>
    %cst_320 = arith.constant dense<0.000000e+00> : vector<32x128xf32>
    %502 = tpu.matmul %496, %501, %cst_320 {dimension_numbers = #tpu.dot_dimension_numbers<[1], [0], [0], [1], [0, 0, 1, 1], [], []>} : vector<32x128xbf16>, vector<128x128xbf16>, vector<32x128xf32> -> vector<32x128xf32>
    %c2_321 = arith.constant 2 : index
    %c0_322 = arith.constant 0 : index
    %c0_323 = arith.constant 0 : index
    %503 = vector.load %arg28[%c2_321, %c0_322, %c0_323] : memref<3x128x128xbf16, #tpu.memory_space<vmem>>, vector<1x128x128xbf16>
    %504 = vector.shape_cast %503 : vector<1x128x128xbf16> to vector<128x128xbf16>
    %cst_324 = arith.constant dense<0.000000e+00> : vector<32x128xf32>
    %505 = tpu.matmul %496, %504, %cst_324 {dimension_numbers = #tpu.dot_dimension_numbers<[1], [0], [0], [1], [0, 0, 1, 1], [], []>} : vector<32x128xbf16>, vector<128x128xbf16>, vector<32x128xf32> -> vector<32x128xf32>
    %c1_i32_325 = arith.constant 1 : i32
    %506 = tpu.dynamic_rotate %499 by %c1_i32_325 dim 0 : vector<32x128xf32>, i32 -> vector<32x128xf32>
    %c31_i32_326 = arith.constant 31 : i32
    %507 = tpu.dynamic_rotate %505 by %c31_i32_326 dim 0 : vector<32x128xf32>, i32 -> vector<32x128xf32>
    %508 = vector.broadcast %1 : vector<32x1xf32> to vector<32x128xf32>
    %509 = arith.mulf %508, %506 : vector<32x128xf32>
    %510 = arith.addf %502, %509 : vector<32x128xf32>
    %511 = vector.broadcast %3 : vector<32x1xf32> to vector<32x128xf32>
    %512 = arith.mulf %511, %507 : vector<32x128xf32>
    %513 = arith.addf %510, %512 : vector<32x128xf32>
    %514 = vector.broadcast %495 : vector<1x128xf32> to vector<32x128xf32>
    %515 = arith.addf %513, %514 : vector<32x128xf32>
    %cst_327 = arith.constant 0.000000e+00 : f32
    %516 = vector.broadcast %cst_327 : f32 to vector<32x128xf32>
    %517 = arith.maximumf %515, %516 : vector<32x128xf32>
    %c2_328 = arith.constant 2 : index
    %c0_329 = arith.constant 0 : index
    %c0_330 = arith.constant 0 : index
    %518 = vector.load %arg30[%c2_328, %c0_329, %c0_330] : memref<4x1x8xf32, #tpu.memory_space<vmem>>, vector<1x1x8xf32>
    %519 = vector.shape_cast %518 : vector<1x1x8xf32> to vector<1x8xf32>
    %c3_331 = arith.constant 3 : index
    %c0_332 = arith.constant 0 : index
    %c0_333 = arith.constant 0 : index
    %520 = vector.load %arg30[%c3_331, %c0_332, %c0_333] : memref<4x1x8xf32, #tpu.memory_space<vmem>>, vector<1x1x8xf32>
    %521 = vector.shape_cast %520 : vector<1x1x8xf32> to vector<1x8xf32>
    %cst_334 = arith.constant dense<0.000000e+00> : vector<128xf32>
    %522 = vector.multi_reduction <add>, %517, %cst_334 [0] : vector<32x128xf32> to vector<128xf32>
    %523 = vector.shape_cast %522 : vector<128xf32> to vector<1x128xf32>
    %524 = arith.mulf %517, %517 : vector<32x128xf32>
    %cst_335 = arith.constant dense<0.000000e+00> : vector<128xf32>
    %525 = vector.multi_reduction <add>, %524, %cst_335 [0] : vector<32x128xf32> to vector<128xf32>
    %526 = vector.shape_cast %525 : vector<128xf32> to vector<1x128xf32>
    %527 = arith.truncf %523 : vector<1x128xf32> to vector<1x128xbf16>
    %cst_336 = arith.constant dense<0.000000e+00> : vector<1x8xf32>
    %528 = tpu.matmul %527, %8, %cst_336 {dimension_numbers = #tpu.dot_dimension_numbers<[1], [0], [0], [1], [0, 0, 1, 1], [], []>} : vector<1x128xbf16>, vector<128x8xbf16>, vector<1x8xf32> -> vector<1x8xf32>
    %529 = arith.truncf %526 : vector<1x128xf32> to vector<1x128xbf16>
    %cst_337 = arith.constant dense<0.000000e+00> : vector<1x8xf32>
    %530 = tpu.matmul %529, %8, %cst_337 {dimension_numbers = #tpu.dot_dimension_numbers<[1], [0], [0], [1], [0, 0, 1, 1], [], []>} : vector<1x128xbf16>, vector<128x8xbf16>, vector<1x8xf32> -> vector<1x8xf32>
    %cst_338 = arith.constant 0.001953125 : f32
    %531 = vector.broadcast %cst_338 : f32 to vector<1x8xf32>
    %532 = arith.mulf %528, %531 : vector<1x8xf32>
    %cst_339 = arith.constant 0.001953125 : f32
    %533 = vector.broadcast %cst_339 : f32 to vector<1x8xf32>
    %534 = arith.mulf %530, %533 : vector<1x8xf32>
    %535 = arith.mulf %532, %532 : vector<1x8xf32>
    %536 = arith.subf %534, %535 : vector<1x8xf32>
    %cst_340 = arith.constant 0.000000e+00 : f32
    %537 = vector.broadcast %cst_340 : f32 to vector<1x8xf32>
    %538 = arith.maximumf %536, %537 : vector<1x8xf32>
    %cst_341 = arith.constant 9.99999974E-6 : f32
    %539 = vector.broadcast %cst_341 : f32 to vector<1x8xf32>
    %540 = arith.addf %538, %539 : vector<1x8xf32>
    %541 = math.rsqrt %540 : vector<1x8xf32>
    %542 = arith.mulf %519, %541 : vector<1x8xf32>
    %543 = arith.mulf %532, %542 : vector<1x8xf32>
    %544 = arith.subf %521, %543 : vector<1x8xf32>
    %545 = arith.truncf %542 : vector<1x8xf32> to vector<1x8xbf16>
    %cst_342 = arith.constant dense<0.000000e+00> : vector<1x128xf32>
    %546 = tpu.matmul %545, %9, %cst_342 {dimension_numbers = #tpu.dot_dimension_numbers<[1], [0], [0], [1], [0, 0, 1, 1], [], []>} : vector<1x8xbf16>, vector<8x128xbf16>, vector<1x128xf32> -> vector<1x128xf32>
    %547 = arith.truncf %544 : vector<1x8xf32> to vector<1x8xbf16>
    %cst_343 = arith.constant dense<0.000000e+00> : vector<1x128xf32>
    %548 = tpu.matmul %547, %9, %cst_343 {dimension_numbers = #tpu.dot_dimension_numbers<[1], [0], [0], [1], [0, 0, 1, 1], [], []>} : vector<1x8xbf16>, vector<8x128xbf16>, vector<1x128xf32> -> vector<1x128xf32>
    %549 = vector.broadcast %546 : vector<1x128xf32> to vector<32x128xf32>
    %550 = arith.mulf %517, %549 : vector<32x128xf32>
    %551 = vector.broadcast %548 : vector<1x128xf32> to vector<32x128xf32>
    %552 = arith.addf %550, %551 : vector<32x128xf32>
    %c31_i32_344 = arith.constant 31 : i32
    %553 = tpu.dynamic_rotate %552 by %c31_i32_344 dim 0 : vector<32x128xf32>, i32 -> vector<32x128xf32>
    %554 = arith.maximumf %552, %553 : vector<32x128xf32>
    %555 = arith.truncf %554 : vector<32x128xf32> to vector<32x128xbf16>
    %cst_345 = arith.constant dense<0.000000e+00> : vector<16x128xf32>
    %556 = tpu.matmul %12, %555, %cst_345 {dimension_numbers = #tpu.dot_dimension_numbers<[1], [0], [0], [1], [0, 0, 1, 1], [], []>} : vector<16x32xbf16>, vector<32x128xbf16>, vector<16x128xf32> -> vector<16x128xf32>
    %557 = arith.truncf %556 : vector<16x128xf32> to vector<16x128xbf16>
    %cst_346 = arith.constant dense<0.000000e+00> : vector<16x64xf32>
    %558 = tpu.matmul %557, %14, %cst_346 {dimension_numbers = #tpu.dot_dimension_numbers<[1], [0], [0], [1], [0, 0, 1, 1], [], []>} : vector<16x128xbf16>, vector<128x64xbf16>, vector<16x64xf32> -> vector<16x64xf32>
    %cst_347 = arith.constant dense<0.000000e+00> : vector<16x64xf32>
    %559 = tpu.matmul %557, %16, %cst_347 {dimension_numbers = #tpu.dot_dimension_numbers<[1], [0], [0], [1], [0, 0, 1, 1], [], []>} : vector<16x128xbf16>, vector<128x64xbf16>, vector<16x64xf32> -> vector<16x64xf32>
    %560 = arith.maximumf %558, %559 : vector<16x64xf32>
    %c0_348 = arith.constant 0 : index
    %c0_349 = arith.constant 0 : index
    %c0_350 = arith.constant 0 : index
    %561 = vector.load %arg33[%c0_348, %c0_349, %c0_350] : memref<2x1x64xf32, #tpu.memory_space<vmem>>, vector<1x1x64xf32>
    %562 = vector.shape_cast %561 : vector<1x1x64xf32> to vector<1x64xf32>
    %563 = arith.truncf %560 : vector<16x64xf32> to vector<16x64xbf16>
    %c0_351 = arith.constant 0 : index
    %c0_352 = arith.constant 0 : index
    %c0_353 = arith.constant 0 : index
    %564 = vector.load %arg31[%c0_351, %c0_352, %c0_353] : memref<3x64x64xbf16, #tpu.memory_space<vmem>>, vector<1x64x64xbf16>
    %565 = vector.shape_cast %564 : vector<1x64x64xbf16> to vector<64x64xbf16>
    %cst_354 = arith.constant dense<0.000000e+00> : vector<16x64xf32>
    %566 = tpu.matmul %563, %565, %cst_354 {dimension_numbers = #tpu.dot_dimension_numbers<[1], [0], [0], [1], [0, 0, 1, 1], [], []>} : vector<16x64xbf16>, vector<64x64xbf16>, vector<16x64xf32> -> vector<16x64xf32>
    %c1_355 = arith.constant 1 : index
    %c0_356 = arith.constant 0 : index
    %c0_357 = arith.constant 0 : index
    %567 = vector.load %arg31[%c1_355, %c0_356, %c0_357] : memref<3x64x64xbf16, #tpu.memory_space<vmem>>, vector<1x64x64xbf16>
    %568 = vector.shape_cast %567 : vector<1x64x64xbf16> to vector<64x64xbf16>
    %cst_358 = arith.constant dense<0.000000e+00> : vector<16x64xf32>
    %569 = tpu.matmul %563, %568, %cst_358 {dimension_numbers = #tpu.dot_dimension_numbers<[1], [0], [0], [1], [0, 0, 1, 1], [], []>} : vector<16x64xbf16>, vector<64x64xbf16>, vector<16x64xf32> -> vector<16x64xf32>
    %c2_359 = arith.constant 2 : index
    %c0_360 = arith.constant 0 : index
    %c0_361 = arith.constant 0 : index
    %570 = vector.load %arg31[%c2_359, %c0_360, %c0_361] : memref<3x64x64xbf16, #tpu.memory_space<vmem>>, vector<1x64x64xbf16>
    %571 = vector.shape_cast %570 : vector<1x64x64xbf16> to vector<64x64xbf16>
    %cst_362 = arith.constant dense<0.000000e+00> : vector<16x64xf32>
    %572 = tpu.matmul %563, %571, %cst_362 {dimension_numbers = #tpu.dot_dimension_numbers<[1], [0], [0], [1], [0, 0, 1, 1], [], []>} : vector<16x64xbf16>, vector<64x64xbf16>, vector<16x64xf32> -> vector<16x64xf32>
    %c1_i32_363 = arith.constant 1 : i32
    %573 = tpu.dynamic_rotate %566 by %c1_i32_363 dim 0 : vector<16x64xf32>, i32 -> vector<16x64xf32>
    %c15_i32_364 = arith.constant 15 : i32
    %574 = tpu.dynamic_rotate %572 by %c15_i32_364 dim 0 : vector<16x64xf32>, i32 -> vector<16x64xf32>
    %575 = vector.broadcast %5 : vector<16x1xf32> to vector<16x64xf32>
    %576 = arith.mulf %575, %573 : vector<16x64xf32>
    %577 = arith.addf %569, %576 : vector<16x64xf32>
    %578 = vector.broadcast %7 : vector<16x1xf32> to vector<16x64xf32>
    %579 = arith.mulf %578, %574 : vector<16x64xf32>
    %580 = arith.addf %577, %579 : vector<16x64xf32>
    %581 = vector.broadcast %562 : vector<1x64xf32> to vector<16x64xf32>
    %582 = arith.addf %580, %581 : vector<16x64xf32>
    %cst_365 = arith.constant 0.000000e+00 : f32
    %583 = vector.broadcast %cst_365 : f32 to vector<16x64xf32>
    %584 = arith.maximumf %582, %583 : vector<16x64xf32>
    %c0_366 = arith.constant 0 : index
    %c0_367 = arith.constant 0 : index
    %c0_368 = arith.constant 0 : index
    %585 = vector.load %arg34[%c0_366, %c0_367, %c0_368] : memref<4x1x8xf32, #tpu.memory_space<vmem>>, vector<1x1x8xf32>
    %586 = vector.shape_cast %585 : vector<1x1x8xf32> to vector<1x8xf32>
    %c1_369 = arith.constant 1 : index
    %c0_370 = arith.constant 0 : index
    %c0_371 = arith.constant 0 : index
    %587 = vector.load %arg34[%c1_369, %c0_370, %c0_371] : memref<4x1x8xf32, #tpu.memory_space<vmem>>, vector<1x1x8xf32>
    %588 = vector.shape_cast %587 : vector<1x1x8xf32> to vector<1x8xf32>
    %cst_372 = arith.constant dense<0.000000e+00> : vector<64xf32>
    %589 = vector.multi_reduction <add>, %584, %cst_372 [0] : vector<16x64xf32> to vector<64xf32>
    %590 = vector.shape_cast %589 : vector<64xf32> to vector<1x64xf32>
    %591 = arith.mulf %584, %584 : vector<16x64xf32>
    %cst_373 = arith.constant dense<0.000000e+00> : vector<64xf32>
    %592 = vector.multi_reduction <add>, %591, %cst_373 [0] : vector<16x64xf32> to vector<64xf32>
    %593 = vector.shape_cast %592 : vector<64xf32> to vector<1x64xf32>
    %594 = arith.truncf %590 : vector<1x64xf32> to vector<1x64xbf16>
    %cst_374 = arith.constant dense<0.000000e+00> : vector<1x8xf32>
    %595 = tpu.matmul %594, %10, %cst_374 {dimension_numbers = #tpu.dot_dimension_numbers<[1], [0], [0], [1], [0, 0, 1, 1], [], []>} : vector<1x64xbf16>, vector<64x8xbf16>, vector<1x8xf32> -> vector<1x8xf32>
    %596 = arith.truncf %593 : vector<1x64xf32> to vector<1x64xbf16>
    %cst_375 = arith.constant dense<0.000000e+00> : vector<1x8xf32>
    %597 = tpu.matmul %596, %10, %cst_375 {dimension_numbers = #tpu.dot_dimension_numbers<[1], [0], [0], [1], [0, 0, 1, 1], [], []>} : vector<1x64xbf16>, vector<64x8xbf16>, vector<1x8xf32> -> vector<1x8xf32>
    %cst_376 = arith.constant 7.812500e-03 : f32
    %598 = vector.broadcast %cst_376 : f32 to vector<1x8xf32>
    %599 = arith.mulf %595, %598 : vector<1x8xf32>
    %cst_377 = arith.constant 7.812500e-03 : f32
    %600 = vector.broadcast %cst_377 : f32 to vector<1x8xf32>
    %601 = arith.mulf %597, %600 : vector<1x8xf32>
    %602 = arith.mulf %599, %599 : vector<1x8xf32>
    %603 = arith.subf %601, %602 : vector<1x8xf32>
    %cst_378 = arith.constant 0.000000e+00 : f32
    %604 = vector.broadcast %cst_378 : f32 to vector<1x8xf32>
    %605 = arith.maximumf %603, %604 : vector<1x8xf32>
    %cst_379 = arith.constant 9.99999974E-6 : f32
    %606 = vector.broadcast %cst_379 : f32 to vector<1x8xf32>
    %607 = arith.addf %605, %606 : vector<1x8xf32>
    %608 = math.rsqrt %607 : vector<1x8xf32>
    %609 = arith.mulf %586, %608 : vector<1x8xf32>
    %610 = arith.mulf %599, %609 : vector<1x8xf32>
    %611 = arith.subf %588, %610 : vector<1x8xf32>
    %612 = arith.truncf %609 : vector<1x8xf32> to vector<1x8xbf16>
    %cst_380 = arith.constant dense<0.000000e+00> : vector<1x64xf32>
    %613 = tpu.matmul %612, %11, %cst_380 {dimension_numbers = #tpu.dot_dimension_numbers<[1], [0], [0], [1], [0, 0, 1, 1], [], []>} : vector<1x8xbf16>, vector<8x64xbf16>, vector<1x64xf32> -> vector<1x64xf32>
    %614 = arith.truncf %611 : vector<1x8xf32> to vector<1x8xbf16>
    %cst_381 = arith.constant dense<0.000000e+00> : vector<1x64xf32>
    %615 = tpu.matmul %614, %11, %cst_381 {dimension_numbers = #tpu.dot_dimension_numbers<[1], [0], [0], [1], [0, 0, 1, 1], [], []>} : vector<1x8xbf16>, vector<8x64xbf16>, vector<1x64xf32> -> vector<1x64xf32>
    %616 = vector.broadcast %613 : vector<1x64xf32> to vector<16x64xf32>
    %617 = arith.mulf %584, %616 : vector<16x64xf32>
    %618 = vector.broadcast %615 : vector<1x64xf32> to vector<16x64xf32>
    %619 = arith.addf %617, %618 : vector<16x64xf32>
    %c1_382 = arith.constant 1 : index
    %c0_383 = arith.constant 0 : index
    %c0_384 = arith.constant 0 : index
    %620 = vector.load %arg33[%c1_382, %c0_383, %c0_384] : memref<2x1x64xf32, #tpu.memory_space<vmem>>, vector<1x1x64xf32>
    %621 = vector.shape_cast %620 : vector<1x1x64xf32> to vector<1x64xf32>
    %622 = arith.truncf %619 : vector<16x64xf32> to vector<16x64xbf16>
    %c0_385 = arith.constant 0 : index
    %c0_386 = arith.constant 0 : index
    %c0_387 = arith.constant 0 : index
    %623 = vector.load %arg32[%c0_385, %c0_386, %c0_387] : memref<3x64x64xbf16, #tpu.memory_space<vmem>>, vector<1x64x64xbf16>
    %624 = vector.shape_cast %623 : vector<1x64x64xbf16> to vector<64x64xbf16>
    %cst_388 = arith.constant dense<0.000000e+00> : vector<16x64xf32>
    %625 = tpu.matmul %622, %624, %cst_388 {dimension_numbers = #tpu.dot_dimension_numbers<[1], [0], [0], [1], [0, 0, 1, 1], [], []>} : vector<16x64xbf16>, vector<64x64xbf16>, vector<16x64xf32> -> vector<16x64xf32>
    %c1_389 = arith.constant 1 : index
    %c0_390 = arith.constant 0 : index
    %c0_391 = arith.constant 0 : index
    %626 = vector.load %arg32[%c1_389, %c0_390, %c0_391] : memref<3x64x64xbf16, #tpu.memory_space<vmem>>, vector<1x64x64xbf16>
    %627 = vector.shape_cast %626 : vector<1x64x64xbf16> to vector<64x64xbf16>
    %cst_392 = arith.constant dense<0.000000e+00> : vector<16x64xf32>
    %628 = tpu.matmul %622, %627, %cst_392 {dimension_numbers = #tpu.dot_dimension_numbers<[1], [0], [0], [1], [0, 0, 1, 1], [], []>} : vector<16x64xbf16>, vector<64x64xbf16>, vector<16x64xf32> -> vector<16x64xf32>
    %c2_393 = arith.constant 2 : index
    %c0_394 = arith.constant 0 : index
    %c0_395 = arith.constant 0 : index
    %629 = vector.load %arg32[%c2_393, %c0_394, %c0_395] : memref<3x64x64xbf16, #tpu.memory_space<vmem>>, vector<1x64x64xbf16>
    %630 = vector.shape_cast %629 : vector<1x64x64xbf16> to vector<64x64xbf16>
    %cst_396 = arith.constant dense<0.000000e+00> : vector<16x64xf32>
    %631 = tpu.matmul %622, %630, %cst_396 {dimension_numbers = #tpu.dot_dimension_numbers<[1], [0], [0], [1], [0, 0, 1, 1], [], []>} : vector<16x64xbf16>, vector<64x64xbf16>, vector<16x64xf32> -> vector<16x64xf32>
    %c1_i32_397 = arith.constant 1 : i32
    %632 = tpu.dynamic_rotate %625 by %c1_i32_397 dim 0 : vector<16x64xf32>, i32 -> vector<16x64xf32>
    %c15_i32_398 = arith.constant 15 : i32
    %633 = tpu.dynamic_rotate %631 by %c15_i32_398 dim 0 : vector<16x64xf32>, i32 -> vector<16x64xf32>
    %634 = vector.broadcast %5 : vector<16x1xf32> to vector<16x64xf32>
    %635 = arith.mulf %634, %632 : vector<16x64xf32>
    %636 = arith.addf %628, %635 : vector<16x64xf32>
    %637 = vector.broadcast %7 : vector<16x1xf32> to vector<16x64xf32>
    %638 = arith.mulf %637, %633 : vector<16x64xf32>
    %639 = arith.addf %636, %638 : vector<16x64xf32>
    %640 = vector.broadcast %621 : vector<1x64xf32> to vector<16x64xf32>
    %641 = arith.addf %639, %640 : vector<16x64xf32>
    %cst_399 = arith.constant 0.000000e+00 : f32
    %642 = vector.broadcast %cst_399 : f32 to vector<16x64xf32>
    %643 = arith.maximumf %641, %642 : vector<16x64xf32>
    %c2_400 = arith.constant 2 : index
    %c0_401 = arith.constant 0 : index
    %c0_402 = arith.constant 0 : index
    %644 = vector.load %arg34[%c2_400, %c0_401, %c0_402] : memref<4x1x8xf32, #tpu.memory_space<vmem>>, vector<1x1x8xf32>
    %645 = vector.shape_cast %644 : vector<1x1x8xf32> to vector<1x8xf32>
    %c3_403 = arith.constant 3 : index
    %c0_404 = arith.constant 0 : index
    %c0_405 = arith.constant 0 : index
    %646 = vector.load %arg34[%c3_403, %c0_404, %c0_405] : memref<4x1x8xf32, #tpu.memory_space<vmem>>, vector<1x1x8xf32>
    %647 = vector.shape_cast %646 : vector<1x1x8xf32> to vector<1x8xf32>
    %cst_406 = arith.constant dense<0.000000e+00> : vector<64xf32>
    %648 = vector.multi_reduction <add>, %643, %cst_406 [0] : vector<16x64xf32> to vector<64xf32>
    %649 = vector.shape_cast %648 : vector<64xf32> to vector<1x64xf32>
    %650 = arith.mulf %643, %643 : vector<16x64xf32>
    %cst_407 = arith.constant dense<0.000000e+00> : vector<64xf32>
    %651 = vector.multi_reduction <add>, %650, %cst_407 [0] : vector<16x64xf32> to vector<64xf32>
    %652 = vector.shape_cast %651 : vector<64xf32> to vector<1x64xf32>
    %653 = arith.truncf %649 : vector<1x64xf32> to vector<1x64xbf16>
    %cst_408 = arith.constant dense<0.000000e+00> : vector<1x8xf32>
    %654 = tpu.matmul %653, %10, %cst_408 {dimension_numbers = #tpu.dot_dimension_numbers<[1], [0], [0], [1], [0, 0, 1, 1], [], []>} : vector<1x64xbf16>, vector<64x8xbf16>, vector<1x8xf32> -> vector<1x8xf32>
    %655 = arith.truncf %652 : vector<1x64xf32> to vector<1x64xbf16>
    %cst_409 = arith.constant dense<0.000000e+00> : vector<1x8xf32>
    %656 = tpu.matmul %655, %10, %cst_409 {dimension_numbers = #tpu.dot_dimension_numbers<[1], [0], [0], [1], [0, 0, 1, 1], [], []>} : vector<1x64xbf16>, vector<64x8xbf16>, vector<1x8xf32> -> vector<1x8xf32>
    %cst_410 = arith.constant 7.812500e-03 : f32
    %657 = vector.broadcast %cst_410 : f32 to vector<1x8xf32>
    %658 = arith.mulf %654, %657 : vector<1x8xf32>
    %cst_411 = arith.constant 7.812500e-03 : f32
    %659 = vector.broadcast %cst_411 : f32 to vector<1x8xf32>
    %660 = arith.mulf %656, %659 : vector<1x8xf32>
    %661 = arith.mulf %658, %658 : vector<1x8xf32>
    %662 = arith.subf %660, %661 : vector<1x8xf32>
    %cst_412 = arith.constant 0.000000e+00 : f32
    %663 = vector.broadcast %cst_412 : f32 to vector<1x8xf32>
    %664 = arith.maximumf %662, %663 : vector<1x8xf32>
    %cst_413 = arith.constant 9.99999974E-6 : f32
    %665 = vector.broadcast %cst_413 : f32 to vector<1x8xf32>
    %666 = arith.addf %664, %665 : vector<1x8xf32>
    %667 = math.rsqrt %666 : vector<1x8xf32>
    %668 = arith.mulf %645, %667 : vector<1x8xf32>
    %669 = arith.mulf %658, %668 : vector<1x8xf32>
    %670 = arith.subf %647, %669 : vector<1x8xf32>
    %671 = arith.truncf %668 : vector<1x8xf32> to vector<1x8xbf16>
    %cst_414 = arith.constant dense<0.000000e+00> : vector<1x64xf32>
    %672 = tpu.matmul %671, %11, %cst_414 {dimension_numbers = #tpu.dot_dimension_numbers<[1], [0], [0], [1], [0, 0, 1, 1], [], []>} : vector<1x8xbf16>, vector<8x64xbf16>, vector<1x64xf32> -> vector<1x64xf32>
    %673 = arith.truncf %670 : vector<1x8xf32> to vector<1x8xbf16>
    %cst_415 = arith.constant dense<0.000000e+00> : vector<1x64xf32>
    %674 = tpu.matmul %673, %11, %cst_415 {dimension_numbers = #tpu.dot_dimension_numbers<[1], [0], [0], [1], [0, 0, 1, 1], [], []>} : vector<1x8xbf16>, vector<8x64xbf16>, vector<1x64xf32> -> vector<1x64xf32>
    %675 = vector.broadcast %672 : vector<1x64xf32> to vector<16x64xf32>
    %676 = arith.mulf %643, %675 : vector<16x64xf32>
    %677 = vector.broadcast %674 : vector<1x64xf32> to vector<16x64xf32>
    %678 = arith.addf %676, %677 : vector<16x64xf32>
    %679 = arith.truncf %678 : vector<16x64xf32> to vector<16x64xbf16>
    %c0_416 = arith.constant 0 : index
    %c0_417 = arith.constant 0 : index
    %680 = vector.load %arg36[%c0_416, %c0_417] : memref<1x128xf32, #tpu.memory_space<vmem>>, vector<1x128xf32>
    %c0_418 = arith.constant 0 : index
    %c0_419 = arith.constant 0 : index
    %c0_420 = arith.constant 0 : index
    %681 = vector.load %arg9[%c0_418, %c0_419, %c0_420] : memref<3x32x16xbf16, #tpu.memory_space<vmem>>, vector<1x32x16xbf16>
    %682 = vector.shape_cast %681 : vector<1x32x16xbf16> to vector<32x16xbf16>
    %c0_421 = arith.constant 0 : index
    %c0_422 = arith.constant 0 : index
    %c0_423 = arith.constant 0 : index
    %683 = vector.load %arg35[%c0_421, %c0_422, %c0_423] : memref<3x64x128xbf16, #tpu.memory_space<vmem>>, vector<1x64x128xbf16>
    %684 = vector.shape_cast %683 : vector<1x64x128xbf16> to vector<64x128xbf16>
    %cst_424 = arith.constant dense<0.000000e+00> : vector<16x128xf32>
    %685 = tpu.matmul %679, %684, %cst_424 {dimension_numbers = #tpu.dot_dimension_numbers<[1], [0], [0], [1], [0, 0, 1, 1], [], []>} : vector<16x64xbf16>, vector<64x128xbf16>, vector<16x128xf32> -> vector<16x128xf32>
    %686 = arith.truncf %685 : vector<16x128xf32> to vector<16x128xbf16>
    %cst_425 = arith.constant dense<0.000000e+00> : vector<32x128xf32>
    %687 = tpu.matmul %682, %686, %cst_425 {dimension_numbers = #tpu.dot_dimension_numbers<[1], [0], [0], [1], [0, 0, 1, 1], [], []>} : vector<32x16xbf16>, vector<16x128xbf16>, vector<32x128xf32> -> vector<32x128xf32>
    %688 = vector.broadcast %680 : vector<1x128xf32> to vector<32x128xf32>
    %689 = arith.addf %688, %687 : vector<32x128xf32>
    %c1_426 = arith.constant 1 : index
    %c0_427 = arith.constant 0 : index
    %c0_428 = arith.constant 0 : index
    %690 = vector.load %arg9[%c1_426, %c0_427, %c0_428] : memref<3x32x16xbf16, #tpu.memory_space<vmem>>, vector<1x32x16xbf16>
    %691 = vector.shape_cast %690 : vector<1x32x16xbf16> to vector<32x16xbf16>
    %c1_429 = arith.constant 1 : index
    %c0_430 = arith.constant 0 : index
    %c0_431 = arith.constant 0 : index
    %692 = vector.load %arg35[%c1_429, %c0_430, %c0_431] : memref<3x64x128xbf16, #tpu.memory_space<vmem>>, vector<1x64x128xbf16>
    %693 = vector.shape_cast %692 : vector<1x64x128xbf16> to vector<64x128xbf16>
    %cst_432 = arith.constant dense<0.000000e+00> : vector<16x128xf32>
    %694 = tpu.matmul %679, %693, %cst_432 {dimension_numbers = #tpu.dot_dimension_numbers<[1], [0], [0], [1], [0, 0, 1, 1], [], []>} : vector<16x64xbf16>, vector<64x128xbf16>, vector<16x128xf32> -> vector<16x128xf32>
    %695 = arith.truncf %694 : vector<16x128xf32> to vector<16x128xbf16>
    %cst_433 = arith.constant dense<0.000000e+00> : vector<32x128xf32>
    %696 = tpu.matmul %691, %695, %cst_433 {dimension_numbers = #tpu.dot_dimension_numbers<[1], [0], [0], [1], [0, 0, 1, 1], [], []>} : vector<32x16xbf16>, vector<16x128xbf16>, vector<32x128xf32> -> vector<32x128xf32>
    %697 = arith.addf %689, %696 : vector<32x128xf32>
    %c2_434 = arith.constant 2 : index
    %c0_435 = arith.constant 0 : index
    %c0_436 = arith.constant 0 : index
    %698 = vector.load %arg9[%c2_434, %c0_435, %c0_436] : memref<3x32x16xbf16, #tpu.memory_space<vmem>>, vector<1x32x16xbf16>
    %699 = vector.shape_cast %698 : vector<1x32x16xbf16> to vector<32x16xbf16>
    %c2_437 = arith.constant 2 : index
    %c0_438 = arith.constant 0 : index
    %c0_439 = arith.constant 0 : index
    %700 = vector.load %arg35[%c2_437, %c0_438, %c0_439] : memref<3x64x128xbf16, #tpu.memory_space<vmem>>, vector<1x64x128xbf16>
    %701 = vector.shape_cast %700 : vector<1x64x128xbf16> to vector<64x128xbf16>
    %cst_440 = arith.constant dense<0.000000e+00> : vector<16x128xf32>
    %702 = tpu.matmul %679, %701, %cst_440 {dimension_numbers = #tpu.dot_dimension_numbers<[1], [0], [0], [1], [0, 0, 1, 1], [], []>} : vector<16x64xbf16>, vector<64x128xbf16>, vector<16x128xf32> -> vector<16x128xf32>
    %703 = arith.truncf %702 : vector<16x128xf32> to vector<16x128xbf16>
    %cst_441 = arith.constant dense<0.000000e+00> : vector<32x128xf32>
    %704 = tpu.matmul %699, %703, %cst_441 {dimension_numbers = #tpu.dot_dimension_numbers<[1], [0], [0], [1], [0, 0, 1, 1], [], []>} : vector<32x16xbf16>, vector<16x128xbf16>, vector<32x128xf32> -> vector<32x128xf32>
    %705 = arith.addf %697, %704 : vector<32x128xf32>
    %706 = arith.truncf %552 : vector<32x128xf32> to vector<32x128xbf16>
    %707 = arith.truncf %705 : vector<32x128xf32> to vector<32x128xbf16>
    %c0_442 = arith.constant 0 : index
    %c0_443 = arith.constant 0 : index
    %c0_444 = arith.constant 0 : index
    %708 = vector.load %arg37[%c0_442, %c0_443, %c0_444] : memref<3x128x128xbf16, #tpu.memory_space<vmem>>, vector<1x128x128xbf16>
    %709 = vector.shape_cast %708 : vector<1x128x128xbf16> to vector<128x128xbf16>
    %cst_445 = arith.constant dense<0.000000e+00> : vector<32x128xf32>
    %710 = tpu.matmul %706, %709, %cst_445 {dimension_numbers = #tpu.dot_dimension_numbers<[1], [0], [0], [1], [0, 0, 1, 1], [], []>} : vector<32x128xbf16>, vector<128x128xbf16>, vector<32x128xf32> -> vector<32x128xf32>
    %c0_446 = arith.constant 0 : index
    %c0_447 = arith.constant 0 : index
    %c0_448 = arith.constant 0 : index
    %711 = vector.load %arg38[%c0_446, %c0_447, %c0_448] : memref<3x128x128xbf16, #tpu.memory_space<vmem>>, vector<1x128x128xbf16>
    %712 = vector.shape_cast %711 : vector<1x128x128xbf16> to vector<128x128xbf16>
    %cst_449 = arith.constant dense<0.000000e+00> : vector<32x128xf32>
    %713 = tpu.matmul %707, %712, %cst_449 {dimension_numbers = #tpu.dot_dimension_numbers<[1], [0], [0], [1], [0, 0, 1, 1], [], []>} : vector<32x128xbf16>, vector<128x128xbf16>, vector<32x128xf32> -> vector<32x128xf32>
    %714 = arith.addf %710, %713 : vector<32x128xf32>
    %c1_450 = arith.constant 1 : index
    %c0_451 = arith.constant 0 : index
    %c0_452 = arith.constant 0 : index
    %715 = vector.load %arg37[%c1_450, %c0_451, %c0_452] : memref<3x128x128xbf16, #tpu.memory_space<vmem>>, vector<1x128x128xbf16>
    %716 = vector.shape_cast %715 : vector<1x128x128xbf16> to vector<128x128xbf16>
    %cst_453 = arith.constant dense<0.000000e+00> : vector<32x128xf32>
    %717 = tpu.matmul %706, %716, %cst_453 {dimension_numbers = #tpu.dot_dimension_numbers<[1], [0], [0], [1], [0, 0, 1, 1], [], []>} : vector<32x128xbf16>, vector<128x128xbf16>, vector<32x128xf32> -> vector<32x128xf32>
    %c1_454 = arith.constant 1 : index
    %c0_455 = arith.constant 0 : index
    %c0_456 = arith.constant 0 : index
    %718 = vector.load %arg38[%c1_454, %c0_455, %c0_456] : memref<3x128x128xbf16, #tpu.memory_space<vmem>>, vector<1x128x128xbf16>
    %719 = vector.shape_cast %718 : vector<1x128x128xbf16> to vector<128x128xbf16>
    %cst_457 = arith.constant dense<0.000000e+00> : vector<32x128xf32>
    %720 = tpu.matmul %707, %719, %cst_457 {dimension_numbers = #tpu.dot_dimension_numbers<[1], [0], [0], [1], [0, 0, 1, 1], [], []>} : vector<32x128xbf16>, vector<128x128xbf16>, vector<32x128xf32> -> vector<32x128xf32>
    %721 = arith.addf %717, %720 : vector<32x128xf32>
    %c2_458 = arith.constant 2 : index
    %c0_459 = arith.constant 0 : index
    %c0_460 = arith.constant 0 : index
    %722 = vector.load %arg37[%c2_458, %c0_459, %c0_460] : memref<3x128x128xbf16, #tpu.memory_space<vmem>>, vector<1x128x128xbf16>
    %723 = vector.shape_cast %722 : vector<1x128x128xbf16> to vector<128x128xbf16>
    %cst_461 = arith.constant dense<0.000000e+00> : vector<32x128xf32>
    %724 = tpu.matmul %706, %723, %cst_461 {dimension_numbers = #tpu.dot_dimension_numbers<[1], [0], [0], [1], [0, 0, 1, 1], [], []>} : vector<32x128xbf16>, vector<128x128xbf16>, vector<32x128xf32> -> vector<32x128xf32>
    %c2_462 = arith.constant 2 : index
    %c0_463 = arith.constant 0 : index
    %c0_464 = arith.constant 0 : index
    %725 = vector.load %arg38[%c2_462, %c0_463, %c0_464] : memref<3x128x128xbf16, #tpu.memory_space<vmem>>, vector<1x128x128xbf16>
    %726 = vector.shape_cast %725 : vector<1x128x128xbf16> to vector<128x128xbf16>
    %cst_465 = arith.constant dense<0.000000e+00> : vector<32x128xf32>
    %727 = tpu.matmul %707, %726, %cst_465 {dimension_numbers = #tpu.dot_dimension_numbers<[1], [0], [0], [1], [0, 0, 1, 1], [], []>} : vector<32x128xbf16>, vector<128x128xbf16>, vector<32x128xf32> -> vector<32x128xf32>
    %728 = arith.addf %724, %727 : vector<32x128xf32>
    %c1_i32_466 = arith.constant 1 : i32
    %729 = tpu.dynamic_rotate %714 by %c1_i32_466 dim 0 : vector<32x128xf32>, i32 -> vector<32x128xf32>
    %730 = vector.broadcast %1 : vector<32x1xf32> to vector<32x128xf32>
    %731 = arith.mulf %730, %729 : vector<32x128xf32>
    %732 = arith.addf %721, %731 : vector<32x128xf32>
    %c31_i32_467 = arith.constant 31 : i32
    %733 = tpu.dynamic_rotate %728 by %c31_i32_467 dim 0 : vector<32x128xf32>, i32 -> vector<32x128xf32>
    %734 = vector.broadcast %3 : vector<32x1xf32> to vector<32x128xf32>
    %735 = arith.mulf %734, %733 : vector<32x128xf32>
    %736 = arith.addf %732, %735 : vector<32x128xf32>
    %c0_468 = arith.constant 0 : index
    %c0_469 = arith.constant 0 : index
    %c0_470 = arith.constant 0 : index
    %737 = vector.load %arg40[%c0_468, %c0_469, %c0_470] : memref<2x1x128xf32, #tpu.memory_space<vmem>>, vector<1x1x128xf32>
    %738 = vector.shape_cast %737 : vector<1x1x128xf32> to vector<1x128xf32>
    %739 = vector.broadcast %738 : vector<1x128xf32> to vector<32x128xf32>
    %740 = arith.addf %736, %739 : vector<32x128xf32>
    %cst_471 = arith.constant 0.000000e+00 : f32
    %741 = vector.broadcast %cst_471 : f32 to vector<32x128xf32>
    %742 = arith.maximumf %740, %741 : vector<32x128xf32>
    %c0_472 = arith.constant 0 : index
    %c0_473 = arith.constant 0 : index
    %c0_474 = arith.constant 0 : index
    %743 = vector.load %arg41[%c0_472, %c0_473, %c0_474] : memref<4x1x8xf32, #tpu.memory_space<vmem>>, vector<1x1x8xf32>
    %744 = vector.shape_cast %743 : vector<1x1x8xf32> to vector<1x8xf32>
    %c1_475 = arith.constant 1 : index
    %c0_476 = arith.constant 0 : index
    %c0_477 = arith.constant 0 : index
    %745 = vector.load %arg41[%c1_475, %c0_476, %c0_477] : memref<4x1x8xf32, #tpu.memory_space<vmem>>, vector<1x1x8xf32>
    %746 = vector.shape_cast %745 : vector<1x1x8xf32> to vector<1x8xf32>
    %cst_478 = arith.constant dense<0.000000e+00> : vector<128xf32>
    %747 = vector.multi_reduction <add>, %742, %cst_478 [0] : vector<32x128xf32> to vector<128xf32>
    %748 = vector.shape_cast %747 : vector<128xf32> to vector<1x128xf32>
    %749 = arith.mulf %742, %742 : vector<32x128xf32>
    %cst_479 = arith.constant dense<0.000000e+00> : vector<128xf32>
    %750 = vector.multi_reduction <add>, %749, %cst_479 [0] : vector<32x128xf32> to vector<128xf32>
    %751 = vector.shape_cast %750 : vector<128xf32> to vector<1x128xf32>
    %752 = arith.truncf %748 : vector<1x128xf32> to vector<1x128xbf16>
    %cst_480 = arith.constant dense<0.000000e+00> : vector<1x8xf32>
    %753 = tpu.matmul %752, %8, %cst_480 {dimension_numbers = #tpu.dot_dimension_numbers<[1], [0], [0], [1], [0, 0, 1, 1], [], []>} : vector<1x128xbf16>, vector<128x8xbf16>, vector<1x8xf32> -> vector<1x8xf32>
    %754 = arith.truncf %751 : vector<1x128xf32> to vector<1x128xbf16>
    %cst_481 = arith.constant dense<0.000000e+00> : vector<1x8xf32>
    %755 = tpu.matmul %754, %8, %cst_481 {dimension_numbers = #tpu.dot_dimension_numbers<[1], [0], [0], [1], [0, 0, 1, 1], [], []>} : vector<1x128xbf16>, vector<128x8xbf16>, vector<1x8xf32> -> vector<1x8xf32>
    %cst_482 = arith.constant 0.001953125 : f32
    %756 = vector.broadcast %cst_482 : f32 to vector<1x8xf32>
    %757 = arith.mulf %753, %756 : vector<1x8xf32>
    %cst_483 = arith.constant 0.001953125 : f32
    %758 = vector.broadcast %cst_483 : f32 to vector<1x8xf32>
    %759 = arith.mulf %755, %758 : vector<1x8xf32>
    %760 = arith.mulf %757, %757 : vector<1x8xf32>
    %761 = arith.subf %759, %760 : vector<1x8xf32>
    %cst_484 = arith.constant 0.000000e+00 : f32
    %762 = vector.broadcast %cst_484 : f32 to vector<1x8xf32>
    %763 = arith.maximumf %761, %762 : vector<1x8xf32>
    %cst_485 = arith.constant 9.99999974E-6 : f32
    %764 = vector.broadcast %cst_485 : f32 to vector<1x8xf32>
    %765 = arith.addf %763, %764 : vector<1x8xf32>
    %766 = math.rsqrt %765 : vector<1x8xf32>
    %767 = arith.mulf %744, %766 : vector<1x8xf32>
    %768 = arith.mulf %757, %767 : vector<1x8xf32>
    %769 = arith.subf %746, %768 : vector<1x8xf32>
    %770 = arith.truncf %767 : vector<1x8xf32> to vector<1x8xbf16>
    %cst_486 = arith.constant dense<0.000000e+00> : vector<1x128xf32>
    %771 = tpu.matmul %770, %9, %cst_486 {dimension_numbers = #tpu.dot_dimension_numbers<[1], [0], [0], [1], [0, 0, 1, 1], [], []>} : vector<1x8xbf16>, vector<8x128xbf16>, vector<1x128xf32> -> vector<1x128xf32>
    %772 = arith.truncf %769 : vector<1x8xf32> to vector<1x8xbf16>
    %cst_487 = arith.constant dense<0.000000e+00> : vector<1x128xf32>
    %773 = tpu.matmul %772, %9, %cst_487 {dimension_numbers = #tpu.dot_dimension_numbers<[1], [0], [0], [1], [0, 0, 1, 1], [], []>} : vector<1x8xbf16>, vector<8x128xbf16>, vector<1x128xf32> -> vector<1x128xf32>
    %774 = vector.broadcast %771 : vector<1x128xf32> to vector<32x128xf32>
    %775 = arith.mulf %742, %774 : vector<32x128xf32>
    %776 = vector.broadcast %773 : vector<1x128xf32> to vector<32x128xf32>
    %777 = arith.addf %775, %776 : vector<32x128xf32>
    %c1_488 = arith.constant 1 : index
    %c0_489 = arith.constant 0 : index
    %c0_490 = arith.constant 0 : index
    %778 = vector.load %arg40[%c1_488, %c0_489, %c0_490] : memref<2x1x128xf32, #tpu.memory_space<vmem>>, vector<1x1x128xf32>
    %779 = vector.shape_cast %778 : vector<1x1x128xf32> to vector<1x128xf32>
    %780 = arith.truncf %777 : vector<32x128xf32> to vector<32x128xbf16>
    %c0_491 = arith.constant 0 : index
    %c0_492 = arith.constant 0 : index
    %c0_493 = arith.constant 0 : index
    %781 = vector.load %arg39[%c0_491, %c0_492, %c0_493] : memref<3x128x128xbf16, #tpu.memory_space<vmem>>, vector<1x128x128xbf16>
    %782 = vector.shape_cast %781 : vector<1x128x128xbf16> to vector<128x128xbf16>
    %cst_494 = arith.constant dense<0.000000e+00> : vector<32x128xf32>
    %783 = tpu.matmul %780, %782, %cst_494 {dimension_numbers = #tpu.dot_dimension_numbers<[1], [0], [0], [1], [0, 0, 1, 1], [], []>} : vector<32x128xbf16>, vector<128x128xbf16>, vector<32x128xf32> -> vector<32x128xf32>
    %c1_495 = arith.constant 1 : index
    %c0_496 = arith.constant 0 : index
    %c0_497 = arith.constant 0 : index
    %784 = vector.load %arg39[%c1_495, %c0_496, %c0_497] : memref<3x128x128xbf16, #tpu.memory_space<vmem>>, vector<1x128x128xbf16>
    %785 = vector.shape_cast %784 : vector<1x128x128xbf16> to vector<128x128xbf16>
    %cst_498 = arith.constant dense<0.000000e+00> : vector<32x128xf32>
    %786 = tpu.matmul %780, %785, %cst_498 {dimension_numbers = #tpu.dot_dimension_numbers<[1], [0], [0], [1], [0, 0, 1, 1], [], []>} : vector<32x128xbf16>, vector<128x128xbf16>, vector<32x128xf32> -> vector<32x128xf32>
    %c2_499 = arith.constant 2 : index
    %c0_500 = arith.constant 0 : index
    %c0_501 = arith.constant 0 : index
    %787 = vector.load %arg39[%c2_499, %c0_500, %c0_501] : memref<3x128x128xbf16, #tpu.memory_space<vmem>>, vector<1x128x128xbf16>
    %788 = vector.shape_cast %787 : vector<1x128x128xbf16> to vector<128x128xbf16>
    %cst_502 = arith.constant dense<0.000000e+00> : vector<32x128xf32>
    %789 = tpu.matmul %780, %788, %cst_502 {dimension_numbers = #tpu.dot_dimension_numbers<[1], [0], [0], [1], [0, 0, 1, 1], [], []>} : vector<32x128xbf16>, vector<128x128xbf16>, vector<32x128xf32> -> vector<32x128xf32>
    %c1_i32_503 = arith.constant 1 : i32
    %790 = tpu.dynamic_rotate %783 by %c1_i32_503 dim 0 : vector<32x128xf32>, i32 -> vector<32x128xf32>
    %c31_i32_504 = arith.constant 31 : i32
    %791 = tpu.dynamic_rotate %789 by %c31_i32_504 dim 0 : vector<32x128xf32>, i32 -> vector<32x128xf32>
    %792 = vector.broadcast %1 : vector<32x1xf32> to vector<32x128xf32>
    %793 = arith.mulf %792, %790 : vector<32x128xf32>
    %794 = arith.addf %786, %793 : vector<32x128xf32>
    %795 = vector.broadcast %3 : vector<32x1xf32> to vector<32x128xf32>
    %796 = arith.mulf %795, %791 : vector<32x128xf32>
    %797 = arith.addf %794, %796 : vector<32x128xf32>
    %798 = vector.broadcast %779 : vector<1x128xf32> to vector<32x128xf32>
    %799 = arith.addf %797, %798 : vector<32x128xf32>
    %cst_505 = arith.constant 0.000000e+00 : f32
    %800 = vector.broadcast %cst_505 : f32 to vector<32x128xf32>
    %801 = arith.maximumf %799, %800 : vector<32x128xf32>
    %c2_506 = arith.constant 2 : index
    %c0_507 = arith.constant 0 : index
    %c0_508 = arith.constant 0 : index
    %802 = vector.load %arg41[%c2_506, %c0_507, %c0_508] : memref<4x1x8xf32, #tpu.memory_space<vmem>>, vector<1x1x8xf32>
    %803 = vector.shape_cast %802 : vector<1x1x8xf32> to vector<1x8xf32>
    %c3_509 = arith.constant 3 : index
    %c0_510 = arith.constant 0 : index
    %c0_511 = arith.constant 0 : index
    %804 = vector.load %arg41[%c3_509, %c0_510, %c0_511] : memref<4x1x8xf32, #tpu.memory_space<vmem>>, vector<1x1x8xf32>
    %805 = vector.shape_cast %804 : vector<1x1x8xf32> to vector<1x8xf32>
    %cst_512 = arith.constant dense<0.000000e+00> : vector<128xf32>
    %806 = vector.multi_reduction <add>, %801, %cst_512 [0] : vector<32x128xf32> to vector<128xf32>
    %807 = vector.shape_cast %806 : vector<128xf32> to vector<1x128xf32>
    %808 = arith.mulf %801, %801 : vector<32x128xf32>
    %cst_513 = arith.constant dense<0.000000e+00> : vector<128xf32>
    %809 = vector.multi_reduction <add>, %808, %cst_513 [0] : vector<32x128xf32> to vector<128xf32>
    %810 = vector.shape_cast %809 : vector<128xf32> to vector<1x128xf32>
    %811 = arith.truncf %807 : vector<1x128xf32> to vector<1x128xbf16>
    %cst_514 = arith.constant dense<0.000000e+00> : vector<1x8xf32>
    %812 = tpu.matmul %811, %8, %cst_514 {dimension_numbers = #tpu.dot_dimension_numbers<[1], [0], [0], [1], [0, 0, 1, 1], [], []>} : vector<1x128xbf16>, vector<128x8xbf16>, vector<1x8xf32> -> vector<1x8xf32>
    %813 = arith.truncf %810 : vector<1x128xf32> to vector<1x128xbf16>
    %cst_515 = arith.constant dense<0.000000e+00> : vector<1x8xf32>
    %814 = tpu.matmul %813, %8, %cst_515 {dimension_numbers = #tpu.dot_dimension_numbers<[1], [0], [0], [1], [0, 0, 1, 1], [], []>} : vector<1x128xbf16>, vector<128x8xbf16>, vector<1x8xf32> -> vector<1x8xf32>
    %cst_516 = arith.constant 0.001953125 : f32
    %815 = vector.broadcast %cst_516 : f32 to vector<1x8xf32>
    %816 = arith.mulf %812, %815 : vector<1x8xf32>
    %cst_517 = arith.constant 0.001953125 : f32
    %817 = vector.broadcast %cst_517 : f32 to vector<1x8xf32>
    %818 = arith.mulf %814, %817 : vector<1x8xf32>
    %819 = arith.mulf %816, %816 : vector<1x8xf32>
    %820 = arith.subf %818, %819 : vector<1x8xf32>
    %cst_518 = arith.constant 0.000000e+00 : f32
    %821 = vector.broadcast %cst_518 : f32 to vector<1x8xf32>
    %822 = arith.maximumf %820, %821 : vector<1x8xf32>
    %cst_519 = arith.constant 9.99999974E-6 : f32
    %823 = vector.broadcast %cst_519 : f32 to vector<1x8xf32>
    %824 = arith.addf %822, %823 : vector<1x8xf32>
    %825 = math.rsqrt %824 : vector<1x8xf32>
    %826 = arith.mulf %803, %825 : vector<1x8xf32>
    %827 = arith.mulf %816, %826 : vector<1x8xf32>
    %828 = arith.subf %805, %827 : vector<1x8xf32>
    %829 = arith.truncf %826 : vector<1x8xf32> to vector<1x8xbf16>
    %cst_520 = arith.constant dense<0.000000e+00> : vector<1x128xf32>
    %830 = tpu.matmul %829, %9, %cst_520 {dimension_numbers = #tpu.dot_dimension_numbers<[1], [0], [0], [1], [0, 0, 1, 1], [], []>} : vector<1x8xbf16>, vector<8x128xbf16>, vector<1x128xf32> -> vector<1x128xf32>
    %831 = arith.truncf %828 : vector<1x8xf32> to vector<1x8xbf16>
    %cst_521 = arith.constant dense<0.000000e+00> : vector<1x128xf32>
    %832 = tpu.matmul %831, %9, %cst_521 {dimension_numbers = #tpu.dot_dimension_numbers<[1], [0], [0], [1], [0, 0, 1, 1], [], []>} : vector<1x8xbf16>, vector<8x128xbf16>, vector<1x128xf32> -> vector<1x128xf32>
    %833 = vector.broadcast %830 : vector<1x128xf32> to vector<32x128xf32>
    %834 = arith.mulf %801, %833 : vector<32x128xf32>
    %835 = vector.broadcast %832 : vector<1x128xf32> to vector<32x128xf32>
    %836 = arith.addf %834, %835 : vector<32x128xf32>
    %837 = arith.truncf %836 : vector<32x128xf32> to vector<32x128xbf16>
    %c0_522 = arith.constant 0 : index
    %c0_523 = arith.constant 0 : index
    %838 = vector.load %arg42[%c0_522, %c0_523] : memref<128x128xbf16, #tpu.memory_space<vmem>>, vector<128x128xbf16>
    %cst_524 = arith.constant dense<0.000000e+00> : vector<32x128xf32>
    %839 = tpu.matmul %837, %838, %cst_524 {dimension_numbers = #tpu.dot_dimension_numbers<[1], [0], [0], [1], [0, 0, 1, 1], [], []>} : vector<32x128xbf16>, vector<128x128xbf16>, vector<32x128xf32> -> vector<32x128xf32>
    %c0_525 = arith.constant 0 : index
    %c0_526 = arith.constant 0 : index
    %840 = vector.load %arg43[%c0_525, %c0_526] : memref<1x128xf32, #tpu.memory_space<vmem>>, vector<1x128xf32>
    %841 = vector.broadcast %840 : vector<1x128xf32> to vector<32x128xf32>
    %842 = arith.addf %839, %841 : vector<32x128xf32>
    %c0_527 = arith.constant 0 : index
    %c0_528 = arith.constant 0 : index
    %843 = vector.load %arg44[%c0_527, %c0_528] : memref<32x128xf32, #tpu.memory_space<vmem>>, vector<32x128xf32>
    tpu.vector_store %arg44[%c0_527, %c0_528], %842 {strides = array<i32>} : memref<32x128xf32, #tpu.memory_space<vmem>>, vector<32x128xf32>,
    return
  }
}

</mosaic_0001>

<llo_original>
// kernel: wnet_forward.1
$region0: #{wnet_forward.1}
  #allocation0 [shape = 'u32[]', space=smem, size = 0x4, offset = 0x4, fixed_abs, tag = 'smem constant byte address 0x4 - core index']
  #allocation1 [shape = 'u32[144,128]{1,0:T(1,128)}', space=vmem, size = 0x12000, scoped, tag = 'internal scratch']
  %s0 = inlined_call_operand.smem [shape: u32[45], index: -1, kind: input, shape index: {}]
  %s1 = sld [smem:[%s0]]
  %s2 = scalar_lea.smem %s0, 1
  %s3 = sld [smem:[%s2]]
  %s4 = scalar_lea.smem %s0, 2
  %s5 = sld [smem:[%s4]]
  %s6 = scalar_lea.smem %s0, 3
  %s7 = sld [smem:[%s6]]
  %s8 = scalar_lea.smem %s0, 4
  %s9 = sld [smem:[%s8]]
  %s10 = scalar_lea.smem %s0, 5
  %s11 = sld [smem:[%s10]]
  %s12 = scalar_lea.smem %s0, 6
  %s13 = sld [smem:[%s12]]
  %s14 = scalar_lea.smem %s0, 7
  %s15 = sld [smem:[%s14]]
  %s16 = scalar_lea.smem %s0, 8
  %s17 = sld [smem:[%s16]]
  %s18 = scalar_lea.smem %s0, 9
  %s19 = sld [smem:[%s18]]
  %s20 = scalar_lea.smem %s0, 10
  %s21 = sld [smem:[%s20]]
  %s22 = scalar_lea.smem %s0, 11
  %s23 = sld [smem:[%s22]]
  %s24 = scalar_lea.smem %s0, 12
  %s25 = sld [smem:[%s24]]
  %s26 = scalar_lea.smem %s0, 13
  %s27 = sld [smem:[%s26]]
  %s28 = scalar_lea.smem %s0, 14
  %s29 = sld [smem:[%s28]]
  %s30 = scalar_lea.smem %s0, 15
  %s31 = sld [smem:[%s30]]
  %s32 = scalar_lea.smem %s0, 16
  %s33 = sld [smem:[%s32]]
  %s34 = scalar_lea.smem %s0, 17
  %s35 = sld [smem:[%s34]]
  %s36 = scalar_lea.smem %s0, 18
  %s37 = sld [smem:[%s36]]
  %s38 = scalar_lea.smem %s0, 19
  %s39 = sld [smem:[%s38]]
  %s40 = scalar_lea.smem %s0, 20
  %s41 = sld [smem:[%s40]]
  %s42 = scalar_lea.smem %s0, 21
  %s43 = sld [smem:[%s42]]
  %s44 = scalar_lea.smem %s0, 22
  %s45 = sld [smem:[%s44]]
  %s46 = scalar_lea.smem %s0, 23
  %s47 = sld [smem:[%s46]]
  %s48 = scalar_lea.smem %s0, 24
  %s49 = sld [smem:[%s48]]
  %s50 = scalar_lea.smem %s0, 25
  %s51 = sld [smem:[%s50]]
  %s52 = scalar_lea.smem %s0, 26
  %s53 = sld [smem:[%s52]]
  %s54 = scalar_lea.smem %s0, 27
  %s55 = sld [smem:[%s54]]
  %s56 = scalar_lea.smem %s0, 28
  %s57 = sld [smem:[%s56]]
  %s58 = scalar_lea.smem %s0, 29
  %s59 = sld [smem:[%s58]]
  %s60 = scalar_lea.smem %s0, 30
  %s61 = sld [smem:[%s60]]
  %s62 = scalar_lea.smem %s0, 31
  %s63 = sld [smem:[%s62]]
  %s64 = scalar_lea.smem %s0, 32
  %s65 = sld [smem:[%s64]]
  %s66 = scalar_lea.smem %s0, 33
  %s67 = sld [smem:[%s66]]
  %s68 = scalar_lea.smem %s0, 34
  %s69 = sld [smem:[%s68]]
  %s70 = scalar_lea.smem %s0, 35
  %s71 = sld [smem:[%s70]]
  %s72 = scalar_lea.smem %s0, 36
  %s73 = sld [smem:[%s72]]
  %s74 = scalar_lea.smem %s0, 37
  %s75 = sld [smem:[%s74]]
  %s76 = scalar_lea.smem %s0, 38
  %s77 = sld [smem:[%s76]]
  %s78 = scalar_lea.smem %s0, 39
  %s79 = sld [smem:[%s78]]
  %s80 = scalar_lea.smem %s0, 40
  %s81 = sld [smem:[%s80]]
  %s82 = scalar_lea.smem %s0, 41
  %s83 = sld [smem:[%s82]]
  %s84 = scalar_lea.smem %s0, 42
  %s85 = sld [smem:[%s84]]
  %s86 = scalar_lea.smem %s0, 43
  %s87 = sld [smem:[%s86]]
  %s88 = scalar_lea.smem %s0, 44
  %s89 = sld [smem:[%s88]]
  %s90 = sld [smem:[#allocation0]]
  $region262: #{wnet_forward.1} parent=0
    _
  %s92 = ssub.s32 1, %s90
  %s93 = scalar_select 0, %s92, %s90
  $region1: #{wnet_forward.1} parent=0
    #allocation2 [shape = 'u8[2048]{0}', space=vmem, size = 0x800, scoped, tag = 'input window, operand 4, single buffered']
    #allocation3 [shape = 's32[1]{0}', space=sflag, size = 0x4, scoped, tag = 'scoped memory for wnet_forward.1']
    #allocation4 [shape = 'u8[2048]{0}', space=vmem, size = 0x800, scoped, tag = 'input window, operand 6, single buffered']
    #allocation5 [shape = 's32[1]{0}', space=sflag, size = 0x4, scoped, tag = 'scoped memory for wnet_forward.1']
    #allocation6 [shape = 'u8[1024]{0}', space=vmem, size = 0x400, scoped, tag = 'input window, operand 16, single buffered']
    #allocation7 [shape = 'u8[2048]{0}', space=vmem, size = 0x800, scoped, tag = 'input window, operand 17, single buffered']
    #allocation8 [shape = 's32[1]{0}', space=sflag, size = 0x4, scoped, tag = 'scoped memory for wnet_forward.1']
    #allocation9 [shape = 'u8[49152]{0}', space=vmem, size = 0xc000, scoped, tag = 'input window, operand 18, single buffered']
    #allocation10 [shape = 'u8[512]{0}', space=vmem, size = 0x400, scoped, tag = 'input window, operand 19, single buffered']
    #allocation11 [shape = 's32[1]{0}', space=sflag, size = 0x4, scoped, tag = 'scoped memory for wnet_forward.1']
    #allocation12 [shape = 'u8[1024]{0}', space=vmem, size = 0x400, scoped, tag = 'input window, operand 23, single buffered']
    #allocation13 [shape = 'u8[2048]{0}', space=vmem, size = 0x800, scoped, tag = 'input window, operand 24, single buffered']
    #allocation14 [shape = 's32[1]{0}', space=sflag, size = 0x4, scoped, tag = 'scoped memory for wnet_forward.1']
    #allocation15 [shape = 'u8[16384]{0}', space=vmem, size = 0x4000, scoped, tag = 'input window, operand 26, single buffered']
    #allocation16 [shape = 'u8[1024]{0}', space=vmem, size = 0x400, scoped, tag = 'input window, operand 29, single buffered']
    #allocation17 [shape = 's32[1]{0}', space=sflag, size = 0x4, scoped, tag = 'scoped memory for wnet_forward.1']
    #allocation18 [shape = 'u8[49152]{0}', space=vmem, size = 0xc000, scoped, tag = 'input window, operand 31, single buffered']
    #allocation19 [shape = 'u8[49152]{0}', space=vmem, size = 0xc000, scoped, tag = 'input window, operand 32, single buffered']
    #allocation20 [shape = 's32[1]{0}', space=sflag, size = 0x4, scoped, tag = 'scoped memory for wnet_forward.1']
    #allocation21 [shape = 'u8[1024]{0}', space=vmem, size = 0x400, scoped, tag = 'input window, operand 33, single buffered']
    #allocation22 [shape = 'u8[49152]{0}', space=vmem, size = 0xc000, scoped, tag = 'input window, operand 35, single buffered']
    #allocation23 [shape = 's32[1]{0}', space=sflag, size = 0x4, scoped, tag = 'scoped memory for wnet_forward.1']
    #allocation24 [shape = 'u8[512]{0}', space=vmem, size = 0x400, scoped, tag = 'input window, operand 36, single buffered']
    #allocation25 [shape = 'u8[1024]{0}', space=vmem, size = 0x400, scoped, tag = 'input window, operand 40, single buffered']
    #allocation26 [shape = 's32[1]{0}', space=sflag, size = 0x4, scoped, tag = 'scoped memory for wnet_forward.1']
    #allocation27 [shape = 'u8[2048]{0}', space=vmem, size = 0x800, scoped, tag = 'input window, operand 41, single buffered']
    #allocation28 [shape = 'u8[32768]{0}', space=vmem, size = 0x8000, scoped, tag = 'input window, operand 42, single buffered']
    #allocation29 [shape = 's32[1]{0}', space=sflag, size = 0x4, scoped, tag = 'scoped memory for wnet_forward.1']
    #allocation30 [shape = 'u8[512]{0}', space=vmem, size = 0x400, scoped, tag = 'input window, operand 43, single buffered']
    %94 = vsyncpa [#allocation3], 0
    %95 = vsyncpa [#allocation5], 0
    %96 = vsyncpa [#allocation8], 0
    %97 = vsyncpa [#allocation11], 0
    %98 = vsyncpa [#allocation14], 0
    %99 = vsyncpa [#allocation17], 0
    %100 = vsyncpa [#allocation20], 0
    %101 = vsyncpa [#allocation23], 0
    %102 = vsyncpa [#allocation26], 0
    %103 = vsyncpa [#allocation29], 0
    // Predicated region
    $region2: #{wnet_forward.1} parent=1 // pred_check
      _
    $region3: #{wnet_forward.1} parent=1 // pred_check_branch
      %105 = sbr.rel (0) target = $region5
    $region4: #{wnet_forward.1} parent=1 // pred_region
      _
    $region5: #{wnet_forward.1} parent=1 // pred_fallthru
      _
    // Predicated region
    $region6: #{wnet_forward.1} parent=1 // pred_check
      _
    $region7: #{wnet_forward.1} parent=1 // pred_check_branch
      %107 = sbr.rel (0) target = $region9
    $region8: #{wnet_forward.1} parent=1 // pred_region
      _
    $region9: #{wnet_forward.1} parent=1 // pred_fallthru
      _
    // Predicated region
    $region10: #{wnet_forward.1} parent=1 // pred_check
      _
    $region11: #{wnet_forward.1} parent=1 // pred_check_branch
      %109 = sbr.rel (0) target = $region13
    $region12: #{wnet_forward.1} parent=1 // pred_region
      _
    $region13: #{wnet_forward.1} parent=1 // pred_fallthru
      _
    // Predicated region
    $region14: #{wnet_forward.1} parent=1 // pred_check
      _
    $region15: #{wnet_forward.1} parent=1 // pred_check_branch
      %111 = sbr.rel (0) target = $region17
    $region16: #{wnet_forward.1} parent=1 // pred_region
      _
    $region17: #{wnet_forward.1} parent=1 // pred_fallthru
      _
    // Predicated region
    $region18: #{wnet_forward.1} parent=1 // pred_check
      _
    $region19: #{wnet_forward.1} parent=1 // pred_check_branch
      %113 = sbr.rel (0) target = $region21
    $region20: #{wnet_forward.1} parent=1 // pred_region
      %s115 = ssub.s32 64, 64
      %116 = vsyncadd [#allocation3], %s115
      %s118 = sshll.u32 [#allocation2], 4
      %s119 = int_to_ptr.vmem [resolvable:$true] %s118
      %121 = dma.hbm_to_vmem [thread:$0]  %s9, 64, %s119, [#allocation3]
    $region21: #{wnet_forward.1} parent=1 // pred_fallthru
      _
    // Predicated region
    $region22: #{wnet_forward.1} parent=1 // pred_check
      _
    $region23: #{wnet_forward.1} parent=1 // pred_check_branch
      %123 = sbr.rel (0) target = $region25
    $region24: #{wnet_forward.1} parent=1 // pred_region
      _
    $region25: #{wnet_forward.1} parent=1 // pred_fallthru
      _
    // Predicated region
    $region26: #{wnet_forward.1} parent=1 // pred_check
      _
    $region27: #{wnet_forward.1} parent=1 // pred_check_branch
      %125 = sbr.rel (0) target = $region29
    $region28: #{wnet_forward.1} parent=1 // pred_region
      %s127 = ssub.s32 64, 64
      %128 = vsyncadd [#allocation5], %s127
      %s130 = sshll.u32 [#allocation4], 4
      %s131 = int_to_ptr.vmem [resolvable:$true] %s130
      %133 = dma.hbm_to_vmem [thread:$0]  %s13, 64, %s131, [#allocation5]
    $region29: #{wnet_forward.1} parent=1 // pred_fallthru
      _
    // Predicated region
    $region30: #{wnet_forward.1} parent=1 // pred_check
      _
    $region31: #{wnet_forward.1} parent=1 // pred_check_branch
      %135 = sbr.rel (0) target = $region33
    $region32: #{wnet_forward.1} parent=1 // pred_region
      _
    $region33: #{wnet_forward.1} parent=1 // pred_fallthru
      _
    // Predicated region
    $region34: #{wnet_forward.1} parent=1 // pred_check
      _
    $region35: #{wnet_forward.1} parent=1 // pred_check_branch
      %137 = sbr.rel (0) target = $region37
    $region36: #{wnet_forward.1} parent=1 // pred_region
      _
    $region37: #{wnet_forward.1} parent=1 // pred_fallthru
      _
    // Predicated region
    $region38: #{wnet_forward.1} parent=1 // pred_check
      _
    $region39: #{wnet_forward.1} parent=1 // pred_check_branch
      %139 = sbr.rel (0) target = $region41
    $region40: #{wnet_forward.1} parent=1 // pred_region
      _
    $region41: #{wnet_forward.1} parent=1 // pred_fallthru
      _
    // Predicated region
    $region42: #{wnet_forward.1} parent=1 // pred_check
      _
    $region43: #{wnet_forward.1} parent=1 // pred_check_branch
      %141 = sbr.rel (0) target = $region45
    $region44: #{wnet_forward.1} parent=1 // pred_region
      _
    $region45: #{wnet_forward.1} parent=1 // pred_fallthru
      _
    // Predicated region
    $region46: #{wnet_forward.1} parent=1 // pred_check
      _
    $region47: #{wnet_forward.1} parent=1 // pred_check_branch
      %143 = sbr.rel (0) target = $region49
    $region48: #{wnet_forward.1} parent=1 // pred_region
      _
    $region49: #{wnet_forward.1} parent=1 // pred_fallthru
      _
    // Predicated region
    $region50: #{wnet_forward.1} parent=1 // pred_check
      _
    $region51: #{wnet_forward.1} parent=1 // pred_check_branch
      %145 = sbr.rel (0) target = $region53
    $region52: #{wnet_forward.1} parent=1 // pred_region
      _
    $region53: #{wnet_forward.1} parent=1 // pred_fallthru
      _
    // Predicated region
    $region54: #{wnet_forward.1} parent=1 // pred_check
      _
    $region55: #{wnet_forward.1} parent=1 // pred_check_branch
      %147 = sbr.rel (0) target = $region57
    $region56: #{wnet_forward.1} parent=1 // pred_region
      _
    $region57: #{wnet_forward.1} parent=1 // pred_fallthru
      _
    // Predicated region
    $region58: #{wnet_forward.1} parent=1 // pred_check
      _
    $region59: #{wnet_forward.1} parent=1 // pred_check_branch
      %149 = sbr.rel (0) target = $region61
    $region60: #{wnet_forward.1} parent=1 // pred_region
      _
    $region61: #{wnet_forward.1} parent=1 // pred_fallthru
      _
    // Predicated region
    $region62: #{wnet_forward.1} parent=1 // pred_check
      _
    $region63: #{wnet_forward.1} parent=1 // pred_check_branch
      %151 = sbr.rel (0) target = $region65
    $region64: #{wnet_forward.1} parent=1 // pred_region
      _
    $region65: #{wnet_forward.1} parent=1 // pred_fallthru
      _
    // Predicated region
    $region66: #{wnet_forward.1} parent=1 // pred_check
      _
    $region67: #{wnet_forward.1} parent=1 // pred_check_branch
      %153 = sbr.rel (0) target = $region69
    $region68: #{wnet_forward.1} parent=1 // pred_region
      %s155 = ssub.s32 32, 32
      %156 = vsyncadd [#allocation5], %s155
      %s157 = sshll.u32 [#allocation6], 4
      %s158 = int_to_ptr.vmem [resolvable:$true] %s157
      %163 = dma.hbm_to_vmem [thread:$0]  %s33, 32, %s158, [#allocation5], 16, 16, 1
    $region69: #{wnet_forward.1} parent=1 // pred_fallthru
      _
    // Predicated region
    $region70: #{wnet_forward.1} parent=1 // pred_check
      _
    $region71: #{wnet_forward.1} parent=1 // pred_check_branch
      %165 = sbr.rel (0) target = $region73
    $region72: #{wnet_forward.1} parent=1 // pred_region
      %s167 = ssub.s32 64, 64
      %168 = vsyncadd [#allocation8], %s167
      %s169 = sshll.u32 [#allocation7], 4
      %s170 = int_to_ptr.vmem [resolvable:$true] %s169
      %175 = dma.hbm_to_vmem [thread:$0]  %s35, 64, %s170, [#allocation8], 16, 16, 1
    $region73: #{wnet_forward.1} parent=1 // pred_fallthru
      _
    // Predicated region
    $region74: #{wnet_forward.1} parent=1 // pred_check
      _
    $region75: #{wnet_forward.1} parent=1 // pred_check_branch
      %177 = sbr.rel (0) target = $region77
    $region76: #{wnet_forward.1} parent=1 // pred_region
      %s179 = ssub.s32 1536, 1536
      %180 = vsyncadd [#allocation8], %s179
      %s181 = sshll.u32 [#allocation9], 4
      %s182 = int_to_ptr.vmem [resolvable:$true] %s181
      %187 = dma.hbm_to_vmem [thread:$0]  %s37, 1536, %s182, [#allocation8], 64, 64, 4
    $region77: #{wnet_forward.1} parent=1 // pred_fallthru
      _
    // Predicated region
    $region78: #{wnet_forward.1} parent=1 // pred_check
      _
    $region79: #{wnet_forward.1} parent=1 // pred_check_branch
      %189 = sbr.rel (0) target = $region81
    $region80: #{wnet_forward.1} parent=1 // pred_region
      %s191 = ssub.s32 16, 16
      %192 = vsyncadd [#allocation11], %s191
      %s194 = sshll.u32 [#allocation10], 4
      %s195 = int_to_ptr.vmem [resolvable:$true] %s194
      %197 = dma.hbm_to_vmem [thread:$0]  %s39, 16, %s195, [#allocation11]
    $region81: #{wnet_forward.1} parent=1 // pred_fallthru
      _
    // Predicated region
    $region82: #{wnet_forward.1} parent=1 // pred_check
      _
    $region83: #{wnet_forward.1} parent=1 // pred_check_branch
      %199 = sbr.rel (0) target = $region85
    $region84: #{wnet_forward.1} parent=1 // pred_region
      _
    $region85: #{wnet_forward.1} parent=1 // pred_fallthru
      _
    // Predicated region
    $region86: #{wnet_forward.1} parent=1 // pred_check
      _
    $region87: #{wnet_forward.1} parent=1 // pred_check_branch
      %201 = sbr.rel (0) target = $region89
    $region88: #{wnet_forward.1} parent=1 // pred_region
      _
    $region89: #{wnet_forward.1} parent=1 // pred_fallthru
      _
    // Predicated region
    $region90: #{wnet_forward.1} parent=1 // pred_check
      _
    $region91: #{wnet_forward.1} parent=1 // pred_check_branch
      %203 = sbr.rel (0) target = $region93
    $region92: #{wnet_forward.1} parent=1 // pred_region
      _
    $region93: #{wnet_forward.1} parent=1 // pred_fallthru
      _
    // Predicated region
    $region94: #{wnet_forward.1} parent=1 // pred_check
      _
    $region95: #{wnet_forward.1} parent=1 // pred_check_branch
      %205 = sbr.rel (0) target = $region97
    $region96: #{wnet_forward.1} parent=1 // pred_region
      %s207 = ssub.s32 32, 32
      %208 = vsyncadd [#allocation11], %s207
      %s209 = sshll.u32 [#allocation12], 4
      %s210 = int_to_ptr.vmem [resolvable:$true] %s209
      %215 = dma.hbm_to_vmem [thread:$0]  %s47, 32, %s210, [#allocation11], 16, 16, 1
    $region97: #{wnet_forward.1} parent=1 // pred_fallthru
      _
    // Predicated region
    $region98: #{wnet_forward.1} parent=1 // pred_check
      _
    $region99: #{wnet_forward.1} parent=1 // pred_check_branch
      %217 = sbr.rel (0) target = $region101
    $region100: #{wnet_forward.1} parent=1 // pred_region
      %s219 = ssub.s32 64, 64
      %220 = vsyncadd [#allocation14], %s219
      %s221 = sshll.u32 [#allocation13], 4
      %s222 = int_to_ptr.vmem [resolvable:$true] %s221
      %227 = dma.hbm_to_vmem [thread:$0]  %s49, 64, %s222, [#allocation14], 16, 16, 1
    $region101: #{wnet_forward.1} parent=1 // pred_fallthru
      _
    // Predicated region
    $region102: #{wnet_forward.1} parent=1 // pred_check
      _
    $region103: #{wnet_forward.1} parent=1 // pred_check_branch
      %229 = sbr.rel (0) target = $region105
    $region104: #{wnet_forward.1} parent=1 // pred_region
      _
    $region105: #{wnet_forward.1} parent=1 // pred_fallthru
      _
    // Predicated region
    $region106: #{wnet_forward.1} parent=1 // pred_check
      _
    $region107: #{wnet_forward.1} parent=1 // pred_check_branch
      %231 = sbr.rel (0) target = $region109
    $region108: #{wnet_forward.1} parent=1 // pred_region
      %s233 = ssub.s32 512, 512
      %234 = vsyncadd [#allocation14], %s233
      %s235 = sshll.u32 [#allocation15], 4
      %s236 = int_to_ptr.vmem [resolvable:$true] %s235
      %241 = dma.hbm_to_vmem [thread:$0]  %s53, 512, %s236, [#allocation14], 64, 64, 4
    $region109: #{wnet_forward.1} parent=1 // pred_fallthru
      _
    // Predicated region
    $region110: #{wnet_forward.1} parent=1 // pred_check
      _
    $region111: #{wnet_forward.1} parent=1 // pred_check_branch
      %243 = sbr.rel (0) target = $region113
    $region112: #{wnet_forward.1} parent=1 // pred_region
      _
    $region113: #{wnet_forward.1} parent=1 // pred_fallthru
      _
    // Predicated region
    $region114: #{wnet_forward.1} parent=1 // pred_check
      _
    $region115: #{wnet_forward.1} parent=1 // pred_check_branch
      %245 = sbr.rel (0) target = $region117
    $region116: #{wnet_forward.1} parent=1 // pred_region
      _
    $region117: #{wnet_forward.1} parent=1 // pred_fallthru
      _
    // Predicated region
    $region118: #{wnet_forward.1} parent=1 // pred_check
      _
    $region119: #{wnet_forward.1} parent=1 // pred_check_branch
      %247 = sbr.rel (0) target = $region121
    $region120: #{wnet_forward.1} parent=1 // pred_region
      %s249 = ssub.s32 32, 32
      %250 = vsyncadd [#allocation17], %s249
      %s251 = sshll.u32 [#allocation16], 4
      %s252 = int_to_ptr.vmem [resolvable:$true] %s251
      %257 = dma.hbm_to_vmem [thread:$0]  %s59, 32, %s252, [#allocation17], 16, 16, 1
    $region121: #{wnet_forward.1} parent=1 // pred_fallthru
      _
    // Predicated region
    $region122: #{wnet_forward.1} parent=1 // pred_check
      _
    $region123: #{wnet_forward.1} parent=1 // pred_check_branch
      %259 = sbr.rel (0) target = $region125
    $region124: #{wnet_forward.1} parent=1 // pred_region
      _
    $region125: #{wnet_forward.1} parent=1 // pred_fallthru
      _
    // Predicated region
    $region126: #{wnet_forward.1} parent=1 // pred_check
      _
    $region127: #{wnet_forward.1} parent=1 // pred_check_branch
      %261 = sbr.rel (0) target = $region129
    $region128: #{wnet_forward.1} parent=1 // pred_region
      %s263 = ssub.s32 1536, 1536
      %264 = vsyncadd [#allocation17], %s263
      %s265 = sshll.u32 [#allocation18], 4
      %s266 = int_to_ptr.vmem [resolvable:$true] %s265
      %271 = dma.hbm_to_vmem [thread:$0]  %s63, 1536, %s266, [#allocation17], 64, 64, 4
    $region129: #{wnet_forward.1} parent=1 // pred_fallthru
      _
    // Predicated region
    $region130: #{wnet_forward.1} parent=1 // pred_check
      _
    $region131: #{wnet_forward.1} parent=1 // pred_check_branch
      %273 = sbr.rel (0) target = $region133
    $region132: #{wnet_forward.1} parent=1 // pred_region
      %s275 = ssub.s32 1536, 1536
      %276 = vsyncadd [#allocation20], %s275
      %s277 = sshll.u32 [#allocation19], 4
      %s278 = int_to_ptr.vmem [resolvable:$true] %s277
      %283 = dma.hbm_to_vmem [thread:$0]  %s65, 1536, %s278, [#allocation20], 64, 64, 4
    $region133: #{wnet_forward.1} parent=1 // pred_fallthru
      _
    // Predicated region
    $region134: #{wnet_forward.1} parent=1 // pred_check
      _
    $region135: #{wnet_forward.1} parent=1 // pred_check_branch
      %285 = sbr.rel (0) target = $region137
    $region136: #{wnet_forward.1} parent=1 // pred_region
      %s287 = ssub.s32 32, 32
      %288 = vsyncadd [#allocation20], %s287
      %s289 = sshll.u32 [#allocation21], 4
      %s290 = int_to_ptr.vmem [resolvable:$true] %s289
      %295 = dma.hbm_to_vmem [thread:$0]  %s67, 32, %s290, [#allocation20], 16, 16, 1
    $region137: #{wnet_forward.1} parent=1 // pred_fallthru
      _
    // Predicated region
    $region138: #{wnet_forward.1} parent=1 // pred_check
      _
    $region139: #{wnet_forward.1} parent=1 // pred_check_branch
      %297 = sbr.rel (0) target = $region141
    $region140: #{wnet_forward.1} parent=1 // pred_region
      _
    $region141: #{wnet_forward.1} parent=1 // pred_fallthru
      _
    // Predicated region
    $region142: #{wnet_forward.1} parent=1 // pred_check
      _
    $region143: #{wnet_forward.1} parent=1 // pred_check_branch
      %299 = sbr.rel (0) target = $region145
    $region144: #{wnet_forward.1} parent=1 // pred_region
      %s301 = ssub.s32 1536, 1536
      %302 = vsyncadd [#allocation23], %s301
      %s303 = sshll.u32 [#allocation22], 4
      %s304 = int_to_ptr.vmem [resolvable:$true] %s303
      %309 = dma.hbm_to_vmem [thread:$0]  %s71, 1536, %s304, [#allocation23], 64, 64, 4
    $region145: #{wnet_forward.1} parent=1 // pred_fallthru
      _
    // Predicated region
    $region146: #{wnet_forward.1} parent=1 // pred_check
      _
    $region147: #{wnet_forward.1} parent=1 // pred_check_branch
      %311 = sbr.rel (0) target = $region149
    $region148: #{wnet_forward.1} parent=1 // pred_region
      %s313 = ssub.s32 16, 16
      %314 = vsyncadd [#allocation23], %s313
      %s316 = sshll.u32 [#allocation24], 4
      %s317 = int_to_ptr.vmem [resolvable:$true] %s316
      %319 = dma.hbm_to_vmem [thread:$0]  %s73, 16, %s317, [#allocation23]
    $region149: #{wnet_forward.1} parent=1 // pred_fallthru
      _
    // Predicated region
    $region150: #{wnet_forward.1} parent=1 // pred_check
      _
    $region151: #{wnet_forward.1} parent=1 // pred_check_branch
      %321 = sbr.rel (0) target = $region153
    $region152: #{wnet_forward.1} parent=1 // pred_region
      _
    $region153: #{wnet_forward.1} parent=1 // pred_fallthru
      _
    // Predicated region
    $region154: #{wnet_forward.1} parent=1 // pred_check
      _
    $region155: #{wnet_forward.1} parent=1 // pred_check_branch
      %323 = sbr.rel (0) target = $region157
    $region156: #{wnet_forward.1} parent=1 // pred_region
      _
    $region157: #{wnet_forward.1} parent=1 // pred_fallthru
      _
    // Predicated region
    $region158: #{wnet_forward.1} parent=1 // pred_check
      _
    $region159: #{wnet_forward.1} parent=1 // pred_check_branch
      %325 = sbr.rel (0) target = $region161
    $region160: #{wnet_forward.1} parent=1 // pred_region
      _
    $region161: #{wnet_forward.1} parent=1 // pred_fallthru
      _
    // Predicated region
    $region162: #{wnet_forward.1} parent=1 // pred_check
      _
    $region163: #{wnet_forward.1} parent=1 // pred_check_branch
      %327 = sbr.rel (0) target = $region165
    $region164: #{wnet_forward.1} parent=1 // pred_region
      %s329 = ssub.s32 32, 32
      %330 = vsyncadd [#allocation26], %s329
      %s331 = sshll.u32 [#allocation25], 4
      %s332 = int_to_ptr.vmem [resolvable:$true] %s331
      %337 = dma.hbm_to_vmem [thread:$0]  %s81, 32, %s332, [#allocation26], 16, 16, 1
    $region165: #{wnet_forward.1} parent=1 // pred_fallthru
      _
    // Predicated region
    $region166: #{wnet_forward.1} parent=1 // pred_check
      _
    $region167: #{wnet_forward.1} parent=1 // pred_check_branch
      %339 = sbr.rel (0) target = $region169
    $region168: #{wnet_forward.1} parent=1 // pred_region
      %s341 = ssub.s32 64, 64
      %342 = vsyncadd [#allocation26], %s341
      %s343 = sshll.u32 [#allocation27], 4
      %s344 = int_to_ptr.vmem [resolvable:$true] %s343
      %349 = dma.hbm_to_vmem [thread:$0]  %s83, 64, %s344, [#allocation26], 16, 16, 1
    $region169: #{wnet_forward.1} parent=1 // pred_fallthru
      _
    // Predicated region
    $region170: #{wnet_forward.1} parent=1 // pred_check
      _
    $region171: #{wnet_forward.1} parent=1 // pred_check_branch
      %351 = sbr.rel (0) target = $region173
    $region172: #{wnet_forward.1} parent=1 // pred_region
      %s353 = ssub.s32 1024, 1024
      %354 = vsyncadd [#allocation29], %s353
      %s355 = sshll.u32 [#allocation28], 4
      %s356 = int_to_ptr.vmem [resolvable:$true] %s355
      %361 = dma.hbm_to_vmem [thread:$0]  %s85, 1024, %s356, [#allocation29], 64, 64, 4
    $region173: #{wnet_forward.1} parent=1 // pred_fallthru
      _
    // Predicated region
    $region174: #{wnet_forward.1} parent=1 // pred_check
      _
    $region175: #{wnet_forward.1} parent=1 // pred_check_branch
      %363 = sbr.rel (0) target = $region177
    $region176: #{wnet_forward.1} parent=1 // pred_region
      %s365 = ssub.s32 16, 16
      %366 = vsyncadd [#allocation29], %s365
      %s368 = sshll.u32 [#allocation30], 4
      %s369 = int_to_ptr.vmem [resolvable:$true] %s368
      %371 = dma.hbm_to_vmem [thread:$0]  %s87, 16, %s369, [#allocation29]
    $region177: #{wnet_forward.1} parent=1 // pred_fallthru
      _
    // Predicated region
    $region178: #{wnet_forward.1} parent=1 // pred_check
      _
    $region179: #{wnet_forward.1} parent=1 // pred_check_branch
      %373 = sbr.rel (0) target = $region181
    $region180: #{wnet_forward.1} parent=1 // pred_region
      %374 = dma.done [#allocation3], 64
    $region181: #{wnet_forward.1} parent=1 // pred_fallthru
      _
    // Predicated region
    $region182: #{wnet_forward.1} parent=1 // pred_check
      _
    $region183: #{wnet_forward.1} parent=1 // pred_check_branch
      %376 = sbr.rel (0) target = $region185
    $region184: #{wnet_forward.1} parent=1 // pred_region
      %377 = dma.done [#allocation5], 64
    $region185: #{wnet_forward.1} parent=1 // pred_fallthru
      _
    // Predicated region
    $region186: #{wnet_forward.1} parent=1 // pred_check
      _
    $region187: #{wnet_forward.1} parent=1 // pred_check_branch
      %379 = sbr.rel (0) target = $region189
    $region188: #{wnet_forward.1} parent=1 // pred_region
      %380 = dma.done [#allocation5], 32
    $region189: #{wnet_forward.1} parent=1 // pred_fallthru
      _
    // Predicated region
    $region190: #{wnet_forward.1} parent=1 // pred_check
      _
    $region191: #{wnet_forward.1} parent=1 // pred_check_branch
      %382 = sbr.rel (0) target = $region193
    $region192: #{wnet_forward.1} parent=1 // pred_region
      %383 = dma.done [#allocation8], 64
    $region193: #{wnet_forward.1} parent=1 // pred_fallthru
      _
    // Predicated region
    $region194: #{wnet_forward.1} parent=1 // pred_check
      _
    $region195: #{wnet_forward.1} parent=1 // pred_check_branch
      %385 = sbr.rel (0) target = $region197
    $region196: #{wnet_forward.1} parent=1 // pred_region
      %386 = dma.done [#allocation8], 1536
    $region197: #{wnet_forward.1} parent=1 // pred_fallthru
      _
    // Predicated region
    $region198: #{wnet_forward.1} parent=1 // pred_check
      _
    $region199: #{wnet_forward.1} parent=1 // pred_check_branch
      %388 = sbr.rel (0) target = $region201
    $region200: #{wnet_forward.1} parent=1 // pred_region
      %389 = dma.done [#allocation11], 16
    $region201: #{wnet_forward.1} parent=1 // pred_fallthru
      _
    // Predicated region
    $region202: #{wnet_forward.1} parent=1 // pred_check
      _
    $region203: #{wnet_forward.1} parent=1 // pred_check_branch
      %391 = sbr.rel (0) target = $region205
    $region204: #{wnet_forward.1} parent=1 // pred_region
      %392 = dma.done [#allocation11], 32
    $region205: #{wnet_forward.1} parent=1 // pred_fallthru
      _
    // Predicated region
    $region206: #{wnet_forward.1} parent=1 // pred_check
      _
    $region207: #{wnet_forward.1} parent=1 // pred_check_branch
      %394 = sbr.rel (0) target = $region209
    $region208: #{wnet_forward.1} parent=1 // pred_region
      %395 = dma.done [#allocation14], 64
    $region209: #{wnet_forward.1} parent=1 // pred_fallthru
      _
    // Predicated region
    $region210: #{wnet_forward.1} parent=1 // pred_check
      _
    $region211: #{wnet_forward.1} parent=1 // pred_check_branch
      %397 = sbr.rel (0) target = $region213
    $region212: #{wnet_forward.1} parent=1 // pred_region
      %398 = dma.done [#allocation14], 512
    $region213: #{wnet_forward.1} parent=1 // pred_fallthru
      _
    // Predicated region
    $region214: #{wnet_forward.1} parent=1 // pred_check
      _
    $region215: #{wnet_forward.1} parent=1 // pred_check_branch
      %400 = sbr.rel (0) target = $region217
    $region216: #{wnet_forward.1} parent=1 // pred_region
      %401 = dma.done [#allocation17], 32
    $region217: #{wnet_forward.1} parent=1 // pred_fallthru
      _
    // Predicated region
    $region218: #{wnet_forward.1} parent=1 // pred_check
      _
    $region219: #{wnet_forward.1} parent=1 // pred_check_branch
      %403 = sbr.rel (0) target = $region221
    $region220: #{wnet_forward.1} parent=1 // pred_region
      %404 = dma.done [#allocation17], 1536
    $region221: #{wnet_forward.1} parent=1 // pred_fallthru
      _
    // Predicated region
    $region222: #{wnet_forward.1} parent=1 // pred_check
      _
    $region223: #{wnet_forward.1} parent=1 // pred_check_branch
      %406 = sbr.rel (0) target = $region225
    $region224: #{wnet_forward.1} parent=1 // pred_region
      %407 = dma.done [#allocation20], 1536
    $region225: #{wnet_forward.1} parent=1 // pred_fallthru
      _
    // Predicated region
    $region226: #{wnet_forward.1} parent=1 // pred_check
      _
    $region227: #{wnet_forward.1} parent=1 // pred_check_branch
      %409 = sbr.rel (0) target = $region229
    $region228: #{wnet_forward.1} parent=1 // pred_region
      %410 = dma.done [#allocation20], 32
    $region229: #{wnet_forward.1} parent=1 // pred_fallthru
      _
    // Predicated region
    $region230: #{wnet_forward.1} parent=1 // pred_check
      _
    $region231: #{wnet_forward.1} parent=1 // pred_check_branch
      %412 = sbr.rel (0) target = $region233
    $region232: #{wnet_forward.1} parent=1 // pred_region
      %413 = dma.done [#allocation23], 1536
    $region233: #{wnet_forward.1} parent=1 // pred_fallthru
      _
    // Predicated region
    $region234: #{wnet_forward.1} parent=1 // pred_check
      _
    $region235: #{wnet_forward.1} parent=1 // pred_check_branch
      %415 = sbr.rel (0) target = $region237
    $region236: #{wnet_forward.1} parent=1 // pred_region
      %416 = dma.done [#allocation23], 16
    $region237: #{wnet_forward.1} parent=1 // pred_fallthru
      _
    // Predicated region
    $region238: #{wnet_forward.1} parent=1 // pred_check
      _
    $region239: #{wnet_forward.1} parent=1 // pred_check_branch
      %418 = sbr.rel (0) target = $region241
    $region240: #{wnet_forward.1} parent=1 // pred_region
      %419 = dma.done [#allocation26], 32
    $region241: #{wnet_forward.1} parent=1 // pred_fallthru
      _
    // Predicated region
    $region242: #{wnet_forward.1} parent=1 // pred_check
      _
    $region243: #{wnet_forward.1} parent=1 // pred_check_branch
      %421 = sbr.rel (0) target = $region245
    $region244: #{wnet_forward.1} parent=1 // pred_region
      %422 = dma.done [#allocation26], 64
    $region245: #{wnet_forward.1} parent=1 // pred_fallthru
      _
    // Predicated region
    $region246: #{wnet_forward.1} parent=1 // pred_check
      _
    $region247: #{wnet_forward.1} parent=1 // pred_check_branch
      %424 = sbr.rel (0) target = $region249
    $region248: #{wnet_forward.1} parent=1 // pred_region
      %425 = dma.done [#allocation29], 1024
    $region249: #{wnet_forward.1} parent=1 // pred_fallthru
      _
    // Predicated region
    $region250: #{wnet_forward.1} parent=1 // pred_check
      _
    $region251: #{wnet_forward.1} parent=1 // pred_check_branch
      %427 = sbr.rel (0) target = $region253
    $region252: #{wnet_forward.1} parent=1 // pred_region
      %428 = dma.done [#allocation29], 16
    $region253: #{wnet_forward.1} parent=1 // pred_fallthru
      _
    %v430 = vld [vmem:[%s3] sm:$0xff]
    %v431 = vld [vmem:[%s3 + $0x8] sm:$0xff]
    %v432 = vld [vmem:[%s3 + $0x10] sm:$0xff]
    %v433 = vld [vmem:[%s3 + $0x18] sm:$0xff]
    %s434 = scalar_lea.vmem %s3, 32
    %v435 = vld [vmem:[%s434] sm:$0xff]
    %v436 = vld [vmem:[%s434 + $0x8] sm:$0xff]
    %v437 = vld [vmem:[%s434 + $0x10] sm:$0xff]
    %v438 = vld [vmem:[%s434 + $0x18] sm:$0xff]
    %v439 = vld [vmem:[%s5] sm:$0xff]
    %v440 = vld [vmem:[%s5 + $0x8] sm:$0xff]
    %s441 = scalar_lea.vmem %s5, 16
    %v442 = vld [vmem:[%s441] sm:$0xff]
    %v443 = vld [vmem:[%s441 + $0x8] sm:$0xff]
    %v444 = vld [vmem:[%s7] sm:$0xf]
    %v445 = vld [vmem:[%s7 + $0x4] sm:$0xf]
    %v446 = vld [vmem:[%s7 + $0x8] sm:$0xf]
    %v447 = vld [vmem:[%s7 + $0xc] sm:$0xf]
    %v448 = vld [vmem:[%s7 + $0x10] sm:$0xf]
    %v449 = vld [vmem:[%s7 + $0x14] sm:$0xf]
    %v450 = vld [vmem:[%s7 + $0x18] sm:$0xf]
    %v451 = vld [vmem:[%s7 + $0x1c] sm:$0xf]
    %v452 = vld [vmem:[%s7 + $0x20] sm:$0xf]
    %v453 = vld [vmem:[%s7 + $0x24] sm:$0xf]
    %v454 = vld [vmem:[%s7 + $0x28] sm:$0xf]
    %v455 = vld [vmem:[%s7 + $0x2c] sm:$0xf]
    %v456 = vld [vmem:[%s7 + $0x30] sm:$0xf]
    %v457 = vld [vmem:[%s7 + $0x34] sm:$0xf]
    %v458 = vld [vmem:[%s7 + $0x38] sm:$0xf]
    %v459 = vld [vmem:[%s7 + $0x3c] sm:$0xf]
    %v460 = vld [vmem:[#allocation2] sm:$0xf]
    %v461 = vld [vmem:[%s11] sm:$0xf]
    %v462 = vld [vmem:[%s11 + $0x4] sm:$0xf]
    %v463 = vld [vmem:[%s11 + $0x8] sm:$0xf]
    %v464 = vld [vmem:[%s11 + $0xc] sm:$0xf]
    %v465 = vld [vmem:[%s11 + $0x10] sm:$0xf]
    %v466 = vld [vmem:[%s11 + $0x14] sm:$0xf]
    %v467 = vld [vmem:[%s11 + $0x18] sm:$0xf]
    %v468 = vld [vmem:[%s11 + $0x1c] sm:$0xf]
    %v469 = vld [vmem:[#allocation4] sm:$0xf]
    %v470 = vld [vmem:[%s15] sm:$0xf]
    %v471 = vld [vmem:[%s15 + $0x4] sm:$0xf]
    %v472 = vld [vmem:[%s17] sm:$0xf]
    %v473 = vld [vmem:[%s17 + $0x4] sm:$0xf]
    %v474 = vld [vmem:[%s17 + $0x8] sm:$0xf]
    %v475 = vld [vmem:[%s17 + $0xc] sm:$0xf]
    %v476 = vld [vmem:[%s17 + $0x10] sm:$0xf]
    %v477 = vld [vmem:[%s17 + $0x14] sm:$0xf]
    %v478 = vld [vmem:[%s17 + $0x18] sm:$0xf]
    %v479 = vld [vmem:[%s17 + $0x1c] sm:$0xf]
    %v480 = vld [vmem:[%s17 + $0x20] sm:$0xf]
    %v481 = vld [vmem:[%s17 + $0x24] sm:$0xf]
    %v482 = vld [vmem:[%s17 + $0x28] sm:$0xf]
    %v483 = vld [vmem:[%s17 + $0x2c] sm:$0xf]
    %v484 = vld [vmem:[%s17 + $0x30] sm:$0xf]
    %v485 = vld [vmem:[%s17 + $0x34] sm:$0xf]
    %v486 = vld [vmem:[%s17 + $0x38] sm:$0xf]
    %v487 = vld [vmem:[%s17 + $0x3c] sm:$0xf]
    %s488 = scalar_lea.vmem %s17, 64
    %v489 = vld [vmem:[%s488] sm:$0xf]
    %v490 = vld [vmem:[%s488 + $0x4] sm:$0xf]
    %v491 = vld [vmem:[%s488 + $0x8] sm:$0xf]
    %v492 = vld [vmem:[%s488 + $0xc] sm:$0xf]
    %v493 = vld [vmem:[%s488 + $0x10] sm:$0xf]
    %v494 = vld [vmem:[%s488 + $0x14] sm:$0xf]
    %v495 = vld [vmem:[%s488 + $0x18] sm:$0xf]
    %v496 = vld [vmem:[%s488 + $0x1c] sm:$0xf]
    %v497 = vld [vmem:[%s488 + $0x20] sm:$0xf]
    %v498 = vld [vmem:[%s488 + $0x24] sm:$0xf]
    %v499 = vld [vmem:[%s488 + $0x28] sm:$0xf]
    %v500 = vld [vmem:[%s488 + $0x2c] sm:$0xf]
    %v501 = vld [vmem:[%s488 + $0x30] sm:$0xf]
    %v502 = vld [vmem:[%s488 + $0x34] sm:$0xf]
    %v503 = vld [vmem:[%s488 + $0x38] sm:$0xf]
    %v504 = vld [vmem:[%s488 + $0x3c] sm:$0xf]
    %v505 = vld [vmem:[%s1] sm:$0xff]
    %v506 = vld [vmem:[%s1 + $0x8] sm:$0xff]
    %v507 = vld [vmem:[%s1 + $0x10] sm:$0xff]
    %v508 = vld [vmem:[%s1 + $0x18] sm:$0xff]
    %v509 = vld [vmem:[%s25] sm:$0x1]
    %v510 = vpack.c.bf16 %v506, %v505
    %v511 = vpack.c.bf16 %v508, %v507
    %v512 = vld [vmem:[%s21] sm:$0xf]
    %v513 = vld [vmem:[%s21 + $0x4] sm:$0xf]
    %v514 = vld [vmem:[%s21 + $0x8] sm:$0xf]
    %v515 = vld [vmem:[%s21 + $0xc] sm:$0xf]
    %v516 = vld [vmem:[%s21 + $0x10] sm:$0xf]
    %v517 = vld [vmem:[%s21 + $0x14] sm:$0xf]
    %v518 = vld [vmem:[%s21 + $0x18] sm:$0xf]
    %v519 = vld [vmem:[%s21 + $0x1c] sm:$0xf]
    %v520 = vld [vmem:[%s21 + $0x20] sm:$0xf]
    %v521 = vld [vmem:[%s21 + $0x24] sm:$0xf]
    %v522 = vld [vmem:[%s21 + $0x28] sm:$0xf]
    %v523 = vld [vmem:[%s21 + $0x2c] sm:$0xf]
    %v524 = vld [vmem:[%s21 + $0x30] sm:$0xf]
    %v525 = vld [vmem:[%s21 + $0x34] sm:$0xf]
    %v526 = vld [vmem:[%s21 + $0x38] sm:$0xf]
    %v527 = vld [vmem:[%s21 + $0x3c] sm:$0xf]
    %v544 = vunpack.c.l.b16 %v512
    %v545 = vunpack.c.l.b16 %v513
    %v546 = vunpack.c.l.b16 %v514
    %v547 = vunpack.c.l.b16 %v515
    %v548 = vunpack.c.l.b16 %v516
    %v549 = vunpack.c.l.b16 %v517
    %v550 = vunpack.c.l.b16 %v518
    %v551 = vunpack.c.l.b16 %v519
    %v552 = vunpack.c.l.b16 %v520
    %v553 = vunpack.c.l.b16 %v521
    %v554 = vunpack.c.l.b16 %v522
    %v555 = vunpack.c.l.b16 %v523
    %v556 = vunpack.c.l.b16 %v524
    %v557 = vunpack.c.l.b16 %v525
    %v558 = vunpack.c.l.b16 %v526
    %v559 = vunpack.c.l.b16 %v527
    %v560 = vpack.c.b16 %v545, %v544
    %v561 = vpack.c.b16 %v547, %v546
    %v562 = vpack.c.b16 %v549, %v548
    %v563 = vpack.c.b16 %v551, %v550
    %v564 = vpack.c.b16 %v553, %v552
    %v565 = vpack.c.b16 %v555, %v554
    %v566 = vpack.c.b16 %v557, %v556
    %v567 = vpack.c.b16 %v559, %v558
    %576 = vmatprep.subr.bf16.mxu0 0
    %577 = vmatpush1.bf16.msra.mxu0 %v560
    %578 = vmatprep.subr.bf16.mxu0 0
    %579 = vmatpush1.bf16.msra.mxu0 %v561
    %580 = vmatprep.subr.bf16.mxu0 0
    %581 = vmatpush1.bf16.msra.mxu0 %v562
    %582 = vmatprep.subr.bf16.mxu0 0
    %583 = vmatpush1.bf16.msra.mxu0 %v563
    %584 = vmatprep.subr.bf16.mxu0 0
    %585 = vmatpush1.bf16.msra.mxu0 %v564
    %586 = vmatprep.subr.bf16.mxu0 0
    %587 = vmatpush1.bf16.msra.mxu0 %v565
    %588 = vmatprep.subr.bf16.mxu0 0
    %589 = vmatpush1.bf16.msra.mxu0 %v566
    %590 = vmatprep.subr.bf16.mxu0 0
    %591 = vmatpush1.bf16.msra.mxu0 %v567
    %592 = vmatprep.subr.bf16.mxu0 0
    %593 = vmatpush1.bf16.msra.mxu0 0
    %594 = vmatprep.subr.bf16.mxu0 0
    %595 = vmatpush1.bf16.msra.mxu0 0
    %596 = vmatprep.subr.bf16.mxu0 0
    %597 = vmatpush1.bf16.msra.mxu0 0
    %598 = vmatprep.subr.bf16.mxu0 0
    %599 = vmatpush1.bf16.msra.mxu0 0
    %600 = vmatprep.subr.bf16.mxu0 0
    %601 = vmatpush1.bf16.msra.mxu0 0
    %602 = vmatprep.subr.bf16.mxu0 0
    %603 = vmatpush1.bf16.msra.mxu0 0
    %604 = vmatprep.subr.bf16.mxu0 0
    %605 = vmatpush1.bf16.msra.mxu0 0
    %606 = vmatprep.subr.bf16.mxu0 0
    %607 = vmatpush1.bf16.msra.mxu0 0
    %608 = vmatprep.mubr.bf16.mxu0 0
    %609 = vmatmul.mubr.bf16.gmra.mrb[0].mxu0 %v510
    %v610 = vpop.f32.mrb[0].mxu0
    %v611 = vadd.f32 0.0, %v610
    %v612 = vpop.f32.mrb[0].mxu0
    %v613 = vpop.f32.mrb[0].mxu0
    %v614 = vadd.f32 0.0, %v613
    %v615 = vpop.f32.mrb[0].mxu0
    %616 = vmatprep.mubr.bf16.mxu0 0
    %617 = vmatmul.mubr.bf16.gmra.mrb[0].mxu0 %v511
    %v618 = vpop.f32.mrb[0].mxu0
    %v619 = vadd.f32 0.0, %v618
    %v620 = vpop.f32.mrb[0].mxu0
    %v621 = vpop.f32.mrb[0].mxu0
    %v622 = vadd.f32 0.0, %v621
    %v623 = vpop.f32.mrb[0].mxu0
    %624 = vdwg.mxu0
    %s625 = scalar_lea.vmem %s21, 64
    %v626 = vld [vmem:[%s625] sm:$0xf]
    %v627 = vld [vmem:[%s625 + $0x4] sm:$0xf]
    %v628 = vld [vmem:[%s625 + $0x8] sm:$0xf]
    %v629 = vld [vmem:[%s625 + $0xc] sm:$0xf]
    %v630 = vld [vmem:[%s625 + $0x10] sm:$0xf]
    %v631 = vld [vmem:[%s625 + $0x14] sm:$0xf]
    %v632 = vld [vmem:[%s625 + $0x18] sm:$0xf]
    %v633 = vld [vmem:[%s625 + $0x1c] sm:$0xf]
    %v634 = vld [vmem:[%s625 + $0x20] sm:$0xf]
    %v635 = vld [vmem:[%s625 + $0x24] sm:$0xf]
    %v636 = vld [vmem:[%s625 + $0x28] sm:$0xf]
    %v637 = vld [vmem:[%s625 + $0x2c] sm:$0xf]
    %v638 = vld [vmem:[%s625 + $0x30] sm:$0xf]
    %v639 = vld [vmem:[%s625 + $0x34] sm:$0xf]
    %v640 = vld [vmem:[%s625 + $0x38] sm:$0xf]
    %v641 = vld [vmem:[%s625 + $0x3c] sm:$0xf]
    %s642 = scalar_lea.vmem %s21, 128
    %v643 = vld [vmem:[%s642] sm:$0xf]
    %v644 = vld [vmem:[%s642 + $0x4] sm:$0xf]
    %v645 = vld [vmem:[%s642 + $0x8] sm:$0xf]
    %v646 = vld [vmem:[%s642 + $0xc] sm:$0xf]
    %v647 = vld [vmem:[%s642 + $0x10] sm:$0xf]
    %v648 = vld [vmem:[%s642 + $0x14] sm:$0xf]
    %v649 = vld [vmem:[%s642 + $0x18] sm:$0xf]
    %v650 = vld [vmem:[%s642 + $0x1c] sm:$0xf]
    %v651 = vld [vmem:[%s642 + $0x20] sm:$0xf]
    %v652 = vld [vmem:[%s642 + $0x24] sm:$0xf]
    %v653 = vld [vmem:[%s642 + $0x28] sm:$0xf]
    %v654 = vld [vmem:[%s642 + $0x2c] sm:$0xf]
    %v655 = vld [vmem:[%s642 + $0x30] sm:$0xf]
    %v656 = vld [vmem:[%s642 + $0x34] sm:$0xf]
    %v657 = vld [vmem:[%s642 + $0x38] sm:$0xf]
    %v658 = vld [vmem:[%s642 + $0x3c] sm:$0xf]
    %v675 = vunpack.c.l.b16 %v643
    %v676 = vunpack.c.l.b16 %v644
    %v677 = vunpack.c.l.b16 %v645
    %v678 = vunpack.c.l.b16 %v646
    %v679 = vunpack.c.l.b16 %v647
    %v680 = vunpack.c.l.b16 %v648
    %v681 = vunpack.c.l.b16 %v649
    %v682 = vunpack.c.l.b16 %v650
    %v683 = vunpack.c.l.b16 %v651
    %v684 = vunpack.c.l.b16 %v652
    %v685 = vunpack.c.l.b16 %v653
    %v686 = vunpack.c.l.b16 %v654
    %v687 = vunpack.c.l.b16 %v655
    %v688 = vunpack.c.l.b16 %v656
    %v689 = vunpack.c.l.b16 %v657
    %v690 = vunpack.c.l.b16 %v658
    %v691 = vpack.c.b16 %v676, %v675
    %v692 = vpack.c.b16 %v678, %v677
    %v693 = vpack.c.b16 %v680, %v679
    %v694 = vpack.c.b16 %v682, %v681
    %v695 = vpack.c.b16 %v684, %v683
    %v696 = vpack.c.b16 %v686, %v685
    %v697 = vpack.c.b16 %v688, %v687
    %v698 = vpack.c.b16 %v690, %v689
    %707 = vmatprep.subr.bf16.mxu0 0
    %708 = vmatpush1.bf16.msra.mxu0 %v691
    %709 = vmatprep.subr.bf16.mxu0 0
    %710 = vmatpush1.bf16.msra.mxu0 %v692
    %711 = vmatprep.subr.bf16.mxu0 0
    %712 = vmatpush1.bf16.msra.mxu0 %v693
    %713 = vmatprep.subr.bf16.mxu0 0
    %714 = vmatpush1.bf16.msra.mxu0 %v694
    %715 = vmatprep.subr.bf16.mxu0 0
    %716 = vmatpush1.bf16.msra.mxu0 %v695
    %717 = vmatprep.subr.bf16.mxu0 0
    %718 = vmatpush1.bf16.msra.mxu0 %v696
    %719 = vmatprep.subr.bf16.mxu0 0
    %720 = vmatpush1.bf16.msra.mxu0 %v697
    %721 = vmatprep.subr.bf16.mxu0 0
    %722 = vmatpush1.bf16.msra.mxu0 %v698
    %723 = vmatprep.subr.bf16.mxu0 0
    %724 = vmatpush1.bf16.msra.mxu0 0
    %725 = vmatprep.subr.bf16.mxu0 0
    %726 = vmatpush1.bf16.msra.mxu0 0
    %727 = vmatprep.subr.bf16.mxu0 0
    %728 = vmatpush1.bf16.msra.mxu0 0
    %729 = vmatprep.subr.bf16.mxu0 0
    %730 = vmatpush1.bf16.msra.mxu0 0
    %731 = vmatprep.subr.bf16.mxu0 0
    %732 = vmatpush1.bf16.msra.mxu0 0
    %733 = vmatprep.subr.bf16.mxu0 0
    %734 = vmatpush1.bf16.msra.mxu0 0
    %735 = vmatprep.subr.bf16.mxu0 0
    %736 = vmatpush1.bf16.msra.mxu0 0
    %737 = vmatprep.subr.bf16.mxu0 0
    %738 = vmatpush1.bf16.msra.mxu0 0
    %739 = vmatprep.mubr.bf16.mxu0 0
    %740 = vmatmul.mubr.bf16.gmra.mrb[0].mxu0 %v510
    %v741 = vpop.f32.mrb[0].mxu0
    %v742 = vadd.f32 0.0, %v741
    %v743 = vpop.f32.mrb[0].mxu0
    %v744 = vpop.f32.mrb[0].mxu0
    %v745 = vadd.f32 0.0, %v744
    %v746 = vpop.f32.mrb[0].mxu0
    %747 = vmatprep.mubr.bf16.mxu0 0
    %748 = vmatmul.mubr.bf16.gmra.mrb[0].mxu0 %v511
    %v749 = vpop.f32.mrb[0].mxu0
    %v750 = vadd.f32 0.0, %v749
    %v751 = vpop.f32.mrb[0].mxu0
    %v752 = vpop.f32.mrb[0].mxu0
    %v753 = vadd.f32 0.0, %v752
    %v754 = vpop.f32.mrb[0].mxu0
    %755 = vdwg.mxu0
    %v756 = vrot.slane %v611, 7
    %v757 = vrot.slane %v614, 7
    %v758 = vrot.slane %v619, 7
    %v759 = vrot.slane %v622, 7
    %v760 = vlaneseq
    %v761 = vshrl.u32 %v760, 7
    %vm762 = vcmp.lt.s32.totalorder %v761, 1
    %v763 = vsel %vm762, %v758, %v759
    %v764 = vsel %vm762, %v757, %v758
    %v765 = vsel %vm762, %v756, %v757
    %v766 = vsel %vm762, %v759, %v756
    %v767 = vrot.slane %v742, 1
    %v768 = vrot.slane %v745, 1
    %v769 = vrot.slane %v750, 1
    %v770 = vrot.slane %v753, 1
    %vm771 = vcmp.lt.s32.totalorder %v761, 7
    %v772 = vsel %vm771, %v769, %v770
    %v773 = vsel %vm771, %v768, %v769
    %v774 = vsel %vm771, %v767, %v768
    %v775 = vsel %vm771, %v770, %v767
    %777 = vset.pattern.permute.xlu0 0
    %778 = vperm.xlu0 %777, %v430
    %v779 = vpop.permute.xlu0 %778
    %782 = vset.pattern.permute.xlu0 0
    %783 = vperm.xlu0 %782, %v431
    %v784 = vpop.permute.xlu0 %783
    %787 = vset.pattern.permute.xlu0 0
    %788 = vperm.xlu0 %787, %v432
    %v789 = vpop.permute.xlu0 %788
    %792 = vset.pattern.permute.xlu0 0
    %793 = vperm.xlu0 %792, %v433
    %v794 = vpop.permute.xlu0 %793
    %v796 = vmul.f32 %v779, %v766
    %v797 = vmul.f32 %v784, %v765
    %v798 = vmul.f32 %v789, %v764
    %v799 = vmul.f32 %v794, %v763
    %v816 = vunpack.c.l.b16 %v626
    %v817 = vunpack.c.l.b16 %v627
    %v818 = vunpack.c.l.b16 %v628
    %v819 = vunpack.c.l.b16 %v629
    %v820 = vunpack.c.l.b16 %v630
    %v821 = vunpack.c.l.b16 %v631
    %v822 = vunpack.c.l.b16 %v632
    %v823 = vunpack.c.l.b16 %v633
    %v824 = vunpack.c.l.b16 %v634
    %v825 = vunpack.c.l.b16 %v635
    %v826 = vunpack.c.l.b16 %v636
    %v827 = vunpack.c.l.b16 %v637
    %v828 = vunpack.c.l.b16 %v638
    %v829 = vunpack.c.l.b16 %v639
    %v830 = vunpack.c.l.b16 %v640
    %v831 = vunpack.c.l.b16 %v641
    %v832 = vpack.c.b16 %v817, %v816
    %v833 = vpack.c.b16 %v819, %v818
    %v834 = vpack.c.b16 %v821, %v820
    %v835 = vpack.c.b16 %v823, %v822
    %v836 = vpack.c.b16 %v825, %v824
    %v837 = vpack.c.b16 %v827, %v826
    %v838 = vpack.c.b16 %v829, %v828
    %v839 = vpack.c.b16 %v831, %v830
    %848 = vmatprep.subr.bf16.mxu0 0
    %849 = vmatpush1.bf16.msra.mxu0 %v832
    %850 = vmatprep.subr.bf16.mxu0 0
    %851 = vmatpush1.bf16.msra.mxu0 %v833
    %852 = vmatprep.subr.bf16.mxu0 0
    %853 = vmatpush1.bf16.msra.mxu0 %v834
    %854 = vmatprep.subr.bf16.mxu0 0
    %855 = vmatpush1.bf16.msra.mxu0 %v835
    %856 = vmatprep.subr.bf16.mxu0 0
    %857 = vmatpush1.bf16.msra.mxu0 %v836
    %858 = vmatprep.subr.bf16.mxu0 0
    %859 = vmatpush1.bf16.msra.mxu0 %v837
    %860 = vmatprep.subr.bf16.mxu0 0
    %861 = vmatpush1.bf16.msra.mxu0 %v838
    %862 = vmatprep.subr.bf16.mxu0 0
    %863 = vmatpush1.bf16.msra.mxu0 %v839
    %864 = vmatprep.subr.bf16.mxu0 0
    %865 = vmatpush1.bf16.msra.mxu0 0
    %866 = vmatprep.subr.bf16.mxu0 0
    %867 = vmatpush1.bf16.msra.mxu0 0
    %868 = vmatprep.subr.bf16.mxu0 0
    %869 = vmatpush1.bf16.msra.mxu0 0
    %870 = vmatprep.subr.bf16.mxu0 0
    %871 = vmatpush1.bf16.msra.mxu0 0
    %872 = vmatprep.subr.bf16.mxu0 0
    %873 = vmatpush1.bf16.msra.mxu0 0
    %874 = vmatprep.subr.bf16.mxu0 0
    %875 = vmatpush1.bf16.msra.mxu0 0
    %876 = vmatprep.subr.bf16.mxu0 0
    %877 = vmatpush1.bf16.msra.mxu0 0
    %878 = vmatprep.subr.bf16.mxu0 0
    %879 = vmatpush1.bf16.msra.mxu0 0
    %880 = vmatprep.mubr.bf16.mxu0 0
    %881 = vmatmul.mubr.bf16.gmra.mrb[0].mxu0 %v510
    %v882 = vpop.f32.mrb[0].mxu0
    %v883 = vadd.f32 %v796, %v882
    %v884 = vpop.f32.mrb[0].mxu0
    %v885 = vpop.f32.mrb[0].mxu0
    %v886 = vadd.f32 %v797, %v885
    %v887 = vpop.f32.mrb[0].mxu0
    %888 = vmatprep.mubr.bf16.mxu0 0
    %889 = vmatmul.mubr.bf16.gmra.mrb[0].mxu0 %v511
    %v890 = vpop.f32.mrb[0].mxu0
    %v891 = vadd.f32 %v798, %v890
    %v892 = vpop.f32.mrb[0].mxu0
    %v893 = vpop.f32.mrb[0].mxu0
    %v894 = vadd.f32 %v799, %v893
    %v895 = vpop.f32.mrb[0].mxu0
    %896 = vdwg.mxu0
    %898 = vset.pattern.permute.xlu0 0
    %899 = vperm.xlu0 %898, %v435
    %v900 = vpop.permute.xlu0 %899
    %903 = vset.pattern.permute.xlu0 0
    %904 = vperm.xlu0 %903, %v436
    %v905 = vpop.permute.xlu0 %904
    %908 = vset.pattern.permute.xlu0 0
    %909 = vperm.xlu0 %908, %v437
    %v910 = vpop.permute.xlu0 %909
    %913 = vset.pattern.permute.xlu0 0
    %914 = vperm.xlu0 %913, %v438
    %v915 = vpop.permute.xlu0 %914
    %v917 = vmul.f32 %v900, %v774
    %v918 = vmul.f32 %v905, %v773
    %v919 = vmul.f32 %v910, %v772
    %v920 = vmul.f32 %v915, %v775
    %v921 = vadd.f32 %v883, %v917
    %v922 = vadd.f32 %v886, %v918
    %v923 = vadd.f32 %v891, %v919
    %v924 = vadd.f32 %v894, %v920
    %v926 = vlaneseq
    %v927 = vshrl.u32 %v926, 7
    %v928 = vsub.s32 0, %v927
    %v929 = vrot.slane %v509, %v928
    %v931 = vadd.f32 %v921, %v929
    %v932 = vadd.f32 %v922, %v929
    %v933 = vadd.f32 %v923, %v929
    %v934 = vadd.f32 %v924, %v929
    %v935 = vmax.f32 %v931, 0.0
    %v936 = vmax.f32 %v932, 0.0
    %v937 = vmax.f32 %v933, 0.0
    %v938 = vmax.f32 %v934, 0.0
    %v939 = vld [vmem:[%s27] sm:$0x1]
    %s940 = scalar_lea.vmem %s27, 1
    %v941 = vld [vmem:[%s940] sm:$0x1]
    %v942 = vadd.f32 %v935, %v936
    %v943 = vadd.f32 %v942, %v937
    %v944 = vadd.f32 %v943, %v938
    %v945 = vrot.slane %v944, 4
    %v946 = vadd.f32 %v944, %v945
    %v947 = vrot.slane %v946, 2
    %v948 = vadd.f32 %v946, %v947
    %v949 = vrot.slane %v948, 1
    %v950 = vadd.f32 %v948, %v949
    %v951 = vmul.f32 %v935, %v935
    %v952 = vmul.f32 %v936, %v936
    %v953 = vmul.f32 %v937, %v937
    %v954 = vmul.f32 %v938, %v938
    %v955 = vadd.f32 %v951, %v952
    %v956 = vadd.f32 %v955, %v953
    %v957 = vadd.f32 %v956, %v954
    %v958 = vrot.slane %v957, 4
    %v959 = vadd.f32 %v957, %v958
    %v960 = vrot.slane %v959, 2
    %v961 = vadd.f32 %v959, %v960
    %v962 = vrot.slane %v961, 1
    %v963 = vadd.f32 %v961, %v962
    %v964 = vpack.c.bf16 %v950, %v950
    %v981 = vunpack.c.l.b16 %v444
    %v982 = vunpack.c.l.b16 %v445
    %v983 = vunpack.c.l.b16 %v446
    %v984 = vunpack.c.l.b16 %v447
    %v985 = vunpack.c.l.b16 %v448
    %v986 = vunpack.c.l.b16 %v449
    %v987 = vunpack.c.l.b16 %v450
    %v988 = vunpack.c.l.b16 %v451
    %v989 = vunpack.c.l.b16 %v452
    %v990 = vunpack.c.l.b16 %v453
    %v991 = vunpack.c.l.b16 %v454
    %v992 = vunpack.c.l.b16 %v455
    %v993 = vunpack.c.l.b16 %v456
    %v994 = vunpack.c.l.b16 %v457
    %v995 = vunpack.c.l.b16 %v458
    %v996 = vunpack.c.l.b16 %v459
    %v997 = vpack.c.b16 %v982, %v981
    %v998 = vpack.c.b16 %v984, %v983
    %v999 = vpack.c.b16 %v986, %v985
    %v1000 = vpack.c.b16 %v988, %v987
    %v1001 = vpack.c.b16 %v990, %v989
    %v1002 = vpack.c.b16 %v992, %v991
    %v1003 = vpack.c.b16 %v994, %v993
    %v1004 = vpack.c.b16 %v996, %v995
    %1013 = vmatprep.subr.bf16.mxu0 0
    %1014 = vmatpush1.bf16.msra.mxu0 %v997
    %1015 = vmatprep.subr.bf16.mxu0 0
    %1016 = vmatpush1.bf16.msra.mxu0 %v998
    %1017 = vmatprep.subr.bf16.mxu0 0
    %1018 = vmatpush1.bf16.msra.mxu0 %v999
    %1019 = vmatprep.subr.bf16.mxu0 0
    %1020 = vmatpush1.bf16.msra.mxu0 %v1000
    %1021 = vmatprep.subr.bf16.mxu0 0
    %1022 = vmatpush1.bf16.msra.mxu0 %v1001
    %1023 = vmatprep.subr.bf16.mxu0 0
    %1024 = vmatpush1.bf16.msra.mxu0 %v1002
    %1025 = vmatprep.subr.bf16.mxu0 0
    %1026 = vmatpush1.bf16.msra.mxu0 %v1003
    %1027 = vmatprep.subr.bf16.mxu0 0
    %1028 = vmatpush1.bf16.msra.mxu0 %v1004
    %1029 = vmatprep.subr.bf16.mxu0 0
    %1030 = vmatpush1.bf16.msra.mxu0 0
    %1031 = vmatprep.subr.bf16.mxu0 0
    %1032 = vmatpush1.bf16.msra.mxu0 0
    %1033 = vmatprep.subr.bf16.mxu0 0
    %1034 = vmatpush1.bf16.msra.mxu0 0
    %1035 = vmatprep.subr.bf16.mxu0 0
    %1036 = vmatpush1.bf16.msra.mxu0 0
    %1037 = vmatprep.subr.bf16.mxu0 0
    %1038 = vmatpush1.bf16.msra.mxu0 0
    %1039 = vmatprep.subr.bf16.mxu0 0
    %1040 = vmatpush1.bf16.msra.mxu0 0
    %1041 = vmatprep.subr.bf16.mxu0 0
    %1042 = vmatpush1.bf16.msra.mxu0 0
    %1043 = vmatprep.subr.bf16.mxu0 0
    %1044 = vmatpush1.bf16.msra.mxu0 0
    %1045 = vmatprep.mubr.bf16.mxu0 0
    %1046 = vmatmul.mubr.bf16.gmra.mrb[0].mxu0 %v964
    %v1047 = vpop.f32.mrb[0].mxu0
    %v1048 = vadd.f32 0.0, %v1047
    %v1049 = vpop.f32.mrb[0].mxu0
    %v1050 = vpop.f32.mrb[0].mxu0
    %v1051 = vpop.f32.mrb[0].mxu0
    %1052 = vdwg.mxu0
    %v1053 = vpack.c.bf16 %v963, %v963
    %1054 = vmatprep.subr.bf16.mxu0 0
    %1055 = vmatpush1.bf16.msra.mxu0 %v997
    %1056 = vmatprep.subr.bf16.mxu0 0
    %1057 = vmatpush1.bf16.msra.mxu0 %v998
    %1058 = vmatprep.subr.bf16.mxu0 0
    %1059 = vmatpush1.bf16.msra.mxu0 %v999
    %1060 = vmatprep.subr.bf16.mxu0 0
    %1061 = vmatpush1.bf16.msra.mxu0 %v1000
    %1062 = vmatprep.subr.bf16.mxu0 0
    %1063 = vmatpush1.bf16.msra.mxu0 %v1001
    %1064 = vmatprep.subr.bf16.mxu0 0
    %1065 = vmatpush1.bf16.msra.mxu0 %v1002
    %1066 = vmatprep.subr.bf16.mxu0 0
    %1067 = vmatpush1.bf16.msra.mxu0 %v1003
    %1068 = vmatprep.subr.bf16.mxu0 0
    %1069 = vmatpush1.bf16.msra.mxu0 %v1004
    %1070 = vmatprep.subr.bf16.mxu0 0
    %1071 = vmatpush1.bf16.msra.mxu0 0
    %1072 = vmatprep.subr.bf16.mxu0 0
    %1073 = vmatpush1.bf16.msra.mxu0 0
    %1074 = vmatprep.subr.bf16.mxu0 0
    %1075 = vmatpush1.bf16.msra.mxu0 0
    %1076 = vmatprep.subr.bf16.mxu0 0
    %1077 = vmatpush1.bf16.msra.mxu0 0
    %1078 = vmatprep.subr.bf16.mxu0 0
    %1079 = vmatpush1.bf16.msra.mxu0 0
    %1080 = vmatprep.subr.bf16.mxu0 0
    %1081 = vmatpush1.bf16.msra.mxu0 0
    %1082 = vmatprep.subr.bf16.mxu0 0
    %1083 = vmatpush1.bf16.msra.mxu0 0
    %1084 = vmatprep.subr.bf16.mxu0 0
    %1085 = vmatpush1.bf16.msra.mxu0 0
    %1086 = vmatprep.mubr.bf16.mxu0 0
    %1087 = vmatmul.mubr.bf16.gmra.mrb[0].mxu0 %v1053
    %v1088 = vpop.f32.mrb[0].mxu0
    %v1089 = vadd.f32 0.0, %v1088
    %v1090 = vpop.f32.mrb[0].mxu0
    %v1091 = vpop.f32.mrb[0].mxu0
    %v1092 = vpop.f32.mrb[0].mxu0
    %1093 = vdwg.mxu0
    %v1094 = vmul.f32 %v1048, 0.001953125
    %v1095 = vmul.f32 %v1089, 0.001953125
    %v1096 = vmul.f32 %v1094, %v1094
    %v1097 = vsub.f32 %v1095, %v1096
    %v1098 = vmax.f32 %v1097, 0.0
    %v1099 = vadd.f32 %v1098, 1e-05
    %v1100 = vrsqrt.pop %v1099
    %v1101 = vmul.f32 %v939, %v1100
    %v1102 = vmul.f32 %v1094, %v1101
    %v1103 = vsub.f32 %v941, %v1102
    %v1104 = vpack.c.bf16 %v1101, %v1101
    %vm1105 = vcmask 64512
    %v1107 = vsel %vm1105, %v1104, 0
    %vm1109 = vcmask 1043456
    %v1111 = vsel %vm1109, %v460, 0
    %1113 = vmatprep.subr.bf16.mxu0 0
    %1114 = vmatpush1.bf16.msra.mxu0 %v1111
    %1115 = vmatprep.subr.bf16.mxu0 0
    %1116 = vmatpush1.bf16.msra.mxu0 0
    %1117 = vmatprep.subr.bf16.mxu0 0
    %1118 = vmatpush1.bf16.msra.mxu0 0
    %1119 = vmatprep.subr.bf16.mxu0 0
    %1120 = vmatpush1.bf16.msra.mxu0 0
    %1121 = vmatprep.subr.bf16.mxu0 0
    %1122 = vmatpush1.bf16.msra.mxu0 0
    %1123 = vmatprep.subr.bf16.mxu0 0
    %1124 = vmatpush1.bf16.msra.mxu0 0
    %1125 = vmatprep.subr.bf16.mxu0 0
    %1126 = vmatpush1.bf16.msra.mxu0 0
    %1127 = vmatprep.subr.bf16.mxu0 0
    %1128 = vmatpush1.bf16.msra.mxu0 0
    %1129 = vmatprep.subr.bf16.mxu0 0
    %1130 = vmatpush1.bf16.msra.mxu0 0
    %1131 = vmatprep.subr.bf16.mxu0 0
    %1132 = vmatpush1.bf16.msra.mxu0 0
    %1133 = vmatprep.subr.bf16.mxu0 0
    %1134 = vmatpush1.bf16.msra.mxu0 0
    %1135 = vmatprep.subr.bf16.mxu0 0
    %1136 = vmatpush1.bf16.msra.mxu0 0
    %1137 = vmatprep.subr.bf16.mxu0 0
    %1138 = vmatpush1.bf16.msra.mxu0 0
    %1139 = vmatprep.subr.bf16.mxu0 0
    %1140 = vmatpush1.bf16.msra.mxu0 0
    %1141 = vmatprep.subr.bf16.mxu0 0
    %1142 = vmatpush1.bf16.msra.mxu0 0
    %1143 = vmatprep.subr.bf16.mxu0 0
    %1144 = vmatpush1.bf16.msra.mxu0 0
    %1145 = vmatprep.mubr.bf16.mxu0 0
    %1146 = vmatmul.mubr.bf16.gmra.mrb[0].mxu0 %v1107
    %v1147 = vpop.f32.mrb[0].mxu0
    %v1148 = vadd.f32 0.0, %v1147
    %v1149 = vpop.f32.mrb[0].mxu0
    %v1150 = vpop.f32.mrb[0].mxu0
    %v1151 = vpop.f32.mrb[0].mxu0
    %1152 = vdwg.mxu0
    %v1153 = vpack.c.bf16 %v1103, %v1103
    %v1155 = vsel %vm1105, %v1153, 0
    %1157 = vmatprep.subr.bf16.mxu0 0
    %1158 = vmatpush1.bf16.msra.mxu0 %v1111
    %1159 = vmatprep.subr.bf16.mxu0 0
    %1160 = vmatpush1.bf16.msra.mxu0 0
    %1161 = vmatprep.subr.bf16.mxu0 0
    %1162 = vmatpush1.bf16.msra.mxu0 0
    %1163 = vmatprep.subr.bf16.mxu0 0
    %1164 = vmatpush1.bf16.msra.mxu0 0
    %1165 = vmatprep.subr.bf16.mxu0 0
    %1166 = vmatpush1.bf16.msra.mxu0 0
    %1167 = vmatprep.subr.bf16.mxu0 0
    %1168 = vmatpush1.bf16.msra.mxu0 0
    %1169 = vmatprep.subr.bf16.mxu0 0
    %1170 = vmatpush1.bf16.msra.mxu0 0
    %1171 = vmatprep.subr.bf16.mxu0 0
    %1172 = vmatpush1.bf16.msra.mxu0 0
    %1173 = vmatprep.subr.bf16.mxu0 0
    %1174 = vmatpush1.bf16.msra.mxu0 0
    %1175 = vmatprep.subr.bf16.mxu0 0
    %1176 = vmatpush1.bf16.msra.mxu0 0
    %1177 = vmatprep.subr.bf16.mxu0 0
    %1178 = vmatpush1.bf16.msra.mxu0 0
    %1179 = vmatprep.subr.bf16.mxu0 0
    %1180 = vmatpush1.bf16.msra.mxu0 0
    %1181 = vmatprep.subr.bf16.mxu0 0
    %1182 = vmatpush1.bf16.msra.mxu0 0
    %1183 = vmatprep.subr.bf16.mxu0 0
    %1184 = vmatpush1.bf16.msra.mxu0 0
    %1185 = vmatprep.subr.bf16.mxu0 0
    %1186 = vmatpush1.bf16.msra.mxu0 0
    %1187 = vmatprep.subr.bf16.mxu0 0
    %1188 = vmatpush1.bf16.msra.mxu0 0
    %1189 = vmatprep.mubr.bf16.mxu0 0
    %1190 = vmatmul.mubr.bf16.gmra.mrb[0].mxu0 %v1155
    %v1191 = vpop.f32.mrb[0].mxu0
    %v1192 = vadd.f32 0.0, %v1191
    %v1193 = vpop.f32.mrb[0].mxu0
    %v1194 = vpop.f32.mrb[0].mxu0
    %v1195 = vpop.f32.mrb[0].mxu0
    %1196 = vdwg.mxu0
    %v1197 = vlaneseq
    %v1198 = vshrl.u32 %v1197, 7
    %v1199 = vsub.s32 0, %v1198
    %v1200 = vrot.slane %v1148, %v1199
    %v1201 = vmul.f32 %v935, %v1200
    %v1202 = vmul.f32 %v936, %v1200
    %v1203 = vmul.f32 %v937, %v1200
    %v1204 = vmul.f32 %v938, %v1200
    %v1205 = vlaneseq
    %v1206 = vshrl.u32 %v1205, 7
    %v1207 = vsub.s32 0, %v1206
    %v1208 = vrot.slane %v1192, %v1207
    %v1209 = vadd.f32 %v1201, %v1208
    %v1210 = vadd.f32 %v1202, %v1208
    %v1211 = vadd.f32 %v1203, %v1208
    %v1212 = vadd.f32 %v1204, %v1208
    %s1213 = scalar_lea.vmem %s25, 1
    %v1214 = vld [vmem:[%s1213] sm:$0x1]
    %v1215 = vpack.c.bf16 %v1210, %v1209
    %v1216 = vpack.c.bf16 %v1212, %v1211
    %v1217 = vld [vmem:[%s23] sm:$0xf]
    %v1218 = vld [vmem:[%s23 + $0x4] sm:$0xf]
    %v1219 = vld [vmem:[%s23 + $0x8] sm:$0xf]
    %v1220 = vld [vmem:[%s23 + $0xc] sm:$0xf]
    %v1221 = vld [vmem:[%s23 + $0x10] sm:$0xf]
    %v1222 = vld [vmem:[%s23 + $0x14] sm:$0xf]
    %v1223 = vld [vmem:[%s23 + $0x18] sm:$0xf]
    %v1224 = vld [vmem:[%s23 + $0x1c] sm:$0xf]
    %v1225 = vld [vmem:[%s23 + $0x20] sm:$0xf]
    %v1226 = vld [vmem:[%s23 + $0x24] sm:$0xf]
    %v1227 = vld [vmem:[%s23 + $0x28] sm:$0xf]
    %v1228 = vld [vmem:[%s23 + $0x2c] sm:$0xf]
    %v1229 = vld [vmem:[%s23 + $0x30] sm:$0xf]
    %v1230 = vld [vmem:[%s23 + $0x34] sm:$0xf]
    %v1231 = vld [vmem:[%s23 + $0x38] sm:$0xf]
    %v1232 = vld [vmem:[%s23 + $0x3c] sm:$0xf]
    %v1249 = vunpack.c.l.b16 %v1217
    %v1250 = vunpack.c.l.b16 %v1218
    %v1251 = vunpack.c.l.b16 %v1219
    %v1252 = vunpack.c.l.b16 %v1220
    %v1253 = vunpack.c.l.b16 %v1221
    %v1254 = vunpack.c.l.b16 %v1222
    %v1255 = vunpack.c.l.b16 %v1223
    %v1256 = vunpack.c.l.b16 %v1224
    %v1257 = vunpack.c.l.b16 %v1225
    %v1258 = vunpack.c.l.b16 %v1226
    %v1259 = vunpack.c.l.b16 %v1227
    %v1260 = vunpack.c.l.b16 %v1228
    %v1261 = vunpack.c.l.b16 %v1229
    %v1262 = vunpack.c.l.b16 %v1230
    %v1263 = vunpack.c.l.b16 %v1231
    %v1264 = vunpack.c.l.b16 %v1232
    %v1265 = vpack.c.b16 %v1250, %v1249
    %v1266 = vpack.c.b16 %v1252, %v1251
    %v1267 = vpack.c.b16 %v1254, %v1253
    %v1268 = vpack.c.b16 %v1256, %v1255
    %v1269 = vpack.c.b16 %v1258, %v1257
    %v1270 = vpack.c.b16 %v1260, %v1259
    %v1271 = vpack.c.b16 %v1262, %v1261
    %v1272 = vpack.c.b16 %v1264, %v1263
    %1281 = vmatprep.subr.bf16.mxu0 0
    %1282 = vmatpush1.bf16.msra.mxu0 %v1265
    %1283 = vmatprep.subr.bf16.mxu0 0
    %1284 = vmatpush1.bf16.msra.mxu0 %v1266
    %1285 = vmatprep.subr.bf16.mxu0 0
    %1286 = vmatpush1.bf16.msra.mxu0 %v1267
    %1287 = vmatprep.subr.bf16.mxu0 0
    %1288 = vmatpush1.bf16.msra.mxu0 %v1268
    %1289 = vmatprep.subr.bf16.mxu0 0
    %1290 = vmatpush1.bf16.msra.mxu0 %v1269
    %1291 = vmatprep.subr.bf16.mxu0 0
    %1292 = vmatpush1.bf16.msra.mxu0 %v1270
    %1293 = vmatprep.subr.bf16.mxu0 0
    %1294 = vmatpush1.bf16.msra.mxu0 %v1271
    %1295 = vmatprep.subr.bf16.mxu0 0
    %1296 = vmatpush1.bf16.msra.mxu0 %v1272
    %1297 = vmatprep.subr.bf16.mxu0 0
    %1298 = vmatpush1.bf16.msra.mxu0 0
    %1299 = vmatprep.subr.bf16.mxu0 0
    %1300 = vmatpush1.bf16.msra.mxu0 0
    %1301 = vmatprep.subr.bf16.mxu0 0
    %1302 = vmatpush1.bf16.msra.mxu0 0
    %1303 = vmatprep.subr.bf16.mxu0 0
    %1304 = vmatpush1.bf16.msra.mxu0 0
    %1305 = vmatprep.subr.bf16.mxu0 0
    %1306 = vmatpush1.bf16.msra.mxu0 0
    %1307 = vmatprep.subr.bf16.mxu0 0
    %1308 = vmatpush1.bf16.msra.mxu0 0
    %1309 = vmatprep.subr.bf16.mxu0 0
    %1310 = vmatpush1.bf16.msra.mxu0 0
    %1311 = vmatprep.subr.bf16.mxu0 0
    %1312 = vmatpush1.bf16.msra.mxu0 0
    %1313 = vmatprep.mubr.bf16.mxu0 0
    %1314 = vmatmul.mubr.bf16.gmra.mrb[0].mxu0 %v1215
    %v1315 = vpop.f32.mrb[0].mxu0
    %v1316 = vadd.f32 0.0, %v1315
    %v1317 = vpop.f32.mrb[0].mxu0
    %v1318 = vpop.f32.mrb[0].mxu0
    %v1319 = vadd.f32 0.0, %v1318
    %v1320 = vpop.f32.mrb[0].mxu0
    %1321 = vmatprep.mubr.bf16.mxu0 0
    %1322 = vmatmul.mubr.bf16.gmra.mrb[0].mxu0 %v1216
    %v1323 = vpop.f32.mrb[0].mxu0
    %v1324 = vadd.f32 0.0, %v1323
    %v1325 = vpop.f32.mrb[0].mxu0
    %v1326 = vpop.f32.mrb[0].mxu0
    %v1327 = vadd.f32 0.0, %v1326
    %v1328 = vpop.f32.mrb[0].mxu0
    %1329 = vdwg.mxu0
    %s1330 = scalar_lea.vmem %s23, 64
    %v1331 = vld [vmem:[%s1330] sm:$0xf]
    %v1332 = vld [vmem:[%s1330 + $0x4] sm:$0xf]
    %v1333 = vld [vmem:[%s1330 + $0x8] sm:$0xf]
    %v1334 = vld [vmem:[%s1330 + $0xc] sm:$0xf]
    %v1335 = vld [vmem:[%s1330 + $0x10] sm:$0xf]
    %v1336 = vld [vmem:[%s1330 + $0x14] sm:$0xf]
    %v1337 = vld [vmem:[%s1330 + $0x18] sm:$0xf]
    %v1338 = vld [vmem:[%s1330 + $0x1c] sm:$0xf]
    %v1339 = vld [vmem:[%s1330 + $0x20] sm:$0xf]
    %v1340 = vld [vmem:[%s1330 + $0x24] sm:$0xf]
    %v1341 = vld [vmem:[%s1330 + $0x28] sm:$0xf]
    %v1342 = vld [vmem:[%s1330 + $0x2c] sm:$0xf]
    %v1343 = vld [vmem:[%s1330 + $0x30] sm:$0xf]
    %v1344 = vld [vmem:[%s1330 + $0x34] sm:$0xf]
    %v1345 = vld [vmem:[%s1330 + $0x38] sm:$0xf]
    %v1346 = vld [vmem:[%s1330 + $0x3c] sm:$0xf]
    %s1347 = scalar_lea.vmem %s23, 128
    %v1348 = vld [vmem:[%s1347] sm:$0xf]
    %v1349 = vld [vmem:[%s1347 + $0x4] sm:$0xf]
    %v1350 = vld [vmem:[%s1347 + $0x8] sm:$0xf]
    %v1351 = vld [vmem:[%s1347 + $0xc] sm:$0xf]
    %v1352 = vld [vmem:[%s1347 + $0x10] sm:$0xf]
    %v1353 = vld [vmem:[%s1347 + $0x14] sm:$0xf]
    %v1354 = vld [vmem:[%s1347 + $0x18] sm:$0xf]
    %v1355 = vld [vmem:[%s1347 + $0x1c] sm:$0xf]
    %v1356 = vld [vmem:[%s1347 + $0x20] sm:$0xf]
    %v1357 = vld [vmem:[%s1347 + $0x24] sm:$0xf]
    %v1358 = vld [vmem:[%s1347 + $0x28] sm:$0xf]
    %v1359 = vld [vmem:[%s1347 + $0x2c] sm:$0xf]
    %v1360 = vld [vmem:[%s1347 + $0x30] sm:$0xf]
    %v1361 = vld [vmem:[%s1347 + $0x34] sm:$0xf]
    %v1362 = vld [vmem:[%s1347 + $0x38] sm:$0xf]
    %v1363 = vld [vmem:[%s1347 + $0x3c] sm:$0xf]
    %v1380 = vunpack.c.l.b16 %v1348
    %v1381 = vunpack.c.l.b16 %v1349
    %v1382 = vunpack.c.l.b16 %v1350
    %v1383 = vunpack.c.l.b16 %v1351
    %v1384 = vunpack.c.l.b16 %v1352
    %v1385 = vunpack.c.l.b16 %v1353
    %v1386 = vunpack.c.l.b16 %v1354
    %v1387 = vunpack.c.l.b16 %v1355
    %v1388 = vunpack.c.l.b16 %v1356
    %v1389 = vunpack.c.l.b16 %v1357
    %v1390 = vunpack.c.l.b16 %v1358
    %v1391 = vunpack.c.l.b16 %v1359
    %v1392 = vunpack.c.l.b16 %v1360
    %v1393 = vunpack.c.l.b16 %v1361
    %v1394 = vunpack.c.l.b16 %v1362
    %v1395 = vunpack.c.l.b16 %v1363
    %v1396 = vpack.c.b16 %v1381, %v1380
    %v1397 = vpack.c.b16 %v1383, %v1382
    %v1398 = vpack.c.b16 %v1385, %v1384
    %v1399 = vpack.c.b16 %v1387, %v1386
    %v1400 = vpack.c.b16 %v1389, %v1388
    %v1401 = vpack.c.b16 %v1391, %v1390
    %v1402 = vpack.c.b16 %v1393, %v1392
    %v1403 = vpack.c.b16 %v1395, %v1394
    %1412 = vmatprep.subr.bf16.mxu0 0
    %1413 = vmatpush1.bf16.msra.mxu0 %v1396
    %1414 = vmatprep.subr.bf16.mxu0 0
    %1415 = vmatpush1.bf16.msra.mxu0 %v1397
    %1416 = vmatprep.subr.bf16.mxu0 0
    %1417 = vmatpush1.bf16.msra.mxu0 %v1398
    %1418 = vmatprep.subr.bf16.mxu0 0
    %1419 = vmatpush1.bf16.msra.mxu0 %v1399
    %1420 = vmatprep.subr.bf16.mxu0 0
    %1421 = vmatpush1.bf16.msra.mxu0 %v1400
    %1422 = vmatprep.subr.bf16.mxu0 0
    %1423 = vmatpush1.bf16.msra.mxu0 %v1401
    %1424 = vmatprep.subr.bf16.mxu0 0
    %1425 = vmatpush1.bf16.msra.mxu0 %v1402
    %1426 = vmatprep.subr.bf16.mxu0 0
    %1427 = vmatpush1.bf16.msra.mxu0 %v1403
    %1428 = vmatprep.subr.bf16.mxu0 0
    %1429 = vmatpush1.bf16.msra.mxu0 0
    %1430 = vmatprep.subr.bf16.mxu0 0
    %1431 = vmatpush1.bf16.msra.mxu0 0
    %1432 = vmatprep.subr.bf16.mxu0 0
    %1433 = vmatpush1.bf16.msra.mxu0 0
    %1434 = vmatprep.subr.bf16.mxu0 0
    %1435 = vmatpush1.bf16.msra.mxu0 0
    %1436 = vmatprep.subr.bf16.mxu0 0
    %1437 = vmatpush1.bf16.msra.mxu0 0
    %1438 = vmatprep.subr.bf16.mxu0 0
    %1439 = vmatpush1.bf16.msra.mxu0 0
    %1440 = vmatprep.subr.bf16.mxu0 0
    %1441 = vmatpush1.bf16.msra.mxu0 0
    %1442 = vmatprep.subr.bf16.mxu0 0
    %1443 = vmatpush1.bf16.msra.mxu0 0
    %1444 = vmatprep.mubr.bf16.mxu0 0
    %1445 = vmatmul.mubr.bf16.gmra.mrb[0].mxu0 %v1215
    %v1446 = vpop.f32.mrb[0].mxu0
    %v1447 = vadd.f32 0.0, %v1446
    %v1448 = vpop.f32.mrb[0].mxu0
    %v1449 = vpop.f32.mrb[0].mxu0
    %v1450 = vadd.f32 0.0, %v1449
    %v1451 = vpop.f32.mrb[0].mxu0
    %1452 = vmatprep.mubr.bf16.mxu0 0
    %1453 = vmatmul.mubr.bf16.gmra.mrb[0].mxu0 %v1216
    %v1454 = vpop.f32.mrb[0].mxu0
    %v1455 = vadd.f32 0.0, %v1454
    %v1456 = vpop.f32.mrb[0].mxu0
    %v1457 = vpop.f32.mrb[0].mxu0
    %v1458 = vadd.f32 0.0, %v1457
    %v1459 = vpop.f32.mrb[0].mxu0
    %1460 = vdwg.mxu0
    %v1461 = vrot.slane %v1316, 7
    %v1462 = vrot.slane %v1319, 7
    %v1463 = vrot.slane %v1324, 7
    %v1464 = vrot.slane %v1327, 7
    %v1465 = vsel %vm762, %v1463, %v1464
    %v1466 = vsel %vm762, %v1462, %v1463
    %v1467 = vsel %vm762, %v1461, %v1462
    %v1468 = vsel %vm762, %v1464, %v1461
    %v1469 = vrot.slane %v1447, 1
    %v1470 = vrot.slane %v1450, 1
    %v1471 = vrot.slane %v1455, 1
    %v1472 = vrot.slane %v1458, 1
    %v1473 = vsel %vm771, %v1471, %v1472
    %v1474 = vsel %vm771, %v1470, %v1471
    %v1475 = vsel %vm771, %v1469, %v1470
    %v1476 = vsel %vm771, %v1472, %v1469
    %v1477 = vmul.f32 %v779, %v1468
    %v1478 = vmul.f32 %v784, %v1467
    %v1479 = vmul.f32 %v789, %v1466
    %v1480 = vmul.f32 %v794, %v1465
    %v1497 = vunpack.c.l.b16 %v1331
    %v1498 = vunpack.c.l.b16 %v1332
    %v1499 = vunpack.c.l.b16 %v1333
    %v1500 = vunpack.c.l.b16 %v1334
    %v1501 = vunpack.c.l.b16 %v1335
    %v1502 = vunpack.c.l.b16 %v1336
    %v1503 = vunpack.c.l.b16 %v1337
    %v1504 = vunpack.c.l.b16 %v1338
    %v1505 = vunpack.c.l.b16 %v1339
    %v1506 = vunpack.c.l.b16 %v1340
    %v1507 = vunpack.c.l.b16 %v1341
    %v1508 = vunpack.c.l.b16 %v1342
    %v1509 = vunpack.c.l.b16 %v1343
    %v1510 = vunpack.c.l.b16 %v1344
    %v1511 = vunpack.c.l.b16 %v1345
    %v1512 = vunpack.c.l.b16 %v1346
    %v1513 = vpack.c.b16 %v1498, %v1497
    %v1514 = vpack.c.b16 %v1500, %v1499
    %v1515 = vpack.c.b16 %v1502, %v1501
    %v1516 = vpack.c.b16 %v1504, %v1503
    %v1517 = vpack.c.b16 %v1506, %v1505
    %v1518 = vpack.c.b16 %v1508, %v1507
    %v1519 = vpack.c.b16 %v1510, %v1509
    %v1520 = vpack.c.b16 %v1512, %v1511
    %1529 = vmatprep.subr.bf16.mxu0 0
    %1530 = vmatpush1.bf16.msra.mxu0 %v1513
    %1531 = vmatprep.subr.bf16.mxu0 0
    %1532 = vmatpush1.bf16.msra.mxu0 %v1514
    %1533 = vmatprep.subr.bf16.mxu0 0
    %1534 = vmatpush1.bf16.msra.mxu0 %v1515
    %1535 = vmatprep.subr.bf16.mxu0 0
    %1536 = vmatpush1.bf16.msra.mxu0 %v1516
    %1537 = vmatprep.subr.bf16.mxu0 0
    %1538 = vmatpush1.bf16.msra.mxu0 %v1517
    %1539 = vmatprep.subr.bf16.mxu0 0
    %1540 = vmatpush1.bf16.msra.mxu0 %v1518
    %1541 = vmatprep.subr.bf16.mxu0 0
    %1542 = vmatpush1.bf16.msra.mxu0 %v1519
    %1543 = vmatprep.subr.bf16.mxu0 0
    %1544 = vmatpush1.bf16.msra.mxu0 %v1520
    %1545 = vmatprep.subr.bf16.mxu0 0
    %1546 = vmatpush1.bf16.msra.mxu0 0
    %1547 = vmatprep.subr.bf16.mxu0 0
    %1548 = vmatpush1.bf16.msra.mxu0 0
    %1549 = vmatprep.subr.bf16.mxu0 0
    %1550 = vmatpush1.bf16.msra.mxu0 0
    %1551 = vmatprep.subr.bf16.mxu0 0
    %1552 = vmatpush1.bf16.msra.mxu0 0
    %1553 = vmatprep.subr.bf16.mxu0 0
    %1554 = vmatpush1.bf16.msra.mxu0 0
    %1555 = vmatprep.subr.bf16.mxu0 0
    %1556 = vmatpush1.bf16.msra.mxu0 0
    %1557 = vmatprep.subr.bf16.mxu0 0
    %1558 = vmatpush1.bf16.msra.mxu0 0
    %1559 = vmatprep.subr.bf16.mxu0 0
    %1560 = vmatpush1.bf16.msra.mxu0 0
    %1561 = vmatprep.mubr.bf16.mxu0 0
    %1562 = vmatmul.mubr.bf16.gmra.mrb[0].mxu0 %v1215
    %v1563 = vpop.f32.mrb[0].mxu0
    %v1564 = vadd.f32 %v1477, %v1563
    %v1565 = vpop.f32.mrb[0].mxu0
    %v1566 = vpop.f32.mrb[0].mxu0
    %v1567 = vadd.f32 %v1478, %v1566
    %v1568 = vpop.f32.mrb[0].mxu0
    %1569 = vmatprep.mubr.bf16.mxu0 0
    %1570 = vmatmul.mubr.bf16.gmra.mrb[0].mxu0 %v1216
    %v1571 = vpop.f32.mrb[0].mxu0
    %v1572 = vadd.f32 %v1479, %v1571
    %v1573 = vpop.f32.mrb[0].mxu0
    %v1574 = vpop.f32.mrb[0].mxu0
    %v1575 = vadd.f32 %v1480, %v1574
    %v1576 = vpop.f32.mrb[0].mxu0
    %1577 = vdwg.mxu0
    %v1578 = vmul.f32 %v900, %v1475
    %v1579 = vmul.f32 %v905, %v1474
    %v1580 = vmul.f32 %v910, %v1473
    %v1581 = vmul.f32 %v915, %v1476
    %v1582 = vadd.f32 %v1564, %v1578
    %v1583 = vadd.f32 %v1567, %v1579
    %v1584 = vadd.f32 %v1572, %v1580
    %v1585 = vadd.f32 %v1575, %v1581
    %v1587 = vlaneseq
    %v1588 = vshrl.u32 %v1587, 7
    %v1589 = vsub.s32 0, %v1588
    %v1590 = vrot.slane %v1214, %v1589
    %v1592 = vadd.f32 %v1582, %v1590
    %v1593 = vadd.f32 %v1583, %v1590
    %v1594 = vadd.f32 %v1584, %v1590
    %v1595 = vadd.f32 %v1585, %v1590
    %v1596 = vmax.f32 %v1592, 0.0
    %v1597 = vmax.f32 %v1593, 0.0
    %v1598 = vmax.f32 %v1594, 0.0
    %v1599 = vmax.f32 %v1595, 0.0
    %s1600 = scalar_lea.vmem %s27, 2
    %v1601 = vld [vmem:[%s1600] sm:$0x1]
    %s1602 = scalar_lea.vmem %s27, 3
    %v1603 = vld [vmem:[%s1602] sm:$0x1]
    %v1604 = vadd.f32 %v1596, %v1597
    %v1605 = vadd.f32 %v1604, %v1598
    %v1606 = vadd.f32 %v1605, %v1599
    %v1607 = vrot.slane %v1606, 4
    %v1608 = vadd.f32 %v1606, %v1607
    %v1609 = vrot.slane %v1608, 2
    %v1610 = vadd.f32 %v1608, %v1609
    %v1611 = vrot.slane %v1610, 1
    %v1612 = vadd.f32 %v1610, %v1611
    %v1613 = vmul.f32 %v1596, %v1596
    %v1614 = vmul.f32 %v1597, %v1597
    %v1615 = vmul.f32 %v1598, %v1598
    %v1616 = vmul.f32 %v1599, %v1599
    %v1617 = vadd.f32 %v1613, %v1614
    %v1618 = vadd.f32 %v1617, %v1615
    %v1619 = vadd.f32 %v1618, %v1616
    %v1620 = vrot.slane %v1619, 4
    %v1621 = vadd.f32 %v1619, %v1620
    %v1622 = vrot.slane %v1621, 2
    %v1623 = vadd.f32 %v1621, %v1622
    %v1624 = vrot.slane %v1623, 1
    %v1625 = vadd.f32 %v1623, %v1624
    %v1626 = vpack.c.bf16 %v1612, %v1612
    %1627 = vmatprep.subr.bf16.mxu0 0
    %1628 = vmatpush1.bf16.msra.mxu0 %v997
    %1629 = vmatprep.subr.bf16.mxu0 0
    %1630 = vmatpush1.bf16.msra.mxu0 %v998
    %1631 = vmatprep.subr.bf16.mxu0 0
    %1632 = vmatpush1.bf16.msra.mxu0 %v999
    %1633 = vmatprep.subr.bf16.mxu0 0
    %1634 = vmatpush1.bf16.msra.mxu0 %v1000
    %1635 = vmatprep.subr.bf16.mxu0 0
    %1636 = vmatpush1.bf16.msra.mxu0 %v1001
    %1637 = vmatprep.subr.bf16.mxu0 0
    %1638 = vmatpush1.bf16.msra.mxu0 %v1002
    %1639 = vmatprep.subr.bf16.mxu0 0
    %1640 = vmatpush1.bf16.msra.mxu0 %v1003
    %1641 = vmatprep.subr.bf16.mxu0 0
    %1642 = vmatpush1.bf16.msra.mxu0 %v1004
    %1643 = vmatprep.subr.bf16.mxu0 0
    %1644 = vmatpush1.bf16.msra.mxu0 0
    %1645 = vmatprep.subr.bf16.mxu0 0
    %1646 = vmatpush1.bf16.msra.mxu0 0
    %1647 = vmatprep.subr.bf16.mxu0 0
    %1648 = vmatpush1.bf16.msra.mxu0 0
    %1649 = vmatprep.subr.bf16.mxu0 0
    %1650 = vmatpush1.bf16.msra.mxu0 0
    %1651 = vmatprep.subr.bf16.mxu0 0
    %1652 = vmatpush1.bf16.msra.mxu0 0
    %1653 = vmatprep.subr.bf16.mxu0 0
    %1654 = vmatpush1.bf16.msra.mxu0 0
    %1655 = vmatprep.subr.bf16.mxu0 0
    %1656 = vmatpush1.bf16.msra.mxu0 0
    %1657 = vmatprep.subr.bf16.mxu0 0
    %1658 = vmatpush1.bf16.msra.mxu0 0
    %1659 = vmatprep.mubr.bf16.mxu0 0
    %1660 = vmatmul.mubr.bf16.gmra.mrb[0].mxu0 %v1626
    %v1661 = vpop.f32.mrb[0].mxu0
    %v1662 = vadd.f32 0.0, %v1661
    %v1663 = vpop.f32.mrb[0].mxu0
    %v1664 = vpop.f32.mrb[0].mxu0
    %v1665 = vpop.f32.mrb[0].mxu0
    %1666 = vdwg.mxu0
    %v1667 = vpack.c.bf16 %v1625, %v1625
    %1668 = vmatprep.subr.bf16.mxu0 0
    %1669 = vmatpush1.bf16.msra.mxu0 %v997
    %1670 = vmatprep.subr.bf16.mxu0 0
    %1671 = vmatpush1.bf16.msra.mxu0 %v998
    %1672 = vmatprep.subr.bf16.mxu0 0
    %1673 = vmatpush1.bf16.msra.mxu0 %v999
    %1674 = vmatprep.subr.bf16.mxu0 0
    %1675 = vmatpush1.bf16.msra.mxu0 %v1000
    %1676 = vmatprep.subr.bf16.mxu0 0
    %1677 = vmatpush1.bf16.msra.mxu0 %v1001
    %1678 = vmatprep.subr.bf16.mxu0 0
    %1679 = vmatpush1.bf16.msra.mxu0 %v1002
    %1680 = vmatprep.subr.bf16.mxu0 0
    %1681 = vmatpush1.bf16.msra.mxu0 %v1003
    %1682 = vmatprep.subr.bf16.mxu0 0
    %1683 = vmatpush1.bf16.msra.mxu0 %v1004
    %1684 = vmatprep.subr.bf16.mxu0 0
    %1685 = vmatpush1.bf16.msra.mxu0 0
    %1686 = vmatprep.subr.bf16.mxu0 0
    %1687 = vmatpush1.bf16.msra.mxu0 0
    %1688 = vmatprep.subr.bf16.mxu0 0
    %1689 = vmatpush1.bf16.msra.mxu0 0
    %1690 = vmatprep.subr.bf16.mxu0 0
    %1691 = vmatpush1.bf16.msra.mxu0 0
    %1692 = vmatprep.subr.bf16.mxu0 0
    %1693 = vmatpush1.bf16.msra.mxu0 0
    %1694 = vmatprep.subr.bf16.mxu0 0
    %1695 = vmatpush1.bf16.msra.mxu0 0
    %1696 = vmatprep.subr.bf16.mxu0 0
    %1697 = vmatpush1.bf16.msra.mxu0 0
    %1698 = vmatprep.subr.bf16.mxu0 0
    %1699 = vmatpush1.bf16.msra.mxu0 0
    %1700 = vmatprep.mubr.bf16.mxu0 0
    %1701 = vmatmul.mubr.bf16.gmra.mrb[0].mxu0 %v1667
    %v1702 = vpop.f32.mrb[0].mxu0
    %v1703 = vadd.f32 0.0, %v1702
    %v1704 = vpop.f32.mrb[0].mxu0
    %v1705 = vpop.f32.mrb[0].mxu0
    %v1706 = vpop.f32.mrb[0].mxu0
    %1707 = vdwg.mxu0
    %v1708 = vmul.f32 %v1662, 0.001953125
    %v1709 = vmul.f32 %v1703, 0.001953125
    %v1710 = vmul.f32 %v1708, %v1708
    %v1711 = vsub.f32 %v1709, %v1710
    %v1712 = vmax.f32 %v1711, 0.0
    %v1713 = vadd.f32 %v1712, 1e-05
    %v1714 = vrsqrt.pop %v1713
    %v1715 = vmul.f32 %v1601, %v1714
    %v1716 = vmul.f32 %v1708, %v1715
    %v1717 = vsub.f32 %v1603, %v1716
    %v1718 = vpack.c.bf16 %v1715, %v1715
    %v1720 = vsel %vm1105, %v1718, 0
    %1722 = vmatprep.subr.bf16.mxu0 0
    %1723 = vmatpush1.bf16.msra.mxu0 %v1111
    %1724 = vmatprep.subr.bf16.mxu0 0
    %1725 = vmatpush1.bf16.msra.mxu0 0
    %1726 = vmatprep.subr.bf16.mxu0 0
    %1727 = vmatpush1.bf16.msra.mxu0 0
    %1728 = vmatprep.subr.bf16.mxu0 0
    %1729 = vmatpush1.bf16.msra.mxu0 0
    %1730 = vmatprep.subr.bf16.mxu0 0
    %1731 = vmatpush1.bf16.msra.mxu0 0
    %1732 = vmatprep.subr.bf16.mxu0 0
    %1733 = vmatpush1.bf16.msra.mxu0 0
    %1734 = vmatprep.subr.bf16.mxu0 0
    %1735 = vmatpush1.bf16.msra.mxu0 0
    %1736 = vmatprep.subr.bf16.mxu0 0
    %1737 = vmatpush1.bf16.msra.mxu0 0
    %1738 = vmatprep.subr.bf16.mxu0 0
    %1739 = vmatpush1.bf16.msra.mxu0 0
    %1740 = vmatprep.subr.bf16.mxu0 0
    %1741 = vmatpush1.bf16.msra.mxu0 0
    %1742 = vmatprep.subr.bf16.mxu0 0
    %1743 = vmatpush1.bf16.msra.mxu0 0
    %1744 = vmatprep.subr.bf16.mxu0 0
    %1745 = vmatpush1.bf16.msra.mxu0 0
    %1746 = vmatprep.subr.bf16.mxu0 0
    %1747 = vmatpush1.bf16.msra.mxu0 0
    %1748 = vmatprep.subr.bf16.mxu0 0
    %1749 = vmatpush1.bf16.msra.mxu0 0
    %1750 = vmatprep.subr.bf16.mxu0 0
    %1751 = vmatpush1.bf16.msra.mxu0 0
    %1752 = vmatprep.subr.bf16.mxu0 0
    %1753 = vmatpush1.bf16.msra.mxu0 0
    %1754 = vmatprep.mubr.bf16.mxu0 0
    %1755 = vmatmul.mubr.bf16.gmra.mrb[0].mxu0 %v1720
    %v1756 = vpop.f32.mrb[0].mxu0
    %v1757 = vadd.f32 0.0, %v1756
    %v1758 = vpop.f32.mrb[0].mxu0
    %v1759 = vpop.f32.mrb[0].mxu0
    %v1760 = vpop.f32.mrb[0].mxu0
    %1761 = vdwg.mxu0
    %v1762 = vpack.c.bf16 %v1717, %v1717
    %v1764 = vsel %vm1105, %v1762, 0
    %1766 = vmatprep.subr.bf16.mxu0 0
    %1767 = vmatpush1.bf16.msra.mxu0 %v1111
    %1768 = vmatprep.subr.bf16.mxu0 0
    %1769 = vmatpush1.bf16.msra.mxu0 0
    %1770 = vmatprep.subr.bf16.mxu0 0
    %1771 = vmatpush1.bf16.msra.mxu0 0
    %1772 = vmatprep.subr.bf16.mxu0 0
    %1773 = vmatpush1.bf16.msra.mxu0 0
    %1774 = vmatprep.subr.bf16.mxu0 0
    %1775 = vmatpush1.bf16.msra.mxu0 0
    %1776 = vmatprep.subr.bf16.mxu0 0
    %1777 = vmatpush1.bf16.msra.mxu0 0
    %1778 = vmatprep.subr.bf16.mxu0 0
    %1779 = vmatpush1.bf16.msra.mxu0 0
    %1780 = vmatprep.subr.bf16.mxu0 0
    %1781 = vmatpush1.bf16.msra.mxu0 0
    %1782 = vmatprep.subr.bf16.mxu0 0
    %1783 = vmatpush1.bf16.msra.mxu0 0
    %1784 = vmatprep.subr.bf16.mxu0 0
    %1785 = vmatpush1.bf16.msra.mxu0 0
    %1786 = vmatprep.subr.bf16.mxu0 0
    %1787 = vmatpush1.bf16.msra.mxu0 0
    %1788 = vmatprep.subr.bf16.mxu0 0
    %1789 = vmatpush1.bf16.msra.mxu0 0
    %1790 = vmatprep.subr.bf16.mxu0 0
    %1791 = vmatpush1.bf16.msra.mxu0 0
    %1792 = vmatprep.subr.bf16.mxu0 0
    %1793 = vmatpush1.bf16.msra.mxu0 0
    %1794 = vmatprep.subr.bf16.mxu0 0
    %1795 = vmatpush1.bf16.msra.mxu0 0
    %1796 = vmatprep.subr.bf16.mxu0 0
    %1797 = vmatpush1.bf16.msra.mxu0 0
    %1798 = vmatprep.mubr.bf16.mxu0 0
    %1799 = vmatmul.mubr.bf16.gmra.mrb[0].mxu0 %v1764
    %v1800 = vpop.f32.mrb[0].mxu0
    %v1801 = vadd.f32 0.0, %v1800
    %v1802 = vpop.f32.mrb[0].mxu0
    %v1803 = vpop.f32.mrb[0].mxu0
    %v1804 = vpop.f32.mrb[0].mxu0
    %1805 = vdwg.mxu0
    %v1806 = vlaneseq
    %v1807 = vshrl.u32 %v1806, 7
    %v1808 = vsub.s32 0, %v1807
    %v1809 = vrot.slane %v1757, %v1808
    %v1810 = vmul.f32 %v1596, %v1809
    %v1811 = vmul.f32 %v1597, %v1809
    %v1812 = vmul.f32 %v1598, %v1809
    %v1813 = vmul.f32 %v1599, %v1809
    %v1814 = vlaneseq
    %v1815 = vshrl.u32 %v1814, 7
    %v1816 = vsub.s32 0, %v1815
    %v1817 = vrot.slane %v1801, %v1816
    %v1818 = vadd.f32 %v1810, %v1817
    %v1819 = vadd.f32 %v1811, %v1817
    %v1820 = vadd.f32 %v1812, %v1817
    %v1821 = vadd.f32 %v1813, %v1817
    %v1822 = vrot.slane %v1818, 1
    %v1823 = vrot.slane %v1819, 1
    %v1824 = vrot.slane %v1820, 1
    %v1825 = vrot.slane %v1821, 1
    %v1826 = vsel %vm771, %v1824, %v1825
    %v1827 = vsel %vm771, %v1823, %v1824
    %v1828 = vsel %vm771, %v1822, %v1823
    %v1829 = vsel %vm771, %v1825, %v1822
    %v1830 = vmax.f32 %v1818, %v1828
    %v1831 = vmax.f32 %v1819, %v1827
    %v1832 = vmax.f32 %v1820, %v1826
    %v1833 = vmax.f32 %v1821, %v1829
    %v1834 = vpack.c.bf16 %v1831, %v1830
    %v1835 = vpack.c.bf16 %v1833, %v1832
    %v1838 = vunpack.c.l.b16 %v470
    %v1839 = vunpack.c.l.b16 %v471
    %v1840 = vpack.c.b16 %v1839, %v1838
    %vm1841 = vcmask 261120
    %v1843 = vsel %vm1841, %v1840, 0
    %1845 = vmatprep.subr.bf16.mxu0 0
    %1846 = vmatpush1.bf16.msra.mxu0 %v1834
    %1847 = vmatprep.subr.bf16.mxu0 0
    %1848 = vmatpush1.bf16.msra.mxu0 %v1835
    %1849 = vmatprep.subr.bf16.mxu0 0
    %1850 = vmatpush1.bf16.msra.mxu0 0
    %1851 = vmatprep.subr.bf16.mxu0 0
    %1852 = vmatpush1.bf16.msra.mxu0 0
    %1853 = vmatprep.subr.bf16.mxu0 0
    %1854 = vmatpush1.bf16.msra.mxu0 0
    %1855 = vmatprep.subr.bf16.mxu0 0
    %1856 = vmatpush1.bf16.msra.mxu0 0
    %1857 = vmatprep.subr.bf16.mxu0 0
    %1858 = vmatpush1.bf16.msra.mxu0 0
    %1859 = vmatprep.subr.bf16.mxu0 0
    %1860 = vmatpush1.bf16.msra.mxu0 0
    %1861 = vmatprep.subr.bf16.mxu0 0
    %1862 = vmatpush1.bf16.msra.mxu0 0
    %1863 = vmatprep.subr.bf16.mxu0 0
    %1864 = vmatpush1.bf16.msra.mxu0 0
    %1865 = vmatprep.subr.bf16.mxu0 0
    %1866 = vmatpush1.bf16.msra.mxu0 0
    %1867 = vmatprep.subr.bf16.mxu0 0
    %1868 = vmatpush1.bf16.msra.mxu0 0
    %1869 = vmatprep.subr.bf16.mxu0 0
    %1870 = vmatpush1.bf16.msra.mxu0 0
    %1871 = vmatprep.subr.bf16.mxu0 0
    %1872 = vmatpush1.bf16.msra.mxu0 0
    %1873 = vmatprep.subr.bf16.mxu0 0
    %1874 = vmatpush1.bf16.msra.mxu0 0
    %1875 = vmatprep.subr.bf16.mxu0 0
    %1876 = vmatpush1.bf16.msra.mxu0 0
    %1877 = vmatprep.mubr.bf16.mxu0 0
    %1878 = vmatmul.mubr.bf16.gmra.mrb[0].mxu0 %v1843
    %v1879 = vpop.f32.mrb[0].mxu0
    %v1880 = vadd.f32 0.0, %v1879
    %v1881 = vpop.f32.mrb[0].mxu0
    %v1882 = vpop.f32.mrb[0].mxu0
    %v1883 = vadd.f32 0.0, %v1882
    %v1884 = vpop.f32.mrb[0].mxu0
    %1885 = vdwg.mxu0
    %v1886 = vpack.c.bf16 %v1883, %v1880
    %v1903 = vunpack.c.l.b16 %v472
    %v1904 = vunpack.c.l.b16 %v473
    %v1905 = vunpack.c.l.b16 %v474
    %v1906 = vunpack.c.l.b16 %v475
    %v1907 = vunpack.c.l.b16 %v476
    %v1908 = vunpack.c.l.b16 %v477
    %v1909 = vunpack.c.l.b16 %v478
    %v1910 = vunpack.c.l.b16 %v479
    %v1911 = vunpack.c.l.b16 %v480
    %v1912 = vunpack.c.l.b16 %v481
    %v1913 = vunpack.c.l.b16 %v482
    %v1914 = vunpack.c.l.b16 %v483
    %v1915 = vunpack.c.l.b16 %v484
    %v1916 = vunpack.c.l.b16 %v485
    %v1917 = vunpack.c.l.b16 %v486
    %v1918 = vunpack.c.l.b16 %v487
    %v1919 = vpack.c.b16 %v1904, %v1903
    %v1920 = vpack.c.b16 %v1906, %v1905
    %v1921 = vpack.c.b16 %v1908, %v1907
    %v1922 = vpack.c.b16 %v1910, %v1909
    %v1923 = vpack.c.b16 %v1912, %v1911
    %v1924 = vpack.c.b16 %v1914, %v1913
    %v1925 = vpack.c.b16 %v1916, %v1915
    %v1926 = vpack.c.b16 %v1918, %v1917
    %1935 = vmatprep.subr.bf16.mxu0 0
    %1936 = vmatpush1.bf16.msra.mxu0 %v1919
    %1937 = vmatprep.subr.bf16.mxu0 0
    %1938 = vmatpush1.bf16.msra.mxu0 %v1920
    %1939 = vmatprep.subr.bf16.mxu0 0
    %1940 = vmatpush1.bf16.msra.mxu0 %v1921
    %1941 = vmatprep.subr.bf16.mxu0 0
    %1942 = vmatpush1.bf16.msra.mxu0 %v1922
    %1943 = vmatprep.subr.bf16.mxu0 0
    %1944 = vmatpush1.bf16.msra.mxu0 %v1923
    %1945 = vmatprep.subr.bf16.mxu0 0
    %1946 = vmatpush1.bf16.msra.mxu0 %v1924
    %1947 = vmatprep.subr.bf16.mxu0 0
    %1948 = vmatpush1.bf16.msra.mxu0 %v1925
    %1949 = vmatprep.subr.bf16.mxu0 0
    %1950 = vmatpush1.bf16.msra.mxu0 %v1926
    %1951 = vmatprep.subr.bf16.mxu0 0
    %1952 = vmatpush1.bf16.msra.mxu0 0
    %1953 = vmatprep.subr.bf16.mxu0 0
    %1954 = vmatpush1.bf16.msra.mxu0 0
    %1955 = vmatprep.subr.bf16.mxu0 0
    %1956 = vmatpush1.bf16.msra.mxu0 0
    %1957 = vmatprep.subr.bf16.mxu0 0
    %1958 = vmatpush1.bf16.msra.mxu0 0
    %1959 = vmatprep.subr.bf16.mxu0 0
    %1960 = vmatpush1.bf16.msra.mxu0 0
    %1961 = vmatprep.subr.bf16.mxu0 0
    %1962 = vmatpush1.bf16.msra.mxu0 0
    %1963 = vmatprep.subr.bf16.mxu0 0
    %1964 = vmatpush1.bf16.msra.mxu0 0
    %1965 = vmatprep.subr.bf16.mxu0 0
    %1966 = vmatpush1.bf16.msra.mxu0 0
    %1967 = vmatprep.mubr.bf16.mxu0 0
    %1968 = vmatmul.mubr.bf16.gmra.mrb[0].mxu0 %v1886
    %v1969 = vpop.f32.mrb[0].mxu0
    %v1970 = vadd.f32 0.0, %v1969
    %v1971 = vpop.f32.mrb[0].mxu0
    %v1972 = vpop.f32.mrb[0].mxu0
    %v1973 = vadd.f32 0.0, %v1972
    %v1974 = vpop.f32.mrb[0].mxu0
    %1975 = vdwg.mxu0
    %v1992 = vunpack.c.l.b16 %v489
    %v1993 = vunpack.c.l.b16 %v490
    %v1994 = vunpack.c.l.b16 %v491
    %v1995 = vunpack.c.l.b16 %v492
    %v1996 = vunpack.c.l.b16 %v493
    %v1997 = vunpack.c.l.b16 %v494
    %v1998 = vunpack.c.l.b16 %v495
    %v1999 = vunpack.c.l.b16 %v496
    %v2000 = vunpack.c.l.b16 %v497
    %v2001 = vunpack.c.l.b16 %v498
    %v2002 = vunpack.c.l.b16 %v499
    %v2003 = vunpack.c.l.b16 %v500
    %v2004 = vunpack.c.l.b16 %v501
    %v2005 = vunpack.c.l.b16 %v502
    %v2006 = vunpack.c.l.b16 %v503
    %v2007 = vunpack.c.l.b16 %v504
    %v2008 = vpack.c.b16 %v1993, %v1992
    %v2009 = vpack.c.b16 %v1995, %v1994
    %v2010 = vpack.c.b16 %v1997, %v1996
    %v2011 = vpack.c.b16 %v1999, %v1998
    %v2012 = vpack.c.b16 %v2001, %v2000
    %v2013 = vpack.c.b16 %v2003, %v2002
    %v2014 = vpack.c.b16 %v2005, %v2004
    %v2015 = vpack.c.b16 %v2007, %v2006
    %2024 = vmatprep.subr.bf16.mxu0 0
    %2025 = vmatpush1.bf16.msra.mxu0 %v2008
    %2026 = vmatprep.subr.bf16.mxu0 0
    %2027 = vmatpush1.bf16.msra.mxu0 %v2009
    %2028 = vmatprep.subr.bf16.mxu0 0
    %2029 = vmatpush1.bf16.msra.mxu0 %v2010
    %2030 = vmatprep.subr.bf16.mxu0 0
    %2031 = vmatpush1.bf16.msra.mxu0 %v2011
    %2032 = vmatprep.subr.bf16.mxu0 0
    %2033 = vmatpush1.bf16.msra.mxu0 %v2012
    %2034 = vmatprep.subr.bf16.mxu0 0
    %2035 = vmatpush1.bf16.msra.mxu0 %v2013
    %2036 = vmatprep.subr.bf16.mxu0 0
    %2037 = vmatpush1.bf16.msra.mxu0 %v2014
    %2038 = vmatprep.subr.bf16.mxu0 0
    %2039 = vmatpush1.bf16.msra.mxu0 %v2015
    %2040 = vmatprep.subr.bf16.mxu0 0
    %2041 = vmatpush1.bf16.msra.mxu0 0
    %2042 = vmatprep.subr.bf16.mxu0 0
    %2043 = vmatpush1.bf16.msra.mxu0 0
    %2044 = vmatprep.subr.bf16.mxu0 0
    %2045 = vmatpush1.bf16.msra.mxu0 0
    %2046 = vmatprep.subr.bf16.mxu0 0
    %2047 = vmatpush1.bf16.msra.mxu0 0
    %2048 = vmatprep.subr.bf16.mxu0 0
    %2049 = vmatpush1.bf16.msra.mxu0 0
    %2050 = vmatprep.subr.bf16.mxu0 0
    %2051 = vmatpush1.bf16.msra.mxu0 0
    %2052 = vmatprep.subr.bf16.mxu0 0
    %2053 = vmatpush1.bf16.msra.mxu0 0
    %2054 = vmatprep.subr.bf16.mxu0 0
    %2055 = vmatpush1.bf16.msra.mxu0 0
    %2056 = vmatprep.mubr.bf16.mxu0 0
    %2057 = vmatmul.mubr.bf16.gmra.mrb[0].mxu0 %v1886
    %v2058 = vpop.f32.mrb[0].mxu0
    %v2059 = vadd.f32 0.0, %v2058
    %v2060 = vpop.f32.mrb[0].mxu0
    %v2061 = vpop.f32.mrb[0].mxu0
    %v2062 = vadd.f32 0.0, %v2061
    %v2063 = vpop.f32.mrb[0].mxu0
    %2064 = vdwg.mxu0
    %v2065 = vmax.f32 %v1970, %v2059
    %v2066 = vmax.f32 %v1973, %v2062
    %v2067 = vld [vmem:[#allocation6] sm:$0x1]
    %v2068 = vpack.c.bf16 %v2066, %v2065
    %v2069 = vld [vmem:[%s29] sm:$0xf]
    %v2070 = vld [vmem:[%s29 + $0x4] sm:$0xf]
    %v2071 = vld [vmem:[%s29 + $0x8] sm:$0xf]
    %v2072 = vld [vmem:[%s29 + $0xc] sm:$0xf]
    %v2073 = vld [vmem:[%s29 + $0x10] sm:$0xf]
    %v2074 = vld [vmem:[%s29 + $0x14] sm:$0xf]
    %v2075 = vld [vmem:[%s29 + $0x18] sm:$0xf]
    %v2076 = vld [vmem:[%s29 + $0x1c] sm:$0xf]
    %v2085 = vunpack.c.l.b16 %v2069
    %v2086 = vunpack.c.l.b16 %v2070
    %v2087 = vunpack.c.l.b16 %v2071
    %v2088 = vunpack.c.l.b16 %v2072
    %v2089 = vunpack.c.l.b16 %v2073
    %v2090 = vunpack.c.l.b16 %v2074
    %v2091 = vunpack.c.l.b16 %v2075
    %v2092 = vunpack.c.l.b16 %v2076
    %v2093 = vpack.c.b16 %v2086, %v2085
    %v2094 = vpack.c.b16 %v2088, %v2087
    %v2095 = vpack.c.b16 %v2090, %v2089
    %v2096 = vpack.c.b16 %v2092, %v2091
    %vm2101 = vcmask 523264
    %v2103 = vsel %vm2101, %v2068, 0
    %2105 = vmatprep.subr.bf16.mxu0 0
    %2106 = vmatpush1.bf16.msra.mxu0 %v2093
    %2107 = vmatprep.subr.bf16.mxu0 0
    %2108 = vmatpush1.bf16.msra.mxu0 %v2094
    %2109 = vmatprep.subr.bf16.mxu0 0
    %2110 = vmatpush1.bf16.msra.mxu0 %v2095
    %2111 = vmatprep.subr.bf16.mxu0 0
    %2112 = vmatpush1.bf16.msra.mxu0 %v2096
    %2113 = vmatprep.subr.bf16.mxu0 0
    %2114 = vmatpush1.bf16.msra.mxu0 0
    %2115 = vmatprep.subr.bf16.mxu0 0
    %2116 = vmatpush1.bf16.msra.mxu0 0
    %2117 = vmatprep.subr.bf16.mxu0 0
    %2118 = vmatpush1.bf16.msra.mxu0 0
    %2119 = vmatprep.subr.bf16.mxu0 0
    %2120 = vmatpush1.bf16.msra.mxu0 0
    %2121 = vmatprep.subr.bf16.mxu0 0
    %2122 = vmatpush1.bf16.msra.mxu0 0
    %2123 = vmatprep.subr.bf16.mxu0 0
    %2124 = vmatpush1.bf16.msra.mxu0 0
    %2125 = vmatprep.subr.bf16.mxu0 0
    %2126 = vmatpush1.bf16.msra.mxu0 0
    %2127 = vmatprep.subr.bf16.mxu0 0
    %2128 = vmatpush1.bf16.msra.mxu0 0
    %2129 = vmatprep.subr.bf16.mxu0 0
    %2130 = vmatpush1.bf16.msra.mxu0 0
    %2131 = vmatprep.subr.bf16.mxu0 0
    %2132 = vmatpush1.bf16.msra.mxu0 0
    %2133 = vmatprep.subr.bf16.mxu0 0
    %2134 = vmatpush1.bf16.msra.mxu0 0
    %2135 = vmatprep.subr.bf16.mxu0 0
    %2136 = vmatpush1.bf16.msra.mxu0 0
    %2137 = vmatprep.mubr.bf16.mxu0 0
    %2138 = vmatmul.mubr.bf16.gmra.mrb[0].mxu0 %v2103
    %v2139 = vpop.f32.mrb[0].mxu0
    %v2140 = vadd.f32 0.0, %v2139
    %v2141 = vpop.f32.mrb[0].mxu0
    %v2142 = vpop.f32.mrb[0].mxu0
    %v2143 = vadd.f32 0.0, %v2142
    %v2144 = vpop.f32.mrb[0].mxu0
    %2145 = vdwg.mxu0
    %s2146 = scalar_lea.vmem %s29, 32
    %v2147 = vld [vmem:[%s2146] sm:$0xf]
    %v2148 = vld [vmem:[%s2146 + $0x4] sm:$0xf]
    %v2149 = vld [vmem:[%s2146 + $0x8] sm:$0xf]
    %v2150 = vld [vmem:[%s2146 + $0xc] sm:$0xf]
    %v2151 = vld [vmem:[%s2146 + $0x10] sm:$0xf]
    %v2152 = vld [vmem:[%s2146 + $0x14] sm:$0xf]
    %v2153 = vld [vmem:[%s2146 + $0x18] sm:$0xf]
    %v2154 = vld [vmem:[%s2146 + $0x1c] sm:$0xf]
    %s2155 = scalar_lea.vmem %s29, 64
    %v2156 = vld [vmem:[%s2155] sm:$0xf]
    %v2157 = vld [vmem:[%s2155 + $0x4] sm:$0xf]
    %v2158 = vld [vmem:[%s2155 + $0x8] sm:$0xf]
    %v2159 = vld [vmem:[%s2155 + $0xc] sm:$0xf]
    %v2160 = vld [vmem:[%s2155 + $0x10] sm:$0xf]
    %v2161 = vld [vmem:[%s2155 + $0x14] sm:$0xf]
    %v2162 = vld [vmem:[%s2155 + $0x18] sm:$0xf]
    %v2163 = vld [vmem:[%s2155 + $0x1c] sm:$0xf]
    %v2172 = vunpack.c.l.b16 %v2156
    %v2173 = vunpack.c.l.b16 %v2157
    %v2174 = vunpack.c.l.b16 %v2158
    %v2175 = vunpack.c.l.b16 %v2159
    %v2176 = vunpack.c.l.b16 %v2160
    %v2177 = vunpack.c.l.b16 %v2161
    %v2178 = vunpack.c.l.b16 %v2162
    %v2179 = vunpack.c.l.b16 %v2163
    %v2180 = vpack.c.b16 %v2173, %v2172
    %v2181 = vpack.c.b16 %v2175, %v2174
    %v2182 = vpack.c.b16 %v2177, %v2176
    %v2183 = vpack.c.b16 %v2179, %v2178
    %2188 = vmatprep.subr.bf16.mxu0 0
    %2189 = vmatpush1.bf16.msra.mxu0 %v2180
    %2190 = vmatprep.subr.bf16.mxu0 0
    %2191 = vmatpush1.bf16.msra.mxu0 %v2181
    %2192 = vmatprep.subr.bf16.mxu0 0
    %2193 = vmatpush1.bf16.msra.mxu0 %v2182
    %2194 = vmatprep.subr.bf16.mxu0 0
    %2195 = vmatpush1.bf16.msra.mxu0 %v2183
    %2196 = vmatprep.subr.bf16.mxu0 0
    %2197 = vmatpush1.bf16.msra.mxu0 0
    %2198 = vmatprep.subr.bf16.mxu0 0
    %2199 = vmatpush1.bf16.msra.mxu0 0
    %2200 = vmatprep.subr.bf16.mxu0 0
    %2201 = vmatpush1.bf16.msra.mxu0 0
    %2202 = vmatprep.subr.bf16.mxu0 0
    %2203 = vmatpush1.bf16.msra.mxu0 0
    %2204 = vmatprep.subr.bf16.mxu0 0
    %2205 = vmatpush1.bf16.msra.mxu0 0
    %2206 = vmatprep.subr.bf16.mxu0 0
    %2207 = vmatpush1.bf16.msra.mxu0 0
    %2208 = vmatprep.subr.bf16.mxu0 0
    %2209 = vmatpush1.bf16.msra.mxu0 0
    %2210 = vmatprep.subr.bf16.mxu0 0
    %2211 = vmatpush1.bf16.msra.mxu0 0
    %2212 = vmatprep.subr.bf16.mxu0 0
    %2213 = vmatpush1.bf16.msra.mxu0 0
    %2214 = vmatprep.subr.bf16.mxu0 0
    %2215 = vmatpush1.bf16.msra.mxu0 0
    %2216 = vmatprep.subr.bf16.mxu0 0
    %2217 = vmatpush1.bf16.msra.mxu0 0
    %2218 = vmatprep.subr.bf16.mxu0 0
    %2219 = vmatpush1.bf16.msra.mxu0 0
    %2220 = vmatprep.mubr.bf16.mxu0 0
    %2221 = vmatmul.mubr.bf16.gmra.mrb[0].mxu0 %v2103
    %v2222 = vpop.f32.mrb[0].mxu0
    %v2223 = vadd.f32 0.0, %v2222
    %v2224 = vpop.f32.mrb[0].mxu0
    %v2225 = vpop.f32.mrb[0].mxu0
    %v2226 = vadd.f32 0.0, %v2225
    %v2227 = vpop.f32.mrb[0].mxu0
    %2228 = vdwg.mxu0
    %v2229 = vrot.slane %v2140, 7
    %v2230 = vrot.slane %v2143, 7
    %v2231 = vsel %vm762, %v2229, %v2230
    %v2232 = vsel %vm762, %v2230, %v2229
    %v2233 = vrot.slane %v2223, 1
    %v2234 = vrot.slane %v2226, 1
    %v2235 = vsel %vm771, %v2233, %v2234
    %v2236 = vsel %vm771, %v2234, %v2233
    %2238 = vset.pattern.permute.xlu0 0
    %2239 = vperm.xlu0 %2238, %v439
    %v2240 = vpop.permute.xlu0 %2239
    %2243 = vset.pattern.permute.xlu0 0
    %2244 = vperm.xlu0 %2243, %v440
    %v2245 = vpop.permute.xlu0 %2244
    %v2247 = vmul.f32 %v2240, %v2232
    %v2248 = vmul.f32 %v2245, %v2231
    %v2257 = vunpack.c.l.b16 %v2147
    %v2258 = vunpack.c.l.b16 %v2148
    %v2259 = vunpack.c.l.b16 %v2149
    %v2260 = vunpack.c.l.b16 %v2150
    %v2261 = vunpack.c.l.b16 %v2151
    %v2262 = vunpack.c.l.b16 %v2152
    %v2263 = vunpack.c.l.b16 %v2153
    %v2264 = vunpack.c.l.b16 %v2154
    %v2265 = vpack.c.b16 %v2258, %v2257
    %v2266 = vpack.c.b16 %v2260, %v2259
    %v2267 = vpack.c.b16 %v2262, %v2261
    %v2268 = vpack.c.b16 %v2264, %v2263
    %2273 = vmatprep.subr.bf16.mxu0 0
    %2274 = vmatpush1.bf16.msra.mxu0 %v2265
    %2275 = vmatprep.subr.bf16.mxu0 0
    %2276 = vmatpush1.bf16.msra.mxu0 %v2266
    %2277 = vmatprep.subr.bf16.mxu0 0
    %2278 = vmatpush1.bf16.msra.mxu0 %v2267
    %2279 = vmatprep.subr.bf16.mxu0 0
    %2280 = vmatpush1.bf16.msra.mxu0 %v2268
    %2281 = vmatprep.subr.bf16.mxu0 0
    %2282 = vmatpush1.bf16.msra.mxu0 0
    %2283 = vmatprep.subr.bf16.mxu0 0
    %2284 = vmatpush1.bf16.msra.mxu0 0
    %2285 = vmatprep.subr.bf16.mxu0 0
    %2286 = vmatpush1.bf16.msra.mxu0 0
    %2287 = vmatprep.subr.bf16.mxu0 0
    %2288 = vmatpush1.bf16.msra.mxu0 0
    %2289 = vmatprep.subr.bf16.mxu0 0
    %2290 = vmatpush1.bf16.msra.mxu0 0
    %2291 = vmatprep.subr.bf16.mxu0 0
    %2292 = vmatpush1.bf16.msra.mxu0 0
    %2293 = vmatprep.subr.bf16.mxu0 0
    %2294 = vmatpush1.bf16.msra.mxu0 0
    %2295 = vmatprep.subr.bf16.mxu0 0
    %2296 = vmatpush1.bf16.msra.mxu0 0
    %2297 = vmatprep.subr.bf16.mxu0 0
    %2298 = vmatpush1.bf16.msra.mxu0 0
    %2299 = vmatprep.subr.bf16.mxu0 0
    %2300 = vmatpush1.bf16.msra.mxu0 0
    %2301 = vmatprep.subr.bf16.mxu0 0
    %2302 = vmatpush1.bf16.msra.mxu0 0
    %2303 = vmatprep.subr.bf16.mxu0 0
    %2304 = vmatpush1.bf16.msra.mxu0 0
    %2305 = vmatprep.mubr.bf16.mxu0 0
    %2306 = vmatmul.mubr.bf16.gmra.mrb[0].mxu0 %v2103
    %v2307 = vpop.f32.mrb[0].mxu0
    %v2308 = vadd.f32 %v2247, %v2307
    %v2309 = vpop.f32.mrb[0].mxu0
    %v2310 = vpop.f32.mrb[0].mxu0
    %v2311 = vadd.f32 %v2248, %v2310
    %v2312 = vpop.f32.mrb[0].mxu0
    %2313 = vdwg.mxu0
    %2315 = vset.pattern.permute.xlu0 0
    %2316 = vperm.xlu0 %2315, %v442
    %v2317 = vpop.permute.xlu0 %2316
    %2320 = vset.pattern.permute.xlu0 0
    %2321 = vperm.xlu0 %2320, %v443
    %v2322 = vpop.permute.xlu0 %2321
    %v2324 = vmul.f32 %v2317, %v2235
    %v2325 = vmul.f32 %v2322, %v2236
    %v2326 = vadd.f32 %v2308, %v2324
    %v2327 = vadd.f32 %v2311, %v2325
    %v2329 = vlaneseq
    %v2330 = vshrl.u32 %v2329, 7
    %v2331 = vsub.s32 0, %v2330
    %v2332 = vrot.slane %v2067, %v2331
    %v2334 = vadd.f32 %v2326, %v2332
    %v2335 = vadd.f32 %v2327, %v2332
    %v2336 = vmax.f32 %v2334, 0.0
    %v2337 = vmax.f32 %v2335, 0.0
    %v2338 = vld [vmem:[#allocation7] sm:$0x1]
    %s2339 = scalar_lea.vmem [#allocation7], 1
    %v2340 = vld [vmem:[%s2339] sm:$0x1]
    %v2341 = vsel %vm2101, %v2336, 0.0
    %v2342 = vsel %vm2101, %v2337, 0.0
    %v2343 = vadd.f32 %v2341, %v2342
    %v2344 = vrot.slane %v2343, 4
    %v2345 = vadd.f32 %v2343, %v2344
    %v2346 = vrot.slane %v2345, 2
    %v2347 = vadd.f32 %v2345, %v2346
    %v2348 = vrot.slane %v2347, 1
    %v2349 = vadd.f32 %v2347, %v2348
    %v2350 = vmul.f32 %v2336, %v2336
    %v2351 = vmul.f32 %v2337, %v2337
    %v2352 = vsel %vm2101, %v2350, 0.0
    %v2353 = vsel %vm2101, %v2351, 0.0
    %v2354 = vadd.f32 %v2352, %v2353
    %v2355 = vrot.slane %v2354, 4
    %v2356 = vadd.f32 %v2354, %v2355
    %v2357 = vrot.slane %v2356, 2
    %v2358 = vadd.f32 %v2356, %v2357
    %v2359 = vrot.slane %v2358, 1
    %v2360 = vadd.f32 %v2358, %v2359
    %v2361 = vpack.c.bf16 %v2349, %v2349
    %v2370 = vunpack.c.l.b16 %v461
    %v2371 = vunpack.c.l.b16 %v462
    %v2372 = vunpack.c.l.b16 %v463
    %v2373 = vunpack.c.l.b16 %v464
    %v2374 = vunpack.c.l.b16 %v465
    %v2375 = vunpack.c.l.b16 %v466
    %v2376 = vunpack.c.l.b16 %v467
    %v2377 = vunpack.c.l.b16 %v468
    %v2378 = vpack.c.b16 %v2371, %v2370
    %v2379 = vpack.c.b16 %v2373, %v2372
    %v2380 = vpack.c.b16 %v2375, %v2374
    %v2381 = vpack.c.b16 %v2377, %v2376
    %v2387 = vsel %vm2101, %v2361, 0
    %2389 = vmatprep.subr.bf16.mxu0 0
    %2390 = vmatpush1.bf16.msra.mxu0 %v2378
    %2391 = vmatprep.subr.bf16.mxu0 0
    %2392 = vmatpush1.bf16.msra.mxu0 %v2379
    %2393 = vmatprep.subr.bf16.mxu0 0
    %2394 = vmatpush1.bf16.msra.mxu0 %v2380
    %2395 = vmatprep.subr.bf16.mxu0 0
    %2396 = vmatpush1.bf16.msra.mxu0 %v2381
    %2397 = vmatprep.subr.bf16.mxu0 0
    %2398 = vmatpush1.bf16.msra.mxu0 0
    %2399 = vmatprep.subr.bf16.mxu0 0
    %2400 = vmatpush1.bf16.msra.mxu0 0
    %2401 = vmatprep.subr.bf16.mxu0 0
    %2402 = vmatpush1.bf16.msra.mxu0 0
    %2403 = vmatprep.subr.bf16.mxu0 0
    %2404 = vmatpush1.bf16.msra.mxu0 0
    %2405 = vmatprep.subr.bf16.mxu0 0
    %2406 = vmatpush1.bf16.msra.mxu0 0
    %2407 = vmatprep.subr.bf16.mxu0 0
    %2408 = vmatpush1.bf16.msra.mxu0 0
    %2409 = vmatprep.subr.bf16.mxu0 0
    %2410 = vmatpush1.bf16.msra.mxu0 0
    %2411 = vmatprep.subr.bf16.mxu0 0
    %2412 = vmatpush1.bf16.msra.mxu0 0
    %2413 = vmatprep.subr.bf16.mxu0 0
    %2414 = vmatpush1.bf16.msra.mxu0 0
    %2415 = vmatprep.subr.bf16.mxu0 0
    %2416 = vmatpush1.bf16.msra.mxu0 0
    %2417 = vmatprep.subr.bf16.mxu0 0
    %2418 = vmatpush1.bf16.msra.mxu0 0
    %2419 = vmatprep.subr.bf16.mxu0 0
    %2420 = vmatpush1.bf16.msra.mxu0 0
    %2421 = vmatprep.mubr.bf16.mxu0 0
    %2422 = vmatmul.mubr.bf16.gmra.mrb[0].mxu0 %v2387
    %v2423 = vpop.f32.mrb[0].mxu0
    %v2424 = vadd.f32 0.0, %v2423
    %v2425 = vpop.f32.mrb[0].mxu0
    %v2426 = vpop.f32.mrb[0].mxu0
    %v2427 = vpop.f32.mrb[0].mxu0
    %2428 = vdwg.mxu0
    %v2429 = vpack.c.bf16 %v2360, %v2360
    %v2431 = vsel %vm2101, %v2429, 0
    %2433 = vmatprep.subr.bf16.mxu0 0
    %2434 = vmatpush1.bf16.msra.mxu0 %v2378
    %2435 = vmatprep.subr.bf16.mxu0 0
    %2436 = vmatpush1.bf16.msra.mxu0 %v2379
    %2437 = vmatprep.subr.bf16.mxu0 0
    %2438 = vmatpush1.bf16.msra.mxu0 %v2380
    %2439 = vmatprep.subr.bf16.mxu0 0
    %2440 = vmatpush1.bf16.msra.mxu0 %v2381
    %2441 = vmatprep.subr.bf16.mxu0 0
    %2442 = vmatpush1.bf16.msra.mxu0 0
    %2443 = vmatprep.subr.bf16.mxu0 0
    %2444 = vmatpush1.bf16.msra.mxu0 0
    %2445 = vmatprep.subr.bf16.mxu0 0
    %2446 = vmatpush1.bf16.msra.mxu0 0
    %2447 = vmatprep.subr.bf16.mxu0 0
    %2448 = vmatpush1.bf16.msra.mxu0 0
    %2449 = vmatprep.subr.bf16.mxu0 0
    %2450 = vmatpush1.bf16.msra.mxu0 0
    %2451 = vmatprep.subr.bf16.mxu0 0
    %2452 = vmatpush1.bf16.msra.mxu0 0
    %2453 = vmatprep.subr.bf16.mxu0 0
    %2454 = vmatpush1.bf16.msra.mxu0 0
    %2455 = vmatprep.subr.bf16.mxu0 0
    %2456 = vmatpush1.bf16.msra.mxu0 0
    %2457 = vmatprep.subr.bf16.mxu0 0
    %2458 = vmatpush1.bf16.msra.mxu0 0
    %2459 = vmatprep.subr.bf16.mxu0 0
    %2460 = vmatpush1.bf16.msra.mxu0 0
    %2461 = vmatprep.subr.bf16.mxu0 0
    %2462 = vmatpush1.bf16.msra.mxu0 0
    %2463 = vmatprep.subr.bf16.mxu0 0
    %2464 = vmatpush1.bf16.msra.mxu0 0
    %2465 = vmatprep.mubr.bf16.mxu0 0
    %2466 = vmatmul.mubr.bf16.gmra.mrb[0].mxu0 %v2431
    %v2467 = vpop.f32.mrb[0].mxu0
    %v2468 = vadd.f32 0.0, %v2467
    %v2469 = vpop.f32.mrb[0].mxu0
    %v2470 = vpop.f32.mrb[0].mxu0
    %v2471 = vpop.f32.mrb[0].mxu0
    %2472 = vdwg.mxu0
    %v2473 = vmul.f32 %v2424, 0.0078125
    %v2474 = vmul.f32 %v2468, 0.0078125
    %v2475 = vmul.f32 %v2473, %v2473
    %v2476 = vsub.f32 %v2474, %v2475
    %v2477 = vmax.f32 %v2476, 0.0
    %v2478 = vadd.f32 %v2477, 1e-05
    %v2479 = vrsqrt.pop %v2478
    %v2480 = vmul.f32 %v2338, %v2479
    %v2481 = vmul.f32 %v2473, %v2480
    %v2482 = vsub.f32 %v2340, %v2481
    %v2483 = vpack.c.bf16 %v2480, %v2480
    %v2485 = vsel %vm1105, %v2483, 0
    %v2488 = vsel %vm1109, %v469, 0
    %2490 = vmatprep.subr.bf16.mxu0 0
    %2491 = vmatpush1.bf16.msra.mxu0 %v2488
    %2492 = vmatprep.subr.bf16.mxu0 0
    %2493 = vmatpush1.bf16.msra.mxu0 0
    %2494 = vmatprep.subr.bf16.mxu0 0
    %2495 = vmatpush1.bf16.msra.mxu0 0
    %2496 = vmatprep.subr.bf16.mxu0 0
    %2497 = vmatpush1.bf16.msra.mxu0 0
    %2498 = vmatprep.subr.bf16.mxu0 0
    %2499 = vmatpush1.bf16.msra.mxu0 0
    %2500 = vmatprep.subr.bf16.mxu0 0
    %2501 = vmatpush1.bf16.msra.mxu0 0
    %2502 = vmatprep.subr.bf16.mxu0 0
    %2503 = vmatpush1.bf16.msra.mxu0 0
    %2504 = vmatprep.subr.bf16.mxu0 0
    %2505 = vmatpush1.bf16.msra.mxu0 0
    %2506 = vmatprep.subr.bf16.mxu0 0
    %2507 = vmatpush1.bf16.msra.mxu0 0
    %2508 = vmatprep.subr.bf16.mxu0 0
    %2509 = vmatpush1.bf16.msra.mxu0 0
    %2510 = vmatprep.subr.bf16.mxu0 0
    %2511 = vmatpush1.bf16.msra.mxu0 0
    %2512 = vmatprep.subr.bf16.mxu0 0
    %2513 = vmatpush1.bf16.msra.mxu0 0
    %2514 = vmatprep.subr.bf16.mxu0 0
    %2515 = vmatpush1.bf16.msra.mxu0 0
    %2516 = vmatprep.subr.bf16.mxu0 0
    %2517 = vmatpush1.bf16.msra.mxu0 0
    %2518 = vmatprep.subr.bf16.mxu0 0
    %2519 = vmatpush1.bf16.msra.mxu0 0
    %2520 = vmatprep.subr.bf16.mxu0 0
    %2521 = vmatpush1.bf16.msra.mxu0 0
    %2522 = vmatprep.mubr.bf16.mxu0 0
    %2523 = vmatmul.mubr.bf16.gmra.mrb[0].mxu0 %v2485
    %v2524 = vpop.f32.mrb[0].mxu0
    %v2525 = vadd.f32 0.0, %v2524
    %v2526 = vpop.f32.mrb[0].mxu0
    %v2527 = vpop.f32.mrb[0].mxu0
    %v2528 = vpop.f32.mrb[0].mxu0
    %2529 = vdwg.mxu0
    %v2530 = vpack.c.bf16 %v2482, %v2482
    %v2532 = vsel %vm1105, %v2530, 0
    %2534 = vmatprep.subr.bf16.mxu0 0
    %2535 = vmatpush1.bf16.msra.mxu0 %v2488
    %2536 = vmatprep.subr.bf16.mxu0 0
    %2537 = vmatpush1.bf16.msra.mxu0 0
    %2538 = vmatprep.subr.bf16.mxu0 0
    %2539 = vmatpush1.bf16.msra.mxu0 0
    %2540 = vmatprep.subr.bf16.mxu0 0
    %2541 = vmatpush1.bf16.msra.mxu0 0
    %2542 = vmatprep.subr.bf16.mxu0 0
    %2543 = vmatpush1.bf16.msra.mxu0 0
    %2544 = vmatprep.subr.bf16.mxu0 0
    %2545 = vmatpush1.bf16.msra.mxu0 0
    %2546 = vmatprep.subr.bf16.mxu0 0
    %2547 = vmatpush1.bf16.msra.mxu0 0
    %2548 = vmatprep.subr.bf16.mxu0 0
    %2549 = vmatpush1.bf16.msra.mxu0 0
    %2550 = vmatprep.subr.bf16.mxu0 0
    %2551 = vmatpush1.bf16.msra.mxu0 0
    %2552 = vmatprep.subr.bf16.mxu0 0
    %2553 = vmatpush1.bf16.msra.mxu0 0
    %2554 = vmatprep.subr.bf16.mxu0 0
    %2555 = vmatpush1.bf16.msra.mxu0 0
    %2556 = vmatprep.subr.bf16.mxu0 0
    %2557 = vmatpush1.bf16.msra.mxu0 0
    %2558 = vmatprep.subr.bf16.mxu0 0
    %2559 = vmatpush1.bf16.msra.mxu0 0
    %2560 = vmatprep.subr.bf16.mxu0 0
    %2561 = vmatpush1.bf16.msra.mxu0 0
    %2562 = vmatprep.subr.bf16.mxu0 0
    %2563 = vmatpush1.bf16.msra.mxu0 0
    %2564 = vmatprep.subr.bf16.mxu0 0
    %2565 = vmatpush1.bf16.msra.mxu0 0
    %2566 = vmatprep.mubr.bf16.mxu0 0
    %2567 = vmatmul.mubr.bf16.gmra.mrb[0].mxu0 %v2532
    %v2568 = vpop.f32.mrb[0].mxu0
    %v2569 = vadd.f32 0.0, %v2568
    %v2570 = vpop.f32.mrb[0].mxu0
    %v2571 = vpop.f32.mrb[0].mxu0
    %v2572 = vpop.f32.mrb[0].mxu0
    %2573 = vdwg.mxu0
    %v2574 = vlaneseq
    %v2575 = vshrl.u32 %v2574, 7
    %v2576 = vsub.s32 0, %v2575
    %v2577 = vrot.slane %v2525, %v2576
    %v2578 = vmul.f32 %v2336, %v2577
    %v2579 = vmul.f32 %v2337, %v2577
    %v2580 = vlaneseq
    %v2581 = vshrl.u32 %v2580, 7
    %v2582 = vsub.s32 0, %v2581
    %v2583 = vrot.slane %v2569, %v2582
    %v2584 = vadd.f32 %v2578, %v2583
    %v2585 = vadd.f32 %v2579, %v2583
    %s2586 = scalar_lea.vmem [#allocation6], 1
    %v2587 = vld [vmem:[%s2586] sm:$0x1]
    %v2588 = vpack.c.bf16 %v2585, %v2584
    %v2589 = vld [vmem:[%s31] sm:$0xf]
    %v2590 = vld [vmem:[%s31 + $0x4] sm:$0xf]
    %v2591 = vld [vmem:[%s31 + $0x8] sm:$0xf]
    %v2592 = vld [vmem:[%s31 + $0xc] sm:$0xf]
    %v2593 = vld [vmem:[%s31 + $0x10] sm:$0xf]
    %v2594 = vld [vmem:[%s31 + $0x14] sm:$0xf]
    %v2595 = vld [vmem:[%s31 + $0x18] sm:$0xf]
    %v2596 = vld [vmem:[%s31 + $0x1c] sm:$0xf]
    %v2605 = vunpack.c.l.b16 %v2589
    %v2606 = vunpack.c.l.b16 %v2590
    %v2607 = vunpack.c.l.b16 %v2591
    %v2608 = vunpack.c.l.b16 %v2592
    %v2609 = vunpack.c.l.b16 %v2593
    %v2610 = vunpack.c.l.b16 %v2594
    %v2611 = vunpack.c.l.b16 %v2595
    %v2612 = vunpack.c.l.b16 %v2596
    %v2613 = vpack.c.b16 %v2606, %v2605
    %v2614 = vpack.c.b16 %v2608, %v2607
    %v2615 = vpack.c.b16 %v2610, %v2609
    %v2616 = vpack.c.b16 %v2612, %v2611
    %v2622 = vsel %vm2101, %v2588, 0
    %2624 = vmatprep.subr.bf16.mxu0 0
    %2625 = vmatpush1.bf16.msra.mxu0 %v2613
    %2626 = vmatprep.subr.bf16.mxu0 0
    %2627 = vmatpush1.bf16.msra.mxu0 %v2614
    %2628 = vmatprep.subr.bf16.mxu0 0
    %2629 = vmatpush1.bf16.msra.mxu0 %v2615
    %2630 = vmatprep.subr.bf16.mxu0 0
    %2631 = vmatpush1.bf16.msra.mxu0 %v2616
    %2632 = vmatprep.subr.bf16.mxu0 0
    %2633 = vmatpush1.bf16.msra.mxu0 0
    %2634 = vmatprep.subr.bf16.mxu0 0
    %2635 = vmatpush1.bf16.msra.mxu0 0
    %2636 = vmatprep.subr.bf16.mxu0 0
    %2637 = vmatpush1.bf16.msra.mxu0 0
    %2638 = vmatprep.subr.bf16.mxu0 0
    %2639 = vmatpush1.bf16.msra.mxu0 0
    %2640 = vmatprep.subr.bf16.mxu0 0
    %2641 = vmatpush1.bf16.msra.mxu0 0
    %2642 = vmatprep.subr.bf16.mxu0 0
    %2643 = vmatpush1.bf16.msra.mxu0 0
    %2644 = vmatprep.subr.bf16.mxu0 0
    %2645 = vmatpush1.bf16.msra.mxu0 0
    %2646 = vmatprep.subr.bf16.mxu0 0
    %2647 = vmatpush1.bf16.msra.mxu0 0
    %2648 = vmatprep.subr.bf16.mxu0 0
    %2649 = vmatpush1.bf16.msra.mxu0 0
    %2650 = vmatprep.subr.bf16.mxu0 0
    %2651 = vmatpush1.bf16.msra.mxu0 0
    %2652 = vmatprep.subr.bf16.mxu0 0
    %2653 = vmatpush1.bf16.msra.mxu0 0
    %2654 = vmatprep.subr.bf16.mxu0 0
    %2655 = vmatpush1.bf16.msra.mxu0 0
    %2656 = vmatprep.mubr.bf16.mxu0 0
    %2657 = vmatmul.mubr.bf16.gmra.mrb[0].mxu0 %v2622
    %v2658 = vpop.f32.mrb[0].mxu0
    %v2659 = vadd.f32 0.0, %v2658
    %v2660 = vpop.f32.mrb[0].mxu0
    %v2661 = vpop.f32.mrb[0].mxu0
    %v2662 = vadd.f32 0.0, %v2661
    %v2663 = vpop.f32.mrb[0].mxu0
    %2664 = vdwg.mxu0
    %s2665 = scalar_lea.vmem %s31, 32
    %v2666 = vld [vmem:[%s2665] sm:$0xf]
    %v2667 = vld [vmem:[%s2665 + $0x4] sm:$0xf]
    %v2668 = vld [vmem:[%s2665 + $0x8] sm:$0xf]
    %v2669 = vld [vmem:[%s2665 + $0xc] sm:$0xf]
    %v2670 = vld [vmem:[%s2665 + $0x10] sm:$0xf]
    %v2671 = vld [vmem:[%s2665 + $0x14] sm:$0xf]
    %v2672 = vld [vmem:[%s2665 + $0x18] sm:$0xf]
    %v2673 = vld [vmem:[%s2665 + $0x1c] sm:$0xf]
    %s2674 = scalar_lea.vmem %s31, 64
    %v2675 = vld [vmem:[%s2674] sm:$0xf]
    %v2676 = vld [vmem:[%s2674 + $0x4] sm:$0xf]
    %v2677 = vld [vmem:[%s2674 + $0x8] sm:$0xf]
    %v2678 = vld [vmem:[%s2674 + $0xc] sm:$0xf]
    %v2679 = vld [vmem:[%s2674 + $0x10] sm:$0xf]
    %v2680 = vld [vmem:[%s2674 + $0x14] sm:$0xf]
    %v2681 = vld [vmem:[%s2674 + $0x18] sm:$0xf]
    %v2682 = vld [vmem:[%s2674 + $0x1c] sm:$0xf]
    %v2691 = vunpack.c.l.b16 %v2675
    %v2692 = vunpack.c.l.b16 %v2676
    %v2693 = vunpack.c.l.b16 %v2677
    %v2694 = vunpack.c.l.b16 %v2678
    %v2695 = vunpack.c.l.b16 %v2679
    %v2696 = vunpack.c.l.b16 %v2680
    %v2697 = vunpack.c.l.b16 %v2681
    %v2698 = vunpack.c.l.b16 %v2682
    %v2699 = vpack.c.b16 %v2692, %v2691
    %v2700 = vpack.c.b16 %v2694, %v2693
    %v2701 = vpack.c.b16 %v2696, %v2695
    %v2702 = vpack.c.b16 %v2698, %v2697
    %2707 = vmatprep.subr.bf16.mxu0 0
    %2708 = vmatpush1.bf16.msra.mxu0 %v2699
    %2709 = vmatprep.subr.bf16.mxu0 0
    %2710 = vmatpush1.bf16.msra.mxu0 %v2700
    %2711 = vmatprep.subr.bf16.mxu0 0
    %2712 = vmatpush1.bf16.msra.mxu0 %v2701
    %2713 = vmatprep.subr.bf16.mxu0 0
    %2714 = vmatpush1.bf16.msra.mxu0 %v2702
    %2715 = vmatprep.subr.bf16.mxu0 0
    %2716 = vmatpush1.bf16.msra.mxu0 0
    %2717 = vmatprep.subr.bf16.mxu0 0
    %2718 = vmatpush1.bf16.msra.mxu0 0
    %2719 = vmatprep.subr.bf16.mxu0 0
    %2720 = vmatpush1.bf16.msra.mxu0 0
    %2721 = vmatprep.subr.bf16.mxu0 0
    %2722 = vmatpush1.bf16.msra.mxu0 0
    %2723 = vmatprep.subr.bf16.mxu0 0
    %2724 = vmatpush1.bf16.msra.mxu0 0
    %2725 = vmatprep.subr.bf16.mxu0 0
    %2726 = vmatpush1.bf16.msra.mxu0 0
    %2727 = vmatprep.subr.bf16.mxu0 0
    %2728 = vmatpush1.bf16.msra.mxu0 0
    %2729 = vmatprep.subr.bf16.mxu0 0
    %2730 = vmatpush1.bf16.msra.mxu0 0
    %2731 = vmatprep.subr.bf16.mxu0 0
    %2732 = vmatpush1.bf16.msra.mxu0 0
    %2733 = vmatprep.subr.bf16.mxu0 0
    %2734 = vmatpush1.bf16.msra.mxu0 0
    %2735 = vmatprep.subr.bf16.mxu0 0
    %2736 = vmatpush1.bf16.msra.mxu0 0
    %2737 = vmatprep.subr.bf16.mxu0 0
    %2738 = vmatpush1.bf16.msra.mxu0 0
    %2739 = vmatprep.mubr.bf16.mxu0 0
    %2740 = vmatmul.mubr.bf16.gmra.mrb[0].mxu0 %v2622
    %v2741 = vpop.f32.mrb[0].mxu0
    %v2742 = vadd.f32 0.0, %v2741
    %v2743 = vpop.f32.mrb[0].mxu0
    %v2744 = vpop.f32.mrb[0].mxu0
    %v2745 = vadd.f32 0.0, %v2744
    %v2746 = vpop.f32.mrb[0].mxu0
    %2747 = vdwg.mxu0
    %v2748 = vrot.slane %v2659, 7
    %v2749 = vrot.slane %v2662, 7
    %v2750 = vsel %vm762, %v2748, %v2749
    %v2751 = vsel %vm762, %v2749, %v2748
    %v2752 = vrot.slane %v2742, 1
    %v2753 = vrot.slane %v2745, 1
    %v2754 = vsel %vm771, %v2752, %v2753
    %v2755 = vsel %vm771, %v2753, %v2752
    %v2756 = vmul.f32 %v2240, %v2751
    %v2757 = vmul.f32 %v2245, %v2750
    %v2766 = vunpack.c.l.b16 %v2666
    %v2767 = vunpack.c.l.b16 %v2667
    %v2768 = vunpack.c.l.b16 %v2668
    %v2769 = vunpack.c.l.b16 %v2669
    %v2770 = vunpack.c.l.b16 %v2670
    %v2771 = vunpack.c.l.b16 %v2671
    %v2772 = vunpack.c.l.b16 %v2672
    %v2773 = vunpack.c.l.b16 %v2673
    %v2774 = vpack.c.b16 %v2767, %v2766
    %v2775 = vpack.c.b16 %v2769, %v2768
    %v2776 = vpack.c.b16 %v2771, %v2770
    %v2777 = vpack.c.b16 %v2773, %v2772
    %2782 = vmatprep.subr.bf16.mxu0 0
    %2783 = vmatpush1.bf16.msra.mxu0 %v2774
    %2784 = vmatprep.subr.bf16.mxu0 0
    %2785 = vmatpush1.bf16.msra.mxu0 %v2775
    %2786 = vmatprep.subr.bf16.mxu0 0
    %2787 = vmatpush1.bf16.msra.mxu0 %v2776
    %2788 = vmatprep.subr.bf16.mxu0 0
    %2789 = vmatpush1.bf16.msra.mxu0 %v2777
    %2790 = vmatprep.subr.bf16.mxu0 0
    %2791 = vmatpush1.bf16.msra.mxu0 0
    %2792 = vmatprep.subr.bf16.mxu0 0
    %2793 = vmatpush1.bf16.msra.mxu0 0
    %2794 = vmatprep.subr.bf16.mxu0 0
    %2795 = vmatpush1.bf16.msra.mxu0 0
    %2796 = vmatprep.subr.bf16.mxu0 0
    %2797 = vmatpush1.bf16.msra.mxu0 0
    %2798 = vmatprep.subr.bf16.mxu0 0
    %2799 = vmatpush1.bf16.msra.mxu0 0
    %2800 = vmatprep.subr.bf16.mxu0 0
    %2801 = vmatpush1.bf16.msra.mxu0 0
    %2802 = vmatprep.subr.bf16.mxu0 0
    %2803 = vmatpush1.bf16.msra.mxu0 0
    %2804 = vmatprep.subr.bf16.mxu0 0
    %2805 = vmatpush1.bf16.msra.mxu0 0
    %2806 = vmatprep.subr.bf16.mxu0 0
    %2807 = vmatpush1.bf16.msra.mxu0 0
    %2808 = vmatprep.subr.bf16.mxu0 0
    %2809 = vmatpush1.bf16.msra.mxu0 0
    %2810 = vmatprep.subr.bf16.mxu0 0
    %2811 = vmatpush1.bf16.msra.mxu0 0
    %2812 = vmatprep.subr.bf16.mxu0 0
    %2813 = vmatpush1.bf16.msra.mxu0 0
    %2814 = vmatprep.mubr.bf16.mxu0 0
    %2815 = vmatmul.mubr.bf16.gmra.mrb[0].mxu0 %v2622
    %v2816 = vpop.f32.mrb[0].mxu0
    %v2817 = vadd.f32 %v2756, %v2816
    %v2818 = vpop.f32.mrb[0].mxu0
    %v2819 = vpop.f32.mrb[0].mxu0
    %v2820 = vadd.f32 %v2757, %v2819
    %v2821 = vpop.f32.mrb[0].mxu0
    %2822 = vdwg.mxu0
    %v2823 = vmul.f32 %v2317, %v2754
    %v2824 = vmul.f32 %v2322, %v2755
    %v2825 = vadd.f32 %v2817, %v2823
    %v2826 = vadd.f32 %v2820, %v2824
    %v2828 = vlaneseq
    %v2829 = vshrl.u32 %v2828, 7
    %v2830 = vsub.s32 0, %v2829
    %v2831 = vrot.slane %v2587, %v2830
    %v2833 = vadd.f32 %v2825, %v2831
    %v2834 = vadd.f32 %v2826, %v2831
    %v2835 = vmax.f32 %v2833, 0.0
    %v2836 = vmax.f32 %v2834, 0.0
    %s2837 = scalar_lea.vmem [#allocation7], 2
    %v2838 = vld [vmem:[%s2837] sm:$0x1]
    %s2839 = scalar_lea.vmem [#allocation7], 3
    %v2840 = vld [vmem:[%s2839] sm:$0x1]
    %v2841 = vsel %vm2101, %v2835, 0.0
    %v2842 = vsel %vm2101, %v2836, 0.0
    %v2843 = vadd.f32 %v2841, %v2842
    %v2844 = vrot.slane %v2843, 4
    %v2845 = vadd.f32 %v2843, %v2844
    %v2846 = vrot.slane %v2845, 2
    %v2847 = vadd.f32 %v2845, %v2846
    %v2848 = vrot.slane %v2847, 1
    %v2849 = vadd.f32 %v2847, %v2848
    %v2850 = vmul.f32 %v2835, %v2835
    %v2851 = vmul.f32 %v2836, %v2836
    %v2852 = vsel %vm2101, %v2850, 0.0
    %v2853 = vsel %vm2101, %v2851, 0.0
    %v2854 = vadd.f32 %v2852, %v2853
    %v2855 = vrot.slane %v2854, 4
    %v2856 = vadd.f32 %v2854, %v2855
    %v2857 = vrot.slane %v2856, 2
    %v2858 = vadd.f32 %v2856, %v2857
    %v2859 = vrot.slane %v2858, 1
    %v2860 = vadd.f32 %v2858, %v2859
    %v2861 = vpack.c.bf16 %v2849, %v2849
    %v2863 = vsel %vm2101, %v2861, 0
    %2865 = vmatprep.subr.bf16.mxu0 0
    %2866 = vmatpush1.bf16.msra.mxu0 %v2378
    %2867 = vmatprep.subr.bf16.mxu0 0
    %2868 = vmatpush1.bf16.msra.mxu0 %v2379
    %2869 = vmatprep.subr.bf16.mxu0 0
    %2870 = vmatpush1.bf16.msra.mxu0 %v2380
    %2871 = vmatprep.subr.bf16.mxu0 0
    %2872 = vmatpush1.bf16.msra.mxu0 %v2381
    %2873 = vmatprep.subr.bf16.mxu0 0
    %2874 = vmatpush1.bf16.msra.mxu0 0
    %2875 = vmatprep.subr.bf16.mxu0 0
    %2876 = vmatpush1.bf16.msra.mxu0 0
    %2877 = vmatprep.subr.bf16.mxu0 0
    %2878 = vmatpush1.bf16.msra.mxu0 0
    %2879 = vmatprep.subr.bf16.mxu0 0
    %2880 = vmatpush1.bf16.msra.mxu0 0
    %2881 = vmatprep.subr.bf16.mxu0 0
    %2882 = vmatpush1.bf16.msra.mxu0 0
    %2883 = vmatprep.subr.bf16.mxu0 0
    %2884 = vmatpush1.bf16.msra.mxu0 0
    %2885 = vmatprep.subr.bf16.mxu0 0
    %2886 = vmatpush1.bf16.msra.mxu0 0
    %2887 = vmatprep.subr.bf16.mxu0 0
    %2888 = vmatpush1.bf16.msra.mxu0 0
    %2889 = vmatprep.subr.bf16.mxu0 0
    %2890 = vmatpush1.bf16.msra.mxu0 0
    %2891 = vmatprep.subr.bf16.mxu0 0
    %2892 = vmatpush1.bf16.msra.mxu0 0
    %2893 = vmatprep.subr.bf16.mxu0 0
    %2894 = vmatpush1.bf16.msra.mxu0 0
    %2895 = vmatprep.subr.bf16.mxu0 0
    %2896 = vmatpush1.bf16.msra.mxu0 0
    %2897 = vmatprep.mubr.bf16.mxu0 0
    %2898 = vmatmul.mubr.bf16.gmra.mrb[0].mxu0 %v2863
    %v2899 = vpop.f32.mrb[0].mxu0
    %v2900 = vadd.f32 0.0, %v2899
    %v2901 = vpop.f32.mrb[0].mxu0
    %v2902 = vpop.f32.mrb[0].mxu0
    %v2903 = vpop.f32.mrb[0].mxu0
    %2904 = vdwg.mxu0
    %v2905 = vpack.c.bf16 %v2860, %v2860
    %v2907 = vsel %vm2101, %v2905, 0
    %2909 = vmatprep.subr.bf16.mxu0 0
    %2910 = vmatpush1.bf16.msra.mxu0 %v2378
    %2911 = vmatprep.subr.bf16.mxu0 0
    %2912 = vmatpush1.bf16.msra.mxu0 %v2379
    %2913 = vmatprep.subr.bf16.mxu0 0
    %2914 = vmatpush1.bf16.msra.mxu0 %v2380
    %2915 = vmatprep.subr.bf16.mxu0 0
    %2916 = vmatpush1.bf16.msra.mxu0 %v2381
    %2917 = vmatprep.subr.bf16.mxu0 0
    %2918 = vmatpush1.bf16.msra.mxu0 0
    %2919 = vmatprep.subr.bf16.mxu0 0
    %2920 = vmatpush1.bf16.msra.mxu0 0
    %2921 = vmatprep.subr.bf16.mxu0 0
    %2922 = vmatpush1.bf16.msra.mxu0 0
    %2923 = vmatprep.subr.bf16.mxu0 0
    %2924 = vmatpush1.bf16.msra.mxu0 0
    %2925 = vmatprep.subr.bf16.mxu0 0
    %2926 = vmatpush1.bf16.msra.mxu0 0
    %2927 = vmatprep.subr.bf16.mxu0 0
    %2928 = vmatpush1.bf16.msra.mxu0 0
    %2929 = vmatprep.subr.bf16.mxu0 0
    %2930 = vmatpush1.bf16.msra.mxu0 0
    %2931 = vmatprep.subr.bf16.mxu0 0
    %2932 = vmatpush1.bf16.msra.mxu0 0
    %2933 = vmatprep.subr.bf16.mxu0 0
    %2934 = vmatpush1.bf16.msra.mxu0 0
    %2935 = vmatprep.subr.bf16.mxu0 0
    %2936 = vmatpush1.bf16.msra.mxu0 0
    %2937 = vmatprep.subr.bf16.mxu0 0
    %2938 = vmatpush1.bf16.msra.mxu0 0
    %2939 = vmatprep.subr.bf16.mxu0 0
    %2940 = vmatpush1.bf16.msra.mxu0 0
    %2941 = vmatprep.mubr.bf16.mxu0 0
    %2942 = vmatmul.mubr.bf16.gmra.mrb[0].mxu0 %v2907
    %v2943 = vpop.f32.mrb[0].mxu0
    %v2944 = vadd.f32 0.0, %v2943
    %v2945 = vpop.f32.mrb[0].mxu0
    %v2946 = vpop.f32.mrb[0].mxu0
    %v2947 = vpop.f32.mrb[0].mxu0
    %2948 = vdwg.mxu0
    %v2949 = vmul.f32 %v2900, 0.0078125
    %v2950 = vmul.f32 %v2944, 0.0078125
    %v2951 = vmul.f32 %v2949, %v2949
    %v2952 = vsub.f32 %v2950, %v2951
    %v2953 = vmax.f32 %v2952, 0.0
    %v2954 = vadd.f32 %v2953, 1e-05
    %v2955 = vrsqrt.pop %v2954
    %v2956 = vmul.f32 %v2838, %v2955
    %v2957 = vmul.f32 %v2949, %v2956
    %v2958 = vsub.f32 %v2840, %v2957
    %v2959 = vpack.c.bf16 %v2956, %v2956
    %v2961 = vsel %vm1105, %v2959, 0
    %2963 = vmatprep.subr.bf16.mxu0 0
    %2964 = vmatpush1.bf16.msra.mxu0 %v2488
    %2965 = vmatprep.subr.bf16.mxu0 0
    %2966 = vmatpush1.bf16.msra.mxu0 0
    %2967 = vmatprep.subr.bf16.mxu0 0
    %2968 = vmatpush1.bf16.msra.mxu0 0
    %2969 = vmatprep.subr.bf16.mxu0 0
    %2970 = vmatpush1.bf16.msra.mxu0 0
    %2971 = vmatprep.subr.bf16.mxu0 0
    %2972 = vmatpush1.bf16.msra.mxu0 0
    %2973 = vmatprep.subr.bf16.mxu0 0
    %2974 = vmatpush1.bf16.msra.mxu0 0
    %2975 = vmatprep.subr.bf16.mxu0 0
    %2976 = vmatpush1.bf16.msra.mxu0 0
    %2977 = vmatprep.subr.bf16.mxu0 0
    %2978 = vmatpush1.bf16.msra.mxu0 0
    %2979 = vmatprep.subr.bf16.mxu0 0
    %2980 = vmatpush1.bf16.msra.mxu0 0
    %2981 = vmatprep.subr.bf16.mxu0 0
    %2982 = vmatpush1.bf16.msra.mxu0 0
    %2983 = vmatprep.subr.bf16.mxu0 0
    %2984 = vmatpush1.bf16.msra.mxu0 0
    %2985 = vmatprep.subr.bf16.mxu0 0
    %2986 = vmatpush1.bf16.msra.mxu0 0
    %2987 = vmatprep.subr.bf16.mxu0 0
    %2988 = vmatpush1.bf16.msra.mxu0 0
    %2989 = vmatprep.subr.bf16.mxu0 0
    %2990 = vmatpush1.bf16.msra.mxu0 0
    %2991 = vmatprep.subr.bf16.mxu0 0
    %2992 = vmatpush1.bf16.msra.mxu0 0
    %2993 = vmatprep.subr.bf16.mxu0 0
    %2994 = vmatpush1.bf16.msra.mxu0 0
    %2995 = vmatprep.mubr.bf16.mxu0 0
    %2996 = vmatmul.mubr.bf16.gmra.mrb[0].mxu0 %v2961
    %v2997 = vpop.f32.mrb[0].mxu0
    %v2998 = vadd.f32 0.0, %v2997
    %v2999 = vpop.f32.mrb[0].mxu0
    %v3000 = vpop.f32.mrb[0].mxu0
    %v3001 = vpop.f32.mrb[0].mxu0
    %3002 = vdwg.mxu0
    %v3003 = vpack.c.bf16 %v2958, %v2958
    %v3005 = vsel %vm1105, %v3003, 0
    %3007 = vmatprep.subr.bf16.mxu0 0
    %3008 = vmatpush1.bf16.msra.mxu0 %v2488
    %3009 = vmatprep.subr.bf16.mxu0 0
    %3010 = vmatpush1.bf16.msra.mxu0 0
    %3011 = vmatprep.subr.bf16.mxu0 0
    %3012 = vmatpush1.bf16.msra.mxu0 0
    %3013 = vmatprep.subr.bf16.mxu0 0
    %3014 = vmatpush1.bf16.msra.mxu0 0
    %3015 = vmatprep.subr.bf16.mxu0 0
    %3016 = vmatpush1.bf16.msra.mxu0 0
    %3017 = vmatprep.subr.bf16.mxu0 0
    %3018 = vmatpush1.bf16.msra.mxu0 0
    %3019 = vmatprep.subr.bf16.mxu0 0
    %3020 = vmatpush1.bf16.msra.mxu0 0
    %3021 = vmatprep.subr.bf16.mxu0 0
    %3022 = vmatpush1.bf16.msra.mxu0 0
    %3023 = vmatprep.subr.bf16.mxu0 0
    %3024 = vmatpush1.bf16.msra.mxu0 0
    %3025 = vmatprep.subr.bf16.mxu0 0
    %3026 = vmatpush1.bf16.msra.mxu0 0
    %3027 = vmatprep.subr.bf16.mxu0 0
    %3028 = vmatpush1.bf16.msra.mxu0 0
    %3029 = vmatprep.subr.bf16.mxu0 0
    %3030 = vmatpush1.bf16.msra.mxu0 0
    %3031 = vmatprep.subr.bf16.mxu0 0
    %3032 = vmatpush1.bf16.msra.mxu0 0
    %3033 = vmatprep.subr.bf16.mxu0 0
    %3034 = vmatpush1.bf16.msra.mxu0 0
    %3035 = vmatprep.subr.bf16.mxu0 0
    %3036 = vmatpush1.bf16.msra.mxu0 0
    %3037 = vmatprep.subr.bf16.mxu0 0
    %3038 = vmatpush1.bf16.msra.mxu0 0
    %3039 = vmatprep.mubr.bf16.mxu0 0
    %3040 = vmatmul.mubr.bf16.gmra.mrb[0].mxu0 %v3005
    %v3041 = vpop.f32.mrb[0].mxu0
    %v3042 = vadd.f32 0.0, %v3041
    %v3043 = vpop.f32.mrb[0].mxu0
    %v3044 = vpop.f32.mrb[0].mxu0
    %v3045 = vpop.f32.mrb[0].mxu0
    %3046 = vdwg.mxu0
    %v3047 = vlaneseq
    %v3048 = vshrl.u32 %v3047, 7
    %v3049 = vsub.s32 0, %v3048
    %v3050 = vrot.slane %v2998, %v3049
    %v3051 = vmul.f32 %v2835, %v3050
    %v3052 = vmul.f32 %v2836, %v3050
    %v3053 = vlaneseq
    %v3054 = vshrl.u32 %v3053, 7
    %v3055 = vsub.s32 0, %v3054
    %v3056 = vrot.slane %v3042, %v3055
    %v3057 = vadd.f32 %v3051, %v3056
    %v3058 = vadd.f32 %v3052, %v3056
    %v3059 = vpack.c.bf16 %v3058, %v3057
    %v3060 = vld [vmem:[#allocation10] sm:$0x1]
    %v3061 = vld [vmem:[%s19] sm:$0xf]
    %v3062 = vld [vmem:[%s19 + $0x4] sm:$0xf]
    %v3063 = vld [vmem:[%s19 + $0x8] sm:$0xf]
    %v3064 = vld [vmem:[%s19 + $0xc] sm:$0xf]
    %v3065 = vld [vmem:[#allocation9] sm:$0xf]
    %v3066 = vld [vmem:[#allocation9 + $0x4] sm:$0xf]
    %v3067 = vld [vmem:[#allocation9 + $0x8] sm:$0xf]
    %v3068 = vld [vmem:[#allocation9 + $0xc] sm:$0xf]
    %v3069 = vld [vmem:[#allocation9 + $0x10] sm:$0xf]
    %v3070 = vld [vmem:[#allocation9 + $0x14] sm:$0xf]
    %v3071 = vld [vmem:[#allocation9 + $0x18] sm:$0xf]
    %v3072 = vld [vmem:[#allocation9 + $0x1c] sm:$0xf]
    %v3081 = vunpack.c.l.b16 %v3065
    %v3082 = vunpack.c.l.b16 %v3066
    %v3083 = vunpack.c.l.b16 %v3067
    %v3084 = vunpack.c.l.b16 %v3068
    %v3085 = vunpack.c.l.b16 %v3069
    %v3086 = vunpack.c.l.b16 %v3070
    %v3087 = vunpack.c.l.b16 %v3071
    %v3088 = vunpack.c.l.b16 %v3072
    %v3089 = vpack.c.b16 %v3082, %v3081
    %v3090 = vpack.c.b16 %v3084, %v3083
    %v3091 = vpack.c.b16 %v3086, %v3085
    %v3092 = vpack.c.b16 %v3088, %v3087
    %v3098 = vsel %vm2101, %v3059, 0
    %3100 = vmatprep.subr.bf16.mxu0 0
    %3101 = vmatpush1.bf16.msra.mxu0 %v3089
    %3102 = vmatprep.subr.bf16.mxu0 0
    %3103 = vmatpush1.bf16.msra.mxu0 %v3090
    %3104 = vmatprep.subr.bf16.mxu0 0
    %3105 = vmatpush1.bf16.msra.mxu0 %v3091
    %3106 = vmatprep.subr.bf16.mxu0 0
    %3107 = vmatpush1.bf16.msra.mxu0 %v3092
    %3108 = vmatprep.subr.bf16.mxu0 0
    %3109 = vmatpush1.bf16.msra.mxu0 0
    %3110 = vmatprep.subr.bf16.mxu0 0
    %3111 = vmatpush1.bf16.msra.mxu0 0
    %3112 = vmatprep.subr.bf16.mxu0 0
    %3113 = vmatpush1.bf16.msra.mxu0 0
    %3114 = vmatprep.subr.bf16.mxu0 0
    %3115 = vmatpush1.bf16.msra.mxu0 0
    %3116 = vmatprep.subr.bf16.mxu0 0
    %3117 = vmatpush1.bf16.msra.mxu0 0
    %3118 = vmatprep.subr.bf16.mxu0 0
    %3119 = vmatpush1.bf16.msra.mxu0 0
    %3120 = vmatprep.subr.bf16.mxu0 0
    %3121 = vmatpush1.bf16.msra.mxu0 0
    %3122 = vmatprep.subr.bf16.mxu0 0
    %3123 = vmatpush1.bf16.msra.mxu0 0
    %3124 = vmatprep.subr.bf16.mxu0 0
    %3125 = vmatpush1.bf16.msra.mxu0 0
    %3126 = vmatprep.subr.bf16.mxu0 0
    %3127 = vmatpush1.bf16.msra.mxu0 0
    %3128 = vmatprep.subr.bf16.mxu0 0
    %3129 = vmatpush1.bf16.msra.mxu0 0
    %3130 = vmatprep.subr.bf16.mxu0 0
    %3131 = vmatpush1.bf16.msra.mxu0 0
    %3132 = vmatprep.mubr.bf16.mxu0 0
    %3133 = vmatmul.mubr.bf16.gmra.mrb[0].mxu0 %v3098
    %v3134 = vpop.f32.mrb[0].mxu0
    %v3135 = vadd.f32 0.0, %v3134
    %v3136 = vpop.f32.mrb[0].mxu0
    %v3137 = vpop.f32.mrb[0].mxu0
    %v3138 = vadd.f32 0.0, %v3137
    %v3139 = vpop.f32.mrb[0].mxu0
    %3140 = vdwg.mxu0
    %v3141 = vpack.c.bf16 %v3138, %v3135
    %v3146 = vunpack.c.l.b16 %v3061
    %v3147 = vunpack.c.l.b16 %v3062
    %v3148 = vunpack.c.l.b16 %v3063
    %v3149 = vunpack.c.l.b16 %v3064
    %v3150 = vpack.c.b16 %v3147, %v3146
    %v3151 = vpack.c.b16 %v3149, %v3148
    %vm3152 = vcmask 130048
    %v3154 = vsel %vm3152, %v3150, 0
    %v3157 = vsel %vm3152, %v3151, 0
    %3159 = vmatprep.subr.bf16.mxu0 0
    %3160 = vmatpush1.bf16.msra.mxu0 %v3141
    %3161 = vmatprep.subr.bf16.mxu0 0
    %3162 = vmatpush1.bf16.msra.mxu0 0
    %3163 = vmatprep.subr.bf16.mxu0 0
    %3164 = vmatpush1.bf16.msra.mxu0 0
    %3165 = vmatprep.subr.bf16.mxu0 0
    %3166 = vmatpush1.bf16.msra.mxu0 0
    %3167 = vmatprep.subr.bf16.mxu0 0
    %3168 = vmatpush1.bf16.msra.mxu0 0
    %3169 = vmatprep.subr.bf16.mxu0 0
    %3170 = vmatpush1.bf16.msra.mxu0 0
    %3171 = vmatprep.subr.bf16.mxu0 0
    %3172 = vmatpush1.bf16.msra.mxu0 0
    %3173 = vmatprep.subr.bf16.mxu0 0
    %3174 = vmatpush1.bf16.msra.mxu0 0
    %3175 = vmatprep.subr.bf16.mxu0 0
    %3176 = vmatpush1.bf16.msra.mxu0 0
    %3177 = vmatprep.subr.bf16.mxu0 0
    %3178 = vmatpush1.bf16.msra.mxu0 0
    %3179 = vmatprep.subr.bf16.mxu0 0
    %3180 = vmatpush1.bf16.msra.mxu0 0
    %3181 = vmatprep.subr.bf16.mxu0 0
    %3182 = vmatpush1.bf16.msra.mxu0 0
    %3183 = vmatprep.subr.bf16.mxu0 0
    %3184 = vmatpush1.bf16.msra.mxu0 0
    %3185 = vmatprep.subr.bf16.mxu0 0
    %3186 = vmatpush1.bf16.msra.mxu0 0
    %3187 = vmatprep.subr.bf16.mxu0 0
    %3188 = vmatpush1.bf16.msra.mxu0 0
    %3189 = vmatprep.subr.bf16.mxu0 0
    %3190 = vmatpush1.bf16.msra.mxu0 0
    %3191 = vmatprep.mubr.bf16.mxu0 0
    %3192 = vmatmul.mubr.bf16.gmra.mrb[0].mxu0 %v3154
    %v3193 = vpop.f32.mrb[0].mxu0
    %v3194 = vadd.f32 0.0, %v3193
    %v3195 = vpop.f32.mrb[0].mxu0
    %v3196 = vpop.f32.mrb[0].mxu0
    %v3197 = vadd.f32 0.0, %v3196
    %v3198 = vpop.f32.mrb[0].mxu0
    %3199 = vmatprep.mubr.bf16.mxu0 0
    %3200 = vmatmul.mubr.bf16.gmra.mrb[0].mxu0 %v3157
    %v3201 = vpop.f32.mrb[0].mxu0
    %v3202 = vadd.f32 0.0, %v3201
    %v3203 = vpop.f32.mrb[0].mxu0
    %v3204 = vpop.f32.mrb[0].mxu0
    %v3205 = vadd.f32 0.0, %v3204
    %v3206 = vpop.f32.mrb[0].mxu0
    %3207 = vdwg.mxu0
    %v3209 = vlaneseq
    %v3210 = vshrl.u32 %v3209, 7
    %v3211 = vsub.s32 0, %v3210
    %v3212 = vrot.slane %v3060, %v3211
    %v3214 = vadd.f32 %v3212, %v3194
    %v3215 = vadd.f32 %v3212, %v3197
    %v3216 = vadd.f32 %v3212, %v3202
    %v3217 = vadd.f32 %v3212, %v3205
    %s3218 = scalar_lea.vmem %s19, 16
    %v3219 = vld [vmem:[%s3218] sm:$0xf]
    %v3220 = vld [vmem:[%s3218 + $0x4] sm:$0xf]
    %v3221 = vld [vmem:[%s3218 + $0x8] sm:$0xf]
    %v3222 = vld [vmem:[%s3218 + $0xc] sm:$0xf]
    %s3223 = scalar_lea.vmem [#allocation9], 32
    %v3224 = vld [vmem:[%s3223] sm:$0xf]
    %v3225 = vld [vmem:[%s3223 + $0x4] sm:$0xf]
    %v3226 = vld [vmem:[%s3223 + $0x8] sm:$0xf]
    %v3227 = vld [vmem:[%s3223 + $0xc] sm:$0xf]
    %v3228 = vld [vmem:[%s3223 + $0x10] sm:$0xf]
    %v3229 = vld [vmem:[%s3223 + $0x14] sm:$0xf]
    %v3230 = vld [vmem:[%s3223 + $0x18] sm:$0xf]
    %v3231 = vld [vmem:[%s3223 + $0x1c] sm:$0xf]
    %v3240 = vunpack.c.l.b16 %v3224
    %v3241 = vunpack.c.l.b16 %v3225
    %v3242 = vunpack.c.l.b16 %v3226
    %v3243 = vunpack.c.l.b16 %v3227
    %v3244 = vunpack.c.l.b16 %v3228
    %v3245 = vunpack.c.l.b16 %v3229
    %v3246 = vunpack.c.l.b16 %v3230
    %v3247 = vunpack.c.l.b16 %v3231
    %v3248 = vpack.c.b16 %v3241, %v3240
    %v3249 = vpack.c.b16 %v3243, %v3242
    %v3250 = vpack.c.b16 %v3245, %v3244
    %v3251 = vpack.c.b16 %v3247, %v3246
    %3256 = vmatprep.subr.bf16.mxu0 0
    %3257 = vmatpush1.bf16.msra.mxu0 %v3248
    %3258 = vmatprep.subr.bf16.mxu0 0
    %3259 = vmatpush1.bf16.msra.mxu0 %v3249
    %3260 = vmatprep.subr.bf16.mxu0 0
    %3261 = vmatpush1.bf16.msra.mxu0 %v3250
    %3262 = vmatprep.subr.bf16.mxu0 0
    %3263 = vmatpush1.bf16.msra.mxu0 %v3251
    %3264 = vmatprep.subr.bf16.mxu0 0
    %3265 = vmatpush1.bf16.msra.mxu0 0
    %3266 = vmatprep.subr.bf16.mxu0 0
    %3267 = vmatpush1.bf16.msra.mxu0 0
    %3268 = vmatprep.subr.bf16.mxu0 0
    %3269 = vmatpush1.bf16.msra.mxu0 0
    %3270 = vmatprep.subr.bf16.mxu0 0
    %3271 = vmatpush1.bf16.msra.mxu0 0
    %3272 = vmatprep.subr.bf16.mxu0 0
    %3273 = vmatpush1.bf16.msra.mxu0 0
    %3274 = vmatprep.subr.bf16.mxu0 0
    %3275 = vmatpush1.bf16.msra.mxu0 0
    %3276 = vmatprep.subr.bf16.mxu0 0
    %3277 = vmatpush1.bf16.msra.mxu0 0
    %3278 = vmatprep.subr.bf16.mxu0 0
    %3279 = vmatpush1.bf16.msra.mxu0 0
    %3280 = vmatprep.subr.bf16.mxu0 0
    %3281 = vmatpush1.bf16.msra.mxu0 0
    %3282 = vmatprep.subr.bf16.mxu0 0
    %3283 = vmatpush1.bf16.msra.mxu0 0
    %3284 = vmatprep.subr.bf16.mxu0 0
    %3285 = vmatpush1.bf16.msra.mxu0 0
    %3286 = vmatprep.subr.bf16.mxu0 0
    %3287 = vmatpush1.bf16.msra.mxu0 0
    %3288 = vmatprep.mubr.bf16.mxu0 0
    %3289 = vmatmul.mubr.bf16.gmra.mrb[0].mxu0 %v3098
    %v3290 = vpop.f32.mrb[0].mxu0
    %v3291 = vadd.f32 0.0, %v3290
    %v3292 = vpop.f32.mrb[0].mxu0
    %v3293 = vpop.f32.mrb[0].mxu0
    %v3294 = vadd.f32 0.0, %v3293
    %v3295 = vpop.f32.mrb[0].mxu0
    %3296 = vdwg.mxu0
    %v3297 = vpack.c.bf16 %v3294, %v3291
    %v3302 = vunpack.c.l.b16 %v3219
    %v3303 = vunpack.c.l.b16 %v3220
    %v3304 = vunpack.c.l.b16 %v3221
    %v3305 = vunpack.c.l.b16 %v3222
    %v3306 = vpack.c.b16 %v3303, %v3302
    %v3307 = vpack.c.b16 %v3305, %v3304
    %v3309 = vsel %vm3152, %v3306, 0
    %v3312 = vsel %vm3152, %v3307, 0
    %3314 = vmatprep.subr.bf16.mxu0 0
    %3315 = vmatpush1.bf16.msra.mxu0 %v3297
    %3316 = vmatprep.subr.bf16.mxu0 0
    %3317 = vmatpush1.bf16.msra.mxu0 0
    %3318 = vmatprep.subr.bf16.mxu0 0
    %3319 = vmatpush1.bf16.msra.mxu0 0
    %3320 = vmatprep.subr.bf16.mxu0 0
    %3321 = vmatpush1.bf16.msra.mxu0 0
    %3322 = vmatprep.subr.bf16.mxu0 0
    %3323 = vmatpush1.bf16.msra.mxu0 0
    %3324 = vmatprep.subr.bf16.mxu0 0
    %3325 = vmatpush1.bf16.msra.mxu0 0
    %3326 = vmatprep.subr.bf16.mxu0 0
    %3327 = vmatpush1.bf16.msra.mxu0 0
    %3328 = vmatprep.subr.bf16.mxu0 0
    %3329 = vmatpush1.bf16.msra.mxu0 0
    %3330 = vmatprep.subr.bf16.mxu0 0
    %3331 = vmatpush1.bf16.msra.mxu0 0
    %3332 = vmatprep.subr.bf16.mxu0 0
    %3333 = vmatpush1.bf16.msra.mxu0 0
    %3334 = vmatprep.subr.bf16.mxu0 0
    %3335 = vmatpush1.bf16.msra.mxu0 0
    %3336 = vmatprep.subr.bf16.mxu0 0
    %3337 = vmatpush1.bf16.msra.mxu0 0
    %3338 = vmatprep.subr.bf16.mxu0 0
    %3339 = vmatpush1.bf16.msra.mxu0 0
    %3340 = vmatprep.subr.bf16.mxu0 0
    %3341 = vmatpush1.bf16.msra.mxu0 0
    %3342 = vmatprep.subr.bf16.mxu0 0
    %3343 = vmatpush1.bf16.msra.mxu0 0
    %3344 = vmatprep.subr.bf16.mxu0 0
    %3345 = vmatpush1.bf16.msra.mxu0 0
    %3346 = vmatprep.mubr.bf16.mxu0 0
    %3347 = vmatmul.mubr.bf16.gmra.mrb[0].mxu0 %v3309
    %v3348 = vpop.f32.mrb[0].mxu0
    %v3349 = vadd.f32 0.0, %v3348
    %v3350 = vpop.f32.mrb[0].mxu0
    %v3351 = vpop.f32.mrb[0].mxu0
    %v3352 = vadd.f32 0.0, %v3351
    %v3353 = vpop.f32.mrb[0].mxu0
    %3354 = vmatprep.mubr.bf16.mxu0 0
    %3355 = vmatmul.mubr.bf16.gmra.mrb[0].mxu0 %v3312
    %v3356 = vpop.f32.mrb[0].mxu0
    %v3357 = vadd.f32 0.0, %v3356
    %v3358 = vpop.f32.mrb[0].mxu0
    %v3359 = vpop.f32.mrb[0].mxu0
    %v3360 = vadd.f32 0.0, %v3359
    %v3361 = vpop.f32.mrb[0].mxu0
    %3362 = vdwg.mxu0
    %v3363 = vadd.f32 %v3214, %v3349
    %v3364 = vadd.f32 %v3215, %v3352
    %v3365 = vadd.f32 %v3216, %v3357
    %v3366 = vadd.f32 %v3217, %v3360
    %s3367 = scalar_lea.vmem %s19, 32
    %v3368 = vld [vmem:[%s3367] sm:$0xf]
    %v3369 = vld [vmem:[%s3367 + $0x4] sm:$0xf]
    %v3370 = vld [vmem:[%s3367 + $0x8] sm:$0xf]
    %v3371 = vld [vmem:[%s3367 + $0xc] sm:$0xf]
    %s3372 = scalar_lea.vmem [#allocation9], 64
    %v3373 = vld [vmem:[%s3372] sm:$0xf]
    %v3374 = vld [vmem:[%s3372 + $0x4] sm:$0xf]
    %v3375 = vld [vmem:[%s3372 + $0x8] sm:$0xf]
    %v3376 = vld [vmem:[%s3372 + $0xc] sm:$0xf]
    %v3377 = vld [vmem:[%s3372 + $0x10] sm:$0xf]
    %v3378 = vld [vmem:[%s3372 + $0x14] sm:$0xf]
    %v3379 = vld [vmem:[%s3372 + $0x18] sm:$0xf]
    %v3380 = vld [vmem:[%s3372 + $0x1c] sm:$0xf]
    %v3389 = vunpack.c.l.b16 %v3373
    %v3390 = vunpack.c.l.b16 %v3374
    %v3391 = vunpack.c.l.b16 %v3375
    %v3392 = vunpack.c.l.b16 %v3376
    %v3393 = vunpack.c.l.b16 %v3377
    %v3394 = vunpack.c.l.b16 %v3378
    %v3395 = vunpack.c.l.b16 %v3379
    %v3396 = vunpack.c.l.b16 %v3380
    %v3397 = vpack.c.b16 %v3390, %v3389
    %v3398 = vpack.c.b16 %v3392, %v3391
    %v3399 = vpack.c.b16 %v3394, %v3393
    %v3400 = vpack.c.b16 %v3396, %v3395
    %3405 = vmatprep.subr.bf16.mxu0 0
    %3406 = vmatpush1.bf16.msra.mxu0 %v3397
    %3407 = vmatprep.subr.bf16.mxu0 0
    %3408 = vmatpush1.bf16.msra.mxu0 %v3398
    %3409 = vmatprep.subr.bf16.mxu0 0
    %3410 = vmatpush1.bf16.msra.mxu0 %v3399
    %3411 = vmatprep.subr.bf16.mxu0 0
    %3412 = vmatpush1.bf16.msra.mxu0 %v3400
    %3413 = vmatprep.subr.bf16.mxu0 0
    %3414 = vmatpush1.bf16.msra.mxu0 0
    %3415 = vmatprep.subr.bf16.mxu0 0
    %3416 = vmatpush1.bf16.msra.mxu0 0
    %3417 = vmatprep.subr.bf16.mxu0 0
    %3418 = vmatpush1.bf16.msra.mxu0 0
    %3419 = vmatprep.subr.bf16.mxu0 0
    %3420 = vmatpush1.bf16.msra.mxu0 0
    %3421 = vmatprep.subr.bf16.mxu0 0
    %3422 = vmatpush1.bf16.msra.mxu0 0
    %3423 = vmatprep.subr.bf16.mxu0 0
    %3424 = vmatpush1.bf16.msra.mxu0 0
    %3425 = vmatprep.subr.bf16.mxu0 0
    %3426 = vmatpush1.bf16.msra.mxu0 0
    %3427 = vmatprep.subr.bf16.mxu0 0
    %3428 = vmatpush1.bf16.msra.mxu0 0
    %3429 = vmatprep.subr.bf16.mxu0 0
    %3430 = vmatpush1.bf16.msra.mxu0 0
    %3431 = vmatprep.subr.bf16.mxu0 0
    %3432 = vmatpush1.bf16.msra.mxu0 0
    %3433 = vmatprep.subr.bf16.mxu0 0
    %3434 = vmatpush1.bf16.msra.mxu0 0
    %3435 = vmatprep.subr.bf16.mxu0 0
    %3436 = vmatpush1.bf16.msra.mxu0 0
    %3437 = vmatprep.mubr.bf16.mxu0 0
    %3438 = vmatmul.mubr.bf16.gmra.mrb[0].mxu0 %v3098
    %v3439 = vpop.f32.mrb[0].mxu0
    %v3440 = vadd.f32 0.0, %v3439
    %v3441 = vpop.f32.mrb[0].mxu0
    %v3442 = vpop.f32.mrb[0].mxu0
    %v3443 = vadd.f32 0.0, %v3442
    %v3444 = vpop.f32.mrb[0].mxu0
    %3445 = vdwg.mxu0
    %v3446 = vpack.c.bf16 %v3443, %v3440
    %v3451 = vunpack.c.l.b16 %v3368
    %v3452 = vunpack.c.l.b16 %v3369
    %v3453 = vunpack.c.l.b16 %v3370
    %v3454 = vunpack.c.l.b16 %v3371
    %v3455 = vpack.c.b16 %v3452, %v3451
    %v3456 = vpack.c.b16 %v3454, %v3453
    %v3458 = vsel %vm3152, %v3455, 0
    %v3461 = vsel %vm3152, %v3456, 0
    %3463 = vmatprep.subr.bf16.mxu0 0
    %3464 = vmatpush1.bf16.msra.mxu0 %v3446
    %3465 = vmatprep.subr.bf16.mxu0 0
    %3466 = vmatpush1.bf16.msra.mxu0 0
    %3467 = vmatprep.subr.bf16.mxu0 0
    %3468 = vmatpush1.bf16.msra.mxu0 0
    %3469 = vmatprep.subr.bf16.mxu0 0
    %3470 = vmatpush1.bf16.msra.mxu0 0
    %3471 = vmatprep.subr.bf16.mxu0 0
    %3472 = vmatpush1.bf16.msra.mxu0 0
    %3473 = vmatprep.subr.bf16.mxu0 0
    %3474 = vmatpush1.bf16.msra.mxu0 0
    %3475 = vmatprep.subr.bf16.mxu0 0
    %3476 = vmatpush1.bf16.msra.mxu0 0
    %3477 = vmatprep.subr.bf16.mxu0 0
    %3478 = vmatpush1.bf16.msra.mxu0 0
    %3479 = vmatprep.subr.bf16.mxu0 0
    %3480 = vmatpush1.bf16.msra.mxu0 0
    %3481 = vmatprep.subr.bf16.mxu0 0
    %3482 = vmatpush1.bf16.msra.mxu0 0
    %3483 = vmatprep.subr.bf16.mxu0 0
    %3484 = vmatpush1.bf16.msra.mxu0 0
    %3485 = vmatprep.subr.bf16.mxu0 0
    %3486 = vmatpush1.bf16.msra.mxu0 0
    %3487 = vmatprep.subr.bf16.mxu0 0
    %3488 = vmatpush1.bf16.msra.mxu0 0
    %3489 = vmatprep.subr.bf16.mxu0 0
    %3490 = vmatpush1.bf16.msra.mxu0 0
    %3491 = vmatprep.subr.bf16.mxu0 0
    %3492 = vmatpush1.bf16.msra.mxu0 0
    %3493 = vmatprep.subr.bf16.mxu0 0
    %3494 = vmatpush1.bf16.msra.mxu0 0
    %3495 = vmatprep.mubr.bf16.mxu0 0
    %3496 = vmatmul.mubr.bf16.gmra.mrb[0].mxu0 %v3458
    %v3497 = vpop.f32.mrb[0].mxu0
    %v3498 = vadd.f32 0.0, %v3497
    %v3499 = vpop.f32.mrb[0].mxu0
    %v3500 = vpop.f32.mrb[0].mxu0
    %v3501 = vadd.f32 0.0, %v3500
    %v3502 = vpop.f32.mrb[0].mxu0
    %3503 = vmatprep.mubr.bf16.mxu0 0
    %3504 = vmatmul.mubr.bf16.gmra.mrb[0].mxu0 %v3461
    %v3505 = vpop.f32.mrb[0].mxu0
    %v3506 = vadd.f32 0.0, %v3505
    %v3507 = vpop.f32.mrb[0].mxu0
    %v3508 = vpop.f32.mrb[0].mxu0
    %v3509 = vadd.f32 0.0, %v3508
    %v3510 = vpop.f32.mrb[0].mxu0
    %3511 = vdwg.mxu0
    %v3512 = vadd.f32 %v3363, %v3498
    %v3513 = vadd.f32 %v3364, %v3501
    %v3514 = vadd.f32 %v3365, %v3506
    %v3515 = vadd.f32 %v3366, %v3509
    %v3516 = vpack.c.bf16 %v1819, %v1818
    %v3517 = vpack.c.bf16 %v1821, %v1820
    %v3518 = vpack.c.bf16 %v3513, %v3512
    %v3519 = vpack.c.bf16 %v3515, %v3514
    %v3520 = vld [vmem:[%s41] sm:$0xf]
    %v3521 = vld [vmem:[%s41 + $0x4] sm:$0xf]
    %v3522 = vld [vmem:[%s41 + $0x8] sm:$0xf]
    %v3523 = vld [vmem:[%s41 + $0xc] sm:$0xf]
    %v3524 = vld [vmem:[%s41 + $0x10] sm:$0xf]
    %v3525 = vld [vmem:[%s41 + $0x14] sm:$0xf]
    %v3526 = vld [vmem:[%s41 + $0x18] sm:$0xf]
    %v3527 = vld [vmem:[%s41 + $0x1c] sm:$0xf]
    %v3528 = vld [vmem:[%s41 + $0x20] sm:$0xf]
    %v3529 = vld [vmem:[%s41 + $0x24] sm:$0xf]
    %v3530 = vld [vmem:[%s41 + $0x28] sm:$0xf]
    %v3531 = vld [vmem:[%s41 + $0x2c] sm:$0xf]
    %v3532 = vld [vmem:[%s41 + $0x30] sm:$0xf]
    %v3533 = vld [vmem:[%s41 + $0x34] sm:$0xf]
    %v3534 = vld [vmem:[%s41 + $0x38] sm:$0xf]
    %v3535 = vld [vmem:[%s41 + $0x3c] sm:$0xf]
    %v3536 = vld [vmem:[%s43] sm:$0xf]
    %v3537 = vld [vmem:[%s43 + $0x4] sm:$0xf]
    %v3538 = vld [vmem:[%s43 + $0x8] sm:$0xf]
    %v3539 = vld [vmem:[%s43 + $0xc] sm:$0xf]
    %v3540 = vld [vmem:[%s43 + $0x10] sm:$0xf]
    %v3541 = vld [vmem:[%s43 + $0x14] sm:$0xf]
    %v3542 = vld [vmem:[%s43 + $0x18] sm:$0xf]
    %v3543 = vld [vmem:[%s43 + $0x1c] sm:$0xf]
    %v3544 = vld [vmem:[%s43 + $0x20] sm:$0xf]
    %v3545 = vld [vmem:[%s43 + $0x24] sm:$0xf]
    %v3546 = vld [vmem:[%s43 + $0x28] sm:$0xf]
    %v3547 = vld [vmem:[%s43 + $0x2c] sm:$0xf]
    %v3548 = vld [vmem:[%s43 + $0x30] sm:$0xf]
    %v3549 = vld [vmem:[%s43 + $0x34] sm:$0xf]
    %v3550 = vld [vmem:[%s43 + $0x38] sm:$0xf]
    %v3551 = vld [vmem:[%s43 + $0x3c] sm:$0xf]
    %v3568 = vunpack.c.l.b16 %v3536
    %v3569 = vunpack.c.l.b16 %v3537
    %v3570 = vunpack.c.l.b16 %v3538
    %v3571 = vunpack.c.l.b16 %v3539
    %v3572 = vunpack.c.l.b16 %v3540
    %v3573 = vunpack.c.l.b16 %v3541
    %v3574 = vunpack.c.l.b16 %v3542
    %v3575 = vunpack.c.l.b16 %v3543
    %v3576 = vunpack.c.l.b16 %v3544
    %v3577 = vunpack.c.l.b16 %v3545
    %v3578 = vunpack.c.l.b16 %v3546
    %v3579 = vunpack.c.l.b16 %v3547
    %v3580 = vunpack.c.l.b16 %v3548
    %v3581 = vunpack.c.l.b16 %v3549
    %v3582 = vunpack.c.l.b16 %v3550
    %v3583 = vunpack.c.l.b16 %v3551
    %v3584 = vpack.c.b16 %v3569, %v3568
    %v3585 = vpack.c.b16 %v3571, %v3570
    %v3586 = vpack.c.b16 %v3573, %v3572
    %v3587 = vpack.c.b16 %v3575, %v3574
    %v3588 = vpack.c.b16 %v3577, %v3576
    %v3589 = vpack.c.b16 %v3579, %v3578
    %v3590 = vpack.c.b16 %v3581, %v3580
    %v3591 = vpack.c.b16 %v3583, %v3582
    %3600 = vmatprep.subr.bf16.mxu0 0
    %3601 = vmatpush1.bf16.msra.mxu0 %v3584
    %3602 = vmatprep.subr.bf16.mxu0 0
    %3603 = vmatpush1.bf16.msra.mxu0 %v3585
    %3604 = vmatprep.subr.bf16.mxu0 0
    %3605 = vmatpush1.bf16.msra.mxu0 %v3586
    %3606 = vmatprep.subr.bf16.mxu0 0
    %3607 = vmatpush1.bf16.msra.mxu0 %v3587
    %3608 = vmatprep.subr.bf16.mxu0 0
    %3609 = vmatpush1.bf16.msra.mxu0 %v3588
    %3610 = vmatprep.subr.bf16.mxu0 0
    %3611 = vmatpush1.bf16.msra.mxu0 %v3589
    %3612 = vmatprep.subr.bf16.mxu0 0
    %3613 = vmatpush1.bf16.msra.mxu0 %v3590
    %3614 = vmatprep.subr.bf16.mxu0 0
    %3615 = vmatpush1.bf16.msra.mxu0 %v3591
    %3616 = vmatprep.subr.bf16.mxu0 0
    %3617 = vmatpush1.bf16.msra.mxu0 0
    %3618 = vmatprep.subr.bf16.mxu0 0
    %3619 = vmatpush1.bf16.msra.mxu0 0
    %3620 = vmatprep.subr.bf16.mxu0 0
    %3621 = vmatpush1.bf16.msra.mxu0 0
    %3622 = vmatprep.subr.bf16.mxu0 0
    %3623 = vmatpush1.bf16.msra.mxu0 0
    %3624 = vmatprep.subr.bf16.mxu0 0
    %3625 = vmatpush1.bf16.msra.mxu0 0
    %3626 = vmatprep.subr.bf16.mxu0 0
    %3627 = vmatpush1.bf16.msra.mxu0 0
    %3628 = vmatprep.subr.bf16.mxu0 0
    %3629 = vmatpush1.bf16.msra.mxu0 0
    %3630 = vmatprep.subr.bf16.mxu0 0
    %3631 = vmatpush1.bf16.msra.mxu0 0
    %3632 = vmatprep.mubr.bf16.mxu0 0
    %3633 = vmatmul.mubr.bf16.gmra.mrb[0].mxu0 %v3518
    %v3634 = vpop.f32.mrb[0].mxu0
    %v3635 = vadd.f32 0.0, %v3634
    %v3636 = vpop.f32.mrb[0].mxu0
    %v3637 = vpop.f32.mrb[0].mxu0
    %v3638 = vadd.f32 0.0, %v3637
    %v3639 = vpop.f32.mrb[0].mxu0
    %3640 = vmatprep.mubr.bf16.mxu0 0
    %3641 = vmatmul.mubr.bf16.gmra.mrb[0].mxu0 %v3519
    %v3642 = vpop.f32.mrb[0].mxu0
    %v3643 = vadd.f32 0.0, %v3642
    %v3644 = vpop.f32.mrb[0].mxu0
    %v3645 = vpop.f32.mrb[0].mxu0
    %v3646 = vadd.f32 0.0, %v3645
    %v3647 = vpop.f32.mrb[0].mxu0
    %3648 = vdwg.mxu0
    %v3665 = vunpack.c.l.b16 %v3520
    %v3666 = vunpack.c.l.b16 %v3521
    %v3667 = vunpack.c.l.b16 %v3522
    %v3668 = vunpack.c.l.b16 %v3523
    %v3669 = vunpack.c.l.b16 %v3524
    %v3670 = vunpack.c.l.b16 %v3525
    %v3671 = vunpack.c.l.b16 %v3526
    %v3672 = vunpack.c.l.b16 %v3527
    %v3673 = vunpack.c.l.b16 %v3528
    %v3674 = vunpack.c.l.b16 %v3529
    %v3675 = vunpack.c.l.b16 %v3530
    %v3676 = vunpack.c.l.b16 %v3531
    %v3677 = vunpack.c.l.b16 %v3532
    %v3678 = vunpack.c.l.b16 %v3533
    %v3679 = vunpack.c.l.b16 %v3534
    %v3680 = vunpack.c.l.b16 %v3535
    %v3681 = vpack.c.b16 %v3666, %v3665
    %v3682 = vpack.c.b16 %v3668, %v3667
    %v3683 = vpack.c.b16 %v3670, %v3669
    %v3684 = vpack.c.b16 %v3672, %v3671
    %v3685 = vpack.c.b16 %v3674, %v3673
    %v3686 = vpack.c.b16 %v3676, %v3675
    %v3687 = vpack.c.b16 %v3678, %v3677
    %v3688 = vpack.c.b16 %v3680, %v3679
    %3697 = vmatprep.subr.bf16.mxu0 0
    %3698 = vmatpush1.bf16.msra.mxu0 %v3681
    %3699 = vmatprep.subr.bf16.mxu0 0
    %3700 = vmatpush1.bf16.msra.mxu0 %v3682
    %3701 = vmatprep.subr.bf16.mxu0 0
    %3702 = vmatpush1.bf16.msra.mxu0 %v3683
    %3703 = vmatprep.subr.bf16.mxu0 0
    %3704 = vmatpush1.bf16.msra.mxu0 %v3684
    %3705 = vmatprep.subr.bf16.mxu0 0
    %3706 = vmatpush1.bf16.msra.mxu0 %v3685
    %3707 = vmatprep.subr.bf16.mxu0 0
    %3708 = vmatpush1.bf16.msra.mxu0 %v3686
    %3709 = vmatprep.subr.bf16.mxu0 0
    %3710 = vmatpush1.bf16.msra.mxu0 %v3687
    %3711 = vmatprep.subr.bf16.mxu0 0
    %3712 = vmatpush1.bf16.msra.mxu0 %v3688
    %3713 = vmatprep.subr.bf16.mxu0 0
    %3714 = vmatpush1.bf16.msra.mxu0 0
    %3715 = vmatprep.subr.bf16.mxu0 0
    %3716 = vmatpush1.bf16.msra.mxu0 0
    %3717 = vmatprep.subr.bf16.mxu0 0
    %3718 = vmatpush1.bf16.msra.mxu0 0
    %3719 = vmatprep.subr.bf16.mxu0 0
    %3720 = vmatpush1.bf16.msra.mxu0 0
    %3721 = vmatprep.subr.bf16.mxu0 0
    %3722 = vmatpush1.bf16.msra.mxu0 0
    %3723 = vmatprep.subr.bf16.mxu0 0
    %3724 = vmatpush1.bf16.msra.mxu0 0
    %3725 = vmatprep.subr.bf16.mxu0 0
    %3726 = vmatpush1.bf16.msra.mxu0 0
    %3727 = vmatprep.subr.bf16.mxu0 0
    %3728 = vmatpush1.bf16.msra.mxu0 0
    %3729 = vmatprep.mubr.bf16.mxu0 0
    %3730 = vmatmul.mubr.bf16.gmra.mrb[0].mxu0 %v3516
    %v3731 = vpop.f32.mrb[0].mxu0
    %v3732 = vadd.f32 %v3635, %v3731
    %v3733 = vpop.f32.mrb[0].mxu0
    %v3734 = vpop.f32.mrb[0].mxu0
    %v3735 = vadd.f32 %v3638, %v3734
    %v3736 = vpop.f32.mrb[0].mxu0
    %3737 = vmatprep.mubr.bf16.mxu0 0
    %3738 = vmatmul.mubr.bf16.gmra.mrb[0].mxu0 %v3517
    %v3739 = vpop.f32.mrb[0].mxu0
    %v3740 = vadd.f32 %v3643, %v3739
    %v3741 = vpop.f32.mrb[0].mxu0
    %v3742 = vpop.f32.mrb[0].mxu0
    %v3743 = vadd.f32 %v3646, %v3742
    %v3744 = vpop.f32.mrb[0].mxu0
    %3745 = vdwg.mxu0
    %s3746 = scalar_lea.vmem %s41, 64
    %v3747 = vld [vmem:[%s3746] sm:$0xf]
    %v3748 = vld [vmem:[%s3746 + $0x4] sm:$0xf]
    %v3749 = vld [vmem:[%s3746 + $0x8] sm:$0xf]
    %v3750 = vld [vmem:[%s3746 + $0xc] sm:$0xf]
    %v3751 = vld [vmem:[%s3746 + $0x10] sm:$0xf]
    %v3752 = vld [vmem:[%s3746 + $0x14] sm:$0xf]
    %v3753 = vld [vmem:[%s3746 + $0x18] sm:$0xf]
    %v3754 = vld [vmem:[%s3746 + $0x1c] sm:$0xf]
    %v3755 = vld [vmem:[%s3746 + $0x20] sm:$0xf]
    %v3756 = vld [vmem:[%s3746 + $0x24] sm:$0xf]
    %v3757 = vld [vmem:[%s3746 + $0x28] sm:$0xf]
    %v3758 = vld [vmem:[%s3746 + $0x2c] sm:$0xf]
    %v3759 = vld [vmem:[%s3746 + $0x30] sm:$0xf]
    %v3760 = vld [vmem:[%s3746 + $0x34] sm:$0xf]
    %v3761 = vld [vmem:[%s3746 + $0x38] sm:$0xf]
    %v3762 = vld [vmem:[%s3746 + $0x3c] sm:$0xf]
    %s3763 = scalar_lea.vmem %s43, 64
    %v3764 = vld [vmem:[%s3763] sm:$0xf]
    %v3765 = vld [vmem:[%s3763 + $0x4] sm:$0xf]
    %v3766 = vld [vmem:[%s3763 + $0x8] sm:$0xf]
    %v3767 = vld [vmem:[%s3763 + $0xc] sm:$0xf]
    %v3768 = vld [vmem:[%s3763 + $0x10] sm:$0xf]
    %v3769 = vld [vmem:[%s3763 + $0x14] sm:$0xf]
    %v3770 = vld [vmem:[%s3763 + $0x18] sm:$0xf]
    %v3771 = vld [vmem:[%s3763 + $0x1c] sm:$0xf]
    %v3772 = vld [vmem:[%s3763 + $0x20] sm:$0xf]
    %v3773 = vld [vmem:[%s3763 + $0x24] sm:$0xf]
    %v3774 = vld [vmem:[%s3763 + $0x28] sm:$0xf]
    %v3775 = vld [vmem:[%s3763 + $0x2c] sm:$0xf]
    %v3776 = vld [vmem:[%s3763 + $0x30] sm:$0xf]
    %v3777 = vld [vmem:[%s3763 + $0x34] sm:$0xf]
    %v3778 = vld [vmem:[%s3763 + $0x38] sm:$0xf]
    %v3779 = vld [vmem:[%s3763 + $0x3c] sm:$0xf]
    %v3796 = vunpack.c.l.b16 %v3764
    %v3797 = vunpack.c.l.b16 %v3765
    %v3798 = vunpack.c.l.b16 %v3766
    %v3799 = vunpack.c.l.b16 %v3767
    %v3800 = vunpack.c.l.b16 %v3768
    %v3801 = vunpack.c.l.b16 %v3769
    %v3802 = vunpack.c.l.b16 %v3770
    %v3803 = vunpack.c.l.b16 %v3771
    %v3804 = vunpack.c.l.b16 %v3772
    %v3805 = vunpack.c.l.b16 %v3773
    %v3806 = vunpack.c.l.b16 %v3774
    %v3807 = vunpack.c.l.b16 %v3775
    %v3808 = vunpack.c.l.b16 %v3776
    %v3809 = vunpack.c.l.b16 %v3777
    %v3810 = vunpack.c.l.b16 %v3778
    %v3811 = vunpack.c.l.b16 %v3779
    %v3812 = vpack.c.b16 %v3797, %v3796
    %v3813 = vpack.c.b16 %v3799, %v3798
    %v3814 = vpack.c.b16 %v3801, %v3800
    %v3815 = vpack.c.b16 %v3803, %v3802
    %v3816 = vpack.c.b16 %v3805, %v3804
    %v3817 = vpack.c.b16 %v3807, %v3806
    %v3818 = vpack.c.b16 %v3809, %v3808
    %v3819 = vpack.c.b16 %v3811, %v3810
    %3828 = vmatprep.subr.bf16.mxu0 0
    %3829 = vmatpush1.bf16.msra.mxu0 %v3812
    %3830 = vmatprep.subr.bf16.mxu0 0
    %3831 = vmatpush1.bf16.msra.mxu0 %v3813
    %3832 = vmatprep.subr.bf16.mxu0 0
    %3833 = vmatpush1.bf16.msra.mxu0 %v3814
    %3834 = vmatprep.subr.bf16.mxu0 0
    %3835 = vmatpush1.bf16.msra.mxu0 %v3815
    %3836 = vmatprep.subr.bf16.mxu0 0
    %3837 = vmatpush1.bf16.msra.mxu0 %v3816
    %3838 = vmatprep.subr.bf16.mxu0 0
    %3839 = vmatpush1.bf16.msra.mxu0 %v3817
    %3840 = vmatprep.subr.bf16.mxu0 0
    %3841 = vmatpush1.bf16.msra.mxu0 %v3818
    %3842 = vmatprep.subr.bf16.mxu0 0
    %3843 = vmatpush1.bf16.msra.mxu0 %v3819
    %3844 = vmatprep.subr.bf16.mxu0 0
    %3845 = vmatpush1.bf16.msra.mxu0 0
    %3846 = vmatprep.subr.bf16.mxu0 0
    %3847 = vmatpush1.bf16.msra.mxu0 0
    %3848 = vmatprep.subr.bf16.mxu0 0
    %3849 = vmatpush1.bf16.msra.mxu0 0
    %3850 = vmatprep.subr.bf16.mxu0 0
    %3851 = vmatpush1.bf16.msra.mxu0 0
    %3852 = vmatprep.subr.bf16.mxu0 0
    %3853 = vmatpush1.bf16.msra.mxu0 0
    %3854 = vmatprep.subr.bf16.mxu0 0
    %3855 = vmatpush1.bf16.msra.mxu0 0
    %3856 = vmatprep.subr.bf16.mxu0 0
    %3857 = vmatpush1.bf16.msra.mxu0 0
    %3858 = vmatprep.subr.bf16.mxu0 0
    %3859 = vmatpush1.bf16.msra.mxu0 0
    %3860 = vmatprep.mubr.bf16.mxu0 0
    %3861 = vmatmul.mubr.bf16.gmra.mrb[0].mxu0 %v3518
    %v3862 = vpop.f32.mrb[0].mxu0
    %v3863 = vadd.f32 0.0, %v3862
    %v3864 = vpop.f32.mrb[0].mxu0
    %v3865 = vpop.f32.mrb[0].mxu0
    %v3866 = vadd.f32 0.0, %v3865
    %v3867 = vpop.f32.mrb[0].mxu0
    %3868 = vmatprep.mubr.bf16.mxu0 0
    %3869 = vmatmul.mubr.bf16.gmra.mrb[0].mxu0 %v3519
    %v3870 = vpop.f32.mrb[0].mxu0
    %v3871 = vadd.f32 0.0, %v3870
    %v3872 = vpop.f32.mrb[0].mxu0
    %v3873 = vpop.f32.mrb[0].mxu0
    %v3874 = vadd.f32 0.0, %v3873
    %v3875 = vpop.f32.mrb[0].mxu0
    %3876 = vdwg.mxu0
    %v3893 = vunpack.c.l.b16 %v3747
    %v3894 = vunpack.c.l.b16 %v3748
    %v3895 = vunpack.c.l.b16 %v3749
    %v3896 = vunpack.c.l.b16 %v3750
    %v3897 = vunpack.c.l.b16 %v3751
    %v3898 = vunpack.c.l.b16 %v3752
    %v3899 = vunpack.c.l.b16 %v3753
    %v3900 = vunpack.c.l.b16 %v3754
    %v3901 = vunpack.c.l.b16 %v3755
    %v3902 = vunpack.c.l.b16 %v3756
    %v3903 = vunpack.c.l.b16 %v3757
    %v3904 = vunpack.c.l.b16 %v3758
    %v3905 = vunpack.c.l.b16 %v3759
    %v3906 = vunpack.c.l.b16 %v3760
    %v3907 = vunpack.c.l.b16 %v3761
    %v3908 = vunpack.c.l.b16 %v3762
    %v3909 = vpack.c.b16 %v3894, %v3893
    %v3910 = vpack.c.b16 %v3896, %v3895
    %v3911 = vpack.c.b16 %v3898, %v3897
    %v3912 = vpack.c.b16 %v3900, %v3899
    %v3913 = vpack.c.b16 %v3902, %v3901
    %v3914 = vpack.c.b16 %v3904, %v3903
    %v3915 = vpack.c.b16 %v3906, %v3905
    %v3916 = vpack.c.b16 %v3908, %v3907
    %3925 = vmatprep.subr.bf16.mxu0 0
    %3926 = vmatpush1.bf16.msra.mxu0 %v3909
    %3927 = vmatprep.subr.bf16.mxu0 0
    %3928 = vmatpush1.bf16.msra.mxu0 %v3910
    %3929 = vmatprep.subr.bf16.mxu0 0
    %3930 = vmatpush1.bf16.msra.mxu0 %v3911
    %3931 = vmatprep.subr.bf16.mxu0 0
    %3932 = vmatpush1.bf16.msra.mxu0 %v3912
    %3933 = vmatprep.subr.bf16.mxu0 0
    %3934 = vmatpush1.bf16.msra.mxu0 %v3913
    %3935 = vmatprep.subr.bf16.mxu0 0
    %3936 = vmatpush1.bf16.msra.mxu0 %v3914
    %3937 = vmatprep.subr.bf16.mxu0 0
    %3938 = vmatpush1.bf16.msra.mxu0 %v3915
    %3939 = vmatprep.subr.bf16.mxu0 0
    %3940 = vmatpush1.bf16.msra.mxu0 %v3916
    %3941 = vmatprep.subr.bf16.mxu0 0
    %3942 = vmatpush1.bf16.msra.mxu0 0
    %3943 = vmatprep.subr.bf16.mxu0 0
    %3944 = vmatpush1.bf16.msra.mxu0 0
    %3945 = vmatprep.subr.bf16.mxu0 0
    %3946 = vmatpush1.bf16.msra.mxu0 0
    %3947 = vmatprep.subr.bf16.mxu0 0
    %3948 = vmatpush1.bf16.msra.mxu0 0
    %3949 = vmatprep.subr.bf16.mxu0 0
    %3950 = vmatpush1.bf16.msra.mxu0 0
    %3951 = vmatprep.subr.bf16.mxu0 0
    %3952 = vmatpush1.bf16.msra.mxu0 0
    %3953 = vmatprep.subr.bf16.mxu0 0
    %3954 = vmatpush1.bf16.msra.mxu0 0
    %3955 = vmatprep.subr.bf16.mxu0 0
    %3956 = vmatpush1.bf16.msra.mxu0 0
    %3957 = vmatprep.mubr.bf16.mxu0 0
    %3958 = vmatmul.mubr.bf16.gmra.mrb[0].mxu0 %v3516
    %v3959 = vpop.f32.mrb[0].mxu0
    %v3960 = vadd.f32 %v3863, %v3959
    %v3961 = vpop.f32.mrb[0].mxu0
    %v3962 = vpop.f32.mrb[0].mxu0
    %v3963 = vadd.f32 %v3866, %v3962
    %v3964 = vpop.f32.mrb[0].mxu0
    %3965 = vmatprep.mubr.bf16.mxu0 0
    %3966 = vmatmul.mubr.bf16.gmra.mrb[0].mxu0 %v3517
    %v3967 = vpop.f32.mrb[0].mxu0
    %v3968 = vadd.f32 %v3871, %v3967
    %v3969 = vpop.f32.mrb[0].mxu0
    %v3970 = vpop.f32.mrb[0].mxu0
    %v3971 = vadd.f32 %v3874, %v3970
    %v3972 = vpop.f32.mrb[0].mxu0
    %3973 = vdwg.mxu0
    %s3974 = scalar_lea.vmem %s41, 128
    %v3975 = vld [vmem:[%s3974] sm:$0xf]
    %v3976 = vld [vmem:[%s3974 + $0x4] sm:$0xf]
    %v3977 = vld [vmem:[%s3974 + $0x8] sm:$0xf]
    %v3978 = vld [vmem:[%s3974 + $0xc] sm:$0xf]
    %v3979 = vld [vmem:[%s3974 + $0x10] sm:$0xf]
    %v3980 = vld [vmem:[%s3974 + $0x14] sm:$0xf]
    %v3981 = vld [vmem:[%s3974 + $0x18] sm:$0xf]
    %v3982 = vld [vmem:[%s3974 + $0x1c] sm:$0xf]
    %v3983 = vld [vmem:[%s3974 + $0x20] sm:$0xf]
    %v3984 = vld [vmem:[%s3974 + $0x24] sm:$0xf]
    %v3985 = vld [vmem:[%s3974 + $0x28] sm:$0xf]
    %v3986 = vld [vmem:[%s3974 + $0x2c] sm:$0xf]
    %v3987 = vld [vmem:[%s3974 + $0x30] sm:$0xf]
    %v3988 = vld [vmem:[%s3974 + $0x34] sm:$0xf]
    %v3989 = vld [vmem:[%s3974 + $0x38] sm:$0xf]
    %v3990 = vld [vmem:[%s3974 + $0x3c] sm:$0xf]
    %s3991 = scalar_lea.vmem %s43, 128
    %v3992 = vld [vmem:[%s3991] sm:$0xf]
    %v3993 = vld [vmem:[%s3991 + $0x4] sm:$0xf]
    %v3994 = vld [vmem:[%s3991 + $0x8] sm:$0xf]
    %v3995 = vld [vmem:[%s3991 + $0xc] sm:$0xf]
    %v3996 = vld [vmem:[%s3991 + $0x10] sm:$0xf]
    %v3997 = vld [vmem:[%s3991 + $0x14] sm:$0xf]
    %v3998 = vld [vmem:[%s3991 + $0x18] sm:$0xf]
    %v3999 = vld [vmem:[%s3991 + $0x1c] sm:$0xf]
    %v4000 = vld [vmem:[%s3991 + $0x20] sm:$0xf]
    %v4001 = vld [vmem:[%s3991 + $0x24] sm:$0xf]
    %v4002 = vld [vmem:[%s3991 + $0x28] sm:$0xf]
    %v4003 = vld [vmem:[%s3991 + $0x2c] sm:$0xf]
    %v4004 = vld [vmem:[%s3991 + $0x30] sm:$0xf]
    %v4005 = vld [vmem:[%s3991 + $0x34] sm:$0xf]
    %v4006 = vld [vmem:[%s3991 + $0x38] sm:$0xf]
    %v4007 = vld [vmem:[%s3991 + $0x3c] sm:$0xf]
    %v4024 = vunpack.c.l.b16 %v3992
    %v4025 = vunpack.c.l.b16 %v3993
    %v4026 = vunpack.c.l.b16 %v3994
    %v4027 = vunpack.c.l.b16 %v3995
    %v4028 = vunpack.c.l.b16 %v3996
    %v4029 = vunpack.c.l.b16 %v3997
    %v4030 = vunpack.c.l.b16 %v3998
    %v4031 = vunpack.c.l.b16 %v3999
    %v4032 = vunpack.c.l.b16 %v4000
    %v4033 = vunpack.c.l.b16 %v4001
    %v4034 = vunpack.c.l.b16 %v4002
    %v4035 = vunpack.c.l.b16 %v4003
    %v4036 = vunpack.c.l.b16 %v4004
    %v4037 = vunpack.c.l.b16 %v4005
    %v4038 = vunpack.c.l.b16 %v4006
    %v4039 = vunpack.c.l.b16 %v4007
    %v4040 = vpack.c.b16 %v4025, %v4024
    %v4041 = vpack.c.b16 %v4027, %v4026
    %v4042 = vpack.c.b16 %v4029, %v4028
    %v4043 = vpack.c.b16 %v4031, %v4030
    %v4044 = vpack.c.b16 %v4033, %v4032
    %v4045 = vpack.c.b16 %v4035, %v4034
    %v4046 = vpack.c.b16 %v4037, %v4036
    %v4047 = vpack.c.b16 %v4039, %v4038
    %4056 = vmatprep.subr.bf16.mxu0 0
    %4057 = vmatpush1.bf16.msra.mxu0 %v4040
    %4058 = vmatprep.subr.bf16.mxu0 0
    %4059 = vmatpush1.bf16.msra.mxu0 %v4041
    %4060 = vmatprep.subr.bf16.mxu0 0
    %4061 = vmatpush1.bf16.msra.mxu0 %v4042
    %4062 = vmatprep.subr.bf16.mxu0 0
    %4063 = vmatpush1.bf16.msra.mxu0 %v4043
    %4064 = vmatprep.subr.bf16.mxu0 0
    %4065 = vmatpush1.bf16.msra.mxu0 %v4044
    %4066 = vmatprep.subr.bf16.mxu0 0
    %4067 = vmatpush1.bf16.msra.mxu0 %v4045
    %4068 = vmatprep.subr.bf16.mxu0 0
    %4069 = vmatpush1.bf16.msra.mxu0 %v4046
    %4070 = vmatprep.subr.bf16.mxu0 0
    %4071 = vmatpush1.bf16.msra.mxu0 %v4047
    %4072 = vmatprep.subr.bf16.mxu0 0
    %4073 = vmatpush1.bf16.msra.mxu0 0
    %4074 = vmatprep.subr.bf16.mxu0 0
    %4075 = vmatpush1.bf16.msra.mxu0 0
    %4076 = vmatprep.subr.bf16.mxu0 0
    %4077 = vmatpush1.bf16.msra.mxu0 0
    %4078 = vmatprep.subr.bf16.mxu0 0
    %4079 = vmatpush1.bf16.msra.mxu0 0
    %4080 = vmatprep.subr.bf16.mxu0 0
    %4081 = vmatpush1.bf16.msra.mxu0 0
    %4082 = vmatprep.subr.bf16.mxu0 0
    %4083 = vmatpush1.bf16.msra.mxu0 0
    %4084 = vmatprep.subr.bf16.mxu0 0
    %4085 = vmatpush1.bf16.msra.mxu0 0
    %4086 = vmatprep.subr.bf16.mxu0 0
    %4087 = vmatpush1.bf16.msra.mxu0 0
    %4088 = vmatprep.mubr.bf16.mxu0 0
    %4089 = vmatmul.mubr.bf16.gmra.mrb[0].mxu0 %v3518
    %v4090 = vpop.f32.mrb[0].mxu0
    %v4091 = vadd.f32 0.0, %v4090
    %v4092 = vpop.f32.mrb[0].mxu0
    %v4093 = vpop.f32.mrb[0].mxu0
    %v4094 = vadd.f32 0.0, %v4093
    %v4095 = vpop.f32.mrb[0].mxu0
    %4096 = vmatprep.mubr.bf16.mxu0 0
    %4097 = vmatmul.mubr.bf16.gmra.mrb[0].mxu0 %v3519
    %v4098 = vpop.f32.mrb[0].mxu0
    %v4099 = vadd.f32 0.0, %v4098
    %v4100 = vpop.f32.mrb[0].mxu0
    %v4101 = vpop.f32.mrb[0].mxu0
    %v4102 = vadd.f32 0.0, %v4101
    %v4103 = vpop.f32.mrb[0].mxu0
    %4104 = vdwg.mxu0
    %v4121 = vunpack.c.l.b16 %v3975
    %v4122 = vunpack.c.l.b16 %v3976
    %v4123 = vunpack.c.l.b16 %v3977
    %v4124 = vunpack.c.l.b16 %v3978
    %v4125 = vunpack.c.l.b16 %v3979
    %v4126 = vunpack.c.l.b16 %v3980
    %v4127 = vunpack.c.l.b16 %v3981
    %v4128 = vunpack.c.l.b16 %v3982
    %v4129 = vunpack.c.l.b16 %v3983
    %v4130 = vunpack.c.l.b16 %v3984
    %v4131 = vunpack.c.l.b16 %v3985
    %v4132 = vunpack.c.l.b16 %v3986
    %v4133 = vunpack.c.l.b16 %v3987
    %v4134 = vunpack.c.l.b16 %v3988
    %v4135 = vunpack.c.l.b16 %v3989
    %v4136 = vunpack.c.l.b16 %v3990
    %v4137 = vpack.c.b16 %v4122, %v4121
    %v4138 = vpack.c.b16 %v4124, %v4123
    %v4139 = vpack.c.b16 %v4126, %v4125
    %v4140 = vpack.c.b16 %v4128, %v4127
    %v4141 = vpack.c.b16 %v4130, %v4129
    %v4142 = vpack.c.b16 %v4132, %v4131
    %v4143 = vpack.c.b16 %v4134, %v4133
    %v4144 = vpack.c.b16 %v4136, %v4135
    %4153 = vmatprep.subr.bf16.mxu0 0
    %4154 = vmatpush1.bf16.msra.mxu0 %v4137
    %4155 = vmatprep.subr.bf16.mxu0 0
    %4156 = vmatpush1.bf16.msra.mxu0 %v4138
    %4157 = vmatprep.subr.bf16.mxu0 0
    %4158 = vmatpush1.bf16.msra.mxu0 %v4139
    %4159 = vmatprep.subr.bf16.mxu0 0
    %4160 = vmatpush1.bf16.msra.mxu0 %v4140
    %4161 = vmatprep.subr.bf16.mxu0 0
    %4162 = vmatpush1.bf16.msra.mxu0 %v4141
    %4163 = vmatprep.subr.bf16.mxu0 0
    %4164 = vmatpush1.bf16.msra.mxu0 %v4142
    %4165 = vmatprep.subr.bf16.mxu0 0
    %4166 = vmatpush1.bf16.msra.mxu0 %v4143
    %4167 = vmatprep.subr.bf16.mxu0 0
    %4168 = vmatpush1.bf16.msra.mxu0 %v4144
    %4169 = vmatprep.subr.bf16.mxu0 0
    %4170 = vmatpush1.bf16.msra.mxu0 0
    %4171 = vmatprep.subr.bf16.mxu0 0
    %4172 = vmatpush1.bf16.msra.mxu0 0
    %4173 = vmatprep.subr.bf16.mxu0 0
    %4174 = vmatpush1.bf16.msra.mxu0 0
    %4175 = vmatprep.subr.bf16.mxu0 0
    %4176 = vmatpush1.bf16.msra.mxu0 0
    %4177 = vmatprep.subr.bf16.mxu0 0
    %4178 = vmatpush1.bf16.msra.mxu0 0
    %4179 = vmatprep.subr.bf16.mxu0 0
    %4180 = vmatpush1.bf16.msra.mxu0 0
    %4181 = vmatprep.subr.bf16.mxu0 0
    %4182 = vmatpush1.bf16.msra.mxu0 0
    %4183 = vmatprep.subr.bf16.mxu0 0
    %4184 = vmatpush1.bf16.msra.mxu0 0
    %4185 = vmatprep.mubr.bf16.mxu0 0
    %4186 = vmatmul.mubr.bf16.gmra.mrb[0].mxu0 %v3516
    %v4187 = vpop.f32.mrb[0].mxu0
    %v4188 = vadd.f32 %v4091, %v4187
    %v4189 = vpop.f32.mrb[0].mxu0
    %v4190 = vpop.f32.mrb[0].mxu0
    %v4191 = vadd.f32 %v4094, %v4190
    %v4192 = vpop.f32.mrb[0].mxu0
    %4193 = vmatprep.mubr.bf16.mxu0 0
    %4194 = vmatmul.mubr.bf16.gmra.mrb[0].mxu0 %v3517
    %v4195 = vpop.f32.mrb[0].mxu0
    %v4196 = vadd.f32 %v4099, %v4195
    %v4197 = vpop.f32.mrb[0].mxu0
    %v4198 = vpop.f32.mrb[0].mxu0
    %v4199 = vadd.f32 %v4102, %v4198
    %v4200 = vpop.f32.mrb[0].mxu0
    %4201 = vdwg.mxu0
    %v4202 = vrot.slane %v3732, 7
    %v4203 = vrot.slane %v3735, 7
    %v4204 = vrot.slane %v3740, 7
    %v4205 = vrot.slane %v3743, 7
    %v4206 = vsel %vm762, %v4204, %v4205
    %v4207 = vsel %vm762, %v4203, %v4204
    %v4208 = vsel %vm762, %v4202, %v4203
    %v4209 = vsel %vm762, %v4205, %v4202
    %v4210 = vmul.f32 %v779, %v4209
    %v4211 = vmul.f32 %v784, %v4208
    %v4212 = vmul.f32 %v789, %v4207
    %v4213 = vmul.f32 %v794, %v4206
    %v4214 = vadd.f32 %v3960, %v4210
    %v4215 = vadd.f32 %v3963, %v4211
    %v4216 = vadd.f32 %v3968, %v4212
    %v4217 = vadd.f32 %v3971, %v4213
    %v4218 = vrot.slane %v4188, 1
    %v4219 = vrot.slane %v4191, 1
    %v4220 = vrot.slane %v4196, 1
    %v4221 = vrot.slane %v4199, 1
    %v4222 = vsel %vm771, %v4220, %v4221
    %v4223 = vsel %vm771, %v4219, %v4220
    %v4224 = vsel %vm771, %v4218, %v4219
    %v4225 = vsel %vm771, %v4221, %v4218
    %v4226 = vmul.f32 %v900, %v4224
    %v4227 = vmul.f32 %v905, %v4223
    %v4228 = vmul.f32 %v910, %v4222
    %v4229 = vmul.f32 %v915, %v4225
    %v4230 = vadd.f32 %v4214, %v4226
    %v4231 = vadd.f32 %v4215, %v4227
    %v4232 = vadd.f32 %v4216, %v4228
    %v4233 = vadd.f32 %v4217, %v4229
    %v4234 = vld [vmem:[#allocation12] sm:$0x1]
    %v4236 = vlaneseq
    %v4237 = vshrl.u32 %v4236, 7
    %v4238 = vsub.s32 0, %v4237
    %v4239 = vrot.slane %v4234, %v4238
    %v4241 = vadd.f32 %v4230, %v4239
    %v4242 = vadd.f32 %v4231, %v4239
    %v4243 = vadd.f32 %v4232, %v4239
    %v4244 = vadd.f32 %v4233, %v4239
    %v4245 = vmax.f32 %v4241, 0.0
    %v4246 = vmax.f32 %v4242, 0.0
    %v4247 = vmax.f32 %v4243, 0.0
    %v4248 = vmax.f32 %v4244, 0.0
    %v4249 = vld [vmem:[#allocation13] sm:$0x1]
    %s4250 = scalar_lea.vmem [#allocation13], 1
    %v4251 = vld [vmem:[%s4250] sm:$0x1]
    %v4252 = vadd.f32 %v4245, %v4246
    %v4253 = vadd.f32 %v4252, %v4247
    %v4254 = vadd.f32 %v4253, %v4248
    %v4255 = vrot.slane %v4254, 4
    %v4256 = vadd.f32 %v4254, %v4255
    %v4257 = vrot.slane %v4256, 2
    %v4258 = vadd.f32 %v4256, %v4257
    %v4259 = vrot.slane %v4258, 1
    %v4260 = vadd.f32 %v4258, %v4259
    %v4261 = vmul.f32 %v4245, %v4245
    %v4262 = vmul.f32 %v4246, %v4246
    %v4263 = vmul.f32 %v4247, %v4247
    %v4264 = vmul.f32 %v4248, %v4248
    %v4265 = vadd.f32 %v4261, %v4262
    %v4266 = vadd.f32 %v4265, %v4263
    %v4267 = vadd.f32 %v4266, %v4264
    %v4268 = vrot.slane %v4267, 4
    %v4269 = vadd.f32 %v4267, %v4268
    %v4270 = vrot.slane %v4269, 2
    %v4271 = vadd.f32 %v4269, %v4270
    %v4272 = vrot.slane %v4271, 1
    %v4273 = vadd.f32 %v4271, %v4272
    %v4274 = vpack.c.bf16 %v4260, %v4260
    %4275 = vmatprep.subr.bf16.mxu0 0
    %4276 = vmatpush1.bf16.msra.mxu0 %v997
    %4277 = vmatprep.subr.bf16.mxu0 0
    %4278 = vmatpush1.bf16.msra.mxu0 %v998
    %4279 = vmatprep.subr.bf16.mxu0 0
    %4280 = vmatpush1.bf16.msra.mxu0 %v999
    %4281 = vmatprep.subr.bf16.mxu0 0
    %4282 = vmatpush1.bf16.msra.mxu0 %v1000
    %4283 = vmatprep.subr.bf16.mxu0 0
    %4284 = vmatpush1.bf16.msra.mxu0 %v1001
    %4285 = vmatprep.subr.bf16.mxu0 0
    %4286 = vmatpush1.bf16.msra.mxu0 %v1002
    %4287 = vmatprep.subr.bf16.mxu0 0
    %4288 = vmatpush1.bf16.msra.mxu0 %v1003
    %4289 = vmatprep.subr.bf16.mxu0 0
    %4290 = vmatpush1.bf16.msra.mxu0 %v1004
    %4291 = vmatprep.subr.bf16.mxu0 0
    %4292 = vmatpush1.bf16.msra.mxu0 0
    %4293 = vmatprep.subr.bf16.mxu0 0
    %4294 = vmatpush1.bf16.msra.mxu0 0
    %4295 = vmatprep.subr.bf16.mxu0 0
    %4296 = vmatpush1.bf16.msra.mxu0 0
    %4297 = vmatprep.subr.bf16.mxu0 0
    %4298 = vmatpush1.bf16.msra.mxu0 0
    %4299 = vmatprep.subr.bf16.mxu0 0
    %4300 = vmatpush1.bf16.msra.mxu0 0
    %4301 = vmatprep.subr.bf16.mxu0 0
    %4302 = vmatpush1.bf16.msra.mxu0 0
    %4303 = vmatprep.subr.bf16.mxu0 0
    %4304 = vmatpush1.bf16.msra.mxu0 0
    %4305 = vmatprep.subr.bf16.mxu0 0
    %4306 = vmatpush1.bf16.msra.mxu0 0
    %4307 = vmatprep.mubr.bf16.mxu0 0
    %4308 = vmatmul.mubr.bf16.gmra.mrb[0].mxu0 %v4274
    %v4309 = vpop.f32.mrb[0].mxu0
    %v4310 = vadd.f32 0.0, %v4309
    %v4311 = vpop.f32.mrb[0].mxu0
    %v4312 = vpop.f32.mrb[0].mxu0
    %v4313 = vpop.f32.mrb[0].mxu0
    %4314 = vdwg.mxu0
    %v4315 = vpack.c.bf16 %v4273, %v4273
    %4316 = vmatprep.subr.bf16.mxu0 0
    %4317 = vmatpush1.bf16.msra.mxu0 %v997
    %4318 = vmatprep.subr.bf16.mxu0 0
    %4319 = vmatpush1.bf16.msra.mxu0 %v998
    %4320 = vmatprep.subr.bf16.mxu0 0
    %4321 = vmatpush1.bf16.msra.mxu0 %v999
    %4322 = vmatprep.subr.bf16.mxu0 0
    %4323 = vmatpush1.bf16.msra.mxu0 %v1000
    %4324 = vmatprep.subr.bf16.mxu0 0
    %4325 = vmatpush1.bf16.msra.mxu0 %v1001
    %4326 = vmatprep.subr.bf16.mxu0 0
    %4327 = vmatpush1.bf16.msra.mxu0 %v1002
    %4328 = vmatprep.subr.bf16.mxu0 0
    %4329 = vmatpush1.bf16.msra.mxu0 %v1003
    %4330 = vmatprep.subr.bf16.mxu0 0
    %4331 = vmatpush1.bf16.msra.mxu0 %v1004
    %4332 = vmatprep.subr.bf16.mxu0 0
    %4333 = vmatpush1.bf16.msra.mxu0 0
    %4334 = vmatprep.subr.bf16.mxu0 0
    %4335 = vmatpush1.bf16.msra.mxu0 0
    %4336 = vmatprep.subr.bf16.mxu0 0
    %4337 = vmatpush1.bf16.msra.mxu0 0
    %4338 = vmatprep.subr.bf16.mxu0 0
    %4339 = vmatpush1.bf16.msra.mxu0 0
    %4340 = vmatprep.subr.bf16.mxu0 0
    %4341 = vmatpush1.bf16.msra.mxu0 0
    %4342 = vmatprep.subr.bf16.mxu0 0
    %4343 = vmatpush1.bf16.msra.mxu0 0
    %4344 = vmatprep.subr.bf16.mxu0 0
    %4345 = vmatpush1.bf16.msra.mxu0 0
    %4346 = vmatprep.subr.bf16.mxu0 0
    %4347 = vmatpush1.bf16.msra.mxu0 0
    %4348 = vmatprep.mubr.bf16.mxu0 0
    %4349 = vmatmul.mubr.bf16.gmra.mrb[0].mxu0 %v4315
    %v4350 = vpop.f32.mrb[0].mxu0
    %v4351 = vadd.f32 0.0, %v4350
    %v4352 = vpop.f32.mrb[0].mxu0
    %v4353 = vpop.f32.mrb[0].mxu0
    %v4354 = vpop.f32.mrb[0].mxu0
    %4355 = vdwg.mxu0
    %v4356 = vmul.f32 %v4310, 0.001953125
    %v4357 = vmul.f32 %v4351, 0.001953125
    %v4358 = vmul.f32 %v4356, %v4356
    %v4359 = vsub.f32 %v4357, %v4358
    %v4360 = vmax.f32 %v4359, 0.0
    %v4361 = vadd.f32 %v4360, 1e-05
    %v4362 = vrsqrt.pop %v4361
    %v4363 = vmul.f32 %v4249, %v4362
    %v4364 = vmul.f32 %v4356, %v4363
    %v4365 = vsub.f32 %v4251, %v4364
    %v4366 = vpack.c.bf16 %v4363, %v4363
    %v4368 = vsel %vm1105, %v4366, 0
    %4370 = vmatprep.subr.bf16.mxu0 0
    %4371 = vmatpush1.bf16.msra.mxu0 %v1111
    %4372 = vmatprep.subr.bf16.mxu0 0
    %4373 = vmatpush1.bf16.msra.mxu0 0
    %4374 = vmatprep.subr.bf16.mxu0 0
    %4375 = vmatpush1.bf16.msra.mxu0 0
    %4376 = vmatprep.subr.bf16.mxu0 0
    %4377 = vmatpush1.bf16.msra.mxu0 0
    %4378 = vmatprep.subr.bf16.mxu0 0
    %4379 = vmatpush1.bf16.msra.mxu0 0
    %4380 = vmatprep.subr.bf16.mxu0 0
    %4381 = vmatpush1.bf16.msra.mxu0 0
    %4382 = vmatprep.subr.bf16.mxu0 0
    %4383 = vmatpush1.bf16.msra.mxu0 0
    %4384 = vmatprep.subr.bf16.mxu0 0
    %4385 = vmatpush1.bf16.msra.mxu0 0
    %4386 = vmatprep.subr.bf16.mxu0 0
    %4387 = vmatpush1.bf16.msra.mxu0 0
    %4388 = vmatprep.subr.bf16.mxu0 0
    %4389 = vmatpush1.bf16.msra.mxu0 0
    %4390 = vmatprep.subr.bf16.mxu0 0
    %4391 = vmatpush1.bf16.msra.mxu0 0
    %4392 = vmatprep.subr.bf16.mxu0 0
    %4393 = vmatpush1.bf16.msra.mxu0 0
    %4394 = vmatprep.subr.bf16.mxu0 0
    %4395 = vmatpush1.bf16.msra.mxu0 0
    %4396 = vmatprep.subr.bf16.mxu0 0
    %4397 = vmatpush1.bf16.msra.mxu0 0
    %4398 = vmatprep.subr.bf16.mxu0 0
    %4399 = vmatpush1.bf16.msra.mxu0 0
    %4400 = vmatprep.subr.bf16.mxu0 0
    %4401 = vmatpush1.bf16.msra.mxu0 0
    %4402 = vmatprep.mubr.bf16.mxu0 0
    %4403 = vmatmul.mubr.bf16.gmra.mrb[0].mxu0 %v4368
    %v4404 = vpop.f32.mrb[0].mxu0
    %v4405 = vadd.f32 0.0, %v4404
    %v4406 = vpop.f32.mrb[0].mxu0
    %v4407 = vpop.f32.mrb[0].mxu0
    %v4408 = vpop.f32.mrb[0].mxu0
    %4409 = vdwg.mxu0
    %v4410 = vpack.c.bf16 %v4365, %v4365
    %v4412 = vsel %vm1105, %v4410, 0
    %4414 = vmatprep.subr.bf16.mxu0 0
    %4415 = vmatpush1.bf16.msra.mxu0 %v1111
    %4416 = vmatprep.subr.bf16.mxu0 0
    %4417 = vmatpush1.bf16.msra.mxu0 0
    %4418 = vmatprep.subr.bf16.mxu0 0
    %4419 = vmatpush1.bf16.msra.mxu0 0
    %4420 = vmatprep.subr.bf16.mxu0 0
    %4421 = vmatpush1.bf16.msra.mxu0 0
    %4422 = vmatprep.subr.bf16.mxu0 0
    %4423 = vmatpush1.bf16.msra.mxu0 0
    %4424 = vmatprep.subr.bf16.mxu0 0
    %4425 = vmatpush1.bf16.msra.mxu0 0
    %4426 = vmatprep.subr.bf16.mxu0 0
    %4427 = vmatpush1.bf16.msra.mxu0 0
    %4428 = vmatprep.subr.bf16.mxu0 0
    %4429 = vmatpush1.bf16.msra.mxu0 0
    %4430 = vmatprep.subr.bf16.mxu0 0
    %4431 = vmatpush1.bf16.msra.mxu0 0
    %4432 = vmatprep.subr.bf16.mxu0 0
    %4433 = vmatpush1.bf16.msra.mxu0 0
    %4434 = vmatprep.subr.bf16.mxu0 0
    %4435 = vmatpush1.bf16.msra.mxu0 0
    %4436 = vmatprep.subr.bf16.mxu0 0
    %4437 = vmatpush1.bf16.msra.mxu0 0
    %4438 = vmatprep.subr.bf16.mxu0 0
    %4439 = vmatpush1.bf16.msra.mxu0 0
    %4440 = vmatprep.subr.bf16.mxu0 0
    %4441 = vmatpush1.bf16.msra.mxu0 0
    %4442 = vmatprep.subr.bf16.mxu0 0
    %4443 = vmatpush1.bf16.msra.mxu0 0
    %4444 = vmatprep.subr.bf16.mxu0 0
    %4445 = vmatpush1.bf16.msra.mxu0 0
    %4446 = vmatprep.mubr.bf16.mxu0 0
    %4447 = vmatmul.mubr.bf16.gmra.mrb[0].mxu0 %v4412
    %v4448 = vpop.f32.mrb[0].mxu0
    %v4449 = vadd.f32 0.0, %v4448
    %v4450 = vpop.f32.mrb[0].mxu0
    %v4451 = vpop.f32.mrb[0].mxu0
    %v4452 = vpop.f32.mrb[0].mxu0
    %4453 = vdwg.mxu0
    %v4454 = vlaneseq
    %v4455 = vshrl.u32 %v4454, 7
    %v4456 = vsub.s32 0, %v4455
    %v4457 = vrot.slane %v4405, %v4456
    %v4458 = vmul.f32 %v4245, %v4457
    %v4459 = vmul.f32 %v4246, %v4457
    %v4460 = vmul.f32 %v4247, %v4457
    %v4461 = vmul.f32 %v4248, %v4457
    %v4462 = vlaneseq
    %v4463 = vshrl.u32 %v4462, 7
    %v4464 = vsub.s32 0, %v4463
    %v4465 = vrot.slane %v4449, %v4464
    %v4466 = vadd.f32 %v4458, %v4465
    %v4467 = vadd.f32 %v4459, %v4465
    %v4468 = vadd.f32 %v4460, %v4465
    %v4469 = vadd.f32 %v4461, %v4465
    %s4470 = scalar_lea.vmem [#allocation12], 1
    %v4471 = vld [vmem:[%s4470] sm:$0x1]
    %v4472 = vpack.c.bf16 %v4467, %v4466
    %v4473 = vpack.c.bf16 %v4469, %v4468
    %v4474 = vld [vmem:[%s45] sm:$0xf]
    %v4475 = vld [vmem:[%s45 + $0x4] sm:$0xf]
    %v4476 = vld [vmem:[%s45 + $0x8] sm:$0xf]
    %v4477 = vld [vmem:[%s45 + $0xc] sm:$0xf]
    %v4478 = vld [vmem:[%s45 + $0x10] sm:$0xf]
    %v4479 = vld [vmem:[%s45 + $0x14] sm:$0xf]
    %v4480 = vld [vmem:[%s45 + $0x18] sm:$0xf]
    %v4481 = vld [vmem:[%s45 + $0x1c] sm:$0xf]
    %v4482 = vld [vmem:[%s45 + $0x20] sm:$0xf]
    %v4483 = vld [vmem:[%s45 + $0x24] sm:$0xf]
    %v4484 = vld [vmem:[%s45 + $0x28] sm:$0xf]
    %v4485 = vld [vmem:[%s45 + $0x2c] sm:$0xf]
    %v4486 = vld [vmem:[%s45 + $0x30] sm:$0xf]
    %v4487 = vld [vmem:[%s45 + $0x34] sm:$0xf]
    %v4488 = vld [vmem:[%s45 + $0x38] sm:$0xf]
    %v4489 = vld [vmem:[%s45 + $0x3c] sm:$0xf]
    %v4506 = vunpack.c.l.b16 %v4474
    %v4507 = vunpack.c.l.b16 %v4475
    %v4508 = vunpack.c.l.b16 %v4476
    %v4509 = vunpack.c.l.b16 %v4477
    %v4510 = vunpack.c.l.b16 %v4478
    %v4511 = vunpack.c.l.b16 %v4479
    %v4512 = vunpack.c.l.b16 %v4480
    %v4513 = vunpack.c.l.b16 %v4481
    %v4514 = vunpack.c.l.b16 %v4482
    %v4515 = vunpack.c.l.b16 %v4483
    %v4516 = vunpack.c.l.b16 %v4484
    %v4517 = vunpack.c.l.b16 %v4485
    %v4518 = vunpack.c.l.b16 %v4486
    %v4519 = vunpack.c.l.b16 %v4487
    %v4520 = vunpack.c.l.b16 %v4488
    %v4521 = vunpack.c.l.b16 %v4489
    %v4522 = vpack.c.b16 %v4507, %v4506
    %v4523 = vpack.c.b16 %v4509, %v4508
    %v4524 = vpack.c.b16 %v4511, %v4510
    %v4525 = vpack.c.b16 %v4513, %v4512
    %v4526 = vpack.c.b16 %v4515, %v4514
    %v4527 = vpack.c.b16 %v4517, %v4516
    %v4528 = vpack.c.b16 %v4519, %v4518
    %v4529 = vpack.c.b16 %v4521, %v4520
    %4538 = vmatprep.subr.bf16.mxu0 0
    %4539 = vmatpush1.bf16.msra.mxu0 %v4522
    %4540 = vmatprep.subr.bf16.mxu0 0
    %4541 = vmatpush1.bf16.msra.mxu0 %v4523
    %4542 = vmatprep.subr.bf16.mxu0 0
    %4543 = vmatpush1.bf16.msra.mxu0 %v4524
    %4544 = vmatprep.subr.bf16.mxu0 0
    %4545 = vmatpush1.bf16.msra.mxu0 %v4525
    %4546 = vmatprep.subr.bf16.mxu0 0
    %4547 = vmatpush1.bf16.msra.mxu0 %v4526
    %4548 = vmatprep.subr.bf16.mxu0 0
    %4549 = vmatpush1.bf16.msra.mxu0 %v4527
    %4550 = vmatprep.subr.bf16.mxu0 0
    %4551 = vmatpush1.bf16.msra.mxu0 %v4528
    %4552 = vmatprep.subr.bf16.mxu0 0
    %4553 = vmatpush1.bf16.msra.mxu0 %v4529
    %4554 = vmatprep.subr.bf16.mxu0 0
    %4555 = vmatpush1.bf16.msra.mxu0 0
    %4556 = vmatprep.subr.bf16.mxu0 0
    %4557 = vmatpush1.bf16.msra.mxu0 0
    %4558 = vmatprep.subr.bf16.mxu0 0
    %4559 = vmatpush1.bf16.msra.mxu0 0
    %4560 = vmatprep.subr.bf16.mxu0 0
    %4561 = vmatpush1.bf16.msra.mxu0 0
    %4562 = vmatprep.subr.bf16.mxu0 0
    %4563 = vmatpush1.bf16.msra.mxu0 0
    %4564 = vmatprep.subr.bf16.mxu0 0
    %4565 = vmatpush1.bf16.msra.mxu0 0
    %4566 = vmatprep.subr.bf16.mxu0 0
    %4567 = vmatpush1.bf16.msra.mxu0 0
    %4568 = vmatprep.subr.bf16.mxu0 0
    %4569 = vmatpush1.bf16.msra.mxu0 0
    %4570 = vmatprep.mubr.bf16.mxu0 0
    %4571 = vmatmul.mubr.bf16.gmra.mrb[0].mxu0 %v4472
    %v4572 = vpop.f32.mrb[0].mxu0
    %v4573 = vadd.f32 0.0, %v4572
    %v4574 = vpop.f32.mrb[0].mxu0
    %v4575 = vpop.f32.mrb[0].mxu0
    %v4576 = vadd.f32 0.0, %v4575
    %v4577 = vpop.f32.mrb[0].mxu0
    %4578 = vmatprep.mubr.bf16.mxu0 0
    %4579 = vmatmul.mubr.bf16.gmra.mrb[0].mxu0 %v4473
    %v4580 = vpop.f32.mrb[0].mxu0
    %v4581 = vadd.f32 0.0, %v4580
    %v4582 = vpop.f32.mrb[0].mxu0
    %v4583 = vpop.f32.mrb[0].mxu0
    %v4584 = vadd.f32 0.0, %v4583
    %v4585 = vpop.f32.mrb[0].mxu0
    %4586 = vdwg.mxu0
    %s4587 = scalar_lea.vmem %s45, 64
    %v4588 = vld [vmem:[%s4587] sm:$0xf]
    %v4589 = vld [vmem:[%s4587 + $0x4] sm:$0xf]
    %v4590 = vld [vmem:[%s4587 + $0x8] sm:$0xf]
    %v4591 = vld [vmem:[%s4587 + $0xc] sm:$0xf]
    %v4592 = vld [vmem:[%s4587 + $0x10] sm:$0xf]
    %v4593 = vld [vmem:[%s4587 + $0x14] sm:$0xf]
    %v4594 = vld [vmem:[%s4587 + $0x18] sm:$0xf]
    %v4595 = vld [vmem:[%s4587 + $0x1c] sm:$0xf]
    %v4596 = vld [vmem:[%s4587 + $0x20] sm:$0xf]
    %v4597 = vld [vmem:[%s4587 + $0x24] sm:$0xf]
    %v4598 = vld [vmem:[%s4587 + $0x28] sm:$0xf]
    %v4599 = vld [vmem:[%s4587 + $0x2c] sm:$0xf]
    %v4600 = vld [vmem:[%s4587 + $0x30] sm:$0xf]
    %v4601 = vld [vmem:[%s4587 + $0x34] sm:$0xf]
    %v4602 = vld [vmem:[%s4587 + $0x38] sm:$0xf]
    %v4603 = vld [vmem:[%s4587 + $0x3c] sm:$0xf]
    %s4604 = scalar_lea.vmem %s45, 128
    %v4605 = vld [vmem:[%s4604] sm:$0xf]
    %v4606 = vld [vmem:[%s4604 + $0x4] sm:$0xf]
    %v4607 = vld [vmem:[%s4604 + $0x8] sm:$0xf]
    %v4608 = vld [vmem:[%s4604 + $0xc] sm:$0xf]
    %v4609 = vld [vmem:[%s4604 + $0x10] sm:$0xf]
    %v4610 = vld [vmem:[%s4604 + $0x14] sm:$0xf]
    %v4611 = vld [vmem:[%s4604 + $0x18] sm:$0xf]
    %v4612 = vld [vmem:[%s4604 + $0x1c] sm:$0xf]
    %v4613 = vld [vmem:[%s4604 + $0x20] sm:$0xf]
    %v4614 = vld [vmem:[%s4604 + $0x24] sm:$0xf]
    %v4615 = vld [vmem:[%s4604 + $0x28] sm:$0xf]
    %v4616 = vld [vmem:[%s4604 + $0x2c] sm:$0xf]
    %v4617 = vld [vmem:[%s4604 + $0x30] sm:$0xf]
    %v4618 = vld [vmem:[%s4604 + $0x34] sm:$0xf]
    %v4619 = vld [vmem:[%s4604 + $0x38] sm:$0xf]
    %v4620 = vld [vmem:[%s4604 + $0x3c] sm:$0xf]
    %v4637 = vunpack.c.l.b16 %v4605
    %v4638 = vunpack.c.l.b16 %v4606
    %v4639 = vunpack.c.l.b16 %v4607
    %v4640 = vunpack.c.l.b16 %v4608
    %v4641 = vunpack.c.l.b16 %v4609
    %v4642 = vunpack.c.l.b16 %v4610
    %v4643 = vunpack.c.l.b16 %v4611
    %v4644 = vunpack.c.l.b16 %v4612
    %v4645 = vunpack.c.l.b16 %v4613
    %v4646 = vunpack.c.l.b16 %v4614
    %v4647 = vunpack.c.l.b16 %v4615
    %v4648 = vunpack.c.l.b16 %v4616
    %v4649 = vunpack.c.l.b16 %v4617
    %v4650 = vunpack.c.l.b16 %v4618
    %v4651 = vunpack.c.l.b16 %v4619
    %v4652 = vunpack.c.l.b16 %v4620
    %v4653 = vpack.c.b16 %v4638, %v4637
    %v4654 = vpack.c.b16 %v4640, %v4639
    %v4655 = vpack.c.b16 %v4642, %v4641
    %v4656 = vpack.c.b16 %v4644, %v4643
    %v4657 = vpack.c.b16 %v4646, %v4645
    %v4658 = vpack.c.b16 %v4648, %v4647
    %v4659 = vpack.c.b16 %v4650, %v4649
    %v4660 = vpack.c.b16 %v4652, %v4651
    %4669 = vmatprep.subr.bf16.mxu0 0
    %4670 = vmatpush1.bf16.msra.mxu0 %v4653
    %4671 = vmatprep.subr.bf16.mxu0 0
    %4672 = vmatpush1.bf16.msra.mxu0 %v4654
    %4673 = vmatprep.subr.bf16.mxu0 0
    %4674 = vmatpush1.bf16.msra.mxu0 %v4655
    %4675 = vmatprep.subr.bf16.mxu0 0
    %4676 = vmatpush1.bf16.msra.mxu0 %v4656
    %4677 = vmatprep.subr.bf16.mxu0 0
    %4678 = vmatpush1.bf16.msra.mxu0 %v4657
    %4679 = vmatprep.subr.bf16.mxu0 0
    %4680 = vmatpush1.bf16.msra.mxu0 %v4658
    %4681 = vmatprep.subr.bf16.mxu0 0
    %4682 = vmatpush1.bf16.msra.mxu0 %v4659
    %4683 = vmatprep.subr.bf16.mxu0 0
    %4684 = vmatpush1.bf16.msra.mxu0 %v4660
    %4685 = vmatprep.subr.bf16.mxu0 0
    %4686 = vmatpush1.bf16.msra.mxu0 0
    %4687 = vmatprep.subr.bf16.mxu0 0
    %4688 = vmatpush1.bf16.msra.mxu0 0
    %4689 = vmatprep.subr.bf16.mxu0 0
    %4690 = vmatpush1.bf16.msra.mxu0 0
    %4691 = vmatprep.subr.bf16.mxu0 0
    %4692 = vmatpush1.bf16.msra.mxu0 0
    %4693 = vmatprep.subr.bf16.mxu0 0
    %4694 = vmatpush1.bf16.msra.mxu0 0
    %4695 = vmatprep.subr.bf16.mxu0 0
    %4696 = vmatpush1.bf16.msra.mxu0 0
    %4697 = vmatprep.subr.bf16.mxu0 0
    %4698 = vmatpush1.bf16.msra.mxu0 0
    %4699 = vmatprep.subr.bf16.mxu0 0
    %4700 = vmatpush1.bf16.msra.mxu0 0
    %4701 = vmatprep.mubr.bf16.mxu0 0
    %4702 = vmatmul.mubr.bf16.gmra.mrb[0].mxu0 %v4472
    %v4703 = vpop.f32.mrb[0].mxu0
    %v4704 = vadd.f32 0.0, %v4703
    %v4705 = vpop.f32.mrb[0].mxu0
    %v4706 = vpop.f32.mrb[0].mxu0
    %v4707 = vadd.f32 0.0, %v4706
    %v4708 = vpop.f32.mrb[0].mxu0
    %4709 = vmatprep.mubr.bf16.mxu0 0
    %4710 = vmatmul.mubr.bf16.gmra.mrb[0].mxu0 %v4473
    %v4711 = vpop.f32.mrb[0].mxu0
    %v4712 = vadd.f32 0.0, %v4711
    %v4713 = vpop.f32.mrb[0].mxu0
    %v4714 = vpop.f32.mrb[0].mxu0
    %v4715 = vadd.f32 0.0, %v4714
    %v4716 = vpop.f32.mrb[0].mxu0
    %4717 = vdwg.mxu0
    %v4718 = vrot.slane %v4573, 7
    %v4719 = vrot.slane %v4576, 7
    %v4720 = vrot.slane %v4581, 7
    %v4721 = vrot.slane %v4584, 7
    %v4722 = vsel %vm762, %v4720, %v4721
    %v4723 = vsel %vm762, %v4719, %v4720
    %v4724 = vsel %vm762, %v4718, %v4719
    %v4725 = vsel %vm762, %v4721, %v4718
    %v4726 = vrot.slane %v4704, 1
    %v4727 = vrot.slane %v4707, 1
    %v4728 = vrot.slane %v4712, 1
    %v4729 = vrot.slane %v4715, 1
    %v4730 = vsel %vm771, %v4728, %v4729
    %v4731 = vsel %vm771, %v4727, %v4728
    %v4732 = vsel %vm771, %v4726, %v4727
    %v4733 = vsel %vm771, %v4729, %v4726
    %v4734 = vmul.f32 %v779, %v4725
    %v4735 = vmul.f32 %v784, %v4724
    %v4736 = vmul.f32 %v789, %v4723
    %v4737 = vmul.f32 %v794, %v4722
    %v4754 = vunpack.c.l.b16 %v4588
    %v4755 = vunpack.c.l.b16 %v4589
    %v4756 = vunpack.c.l.b16 %v4590
    %v4757 = vunpack.c.l.b16 %v4591
    %v4758 = vunpack.c.l.b16 %v4592
    %v4759 = vunpack.c.l.b16 %v4593
    %v4760 = vunpack.c.l.b16 %v4594
    %v4761 = vunpack.c.l.b16 %v4595
    %v4762 = vunpack.c.l.b16 %v4596
    %v4763 = vunpack.c.l.b16 %v4597
    %v4764 = vunpack.c.l.b16 %v4598
    %v4765 = vunpack.c.l.b16 %v4599
    %v4766 = vunpack.c.l.b16 %v4600
    %v4767 = vunpack.c.l.b16 %v4601
    %v4768 = vunpack.c.l.b16 %v4602
    %v4769 = vunpack.c.l.b16 %v4603
    %v4770 = vpack.c.b16 %v4755, %v4754
    %v4771 = vpack.c.b16 %v4757, %v4756
    %v4772 = vpack.c.b16 %v4759, %v4758
    %v4773 = vpack.c.b16 %v4761, %v4760
    %v4774 = vpack.c.b16 %v4763, %v4762
    %v4775 = vpack.c.b16 %v4765, %v4764
    %v4776 = vpack.c.b16 %v4767, %v4766
    %v4777 = vpack.c.b16 %v4769, %v4768
    %4786 = vmatprep.subr.bf16.mxu0 0
    %4787 = vmatpush1.bf16.msra.mxu0 %v4770
    %4788 = vmatprep.subr.bf16.mxu0 0
    %4789 = vmatpush1.bf16.msra.mxu0 %v4771
    %4790 = vmatprep.subr.bf16.mxu0 0
    %4791 = vmatpush1.bf16.msra.mxu0 %v4772
    %4792 = vmatprep.subr.bf16.mxu0 0
    %4793 = vmatpush1.bf16.msra.mxu0 %v4773
    %4794 = vmatprep.subr.bf16.mxu0 0
    %4795 = vmatpush1.bf16.msra.mxu0 %v4774
    %4796 = vmatprep.subr.bf16.mxu0 0
    %4797 = vmatpush1.bf16.msra.mxu0 %v4775
    %4798 = vmatprep.subr.bf16.mxu0 0
    %4799 = vmatpush1.bf16.msra.mxu0 %v4776
    %4800 = vmatprep.subr.bf16.mxu0 0
    %4801 = vmatpush1.bf16.msra.mxu0 %v4777
    %4802 = vmatprep.subr.bf16.mxu0 0
    %4803 = vmatpush1.bf16.msra.mxu0 0
    %4804 = vmatprep.subr.bf16.mxu0 0
    %4805 = vmatpush1.bf16.msra.mxu0 0
    %4806 = vmatprep.subr.bf16.mxu0 0
    %4807 = vmatpush1.bf16.msra.mxu0 0
    %4808 = vmatprep.subr.bf16.mxu0 0
    %4809 = vmatpush1.bf16.msra.mxu0 0
    %4810 = vmatprep.subr.bf16.mxu0 0
    %4811 = vmatpush1.bf16.msra.mxu0 0
    %4812 = vmatprep.subr.bf16.mxu0 0
    %4813 = vmatpush1.bf16.msra.mxu0 0
    %4814 = vmatprep.subr.bf16.mxu0 0
    %4815 = vmatpush1.bf16.msra.mxu0 0
    %4816 = vmatprep.subr.bf16.mxu0 0
    %4817 = vmatpush1.bf16.msra.mxu0 0
    %4818 = vmatprep.mubr.bf16.mxu0 0
    %4819 = vmatmul.mubr.bf16.gmra.mrb[0].mxu0 %v4472
    %v4820 = vpop.f32.mrb[0].mxu0
    %v4821 = vadd.f32 %v4734, %v4820
    %v4822 = vpop.f32.mrb[0].mxu0
    %v4823 = vpop.f32.mrb[0].mxu0
    %v4824 = vadd.f32 %v4735, %v4823
    %v4825 = vpop.f32.mrb[0].mxu0
    %4826 = vmatprep.mubr.bf16.mxu0 0
    %4827 = vmatmul.mubr.bf16.gmra.mrb[0].mxu0 %v4473
    %v4828 = vpop.f32.mrb[0].mxu0
    %v4829 = vadd.f32 %v4736, %v4828
    %v4830 = vpop.f32.mrb[0].mxu0
    %v4831 = vpop.f32.mrb[0].mxu0
    %v4832 = vadd.f32 %v4737, %v4831
    %v4833 = vpop.f32.mrb[0].mxu0
    %4834 = vdwg.mxu0
    %v4835 = vmul.f32 %v900, %v4732
    %v4836 = vmul.f32 %v905, %v4731
    %v4837 = vmul.f32 %v910, %v4730
    %v4838 = vmul.f32 %v915, %v4733
    %v4839 = vadd.f32 %v4821, %v4835
    %v4840 = vadd.f32 %v4824, %v4836
    %v4841 = vadd.f32 %v4829, %v4837
    %v4842 = vadd.f32 %v4832, %v4838
    %v4844 = vlaneseq
    %v4845 = vshrl.u32 %v4844, 7
    %v4846 = vsub.s32 0, %v4845
    %v4847 = vrot.slane %v4471, %v4846
    %v4849 = vadd.f32 %v4839, %v4847
    %v4850 = vadd.f32 %v4840, %v4847
    %v4851 = vadd.f32 %v4841, %v4847
    %v4852 = vadd.f32 %v4842, %v4847
    %v4853 = vmax.f32 %v4849, 0.0
    %v4854 = vmax.f32 %v4850, 0.0
    %v4855 = vmax.f32 %v4851, 0.0
    %v4856 = vmax.f32 %v4852, 0.0
    %s4857 = scalar_lea.vmem [#allocation13], 2
    %v4858 = vld [vmem:[%s4857] sm:$0x1]
    %s4859 = scalar_lea.vmem [#allocation13], 3
    %v4860 = vld [vmem:[%s4859] sm:$0x1]
    %v4861 = vadd.f32 %v4853, %v4854
    %v4862 = vadd.f32 %v4861, %v4855
    %v4863 = vadd.f32 %v4862, %v4856
    %v4864 = vrot.slane %v4863, 4
    %v4865 = vadd.f32 %v4863, %v4864
    %v4866 = vrot.slane %v4865, 2
    %v4867 = vadd.f32 %v4865, %v4866
    %v4868 = vrot.slane %v4867, 1
    %v4869 = vadd.f32 %v4867, %v4868
    %v4870 = vmul.f32 %v4853, %v4853
    %v4871 = vmul.f32 %v4854, %v4854
    %v4872 = vmul.f32 %v4855, %v4855
    %v4873 = vmul.f32 %v4856, %v4856
    %v4874 = vadd.f32 %v4870, %v4871
    %v4875 = vadd.f32 %v4874, %v4872
    %v4876 = vadd.f32 %v4875, %v4873
    %v4877 = vrot.slane %v4876, 4
    %v4878 = vadd.f32 %v4876, %v4877
    %v4879 = vrot.slane %v4878, 2
    %v4880 = vadd.f32 %v4878, %v4879
    %v4881 = vrot.slane %v4880, 1
    %v4882 = vadd.f32 %v4880, %v4881
    %v4883 = vpack.c.bf16 %v4869, %v4869
    %4884 = vmatprep.subr.bf16.mxu0 0
    %4885 = vmatpush1.bf16.msra.mxu0 %v997
    %4886 = vmatprep.subr.bf16.mxu0 0
    %4887 = vmatpush1.bf16.msra.mxu0 %v998
    %4888 = vmatprep.subr.bf16.mxu0 0
    %4889 = vmatpush1.bf16.msra.mxu0 %v999
    %4890 = vmatprep.subr.bf16.mxu0 0
    %4891 = vmatpush1.bf16.msra.mxu0 %v1000
    %4892 = vmatprep.subr.bf16.mxu0 0
    %4893 = vmatpush1.bf16.msra.mxu0 %v1001
    %4894 = vmatprep.subr.bf16.mxu0 0
    %4895 = vmatpush1.bf16.msra.mxu0 %v1002
    %4896 = vmatprep.subr.bf16.mxu0 0
    %4897 = vmatpush1.bf16.msra.mxu0 %v1003
    %4898 = vmatprep.subr.bf16.mxu0 0
    %4899 = vmatpush1.bf16.msra.mxu0 %v1004
    %4900 = vmatprep.subr.bf16.mxu0 0
    %4901 = vmatpush1.bf16.msra.mxu0 0
    %4902 = vmatprep.subr.bf16.mxu0 0
    %4903 = vmatpush1.bf16.msra.mxu0 0
    %4904 = vmatprep.subr.bf16.mxu0 0
    %4905 = vmatpush1.bf16.msra.mxu0 0
    %4906 = vmatprep.subr.bf16.mxu0 0
    %4907 = vmatpush1.bf16.msra.mxu0 0
    %4908 = vmatprep.subr.bf16.mxu0 0
    %4909 = vmatpush1.bf16.msra.mxu0 0
    %4910 = vmatprep.subr.bf16.mxu0 0
    %4911 = vmatpush1.bf16.msra.mxu0 0
    %4912 = vmatprep.subr.bf16.mxu0 0
    %4913 = vmatpush1.bf16.msra.mxu0 0
    %4914 = vmatprep.subr.bf16.mxu0 0
    %4915 = vmatpush1.bf16.msra.mxu0 0
    %4916 = vmatprep.mubr.bf16.mxu0 0
    %4917 = vmatmul.mubr.bf16.gmra.mrb[0].mxu0 %v4883
    %v4918 = vpop.f32.mrb[0].mxu0
    %v4919 = vadd.f32 0.0, %v4918
    %v4920 = vpop.f32.mrb[0].mxu0
    %v4921 = vpop.f32.mrb[0].mxu0
    %v4922 = vpop.f32.mrb[0].mxu0
    %4923 = vdwg.mxu0
    %v4924 = vpack.c.bf16 %v4882, %v4882
    %4925 = vmatprep.subr.bf16.mxu0 0
    %4926 = vmatpush1.bf16.msra.mxu0 %v997
    %4927 = vmatprep.subr.bf16.mxu0 0
    %4928 = vmatpush1.bf16.msra.mxu0 %v998
    %4929 = vmatprep.subr.bf16.mxu0 0
    %4930 = vmatpush1.bf16.msra.mxu0 %v999
    %4931 = vmatprep.subr.bf16.mxu0 0
    %4932 = vmatpush1.bf16.msra.mxu0 %v1000
    %4933 = vmatprep.subr.bf16.mxu0 0
    %4934 = vmatpush1.bf16.msra.mxu0 %v1001
    %4935 = vmatprep.subr.bf16.mxu0 0
    %4936 = vmatpush1.bf16.msra.mxu0 %v1002
    %4937 = vmatprep.subr.bf16.mxu0 0
    %4938 = vmatpush1.bf16.msra.mxu0 %v1003
    %4939 = vmatprep.subr.bf16.mxu0 0
    %4940 = vmatpush1.bf16.msra.mxu0 %v1004
    %4941 = vmatprep.subr.bf16.mxu0 0
    %4942 = vmatpush1.bf16.msra.mxu0 0
    %4943 = vmatprep.subr.bf16.mxu0 0
    %4944 = vmatpush1.bf16.msra.mxu0 0
    %4945 = vmatprep.subr.bf16.mxu0 0
    %4946 = vmatpush1.bf16.msra.mxu0 0
    %4947 = vmatprep.subr.bf16.mxu0 0
    %4948 = vmatpush1.bf16.msra.mxu0 0
    %4949 = vmatprep.subr.bf16.mxu0 0
    %4950 = vmatpush1.bf16.msra.mxu0 0
    %4951 = vmatprep.subr.bf16.mxu0 0
    %4952 = vmatpush1.bf16.msra.mxu0 0
    %4953 = vmatprep.subr.bf16.mxu0 0
    %4954 = vmatpush1.bf16.msra.mxu0 0
    %4955 = vmatprep.subr.bf16.mxu0 0
    %4956 = vmatpush1.bf16.msra.mxu0 0
    %4957 = vmatprep.mubr.bf16.mxu0 0
    %4958 = vmatmul.mubr.bf16.gmra.mrb[0].mxu0 %v4924
    %v4959 = vpop.f32.mrb[0].mxu0
    %v4960 = vadd.f32 0.0, %v4959
    %v4961 = vpop.f32.mrb[0].mxu0
    %v4962 = vpop.f32.mrb[0].mxu0
    %v4963 = vpop.f32.mrb[0].mxu0
    %4964 = vdwg.mxu0
    %v4965 = vmul.f32 %v4919, 0.001953125
    %v4966 = vmul.f32 %v4960, 0.001953125
    %v4967 = vmul.f32 %v4965, %v4965
    %v4968 = vsub.f32 %v4966, %v4967
    %v4969 = vmax.f32 %v4968, 0.0
    %v4970 = vadd.f32 %v4969, 1e-05
    %v4971 = vrsqrt.pop %v4970
    %v4972 = vmul.f32 %v4858, %v4971
    %v4973 = vmul.f32 %v4965, %v4972
    %v4974 = vsub.f32 %v4860, %v4973
    %v4975 = vpack.c.bf16 %v4972, %v4972
    %v4977 = vsel %vm1105, %v4975, 0
    %4979 = vmatprep.subr.bf16.mxu0 0
    %4980 = vmatpush1.bf16.msra.mxu0 %v1111
    %4981 = vmatprep.subr.bf16.mxu0 0
    %4982 = vmatpush1.bf16.msra.mxu0 0
    %4983 = vmatprep.subr.bf16.mxu0 0
    %4984 = vmatpush1.bf16.msra.mxu0 0
    %4985 = vmatprep.subr.bf16.mxu0 0
    %4986 = vmatpush1.bf16.msra.mxu0 0
    %4987 = vmatprep.subr.bf16.mxu0 0
    %4988 = vmatpush1.bf16.msra.mxu0 0
    %4989 = vmatprep.subr.bf16.mxu0 0
    %4990 = vmatpush1.bf16.msra.mxu0 0
    %4991 = vmatprep.subr.bf16.mxu0 0
    %4992 = vmatpush1.bf16.msra.mxu0 0
    %4993 = vmatprep.subr.bf16.mxu0 0
    %4994 = vmatpush1.bf16.msra.mxu0 0
    %4995 = vmatprep.subr.bf16.mxu0 0
    %4996 = vmatpush1.bf16.msra.mxu0 0
    %4997 = vmatprep.subr.bf16.mxu0 0
    %4998 = vmatpush1.bf16.msra.mxu0 0
    %4999 = vmatprep.subr.bf16.mxu0 0
    %5000 = vmatpush1.bf16.msra.mxu0 0
    %5001 = vmatprep.subr.bf16.mxu0 0
    %5002 = vmatpush1.bf16.msra.mxu0 0
    %5003 = vmatprep.subr.bf16.mxu0 0
    %5004 = vmatpush1.bf16.msra.mxu0 0
    %5005 = vmatprep.subr.bf16.mxu0 0
    %5006 = vmatpush1.bf16.msra.mxu0 0
    %5007 = vmatprep.subr.bf16.mxu0 0
    %5008 = vmatpush1.bf16.msra.mxu0 0
    %5009 = vmatprep.subr.bf16.mxu0 0
    %5010 = vmatpush1.bf16.msra.mxu0 0
    %5011 = vmatprep.mubr.bf16.mxu0 0
    %5012 = vmatmul.mubr.bf16.gmra.mrb[0].mxu0 %v4977
    %v5013 = vpop.f32.mrb[0].mxu0
    %v5014 = vadd.f32 0.0, %v5013
    %v5015 = vpop.f32.mrb[0].mxu0
    %v5016 = vpop.f32.mrb[0].mxu0
    %v5017 = vpop.f32.mrb[0].mxu0
    %5018 = vdwg.mxu0
    %v5019 = vpack.c.bf16 %v4974, %v4974
    %v5021 = vsel %vm1105, %v5019, 0
    %5023 = vmatprep.subr.bf16.mxu0 0
    %5024 = vmatpush1.bf16.msra.mxu0 %v1111
    %5025 = vmatprep.subr.bf16.mxu0 0
    %5026 = vmatpush1.bf16.msra.mxu0 0
    %5027 = vmatprep.subr.bf16.mxu0 0
    %5028 = vmatpush1.bf16.msra.mxu0 0
    %5029 = vmatprep.subr.bf16.mxu0 0
    %5030 = vmatpush1.bf16.msra.mxu0 0
    %5031 = vmatprep.subr.bf16.mxu0 0
    %5032 = vmatpush1.bf16.msra.mxu0 0
    %5033 = vmatprep.subr.bf16.mxu0 0
    %5034 = vmatpush1.bf16.msra.mxu0 0
    %5035 = vmatprep.subr.bf16.mxu0 0
    %5036 = vmatpush1.bf16.msra.mxu0 0
    %5037 = vmatprep.subr.bf16.mxu0 0
    %5038 = vmatpush1.bf16.msra.mxu0 0
    %5039 = vmatprep.subr.bf16.mxu0 0
    %5040 = vmatpush1.bf16.msra.mxu0 0
    %5041 = vmatprep.subr.bf16.mxu0 0
    %5042 = vmatpush1.bf16.msra.mxu0 0
    %5043 = vmatprep.subr.bf16.mxu0 0
    %5044 = vmatpush1.bf16.msra.mxu0 0
    %5045 = vmatprep.subr.bf16.mxu0 0
    %5046 = vmatpush1.bf16.msra.mxu0 0
    %5047 = vmatprep.subr.bf16.mxu0 0
    %5048 = vmatpush1.bf16.msra.mxu0 0
    %5049 = vmatprep.subr.bf16.mxu0 0
    %5050 = vmatpush1.bf16.msra.mxu0 0
    %5051 = vmatprep.subr.bf16.mxu0 0
    %5052 = vmatpush1.bf16.msra.mxu0 0
    %5053 = vmatprep.subr.bf16.mxu0 0
    %5054 = vmatpush1.bf16.msra.mxu0 0
    %5055 = vmatprep.mubr.bf16.mxu0 0
    %5056 = vmatmul.mubr.bf16.gmra.mrb[0].mxu0 %v5021
    %v5057 = vpop.f32.mrb[0].mxu0
    %v5058 = vadd.f32 0.0, %v5057
    %v5059 = vpop.f32.mrb[0].mxu0
    %v5060 = vpop.f32.mrb[0].mxu0
    %v5061 = vpop.f32.mrb[0].mxu0
    %5062 = vdwg.mxu0
    %v5063 = vlaneseq
    %v5064 = vshrl.u32 %v5063, 7
    %v5065 = vsub.s32 0, %v5064
    %v5066 = vrot.slane %v5014, %v5065
    %v5067 = vmul.f32 %v4853, %v5066
    %v5068 = vmul.f32 %v4854, %v5066
    %v5069 = vmul.f32 %v4855, %v5066
    %v5070 = vmul.f32 %v4856, %v5066
    %v5071 = vlaneseq
    %v5072 = vshrl.u32 %v5071, 7
    %v5073 = vsub.s32 0, %v5072
    %v5074 = vrot.slane %v5058, %v5073
    %v5075 = vadd.f32 %v5067, %v5074
    %v5076 = vadd.f32 %v5068, %v5074
    %v5077 = vadd.f32 %v5069, %v5074
    %v5078 = vadd.f32 %v5070, %v5074
    %v5079 = vpack.c.bf16 %v5076, %v5075
    %v5080 = vpack.c.bf16 %v5078, %v5077
    %v5081 = vld [vmem:[%s51] sm:$0xf]
    %v5082 = vld [vmem:[%s51 + $0x4] sm:$0xf]
    %v5083 = vld [vmem:[%s51 + $0x8] sm:$0xf]
    %v5084 = vld [vmem:[%s51 + $0xc] sm:$0xf]
    %v5085 = vld [vmem:[%s51 + $0x10] sm:$0xf]
    %v5086 = vld [vmem:[%s51 + $0x14] sm:$0xf]
    %v5087 = vld [vmem:[%s51 + $0x18] sm:$0xf]
    %v5088 = vld [vmem:[%s51 + $0x1c] sm:$0xf]
    %v5089 = vld [vmem:[%s51 + $0x20] sm:$0xf]
    %v5090 = vld [vmem:[%s51 + $0x24] sm:$0xf]
    %v5091 = vld [vmem:[%s51 + $0x28] sm:$0xf]
    %v5092 = vld [vmem:[%s51 + $0x2c] sm:$0xf]
    %v5093 = vld [vmem:[%s51 + $0x30] sm:$0xf]
    %v5094 = vld [vmem:[%s51 + $0x34] sm:$0xf]
    %v5095 = vld [vmem:[%s51 + $0x38] sm:$0xf]
    %v5096 = vld [vmem:[%s51 + $0x3c] sm:$0xf]
    %v5113 = vunpack.c.l.b16 %v5081
    %v5114 = vunpack.c.l.b16 %v5082
    %v5115 = vunpack.c.l.b16 %v5083
    %v5116 = vunpack.c.l.b16 %v5084
    %v5117 = vunpack.c.l.b16 %v5085
    %v5118 = vunpack.c.l.b16 %v5086
    %v5119 = vunpack.c.l.b16 %v5087
    %v5120 = vunpack.c.l.b16 %v5088
    %v5121 = vunpack.c.l.b16 %v5089
    %v5122 = vunpack.c.l.b16 %v5090
    %v5123 = vunpack.c.l.b16 %v5091
    %v5124 = vunpack.c.l.b16 %v5092
    %v5125 = vunpack.c.l.b16 %v5093
    %v5126 = vunpack.c.l.b16 %v5094
    %v5127 = vunpack.c.l.b16 %v5095
    %v5128 = vunpack.c.l.b16 %v5096
    %v5129 = vpack.c.b16 %v5114, %v5113
    %v5130 = vpack.c.b16 %v5116, %v5115
    %v5131 = vpack.c.b16 %v5118, %v5117
    %v5132 = vpack.c.b16 %v5120, %v5119
    %v5133 = vpack.c.b16 %v5122, %v5121
    %v5134 = vpack.c.b16 %v5124, %v5123
    %v5135 = vpack.c.b16 %v5126, %v5125
    %v5136 = vpack.c.b16 %v5128, %v5127
    %5145 = vmatprep.subr.bf16.mxu0 0
    %5146 = vmatpush1.bf16.msra.mxu0 %v5129
    %5147 = vmatprep.subr.bf16.mxu0 0
    %5148 = vmatpush1.bf16.msra.mxu0 %v5130
    %5149 = vmatprep.subr.bf16.mxu0 0
    %5150 = vmatpush1.bf16.msra.mxu0 %v5131
    %5151 = vmatprep.subr.bf16.mxu0 0
    %5152 = vmatpush1.bf16.msra.mxu0 %v5132
    %5153 = vmatprep.subr.bf16.mxu0 0
    %5154 = vmatpush1.bf16.msra.mxu0 %v5133
    %5155 = vmatprep.subr.bf16.mxu0 0
    %5156 = vmatpush1.bf16.msra.mxu0 %v5134
    %5157 = vmatprep.subr.bf16.mxu0 0
    %5158 = vmatpush1.bf16.msra.mxu0 %v5135
    %5159 = vmatprep.subr.bf16.mxu0 0
    %5160 = vmatpush1.bf16.msra.mxu0 %v5136
    %5161 = vmatprep.subr.bf16.mxu0 0
    %5162 = vmatpush1.bf16.msra.mxu0 0
    %5163 = vmatprep.subr.bf16.mxu0 0
    %5164 = vmatpush1.bf16.msra.mxu0 0
    %5165 = vmatprep.subr.bf16.mxu0 0
    %5166 = vmatpush1.bf16.msra.mxu0 0
    %5167 = vmatprep.subr.bf16.mxu0 0
    %5168 = vmatpush1.bf16.msra.mxu0 0
    %5169 = vmatprep.subr.bf16.mxu0 0
    %5170 = vmatpush1.bf16.msra.mxu0 0
    %5171 = vmatprep.subr.bf16.mxu0 0
    %5172 = vmatpush1.bf16.msra.mxu0 0
    %5173 = vmatprep.subr.bf16.mxu0 0
    %5174 = vmatpush1.bf16.msra.mxu0 0
    %5175 = vmatprep.subr.bf16.mxu0 0
    %5176 = vmatpush1.bf16.msra.mxu0 0
    %5177 = vmatprep.mubr.bf16.mxu0 0
    %5178 = vmatmul.mubr.bf16.gmra.mrb[0].mxu0 %v5079
    %v5179 = vpop.f32.mrb[0].mxu0
    %v5180 = vadd.f32 0.0, %v5179
    %v5181 = vpop.f32.mrb[0].mxu0
    %v5182 = vpop.f32.mrb[0].mxu0
    %v5183 = vadd.f32 0.0, %v5182
    %v5184 = vpop.f32.mrb[0].mxu0
    %5185 = vmatprep.mubr.bf16.mxu0 0
    %5186 = vmatmul.mubr.bf16.gmra.mrb[0].mxu0 %v5080
    %v5187 = vpop.f32.mrb[0].mxu0
    %v5188 = vadd.f32 0.0, %v5187
    %v5189 = vpop.f32.mrb[0].mxu0
    %v5190 = vpop.f32.mrb[0].mxu0
    %v5191 = vadd.f32 0.0, %v5190
    %v5192 = vpop.f32.mrb[0].mxu0
    %5193 = vdwg.mxu0
    %v5194 = vsel %vm2101, %v5180, -inf
    %5195 = vmax.xlane.f32.xlu0 %v5194
    %v5196 = vpop.xlane.xlu0 %5195
    %v5197 = vsel %vm2101, %v5183, -inf
    %5198 = vmax.xlane.f32.xlu0 %v5197
    %v5199 = vpop.xlane.xlu0 %5198
    %v5200 = vsel %vm2101, %v5188, -inf
    %5201 = vmax.xlane.f32.xlu0 %v5200
    %v5202 = vpop.xlane.xlu0 %5201
    %v5203 = vsel %vm2101, %v5191, -inf
    %5204 = vmax.xlane.f32.xlu0 %v5203
    %v5205 = vpop.xlane.xlu0 %5204
    %v5206 = vsub.f32 %v5180, %v5196
    %v5207 = vsub.f32 %v5183, %v5199
    %v5208 = vsub.f32 %v5188, %v5202
    %v5209 = vsub.f32 %v5191, %v5205
    %v5210 = vmul.f32 %v5206, 1.442695
    %v5211 = vpow.pop %v5210
    %v5212 = vmul.f32 %v5207, 1.442695
    %v5213 = vpow.pop %v5212
    %v5214 = vmul.f32 %v5208, 1.442695
    %v5215 = vpow.pop %v5214
    %v5216 = vmul.f32 %v5209, 1.442695
    %v5217 = vpow.pop %v5216
    %v5218 = vpack.c.bf16 %v5213, %v5211
    %v5219 = vpack.c.bf16 %v5217, %v5215
    %v5220 = vld [vmem:[#allocation15] sm:$0xf]
    %v5221 = vld [vmem:[#allocation15 + $0x4] sm:$0xf]
    %v5222 = vld [vmem:[#allocation15 + $0x8] sm:$0xf]
    %v5223 = vld [vmem:[#allocation15 + $0xc] sm:$0xf]
    %v5224 = vld [vmem:[#allocation15 + $0x10] sm:$0xf]
    %v5225 = vld [vmem:[#allocation15 + $0x14] sm:$0xf]
    %v5226 = vld [vmem:[#allocation15 + $0x18] sm:$0xf]
    %v5227 = vld [vmem:[#allocation15 + $0x1c] sm:$0xf]
    %v5236 = vunpack.c.l.b16 %v5220
    %v5237 = vunpack.c.l.b16 %v5221
    %v5238 = vunpack.c.l.b16 %v5222
    %v5239 = vunpack.c.l.b16 %v5223
    %v5240 = vunpack.c.l.b16 %v5224
    %v5241 = vunpack.c.l.b16 %v5225
    %v5242 = vunpack.c.l.b16 %v5226
    %v5243 = vunpack.c.l.b16 %v5227
    %v5244 = vpack.c.b16 %v5237, %v5236
    %v5245 = vpack.c.b16 %v5239, %v5238
    %v5246 = vpack.c.b16 %v5241, %v5240
    %v5247 = vpack.c.b16 %v5243, %v5242
    %v5253 = vsel %vm2101, %v5218, 0
    %v5256 = vsel %vm2101, %v5219, 0
    %5258 = vmatprep.subr.bf16.mxu0 0
    %5259 = vmatpush1.bf16.msra.mxu0 %v5244
    %5260 = vmatprep.subr.bf16.mxu0 0
    %5261 = vmatpush1.bf16.msra.mxu0 %v5245
    %5262 = vmatprep.subr.bf16.mxu0 0
    %5263 = vmatpush1.bf16.msra.mxu0 %v5246
    %5264 = vmatprep.subr.bf16.mxu0 0
    %5265 = vmatpush1.bf16.msra.mxu0 %v5247
    %5266 = vmatprep.subr.bf16.mxu0 0
    %5267 = vmatpush1.bf16.msra.mxu0 0
    %5268 = vmatprep.subr.bf16.mxu0 0
    %5269 = vmatpush1.bf16.msra.mxu0 0
    %5270 = vmatprep.subr.bf16.mxu0 0
    %5271 = vmatpush1.bf16.msra.mxu0 0
    %5272 = vmatprep.subr.bf16.mxu0 0
    %5273 = vmatpush1.bf16.msra.mxu0 0
    %5274 = vmatprep.subr.bf16.mxu0 0
    %5275 = vmatpush1.bf16.msra.mxu0 0
    %5276 = vmatprep.subr.bf16.mxu0 0
    %5277 = vmatpush1.bf16.msra.mxu0 0
    %5278 = vmatprep.subr.bf16.mxu0 0
    %5279 = vmatpush1.bf16.msra.mxu0 0
    %5280 = vmatprep.subr.bf16.mxu0 0
    %5281 = vmatpush1.bf16.msra.mxu0 0
    %5282 = vmatprep.subr.bf16.mxu0 0
    %5283 = vmatpush1.bf16.msra.mxu0 0
    %5284 = vmatprep.subr.bf16.mxu0 0
    %5285 = vmatpush1.bf16.msra.mxu0 0
    %5286 = vmatprep.subr.bf16.mxu0 0
    %5287 = vmatpush1.bf16.msra.mxu0 0
    %5288 = vmatprep.subr.bf16.mxu0 0
    %5289 = vmatpush1.bf16.msra.mxu0 0
    %5290 = vmatprep.mubr.bf16.mxu0 0
    %5291 = vmatmul.mubr.bf16.gmra.mrb[0].mxu0 %v5253
    %v5292 = vpop.f32.mrb[0].mxu0
    %v5293 = vadd.f32 0.0, %v5292
    %v5294 = vpop.f32.mrb[0].mxu0
    %v5295 = vpop.f32.mrb[0].mxu0
    %v5296 = vadd.f32 0.0, %v5295
    %v5297 = vpop.f32.mrb[0].mxu0
    %5298 = vmatprep.mubr.bf16.mxu0 0
    %5299 = vmatmul.mubr.bf16.gmra.mrb[0].mxu0 %v5256
    %v5300 = vpop.f32.mrb[0].mxu0
    %v5301 = vadd.f32 0.0, %v5300
    %v5302 = vpop.f32.mrb[0].mxu0
    %v5303 = vpop.f32.mrb[0].mxu0
    %v5304 = vadd.f32 0.0, %v5303
    %v5305 = vpop.f32.mrb[0].mxu0
    %5306 = vdwg.mxu0
    %v5307 = vmax.f32 %v5293, 1e-20
    %v5308 = vmax.f32 %v5296, 1e-20
    %v5309 = vmax.f32 %v5301, 1e-20
    %v5310 = vmax.f32 %v5304, 1e-20
    %v5311 = vrcp.pop %v5307
    %v5312 = vrcp.pop %v5308
    %v5313 = vrcp.pop %v5309
    %v5314 = vrcp.pop %v5310
    %v5315 = vmul.f32 %v5211, %v5311
    %v5316 = vmul.f32 %v5213, %v5312
    %v5317 = vmul.f32 %v5215, %v5313
    %v5318 = vmul.f32 %v5217, %v5314
    %v5319 = vld [vmem:[#allocation16] sm:$0x1]
    %v5320 = vpack.c.bf16 %v5316, %v5315
    %v5321 = vpack.c.bf16 %v5318, %v5317
    %v5322 = vld [vmem:[%s55] sm:$0xf]
    %v5323 = vld [vmem:[%s55 + $0x4] sm:$0xf]
    %v5324 = vld [vmem:[%s55 + $0x8] sm:$0xf]
    %v5325 = vld [vmem:[%s55 + $0xc] sm:$0xf]
    %v5326 = vld [vmem:[%s55 + $0x10] sm:$0xf]
    %v5327 = vld [vmem:[%s55 + $0x14] sm:$0xf]
    %v5328 = vld [vmem:[%s55 + $0x18] sm:$0xf]
    %v5329 = vld [vmem:[%s55 + $0x1c] sm:$0xf]
    %v5338 = vunpack.c.l.b16 %v5322
    %v5339 = vunpack.c.l.b16 %v5323
    %v5340 = vunpack.c.l.b16 %v5324
    %v5341 = vunpack.c.l.b16 %v5325
    %v5342 = vunpack.c.l.b16 %v5326
    %v5343 = vunpack.c.l.b16 %v5327
    %v5344 = vunpack.c.l.b16 %v5328
    %v5345 = vunpack.c.l.b16 %v5329
    %v5346 = vpack.c.b16 %v5339, %v5338
    %v5347 = vpack.c.b16 %v5341, %v5340
    %v5348 = vpack.c.b16 %v5343, %v5342
    %v5349 = vpack.c.b16 %v5345, %v5344
    %v5355 = vsel %vm2101, %v5320, 0
    %v5358 = vsel %vm2101, %v5321, 0
    %5360 = vmatprep.subr.bf16.mxu0 0
    %5361 = vmatpush1.bf16.msra.mxu0 %v5346
    %5362 = vmatprep.subr.bf16.mxu0 0
    %5363 = vmatpush1.bf16.msra.mxu0 %v5347
    %5364 = vmatprep.subr.bf16.mxu0 0
    %5365 = vmatpush1.bf16.msra.mxu0 %v5348
    %5366 = vmatprep.subr.bf16.mxu0 0
    %5367 = vmatpush1.bf16.msra.mxu0 %v5349
    %5368 = vmatprep.subr.bf16.mxu0 0
    %5369 = vmatpush1.bf16.msra.mxu0 0
    %5370 = vmatprep.subr.bf16.mxu0 0
    %5371 = vmatpush1.bf16.msra.mxu0 0
    %5372 = vmatprep.subr.bf16.mxu0 0
    %5373 = vmatpush1.bf16.msra.mxu0 0
    %5374 = vmatprep.subr.bf16.mxu0 0
    %5375 = vmatpush1.bf16.msra.mxu0 0
    %5376 = vmatprep.subr.bf16.mxu0 0
    %5377 = vmatpush1.bf16.msra.mxu0 0
    %5378 = vmatprep.subr.bf16.mxu0 0
    %5379 = vmatpush1.bf16.msra.mxu0 0
    %5380 = vmatprep.subr.bf16.mxu0 0
    %5381 = vmatpush1.bf16.msra.mxu0 0
    %5382 = vmatprep.subr.bf16.mxu0 0
    %5383 = vmatpush1.bf16.msra.mxu0 0
    %5384 = vmatprep.subr.bf16.mxu0 0
    %5385 = vmatpush1.bf16.msra.mxu0 0
    %5386 = vmatprep.subr.bf16.mxu0 0
    %5387 = vmatpush1.bf16.msra.mxu0 0
    %5388 = vmatprep.subr.bf16.mxu0 0
    %5389 = vmatpush1.bf16.msra.mxu0 0
    %5390 = vmatprep.subr.bf16.mxu0 0
    %5391 = vmatpush1.bf16.msra.mxu0 0
    %5392 = vmatprep.mubr.bf16.mxu0 0
    %5393 = vmatmul.mubr.bf16.gmra.mrb[0].mxu0 %v5355
    %v5394 = vpop.f32.mrb[0].mxu0
    %v5395 = vadd.f32 0.0, %v5394
    %v5396 = vpop.f32.mrb[0].mxu0
    %v5397 = vpop.f32.mrb[0].mxu0
    %v5398 = vadd.f32 0.0, %v5397
    %v5399 = vpop.f32.mrb[0].mxu0
    %5400 = vmatprep.mubr.bf16.mxu0 0
    %5401 = vmatmul.mubr.bf16.gmra.mrb[0].mxu0 %v5358
    %v5402 = vpop.f32.mrb[0].mxu0
    %v5403 = vadd.f32 0.0, %v5402
    %v5404 = vpop.f32.mrb[0].mxu0
    %v5405 = vpop.f32.mrb[0].mxu0
    %v5406 = vadd.f32 0.0, %v5405
    %v5407 = vpop.f32.mrb[0].mxu0
    %5408 = vdwg.mxu0
    %s5409 = scalar_lea.vmem %s55, 32
    %v5410 = vld [vmem:[%s5409] sm:$0xf]
    %v5411 = vld [vmem:[%s5409 + $0x4] sm:$0xf]
    %v5412 = vld [vmem:[%s5409 + $0x8] sm:$0xf]
    %v5413 = vld [vmem:[%s5409 + $0xc] sm:$0xf]
    %v5414 = vld [vmem:[%s5409 + $0x10] sm:$0xf]
    %v5415 = vld [vmem:[%s5409 + $0x14] sm:$0xf]
    %v5416 = vld [vmem:[%s5409 + $0x18] sm:$0xf]
    %v5417 = vld [vmem:[%s5409 + $0x1c] sm:$0xf]
    %s5418 = scalar_lea.vmem %s55, 64
    %v5419 = vld [vmem:[%s5418] sm:$0xf]
    %v5420 = vld [vmem:[%s5418 + $0x4] sm:$0xf]
    %v5421 = vld [vmem:[%s5418 + $0x8] sm:$0xf]
    %v5422 = vld [vmem:[%s5418 + $0xc] sm:$0xf]
    %v5423 = vld [vmem:[%s5418 + $0x10] sm:$0xf]
    %v5424 = vld [vmem:[%s5418 + $0x14] sm:$0xf]
    %v5425 = vld [vmem:[%s5418 + $0x18] sm:$0xf]
    %v5426 = vld [vmem:[%s5418 + $0x1c] sm:$0xf]
    %v5435 = vunpack.c.l.b16 %v5419
    %v5436 = vunpack.c.l.b16 %v5420
    %v5437 = vunpack.c.l.b16 %v5421
    %v5438 = vunpack.c.l.b16 %v5422
    %v5439 = vunpack.c.l.b16 %v5423
    %v5440 = vunpack.c.l.b16 %v5424
    %v5441 = vunpack.c.l.b16 %v5425
    %v5442 = vunpack.c.l.b16 %v5426
    %v5443 = vpack.c.b16 %v5436, %v5435
    %v5444 = vpack.c.b16 %v5438, %v5437
    %v5445 = vpack.c.b16 %v5440, %v5439
    %v5446 = vpack.c.b16 %v5442, %v5441
    %5451 = vmatprep.subr.bf16.mxu0 0
    %5452 = vmatpush1.bf16.msra.mxu0 %v5443
    %5453 = vmatprep.subr.bf16.mxu0 0
    %5454 = vmatpush1.bf16.msra.mxu0 %v5444
    %5455 = vmatprep.subr.bf16.mxu0 0
    %5456 = vmatpush1.bf16.msra.mxu0 %v5445
    %5457 = vmatprep.subr.bf16.mxu0 0
    %5458 = vmatpush1.bf16.msra.mxu0 %v5446
    %5459 = vmatprep.subr.bf16.mxu0 0
    %5460 = vmatpush1.bf16.msra.mxu0 0
    %5461 = vmatprep.subr.bf16.mxu0 0
    %5462 = vmatpush1.bf16.msra.mxu0 0
    %5463 = vmatprep.subr.bf16.mxu0 0
    %5464 = vmatpush1.bf16.msra.mxu0 0
    %5465 = vmatprep.subr.bf16.mxu0 0
    %5466 = vmatpush1.bf16.msra.mxu0 0
    %5467 = vmatprep.subr.bf16.mxu0 0
    %5468 = vmatpush1.bf16.msra.mxu0 0
    %5469 = vmatprep.subr.bf16.mxu0 0
    %5470 = vmatpush1.bf16.msra.mxu0 0
    %5471 = vmatprep.subr.bf16.mxu0 0
    %5472 = vmatpush1.bf16.msra.mxu0 0
    %5473 = vmatprep.subr.bf16.mxu0 0
    %5474 = vmatpush1.bf16.msra.mxu0 0
    %5475 = vmatprep.subr.bf16.mxu0 0
    %5476 = vmatpush1.bf16.msra.mxu0 0
    %5477 = vmatprep.subr.bf16.mxu0 0
    %5478 = vmatpush1.bf16.msra.mxu0 0
    %5479 = vmatprep.subr.bf16.mxu0 0
    %5480 = vmatpush1.bf16.msra.mxu0 0
    %5481 = vmatprep.subr.bf16.mxu0 0
    %5482 = vmatpush1.bf16.msra.mxu0 0
    %5483 = vmatprep.mubr.bf16.mxu0 0
    %5484 = vmatmul.mubr.bf16.gmra.mrb[0].mxu0 %v5355
    %v5485 = vpop.f32.mrb[0].mxu0
    %v5486 = vadd.f32 0.0, %v5485
    %v5487 = vpop.f32.mrb[0].mxu0
    %v5488 = vpop.f32.mrb[0].mxu0
    %v5489 = vadd.f32 0.0, %v5488
    %v5490 = vpop.f32.mrb[0].mxu0
    %5491 = vmatprep.mubr.bf16.mxu0 0
    %5492 = vmatmul.mubr.bf16.gmra.mrb[0].mxu0 %v5358
    %v5493 = vpop.f32.mrb[0].mxu0
    %v5494 = vadd.f32 0.0, %v5493
    %v5495 = vpop.f32.mrb[0].mxu0
    %v5496 = vpop.f32.mrb[0].mxu0
    %v5497 = vadd.f32 0.0, %v5496
    %v5498 = vpop.f32.mrb[0].mxu0
    %5499 = vdwg.mxu0
    %v5500 = vrot.slane %v5395, 7
    %v5501 = vrot.slane %v5398, 7
    %v5502 = vrot.slane %v5403, 7
    %v5503 = vrot.slane %v5406, 7
    %v5504 = vsel %vm762, %v5502, %v5503
    %v5505 = vsel %vm762, %v5501, %v5502
    %v5506 = vsel %vm762, %v5500, %v5501
    %v5507 = vsel %vm762, %v5503, %v5500
    %v5508 = vrot.slane %v5486, 1
    %v5509 = vrot.slane %v5489, 1
    %v5510 = vrot.slane %v5494, 1
    %v5511 = vrot.slane %v5497, 1
    %v5512 = vsel %vm771, %v5510, %v5511
    %v5513 = vsel %vm771, %v5509, %v5510
    %v5514 = vsel %vm771, %v5508, %v5509
    %v5515 = vsel %vm771, %v5511, %v5508
    %v5516 = vmul.f32 %v779, %v5507
    %v5517 = vmul.f32 %v784, %v5506
    %v5518 = vmul.f32 %v789, %v5505
    %v5519 = vmul.f32 %v794, %v5504
    %v5528 = vunpack.c.l.b16 %v5410
    %v5529 = vunpack.c.l.b16 %v5411
    %v5530 = vunpack.c.l.b16 %v5412
    %v5531 = vunpack.c.l.b16 %v5413
    %v5532 = vunpack.c.l.b16 %v5414
    %v5533 = vunpack.c.l.b16 %v5415
    %v5534 = vunpack.c.l.b16 %v5416
    %v5535 = vunpack.c.l.b16 %v5417
    %v5536 = vpack.c.b16 %v5529, %v5528
    %v5537 = vpack.c.b16 %v5531, %v5530
    %v5538 = vpack.c.b16 %v5533, %v5532
    %v5539 = vpack.c.b16 %v5535, %v5534
    %5544 = vmatprep.subr.bf16.mxu0 0
    %5545 = vmatpush1.bf16.msra.mxu0 %v5536
    %5546 = vmatprep.subr.bf16.mxu0 0
    %5547 = vmatpush1.bf16.msra.mxu0 %v5537
    %5548 = vmatprep.subr.bf16.mxu0 0
    %5549 = vmatpush1.bf16.msra.mxu0 %v5538
    %5550 = vmatprep.subr.bf16.mxu0 0
    %5551 = vmatpush1.bf16.msra.mxu0 %v5539
    %5552 = vmatprep.subr.bf16.mxu0 0
    %5553 = vmatpush1.bf16.msra.mxu0 0
    %5554 = vmatprep.subr.bf16.mxu0 0
    %5555 = vmatpush1.bf16.msra.mxu0 0
    %5556 = vmatprep.subr.bf16.mxu0 0
    %5557 = vmatpush1.bf16.msra.mxu0 0
    %5558 = vmatprep.subr.bf16.mxu0 0
    %5559 = vmatpush1.bf16.msra.mxu0 0
    %5560 = vmatprep.subr.bf16.mxu0 0
    %5561 = vmatpush1.bf16.msra.mxu0 0
    %5562 = vmatprep.subr.bf16.mxu0 0
    %5563 = vmatpush1.bf16.msra.mxu0 0
    %5564 = vmatprep.subr.bf16.mxu0 0
    %5565 = vmatpush1.bf16.msra.mxu0 0
    %5566 = vmatprep.subr.bf16.mxu0 0
    %5567 = vmatpush1.bf16.msra.mxu0 0
    %5568 = vmatprep.subr.bf16.mxu0 0
    %5569 = vmatpush1.bf16.msra.mxu0 0
    %5570 = vmatprep.subr.bf16.mxu0 0
    %5571 = vmatpush1.bf16.msra.mxu0 0
    %5572 = vmatprep.subr.bf16.mxu0 0
    %5573 = vmatpush1.bf16.msra.mxu0 0
    %5574 = vmatprep.subr.bf16.mxu0 0
    %5575 = vmatpush1.bf16.msra.mxu0 0
    %5576 = vmatprep.mubr.bf16.mxu0 0
    %5577 = vmatmul.mubr.bf16.gmra.mrb[0].mxu0 %v5355
    %v5578 = vpop.f32.mrb[0].mxu0
    %v5579 = vadd.f32 %v5516, %v5578
    %v5580 = vpop.f32.mrb[0].mxu0
    %v5581 = vpop.f32.mrb[0].mxu0
    %v5582 = vadd.f32 %v5517, %v5581
    %v5583 = vpop.f32.mrb[0].mxu0
    %5584 = vmatprep.mubr.bf16.mxu0 0
    %5585 = vmatmul.mubr.bf16.gmra.mrb[0].mxu0 %v5358
    %v5586 = vpop.f32.mrb[0].mxu0
    %v5587 = vadd.f32 %v5518, %v5586
    %v5588 = vpop.f32.mrb[0].mxu0
    %v5589 = vpop.f32.mrb[0].mxu0
    %v5590 = vadd.f32 %v5519, %v5589
    %v5591 = vpop.f32.mrb[0].mxu0
    %5592 = vdwg.mxu0
    %v5593 = vmul.f32 %v900, %v5514
    %v5594 = vmul.f32 %v905, %v5513
    %v5595 = vmul.f32 %v910, %v5512
    %v5596 = vmul.f32 %v915, %v5515
    %v5597 = vadd.f32 %v5579, %v5593
    %v5598 = vadd.f32 %v5582, %v5594
    %v5599 = vadd.f32 %v5587, %v5595
    %v5600 = vadd.f32 %v5590, %v5596
    %v5602 = vlaneseq
    %v5603 = vshrl.u32 %v5602, 7
    %v5604 = vsub.s32 0, %v5603
    %v5605 = vrot.slane %v5319, %v5604
    %v5607 = vadd.f32 %v5597, %v5605
    %v5608 = vadd.f32 %v5598, %v5605
    %v5609 = vadd.f32 %v5599, %v5605
    %v5610 = vadd.f32 %v5600, %v5605
    %v5611 = vmax.f32 %v5607, 0.0
    %v5612 = vmax.f32 %v5608, 0.0
    %v5613 = vmax.f32 %v5609, 0.0
    %v5614 = vmax.f32 %v5610, 0.0
    %v5615 = vld [vmem:[%s61] sm:$0x1]
    %s5616 = scalar_lea.vmem %s61, 1
    %v5617 = vld [vmem:[%s5616] sm:$0x1]
    %v5618 = vadd.f32 %v5611, %v5612
    %v5619 = vadd.f32 %v5618, %v5613
    %v5620 = vadd.f32 %v5619, %v5614
    %v5621 = vrot.slane %v5620, 4
    %v5622 = vadd.f32 %v5620, %v5621
    %v5623 = vrot.slane %v5622, 2
    %v5624 = vadd.f32 %v5622, %v5623
    %v5625 = vrot.slane %v5624, 1
    %v5626 = vadd.f32 %v5624, %v5625
    %v5627 = vmul.f32 %v5611, %v5611
    %v5628 = vmul.f32 %v5612, %v5612
    %v5629 = vmul.f32 %v5613, %v5613
    %v5630 = vmul.f32 %v5614, %v5614
    %v5631 = vadd.f32 %v5627, %v5628
    %v5632 = vadd.f32 %v5631, %v5629
    %v5633 = vadd.f32 %v5632, %v5630
    %v5634 = vrot.slane %v5633, 4
    %v5635 = vadd.f32 %v5633, %v5634
    %v5636 = vrot.slane %v5635, 2
    %v5637 = vadd.f32 %v5635, %v5636
    %v5638 = vrot.slane %v5637, 1
    %v5639 = vadd.f32 %v5637, %v5638
    %v5640 = vpack.c.bf16 %v5626, %v5626
    %5641 = vmatprep.subr.bf16.mxu0 0
    %5642 = vmatpush1.bf16.msra.mxu0 %v997
    %5643 = vmatprep.subr.bf16.mxu0 0
    %5644 = vmatpush1.bf16.msra.mxu0 %v998
    %5645 = vmatprep.subr.bf16.mxu0 0
    %5646 = vmatpush1.bf16.msra.mxu0 %v999
    %5647 = vmatprep.subr.bf16.mxu0 0
    %5648 = vmatpush1.bf16.msra.mxu0 %v1000
    %5649 = vmatprep.subr.bf16.mxu0 0
    %5650 = vmatpush1.bf16.msra.mxu0 %v1001
    %5651 = vmatprep.subr.bf16.mxu0 0
    %5652 = vmatpush1.bf16.msra.mxu0 %v1002
    %5653 = vmatprep.subr.bf16.mxu0 0
    %5654 = vmatpush1.bf16.msra.mxu0 %v1003
    %5655 = vmatprep.subr.bf16.mxu0 0
    %5656 = vmatpush1.bf16.msra.mxu0 %v1004
    %5657 = vmatprep.subr.bf16.mxu0 0
    %5658 = vmatpush1.bf16.msra.mxu0 0
    %5659 = vmatprep.subr.bf16.mxu0 0
    %5660 = vmatpush1.bf16.msra.mxu0 0
    %5661 = vmatprep.subr.bf16.mxu0 0
    %5662 = vmatpush1.bf16.msra.mxu0 0
    %5663 = vmatprep.subr.bf16.mxu0 0
    %5664 = vmatpush1.bf16.msra.mxu0 0
    %5665 = vmatprep.subr.bf16.mxu0 0
    %5666 = vmatpush1.bf16.msra.mxu0 0
    %5667 = vmatprep.subr.bf16.mxu0 0
    %5668 = vmatpush1.bf16.msra.mxu0 0
    %5669 = vmatprep.subr.bf16.mxu0 0
    %5670 = vmatpush1.bf16.msra.mxu0 0
    %5671 = vmatprep.subr.bf16.mxu0 0
    %5672 = vmatpush1.bf16.msra.mxu0 0
    %5673 = vmatprep.mubr.bf16.mxu0 0
    %5674 = vmatmul.mubr.bf16.gmra.mrb[0].mxu0 %v5640
    %v5675 = vpop.f32.mrb[0].mxu0
    %v5676 = vadd.f32 0.0, %v5675
    %v5677 = vpop.f32.mrb[0].mxu0
    %v5678 = vpop.f32.mrb[0].mxu0
    %v5679 = vpop.f32.mrb[0].mxu0
    %5680 = vdwg.mxu0
    %v5681 = vpack.c.bf16 %v5639, %v5639
    %5682 = vmatprep.subr.bf16.mxu0 0
    %5683 = vmatpush1.bf16.msra.mxu0 %v997
    %5684 = vmatprep.subr.bf16.mxu0 0
    %5685 = vmatpush1.bf16.msra.mxu0 %v998
    %5686 = vmatprep.subr.bf16.mxu0 0
    %5687 = vmatpush1.bf16.msra.mxu0 %v999
    %5688 = vmatprep.subr.bf16.mxu0 0
    %5689 = vmatpush1.bf16.msra.mxu0 %v1000
    %5690 = vmatprep.subr.bf16.mxu0 0
    %5691 = vmatpush1.bf16.msra.mxu0 %v1001
    %5692 = vmatprep.subr.bf16.mxu0 0
    %5693 = vmatpush1.bf16.msra.mxu0 %v1002
    %5694 = vmatprep.subr.bf16.mxu0 0
    %5695 = vmatpush1.bf16.msra.mxu0 %v1003
    %5696 = vmatprep.subr.bf16.mxu0 0
    %5697 = vmatpush1.bf16.msra.mxu0 %v1004
    %5698 = vmatprep.subr.bf16.mxu0 0
    %5699 = vmatpush1.bf16.msra.mxu0 0
    %5700 = vmatprep.subr.bf16.mxu0 0
    %5701 = vmatpush1.bf16.msra.mxu0 0
    %5702 = vmatprep.subr.bf16.mxu0 0
    %5703 = vmatpush1.bf16.msra.mxu0 0
    %5704 = vmatprep.subr.bf16.mxu0 0
    %5705 = vmatpush1.bf16.msra.mxu0 0
    %5706 = vmatprep.subr.bf16.mxu0 0
    %5707 = vmatpush1.bf16.msra.mxu0 0
    %5708 = vmatprep.subr.bf16.mxu0 0
    %5709 = vmatpush1.bf16.msra.mxu0 0
    %5710 = vmatprep.subr.bf16.mxu0 0
    %5711 = vmatpush1.bf16.msra.mxu0 0
    %5712 = vmatprep.subr.bf16.mxu0 0
    %5713 = vmatpush1.bf16.msra.mxu0 0
    %5714 = vmatprep.mubr.bf16.mxu0 0
    %5715 = vmatmul.mubr.bf16.gmra.mrb[0].mxu0 %v5681
    %v5716 = vpop.f32.mrb[0].mxu0
    %v5717 = vadd.f32 0.0, %v5716
    %v5718 = vpop.f32.mrb[0].mxu0
    %v5719 = vpop.f32.mrb[0].mxu0
    %v5720 = vpop.f32.mrb[0].mxu0
    %5721 = vdwg.mxu0
    %v5722 = vmul.f32 %v5676, 0.001953125
    %v5723 = vmul.f32 %v5717, 0.001953125
    %v5724 = vmul.f32 %v5722, %v5722
    %v5725 = vsub.f32 %v5723, %v5724
    %v5726 = vmax.f32 %v5725, 0.0
    %v5727 = vadd.f32 %v5726, 1e-05
    %v5728 = vrsqrt.pop %v5727
    %v5729 = vmul.f32 %v5615, %v5728
    %v5730 = vmul.f32 %v5722, %v5729
    %v5731 = vsub.f32 %v5617, %v5730
    %v5732 = vpack.c.bf16 %v5729, %v5729
    %v5734 = vsel %vm1105, %v5732, 0
    %5736 = vmatprep.subr.bf16.mxu0 0
    %5737 = vmatpush1.bf16.msra.mxu0 %v1111
    %5738 = vmatprep.subr.bf16.mxu0 0
    %5739 = vmatpush1.bf16.msra.mxu0 0
    %5740 = vmatprep.subr.bf16.mxu0 0
    %5741 = vmatpush1.bf16.msra.mxu0 0
    %5742 = vmatprep.subr.bf16.mxu0 0
    %5743 = vmatpush1.bf16.msra.mxu0 0
    %5744 = vmatprep.subr.bf16.mxu0 0
    %5745 = vmatpush1.bf16.msra.mxu0 0
    %5746 = vmatprep.subr.bf16.mxu0 0
    %5747 = vmatpush1.bf16.msra.mxu0 0
    %5748 = vmatprep.subr.bf16.mxu0 0
    %5749 = vmatpush1.bf16.msra.mxu0 0
    %5750 = vmatprep.subr.bf16.mxu0 0
    %5751 = vmatpush1.bf16.msra.mxu0 0
    %5752 = vmatprep.subr.bf16.mxu0 0
    %5753 = vmatpush1.bf16.msra.mxu0 0
    %5754 = vmatprep.subr.bf16.mxu0 0
    %5755 = vmatpush1.bf16.msra.mxu0 0
    %5756 = vmatprep.subr.bf16.mxu0 0
    %5757 = vmatpush1.bf16.msra.mxu0 0
    %5758 = vmatprep.subr.bf16.mxu0 0
    %5759 = vmatpush1.bf16.msra.mxu0 0
    %5760 = vmatprep.subr.bf16.mxu0 0
    %5761 = vmatpush1.bf16.msra.mxu0 0
    %5762 = vmatprep.subr.bf16.mxu0 0
    %5763 = vmatpush1.bf16.msra.mxu0 0
    %5764 = vmatprep.subr.bf16.mxu0 0
    %5765 = vmatpush1.bf16.msra.mxu0 0
    %5766 = vmatprep.subr.bf16.mxu0 0
    %5767 = vmatpush1.bf16.msra.mxu0 0
    %5768 = vmatprep.mubr.bf16.mxu0 0
    %5769 = vmatmul.mubr.bf16.gmra.mrb[0].mxu0 %v5734
    %v5770 = vpop.f32.mrb[0].mxu0
    %v5771 = vadd.f32 0.0, %v5770
    %v5772 = vpop.f32.mrb[0].mxu0
    %v5773 = vpop.f32.mrb[0].mxu0
    %v5774 = vpop.f32.mrb[0].mxu0
    %5775 = vdwg.mxu0
    %v5776 = vpack.c.bf16 %v5731, %v5731
    %v5778 = vsel %vm1105, %v5776, 0
    %5780 = vmatprep.subr.bf16.mxu0 0
    %5781 = vmatpush1.bf16.msra.mxu0 %v1111
    %5782 = vmatprep.subr.bf16.mxu0 0
    %5783 = vmatpush1.bf16.msra.mxu0 0
    %5784 = vmatprep.subr.bf16.mxu0 0
    %5785 = vmatpush1.bf16.msra.mxu0 0
    %5786 = vmatprep.subr.bf16.mxu0 0
    %5787 = vmatpush1.bf16.msra.mxu0 0
    %5788 = vmatprep.subr.bf16.mxu0 0
    %5789 = vmatpush1.bf16.msra.mxu0 0
    %5790 = vmatprep.subr.bf16.mxu0 0
    %5791 = vmatpush1.bf16.msra.mxu0 0
    %5792 = vmatprep.subr.bf16.mxu0 0
    %5793 = vmatpush1.bf16.msra.mxu0 0
    %5794 = vmatprep.subr.bf16.mxu0 0
    %5795 = vmatpush1.bf16.msra.mxu0 0
    %5796 = vmatprep.subr.bf16.mxu0 0
    %5797 = vmatpush1.bf16.msra.mxu0 0
    %5798 = vmatprep.subr.bf16.mxu0 0
    %5799 = vmatpush1.bf16.msra.mxu0 0
    %5800 = vmatprep.subr.bf16.mxu0 0
    %5801 = vmatpush1.bf16.msra.mxu0 0
    %5802 = vmatprep.subr.bf16.mxu0 0
    %5803 = vmatpush1.bf16.msra.mxu0 0
    %5804 = vmatprep.subr.bf16.mxu0 0
    %5805 = vmatpush1.bf16.msra.mxu0 0
    %5806 = vmatprep.subr.bf16.mxu0 0
    %5807 = vmatpush1.bf16.msra.mxu0 0
    %5808 = vmatprep.subr.bf16.mxu0 0
    %5809 = vmatpush1.bf16.msra.mxu0 0
    %5810 = vmatprep.subr.bf16.mxu0 0
    %5811 = vmatpush1.bf16.msra.mxu0 0
    %5812 = vmatprep.mubr.bf16.mxu0 0
    %5813 = vmatmul.mubr.bf16.gmra.mrb[0].mxu0 %v5778
    %v5814 = vpop.f32.mrb[0].mxu0
    %v5815 = vadd.f32 0.0, %v5814
    %v5816 = vpop.f32.mrb[0].mxu0
    %v5817 = vpop.f32.mrb[0].mxu0
    %v5818 = vpop.f32.mrb[0].mxu0
    %5819 = vdwg.mxu0
    %v5820 = vlaneseq
    %v5821 = vshrl.u32 %v5820, 7
    %v5822 = vsub.s32 0, %v5821
    %v5823 = vrot.slane %v5771, %v5822
    %v5824 = vmul.f32 %v5611, %v5823
    %v5825 = vmul.f32 %v5612, %v5823
    %v5826 = vmul.f32 %v5613, %v5823
    %v5827 = vmul.f32 %v5614, %v5823
    %v5828 = vlaneseq
    %v5829 = vshrl.u32 %v5828, 7
    %v5830 = vsub.s32 0, %v5829
    %v5831 = vrot.slane %v5815, %v5830
    %v5832 = vadd.f32 %v5824, %v5831
    %v5833 = vadd.f32 %v5825, %v5831
    %v5834 = vadd.f32 %v5826, %v5831
    %v5835 = vadd.f32 %v5827, %v5831
    %s5836 = scalar_lea.vmem [#allocation16], 1
    %v5837 = vld [vmem:[%s5836] sm:$0x1]
    %v5838 = vpack.c.bf16 %v5833, %v5832
    %v5839 = vpack.c.bf16 %v5835, %v5834
    %v5840 = vld [vmem:[%s57] sm:$0xf]
    %v5841 = vld [vmem:[%s57 + $0x4] sm:$0xf]
    %v5842 = vld [vmem:[%s57 + $0x8] sm:$0xf]
    %v5843 = vld [vmem:[%s57 + $0xc] sm:$0xf]
    %v5844 = vld [vmem:[%s57 + $0x10] sm:$0xf]
    %v5845 = vld [vmem:[%s57 + $0x14] sm:$0xf]
    %v5846 = vld [vmem:[%s57 + $0x18] sm:$0xf]
    %v5847 = vld [vmem:[%s57 + $0x1c] sm:$0xf]
    %v5848 = vld [vmem:[%s57 + $0x20] sm:$0xf]
    %v5849 = vld [vmem:[%s57 + $0x24] sm:$0xf]
    %v5850 = vld [vmem:[%s57 + $0x28] sm:$0xf]
    %v5851 = vld [vmem:[%s57 + $0x2c] sm:$0xf]
    %v5852 = vld [vmem:[%s57 + $0x30] sm:$0xf]
    %v5853 = vld [vmem:[%s57 + $0x34] sm:$0xf]
    %v5854 = vld [vmem:[%s57 + $0x38] sm:$0xf]
    %v5855 = vld [vmem:[%s57 + $0x3c] sm:$0xf]
    %v5872 = vunpack.c.l.b16 %v5840
    %v5873 = vunpack.c.l.b16 %v5841
    %v5874 = vunpack.c.l.b16 %v5842
    %v5875 = vunpack.c.l.b16 %v5843
    %v5876 = vunpack.c.l.b16 %v5844
    %v5877 = vunpack.c.l.b16 %v5845
    %v5878 = vunpack.c.l.b16 %v5846
    %v5879 = vunpack.c.l.b16 %v5847
    %v5880 = vunpack.c.l.b16 %v5848
    %v5881 = vunpack.c.l.b16 %v5849
    %v5882 = vunpack.c.l.b16 %v5850
    %v5883 = vunpack.c.l.b16 %v5851
    %v5884 = vunpack.c.l.b16 %v5852
    %v5885 = vunpack.c.l.b16 %v5853
    %v5886 = vunpack.c.l.b16 %v5854
    %v5887 = vunpack.c.l.b16 %v5855
    %v5888 = vpack.c.b16 %v5873, %v5872
    %v5889 = vpack.c.b16 %v5875, %v5874
    %v5890 = vpack.c.b16 %v5877, %v5876
    %v5891 = vpack.c.b16 %v5879, %v5878
    %v5892 = vpack.c.b16 %v5881, %v5880
    %v5893 = vpack.c.b16 %v5883, %v5882
    %v5894 = vpack.c.b16 %v5885, %v5884
    %v5895 = vpack.c.b16 %v5887, %v5886
    %5904 = vmatprep.subr.bf16.mxu0 0
    %5905 = vmatpush1.bf16.msra.mxu0 %v5888
    %5906 = vmatprep.subr.bf16.mxu0 0
    %5907 = vmatpush1.bf16.msra.mxu0 %v5889
    %5908 = vmatprep.subr.bf16.mxu0 0
    %5909 = vmatpush1.bf16.msra.mxu0 %v5890
    %5910 = vmatprep.subr.bf16.mxu0 0
    %5911 = vmatpush1.bf16.msra.mxu0 %v5891
    %5912 = vmatprep.subr.bf16.mxu0 0
    %5913 = vmatpush1.bf16.msra.mxu0 %v5892
    %5914 = vmatprep.subr.bf16.mxu0 0
    %5915 = vmatpush1.bf16.msra.mxu0 %v5893
    %5916 = vmatprep.subr.bf16.mxu0 0
    %5917 = vmatpush1.bf16.msra.mxu0 %v5894
    %5918 = vmatprep.subr.bf16.mxu0 0
    %5919 = vmatpush1.bf16.msra.mxu0 %v5895
    %5920 = vmatprep.subr.bf16.mxu0 0
    %5921 = vmatpush1.bf16.msra.mxu0 0
    %5922 = vmatprep.subr.bf16.mxu0 0
    %5923 = vmatpush1.bf16.msra.mxu0 0
    %5924 = vmatprep.subr.bf16.mxu0 0
    %5925 = vmatpush1.bf16.msra.mxu0 0
    %5926 = vmatprep.subr.bf16.mxu0 0
    %5927 = vmatpush1.bf16.msra.mxu0 0
    %5928 = vmatprep.subr.bf16.mxu0 0
    %5929 = vmatpush1.bf16.msra.mxu0 0
    %5930 = vmatprep.subr.bf16.mxu0 0
    %5931 = vmatpush1.bf16.msra.mxu0 0
    %5932 = vmatprep.subr.bf16.mxu0 0
    %5933 = vmatpush1.bf16.msra.mxu0 0
    %5934 = vmatprep.subr.bf16.mxu0 0
    %5935 = vmatpush1.bf16.msra.mxu0 0
    %5936 = vmatprep.mubr.bf16.mxu0 0
    %5937 = vmatmul.mubr.bf16.gmra.mrb[0].mxu0 %v5838
    %v5938 = vpop.f32.mrb[0].mxu0
    %v5939 = vadd.f32 0.0, %v5938
    %v5940 = vpop.f32.mrb[0].mxu0
    %v5941 = vpop.f32.mrb[0].mxu0
    %v5942 = vadd.f32 0.0, %v5941
    %v5943 = vpop.f32.mrb[0].mxu0
    %5944 = vmatprep.mubr.bf16.mxu0 0
    %5945 = vmatmul.mubr.bf16.gmra.mrb[0].mxu0 %v5839
    %v5946 = vpop.f32.mrb[0].mxu0
    %v5947 = vadd.f32 0.0, %v5946
    %v5948 = vpop.f32.mrb[0].mxu0
    %v5949 = vpop.f32.mrb[0].mxu0
    %v5950 = vadd.f32 0.0, %v5949
    %v5951 = vpop.f32.mrb[0].mxu0
    %5952 = vdwg.mxu0
    %s5953 = scalar_lea.vmem %s57, 64
    %v5954 = vld [vmem:[%s5953] sm:$0xf]
    %v5955 = vld [vmem:[%s5953 + $0x4] sm:$0xf]
    %v5956 = vld [vmem:[%s5953 + $0x8] sm:$0xf]
    %v5957 = vld [vmem:[%s5953 + $0xc] sm:$0xf]
    %v5958 = vld [vmem:[%s5953 + $0x10] sm:$0xf]
    %v5959 = vld [vmem:[%s5953 + $0x14] sm:$0xf]
    %v5960 = vld [vmem:[%s5953 + $0x18] sm:$0xf]
    %v5961 = vld [vmem:[%s5953 + $0x1c] sm:$0xf]
    %v5962 = vld [vmem:[%s5953 + $0x20] sm:$0xf]
    %v5963 = vld [vmem:[%s5953 + $0x24] sm:$0xf]
    %v5964 = vld [vmem:[%s5953 + $0x28] sm:$0xf]
    %v5965 = vld [vmem:[%s5953 + $0x2c] sm:$0xf]
    %v5966 = vld [vmem:[%s5953 + $0x30] sm:$0xf]
    %v5967 = vld [vmem:[%s5953 + $0x34] sm:$0xf]
    %v5968 = vld [vmem:[%s5953 + $0x38] sm:$0xf]
    %v5969 = vld [vmem:[%s5953 + $0x3c] sm:$0xf]
    %s5970 = scalar_lea.vmem %s57, 128
    %v5971 = vld [vmem:[%s5970] sm:$0xf]
    %v5972 = vld [vmem:[%s5970 + $0x4] sm:$0xf]
    %v5973 = vld [vmem:[%s5970 + $0x8] sm:$0xf]
    %v5974 = vld [vmem:[%s5970 + $0xc] sm:$0xf]
    %v5975 = vld [vmem:[%s5970 + $0x10] sm:$0xf]
    %v5976 = vld [vmem:[%s5970 + $0x14] sm:$0xf]
    %v5977 = vld [vmem:[%s5970 + $0x18] sm:$0xf]
    %v5978 = vld [vmem:[%s5970 + $0x1c] sm:$0xf]
    %v5979 = vld [vmem:[%s5970 + $0x20] sm:$0xf]
    %v5980 = vld [vmem:[%s5970 + $0x24] sm:$0xf]
    %v5981 = vld [vmem:[%s5970 + $0x28] sm:$0xf]
    %v5982 = vld [vmem:[%s5970 + $0x2c] sm:$0xf]
    %v5983 = vld [vmem:[%s5970 + $0x30] sm:$0xf]
    %v5984 = vld [vmem:[%s5970 + $0x34] sm:$0xf]
    %v5985 = vld [vmem:[%s5970 + $0x38] sm:$0xf]
    %v5986 = vld [vmem:[%s5970 + $0x3c] sm:$0xf]
    %v6003 = vunpack.c.l.b16 %v5971
    %v6004 = vunpack.c.l.b16 %v5972
    %v6005 = vunpack.c.l.b16 %v5973
    %v6006 = vunpack.c.l.b16 %v5974
    %v6007 = vunpack.c.l.b16 %v5975
    %v6008 = vunpack.c.l.b16 %v5976
    %v6009 = vunpack.c.l.b16 %v5977
    %v6010 = vunpack.c.l.b16 %v5978
    %v6011 = vunpack.c.l.b16 %v5979
    %v6012 = vunpack.c.l.b16 %v5980
    %v6013 = vunpack.c.l.b16 %v5981
    %v6014 = vunpack.c.l.b16 %v5982
    %v6015 = vunpack.c.l.b16 %v5983
    %v6016 = vunpack.c.l.b16 %v5984
    %v6017 = vunpack.c.l.b16 %v5985
    %v6018 = vunpack.c.l.b16 %v5986
    %v6019 = vpack.c.b16 %v6004, %v6003
    %v6020 = vpack.c.b16 %v6006, %v6005
    %v6021 = vpack.c.b16 %v6008, %v6007
    %v6022 = vpack.c.b16 %v6010, %v6009
    %v6023 = vpack.c.b16 %v6012, %v6011
    %v6024 = vpack.c.b16 %v6014, %v6013
    %v6025 = vpack.c.b16 %v6016, %v6015
    %v6026 = vpack.c.b16 %v6018, %v6017
    %6035 = vmatprep.subr.bf16.mxu0 0
    %6036 = vmatpush1.bf16.msra.mxu0 %v6019
    %6037 = vmatprep.subr.bf16.mxu0 0
    %6038 = vmatpush1.bf16.msra.mxu0 %v6020
    %6039 = vmatprep.subr.bf16.mxu0 0
    %6040 = vmatpush1.bf16.msra.mxu0 %v6021
    %6041 = vmatprep.subr.bf16.mxu0 0
    %6042 = vmatpush1.bf16.msra.mxu0 %v6022
    %6043 = vmatprep.subr.bf16.mxu0 0
    %6044 = vmatpush1.bf16.msra.mxu0 %v6023
    %6045 = vmatprep.subr.bf16.mxu0 0
    %6046 = vmatpush1.bf16.msra.mxu0 %v6024
    %6047 = vmatprep.subr.bf16.mxu0 0
    %6048 = vmatpush1.bf16.msra.mxu0 %v6025
    %6049 = vmatprep.subr.bf16.mxu0 0
    %6050 = vmatpush1.bf16.msra.mxu0 %v6026
    %6051 = vmatprep.subr.bf16.mxu0 0
    %6052 = vmatpush1.bf16.msra.mxu0 0
    %6053 = vmatprep.subr.bf16.mxu0 0
    %6054 = vmatpush1.bf16.msra.mxu0 0
    %6055 = vmatprep.subr.bf16.mxu0 0
    %6056 = vmatpush1.bf16.msra.mxu0 0
    %6057 = vmatprep.subr.bf16.mxu0 0
    %6058 = vmatpush1.bf16.msra.mxu0 0
    %6059 = vmatprep.subr.bf16.mxu0 0
    %6060 = vmatpush1.bf16.msra.mxu0 0
    %6061 = vmatprep.subr.bf16.mxu0 0
    %6062 = vmatpush1.bf16.msra.mxu0 0
    %6063 = vmatprep.subr.bf16.mxu0 0
    %6064 = vmatpush1.bf16.msra.mxu0 0
    %6065 = vmatprep.subr.bf16.mxu0 0
    %6066 = vmatpush1.bf16.msra.mxu0 0
    %6067 = vmatprep.mubr.bf16.mxu0 0
    %6068 = vmatmul.mubr.bf16.gmra.mrb[0].mxu0 %v5838
    %v6069 = vpop.f32.mrb[0].mxu0
    %v6070 = vadd.f32 0.0, %v6069
    %v6071 = vpop.f32.mrb[0].mxu0
    %v6072 = vpop.f32.mrb[0].mxu0
    %v6073 = vadd.f32 0.0, %v6072
    %v6074 = vpop.f32.mrb[0].mxu0
    %6075 = vmatprep.mubr.bf16.mxu0 0
    %6076 = vmatmul.mubr.bf16.gmra.mrb[0].mxu0 %v5839
    %v6077 = vpop.f32.mrb[0].mxu0
    %v6078 = vadd.f32 0.0, %v6077
    %v6079 = vpop.f32.mrb[0].mxu0
    %v6080 = vpop.f32.mrb[0].mxu0
    %v6081 = vadd.f32 0.0, %v6080
    %v6082 = vpop.f32.mrb[0].mxu0
    %6083 = vdwg.mxu0
    %v6084 = vrot.slane %v5939, 7
    %v6085 = vrot.slane %v5942, 7
    %v6086 = vrot.slane %v5947, 7
    %v6087 = vrot.slane %v5950, 7
    %v6088 = vsel %vm762, %v6086, %v6087
    %v6089 = vsel %vm762, %v6085, %v6086
    %v6090 = vsel %vm762, %v6084, %v6085
    %v6091 = vsel %vm762, %v6087, %v6084
    %v6092 = vrot.slane %v6070, 1
    %v6093 = vrot.slane %v6073, 1
    %v6094 = vrot.slane %v6078, 1
    %v6095 = vrot.slane %v6081, 1
    %v6096 = vsel %vm771, %v6094, %v6095
    %v6097 = vsel %vm771, %v6093, %v6094
    %v6098 = vsel %vm771, %v6092, %v6093
    %v6099 = vsel %vm771, %v6095, %v6092
    %v6100 = vmul.f32 %v779, %v6091
    %v6101 = vmul.f32 %v784, %v6090
    %v6102 = vmul.f32 %v789, %v6089
    %v6103 = vmul.f32 %v794, %v6088
    %v6120 = vunpack.c.l.b16 %v5954
    %v6121 = vunpack.c.l.b16 %v5955
    %v6122 = vunpack.c.l.b16 %v5956
    %v6123 = vunpack.c.l.b16 %v5957
    %v6124 = vunpack.c.l.b16 %v5958
    %v6125 = vunpack.c.l.b16 %v5959
    %v6126 = vunpack.c.l.b16 %v5960
    %v6127 = vunpack.c.l.b16 %v5961
    %v6128 = vunpack.c.l.b16 %v5962
    %v6129 = vunpack.c.l.b16 %v5963
    %v6130 = vunpack.c.l.b16 %v5964
    %v6131 = vunpack.c.l.b16 %v5965
    %v6132 = vunpack.c.l.b16 %v5966
    %v6133 = vunpack.c.l.b16 %v5967
    %v6134 = vunpack.c.l.b16 %v5968
    %v6135 = vunpack.c.l.b16 %v5969
    %v6136 = vpack.c.b16 %v6121, %v6120
    %v6137 = vpack.c.b16 %v6123, %v6122
    %v6138 = vpack.c.b16 %v6125, %v6124
    %v6139 = vpack.c.b16 %v6127, %v6126
    %v6140 = vpack.c.b16 %v6129, %v6128
    %v6141 = vpack.c.b16 %v6131, %v6130
    %v6142 = vpack.c.b16 %v6133, %v6132
    %v6143 = vpack.c.b16 %v6135, %v6134
    %6152 = vmatprep.subr.bf16.mxu0 0
    %6153 = vmatpush1.bf16.msra.mxu0 %v6136
    %6154 = vmatprep.subr.bf16.mxu0 0
    %6155 = vmatpush1.bf16.msra.mxu0 %v6137
    %6156 = vmatprep.subr.bf16.mxu0 0
    %6157 = vmatpush1.bf16.msra.mxu0 %v6138
    %6158 = vmatprep.subr.bf16.mxu0 0
    %6159 = vmatpush1.bf16.msra.mxu0 %v6139
    %6160 = vmatprep.subr.bf16.mxu0 0
    %6161 = vmatpush1.bf16.msra.mxu0 %v6140
    %6162 = vmatprep.subr.bf16.mxu0 0
    %6163 = vmatpush1.bf16.msra.mxu0 %v6141
    %6164 = vmatprep.subr.bf16.mxu0 0
    %6165 = vmatpush1.bf16.msra.mxu0 %v6142
    %6166 = vmatprep.subr.bf16.mxu0 0
    %6167 = vmatpush1.bf16.msra.mxu0 %v6143
    %6168 = vmatprep.subr.bf16.mxu0 0
    %6169 = vmatpush1.bf16.msra.mxu0 0
    %6170 = vmatprep.subr.bf16.mxu0 0
    %6171 = vmatpush1.bf16.msra.mxu0 0
    %6172 = vmatprep.subr.bf16.mxu0 0
    %6173 = vmatpush1.bf16.msra.mxu0 0
    %6174 = vmatprep.subr.bf16.mxu0 0
    %6175 = vmatpush1.bf16.msra.mxu0 0
    %6176 = vmatprep.subr.bf16.mxu0 0
    %6177 = vmatpush1.bf16.msra.mxu0 0
    %6178 = vmatprep.subr.bf16.mxu0 0
    %6179 = vmatpush1.bf16.msra.mxu0 0
    %6180 = vmatprep.subr.bf16.mxu0 0
    %6181 = vmatpush1.bf16.msra.mxu0 0
    %6182 = vmatprep.subr.bf16.mxu0 0
    %6183 = vmatpush1.bf16.msra.mxu0 0
    %6184 = vmatprep.mubr.bf16.mxu0 0
    %6185 = vmatmul.mubr.bf16.gmra.mrb[0].mxu0 %v5838
    %v6186 = vpop.f32.mrb[0].mxu0
    %v6187 = vadd.f32 %v6100, %v6186
    %v6188 = vpop.f32.mrb[0].mxu0
    %v6189 = vpop.f32.mrb[0].mxu0
    %v6190 = vadd.f32 %v6101, %v6189
    %v6191 = vpop.f32.mrb[0].mxu0
    %6192 = vmatprep.mubr.bf16.mxu0 0
    %6193 = vmatmul.mubr.bf16.gmra.mrb[0].mxu0 %v5839
    %v6194 = vpop.f32.mrb[0].mxu0
    %v6195 = vadd.f32 %v6102, %v6194
    %v6196 = vpop.f32.mrb[0].mxu0
    %v6197 = vpop.f32.mrb[0].mxu0
    %v6198 = vadd.f32 %v6103, %v6197
    %v6199 = vpop.f32.mrb[0].mxu0
    %6200 = vdwg.mxu0
    %v6201 = vmul.f32 %v900, %v6098
    %v6202 = vmul.f32 %v905, %v6097
    %v6203 = vmul.f32 %v910, %v6096
    %v6204 = vmul.f32 %v915, %v6099
    %v6205 = vadd.f32 %v6187, %v6201
    %v6206 = vadd.f32 %v6190, %v6202
    %v6207 = vadd.f32 %v6195, %v6203
    %v6208 = vadd.f32 %v6198, %v6204
    %v6210 = vlaneseq
    %v6211 = vshrl.u32 %v6210, 7
    %v6212 = vsub.s32 0, %v6211
    %v6213 = vrot.slane %v5837, %v6212
    %v6215 = vadd.f32 %v6205, %v6213
    %v6216 = vadd.f32 %v6206, %v6213
    %v6217 = vadd.f32 %v6207, %v6213
    %v6218 = vadd.f32 %v6208, %v6213
    %v6219 = vmax.f32 %v6215, 0.0
    %v6220 = vmax.f32 %v6216, 0.0
    %v6221 = vmax.f32 %v6217, 0.0
    %v6222 = vmax.f32 %v6218, 0.0
    %s6223 = scalar_lea.vmem %s61, 2
    %v6224 = vld [vmem:[%s6223] sm:$0x1]
    %s6225 = scalar_lea.vmem %s61, 3
    %v6226 = vld [vmem:[%s6225] sm:$0x1]
    %v6227 = vadd.f32 %v6219, %v6220
    %v6228 = vadd.f32 %v6227, %v6221
    %v6229 = vadd.f32 %v6228, %v6222
    %v6230 = vrot.slane %v6229, 4
    %v6231 = vadd.f32 %v6229, %v6230
    %v6232 = vrot.slane %v6231, 2
    %v6233 = vadd.f32 %v6231, %v6232
    %v6234 = vrot.slane %v6233, 1
    %v6235 = vadd.f32 %v6233, %v6234
    %v6236 = vmul.f32 %v6219, %v6219
    %v6237 = vmul.f32 %v6220, %v6220
    %v6238 = vmul.f32 %v6221, %v6221
    %v6239 = vmul.f32 %v6222, %v6222
    %v6240 = vadd.f32 %v6236, %v6237
    %v6241 = vadd.f32 %v6240, %v6238
    %v6242 = vadd.f32 %v6241, %v6239
    %v6243 = vrot.slane %v6242, 4
    %v6244 = vadd.f32 %v6242, %v6243
    %v6245 = vrot.slane %v6244, 2
    %v6246 = vadd.f32 %v6244, %v6245
    %v6247 = vrot.slane %v6246, 1
    %v6248 = vadd.f32 %v6246, %v6247
    %v6249 = vpack.c.bf16 %v6235, %v6235
    %6250 = vmatprep.subr.bf16.mxu0 0
    %6251 = vmatpush1.bf16.msra.mxu0 %v997
    %6252 = vmatprep.subr.bf16.mxu0 0
    %6253 = vmatpush1.bf16.msra.mxu0 %v998
    %6254 = vmatprep.subr.bf16.mxu0 0
    %6255 = vmatpush1.bf16.msra.mxu0 %v999
    %6256 = vmatprep.subr.bf16.mxu0 0
    %6257 = vmatpush1.bf16.msra.mxu0 %v1000
    %6258 = vmatprep.subr.bf16.mxu0 0
    %6259 = vmatpush1.bf16.msra.mxu0 %v1001
    %6260 = vmatprep.subr.bf16.mxu0 0
    %6261 = vmatpush1.bf16.msra.mxu0 %v1002
    %6262 = vmatprep.subr.bf16.mxu0 0
    %6263 = vmatpush1.bf16.msra.mxu0 %v1003
    %6264 = vmatprep.subr.bf16.mxu0 0
    %6265 = vmatpush1.bf16.msra.mxu0 %v1004
    %6266 = vmatprep.subr.bf16.mxu0 0
    %6267 = vmatpush1.bf16.msra.mxu0 0
    %6268 = vmatprep.subr.bf16.mxu0 0
    %6269 = vmatpush1.bf16.msra.mxu0 0
    %6270 = vmatprep.subr.bf16.mxu0 0
    %6271 = vmatpush1.bf16.msra.mxu0 0
    %6272 = vmatprep.subr.bf16.mxu0 0
    %6273 = vmatpush1.bf16.msra.mxu0 0
    %6274 = vmatprep.subr.bf16.mxu0 0
    %6275 = vmatpush1.bf16.msra.mxu0 0
    %6276 = vmatprep.subr.bf16.mxu0 0
    %6277 = vmatpush1.bf16.msra.mxu0 0
    %6278 = vmatprep.subr.bf16.mxu0 0
    %6279 = vmatpush1.bf16.msra.mxu0 0
    %6280 = vmatprep.subr.bf16.mxu0 0
    %6281 = vmatpush1.bf16.msra.mxu0 0
    %6282 = vmatprep.mubr.bf16.mxu0 0
    %6283 = vmatmul.mubr.bf16.gmra.mrb[0].mxu0 %v6249
    %v6284 = vpop.f32.mrb[0].mxu0
    %v6285 = vadd.f32 0.0, %v6284
    %v6286 = vpop.f32.mrb[0].mxu0
    %v6287 = vpop.f32.mrb[0].mxu0
    %v6288 = vpop.f32.mrb[0].mxu0
    %6289 = vdwg.mxu0
    %v6290 = vpack.c.bf16 %v6248, %v6248
    %6291 = vmatprep.subr.bf16.mxu0 0
    %6292 = vmatpush1.bf16.msra.mxu0 %v997
    %6293 = vmatprep.subr.bf16.mxu0 0
    %6294 = vmatpush1.bf16.msra.mxu0 %v998
    %6295 = vmatprep.subr.bf16.mxu0 0
    %6296 = vmatpush1.bf16.msra.mxu0 %v999
    %6297 = vmatprep.subr.bf16.mxu0 0
    %6298 = vmatpush1.bf16.msra.mxu0 %v1000
    %6299 = vmatprep.subr.bf16.mxu0 0
    %6300 = vmatpush1.bf16.msra.mxu0 %v1001
    %6301 = vmatprep.subr.bf16.mxu0 0
    %6302 = vmatpush1.bf16.msra.mxu0 %v1002
    %6303 = vmatprep.subr.bf16.mxu0 0
    %6304 = vmatpush1.bf16.msra.mxu0 %v1003
    %6305 = vmatprep.subr.bf16.mxu0 0
    %6306 = vmatpush1.bf16.msra.mxu0 %v1004
    %6307 = vmatprep.subr.bf16.mxu0 0
    %6308 = vmatpush1.bf16.msra.mxu0 0
    %6309 = vmatprep.subr.bf16.mxu0 0
    %6310 = vmatpush1.bf16.msra.mxu0 0
    %6311 = vmatprep.subr.bf16.mxu0 0
    %6312 = vmatpush1.bf16.msra.mxu0 0
    %6313 = vmatprep.subr.bf16.mxu0 0
    %6314 = vmatpush1.bf16.msra.mxu0 0
    %6315 = vmatprep.subr.bf16.mxu0 0
    %6316 = vmatpush1.bf16.msra.mxu0 0
    %6317 = vmatprep.subr.bf16.mxu0 0
    %6318 = vmatpush1.bf16.msra.mxu0 0
    %6319 = vmatprep.subr.bf16.mxu0 0
    %6320 = vmatpush1.bf16.msra.mxu0 0
    %6321 = vmatprep.subr.bf16.mxu0 0
    %6322 = vmatpush1.bf16.msra.mxu0 0
    %6323 = vmatprep.mubr.bf16.mxu0 0
    %6324 = vmatmul.mubr.bf16.gmra.mrb[0].mxu0 %v6290
    %v6325 = vpop.f32.mrb[0].mxu0
    %v6326 = vadd.f32 0.0, %v6325
    %v6327 = vpop.f32.mrb[0].mxu0
    %v6328 = vpop.f32.mrb[0].mxu0
    %v6329 = vpop.f32.mrb[0].mxu0
    %6330 = vdwg.mxu0
    %v6331 = vmul.f32 %v6285, 0.001953125
    %v6332 = vmul.f32 %v6326, 0.001953125
    %v6333 = vmul.f32 %v6331, %v6331
    %v6334 = vsub.f32 %v6332, %v6333
    %v6335 = vmax.f32 %v6334, 0.0
    %v6336 = vadd.f32 %v6335, 1e-05
    %v6337 = vrsqrt.pop %v6336
    %v6338 = vmul.f32 %v6224, %v6337
    %v6339 = vmul.f32 %v6331, %v6338
    %v6340 = vsub.f32 %v6226, %v6339
    %v6341 = vpack.c.bf16 %v6338, %v6338
    %v6343 = vsel %vm1105, %v6341, 0
    %6345 = vmatprep.subr.bf16.mxu0 0
    %6346 = vmatpush1.bf16.msra.mxu0 %v1111
    %6347 = vmatprep.subr.bf16.mxu0 0
    %6348 = vmatpush1.bf16.msra.mxu0 0
    %6349 = vmatprep.subr.bf16.mxu0 0
    %6350 = vmatpush1.bf16.msra.mxu0 0
    %6351 = vmatprep.subr.bf16.mxu0 0
    %6352 = vmatpush1.bf16.msra.mxu0 0
    %6353 = vmatprep.subr.bf16.mxu0 0
    %6354 = vmatpush1.bf16.msra.mxu0 0
    %6355 = vmatprep.subr.bf16.mxu0 0
    %6356 = vmatpush1.bf16.msra.mxu0 0
    %6357 = vmatprep.subr.bf16.mxu0 0
    %6358 = vmatpush1.bf16.msra.mxu0 0
    %6359 = vmatprep.subr.bf16.mxu0 0
    %6360 = vmatpush1.bf16.msra.mxu0 0
    %6361 = vmatprep.subr.bf16.mxu0 0
    %6362 = vmatpush1.bf16.msra.mxu0 0
    %6363 = vmatprep.subr.bf16.mxu0 0
    %6364 = vmatpush1.bf16.msra.mxu0 0
    %6365 = vmatprep.subr.bf16.mxu0 0
    %6366 = vmatpush1.bf16.msra.mxu0 0
    %6367 = vmatprep.subr.bf16.mxu0 0
    %6368 = vmatpush1.bf16.msra.mxu0 0
    %6369 = vmatprep.subr.bf16.mxu0 0
    %6370 = vmatpush1.bf16.msra.mxu0 0
    %6371 = vmatprep.subr.bf16.mxu0 0
    %6372 = vmatpush1.bf16.msra.mxu0 0
    %6373 = vmatprep.subr.bf16.mxu0 0
    %6374 = vmatpush1.bf16.msra.mxu0 0
    %6375 = vmatprep.subr.bf16.mxu0 0
    %6376 = vmatpush1.bf16.msra.mxu0 0
    %6377 = vmatprep.mubr.bf16.mxu0 0
    %6378 = vmatmul.mubr.bf16.gmra.mrb[0].mxu0 %v6343
    %v6379 = vpop.f32.mrb[0].mxu0
    %v6380 = vadd.f32 0.0, %v6379
    %v6381 = vpop.f32.mrb[0].mxu0
    %v6382 = vpop.f32.mrb[0].mxu0
    %v6383 = vpop.f32.mrb[0].mxu0
    %6384 = vdwg.mxu0
    %v6385 = vpack.c.bf16 %v6340, %v6340
    %v6387 = vsel %vm1105, %v6385, 0
    %6389 = vmatprep.subr.bf16.mxu0 0
    %6390 = vmatpush1.bf16.msra.mxu0 %v1111
    %6391 = vmatprep.subr.bf16.mxu0 0
    %6392 = vmatpush1.bf16.msra.mxu0 0
    %6393 = vmatprep.subr.bf16.mxu0 0
    %6394 = vmatpush1.bf16.msra.mxu0 0
    %6395 = vmatprep.subr.bf16.mxu0 0
    %6396 = vmatpush1.bf16.msra.mxu0 0
    %6397 = vmatprep.subr.bf16.mxu0 0
    %6398 = vmatpush1.bf16.msra.mxu0 0
    %6399 = vmatprep.subr.bf16.mxu0 0
    %6400 = vmatpush1.bf16.msra.mxu0 0
    %6401 = vmatprep.subr.bf16.mxu0 0
    %6402 = vmatpush1.bf16.msra.mxu0 0
    %6403 = vmatprep.subr.bf16.mxu0 0
    %6404 = vmatpush1.bf16.msra.mxu0 0
    %6405 = vmatprep.subr.bf16.mxu0 0
    %6406 = vmatpush1.bf16.msra.mxu0 0
    %6407 = vmatprep.subr.bf16.mxu0 0
    %6408 = vmatpush1.bf16.msra.mxu0 0
    %6409 = vmatprep.subr.bf16.mxu0 0
    %6410 = vmatpush1.bf16.msra.mxu0 0
    %6411 = vmatprep.subr.bf16.mxu0 0
    %6412 = vmatpush1.bf16.msra.mxu0 0
    %6413 = vmatprep.subr.bf16.mxu0 0
    %6414 = vmatpush1.bf16.msra.mxu0 0
    %6415 = vmatprep.subr.bf16.mxu0 0
    %6416 = vmatpush1.bf16.msra.mxu0 0
    %6417 = vmatprep.subr.bf16.mxu0 0
    %6418 = vmatpush1.bf16.msra.mxu0 0
    %6419 = vmatprep.subr.bf16.mxu0 0
    %6420 = vmatpush1.bf16.msra.mxu0 0
    %6421 = vmatprep.mubr.bf16.mxu0 0
    %6422 = vmatmul.mubr.bf16.gmra.mrb[0].mxu0 %v6387
    %v6423 = vpop.f32.mrb[0].mxu0
    %v6424 = vadd.f32 0.0, %v6423
    %v6425 = vpop.f32.mrb[0].mxu0
    %v6426 = vpop.f32.mrb[0].mxu0
    %v6427 = vpop.f32.mrb[0].mxu0
    %6428 = vdwg.mxu0
    %v6429 = vlaneseq
    %v6430 = vshrl.u32 %v6429, 7
    %v6431 = vsub.s32 0, %v6430
    %v6432 = vrot.slane %v6380, %v6431
    %v6433 = vmul.f32 %v6219, %v6432
    %v6434 = vmul.f32 %v6220, %v6432
    %v6435 = vmul.f32 %v6221, %v6432
    %v6436 = vmul.f32 %v6222, %v6432
    %v6437 = vlaneseq
    %v6438 = vshrl.u32 %v6437, 7
    %v6439 = vsub.s32 0, %v6438
    %v6440 = vrot.slane %v6424, %v6439
    %v6441 = vadd.f32 %v6433, %v6440
    %v6442 = vadd.f32 %v6434, %v6440
    %v6443 = vadd.f32 %v6435, %v6440
    %v6444 = vadd.f32 %v6436, %v6440
    %v6445 = vrot.slane %v6441, 1
    %v6446 = vrot.slane %v6442, 1
    %v6447 = vrot.slane %v6443, 1
    %v6448 = vrot.slane %v6444, 1
    %v6449 = vsel %vm771, %v6447, %v6448
    %v6450 = vsel %vm771, %v6446, %v6447
    %v6451 = vsel %vm771, %v6445, %v6446
    %v6452 = vsel %vm771, %v6448, %v6445
    %v6453 = vmax.f32 %v6441, %v6451
    %v6454 = vmax.f32 %v6442, %v6450
    %v6455 = vmax.f32 %v6443, %v6449
    %v6456 = vmax.f32 %v6444, %v6452
    %v6457 = vpack.c.bf16 %v6454, %v6453
    %v6458 = vpack.c.bf16 %v6456, %v6455
    %6459 = vmatprep.subr.bf16.mxu0 0
    %6460 = vmatpush1.bf16.msra.mxu0 %v6457
    %6461 = vmatprep.subr.bf16.mxu0 0
    %6462 = vmatpush1.bf16.msra.mxu0 %v6458
    %6463 = vmatprep.subr.bf16.mxu0 0
    %6464 = vmatpush1.bf16.msra.mxu0 0
    %6465 = vmatprep.subr.bf16.mxu0 0
    %6466 = vmatpush1.bf16.msra.mxu0 0
    %6467 = vmatprep.subr.bf16.mxu0 0
    %6468 = vmatpush1.bf16.msra.mxu0 0
    %6469 = vmatprep.subr.bf16.mxu0 0
    %6470 = vmatpush1.bf16.msra.mxu0 0
    %6471 = vmatprep.subr.bf16.mxu0 0
    %6472 = vmatpush1.bf16.msra.mxu0 0
    %6473 = vmatprep.subr.bf16.mxu0 0
    %6474 = vmatpush1.bf16.msra.mxu0 0
    %6475 = vmatprep.subr.bf16.mxu0 0
    %6476 = vmatpush1.bf16.msra.mxu0 0
    %6477 = vmatprep.subr.bf16.mxu0 0
    %6478 = vmatpush1.bf16.msra.mxu0 0
    %6479 = vmatprep.subr.bf16.mxu0 0
    %6480 = vmatpush1.bf16.msra.mxu0 0
    %6481 = vmatprep.subr.bf16.mxu0 0
    %6482 = vmatpush1.bf16.msra.mxu0 0
    %6483 = vmatprep.subr.bf16.mxu0 0
    %6484 = vmatpush1.bf16.msra.mxu0 0
    %6485 = vmatprep.subr.bf16.mxu0 0
    %6486 = vmatpush1.bf16.msra.mxu0 0
    %6487 = vmatprep.subr.bf16.mxu0 0
    %6488 = vmatpush1.bf16.msra.mxu0 0
    %6489 = vmatprep.subr.bf16.mxu0 0
    %6490 = vmatpush1.bf16.msra.mxu0 0
    %6491 = vmatprep.mubr.bf16.mxu0 0
    %6492 = vmatmul.mubr.bf16.gmra.mrb[0].mxu0 %v1843
    %v6493 = vpop.f32.mrb[0].mxu0
    %v6494 = vadd.f32 0.0, %v6493
    %v6495 = vpop.f32.mrb[0].mxu0
    %v6496 = vpop.f32.mrb[0].mxu0
    %v6497 = vadd.f32 0.0, %v6496
    %v6498 = vpop.f32.mrb[0].mxu0
    %6499 = vdwg.mxu0
    %v6500 = vpack.c.bf16 %v6497, %v6494
    %6501 = vmatprep.subr.bf16.mxu0 0
    %6502 = vmatpush1.bf16.msra.mxu0 %v1919
    %6503 = vmatprep.subr.bf16.mxu0 0
    %6504 = vmatpush1.bf16.msra.mxu0 %v1920
    %6505 = vmatprep.subr.bf16.mxu0 0
    %6506 = vmatpush1.bf16.msra.mxu0 %v1921
    %6507 = vmatprep.subr.bf16.mxu0 0
    %6508 = vmatpush1.bf16.msra.mxu0 %v1922
    %6509 = vmatprep.subr.bf16.mxu0 0
    %6510 = vmatpush1.bf16.msra.mxu0 %v1923
    %6511 = vmatprep.subr.bf16.mxu0 0
    %6512 = vmatpush1.bf16.msra.mxu0 %v1924
    %6513 = vmatprep.subr.bf16.mxu0 0
    %6514 = vmatpush1.bf16.msra.mxu0 %v1925
    %6515 = vmatprep.subr.bf16.mxu0 0
    %6516 = vmatpush1.bf16.msra.mxu0 %v1926
    %6517 = vmatprep.subr.bf16.mxu0 0
    %6518 = vmatpush1.bf16.msra.mxu0 0
    %6519 = vmatprep.subr.bf16.mxu0 0
    %6520 = vmatpush1.bf16.msra.mxu0 0
    %6521 = vmatprep.subr.bf16.mxu0 0
    %6522 = vmatpush1.bf16.msra.mxu0 0
    %6523 = vmatprep.subr.bf16.mxu0 0
    %6524 = vmatpush1.bf16.msra.mxu0 0
    %6525 = vmatprep.subr.bf16.mxu0 0
    %6526 = vmatpush1.bf16.msra.mxu0 0
    %6527 = vmatprep.subr.bf16.mxu0 0
    %6528 = vmatpush1.bf16.msra.mxu0 0
    %6529 = vmatprep.subr.bf16.mxu0 0
    %6530 = vmatpush1.bf16.msra.mxu0 0
    %6531 = vmatprep.subr.bf16.mxu0 0
    %6532 = vmatpush1.bf16.msra.mxu0 0
    %6533 = vmatprep.mubr.bf16.mxu0 0
    %6534 = vmatmul.mubr.bf16.gmra.mrb[0].mxu0 %v6500
    %v6535 = vpop.f32.mrb[0].mxu0
    %v6536 = vadd.f32 0.0, %v6535
    %v6537 = vpop.f32.mrb[0].mxu0
    %v6538 = vpop.f32.mrb[0].mxu0
    %v6539 = vadd.f32 0.0, %v6538
    %v6540 = vpop.f32.mrb[0].mxu0
    %6541 = vdwg.mxu0
    %6542 = vmatprep.subr.bf16.mxu0 0
    %6543 = vmatpush1.bf16.msra.mxu0 %v2008
    %6544 = vmatprep.subr.bf16.mxu0 0
    %6545 = vmatpush1.bf16.msra.mxu0 %v2009
    %6546 = vmatprep.subr.bf16.mxu0 0
    %6547 = vmatpush1.bf16.msra.mxu0 %v2010
    %6548 = vmatprep.subr.bf16.mxu0 0
    %6549 = vmatpush1.bf16.msra.mxu0 %v2011
    %6550 = vmatprep.subr.bf16.mxu0 0
    %6551 = vmatpush1.bf16.msra.mxu0 %v2012
    %6552 = vmatprep.subr.bf16.mxu0 0
    %6553 = vmatpush1.bf16.msra.mxu0 %v2013
    %6554 = vmatprep.subr.bf16.mxu0 0
    %6555 = vmatpush1.bf16.msra.mxu0 %v2014
    %6556 = vmatprep.subr.bf16.mxu0 0
    %6557 = vmatpush1.bf16.msra.mxu0 %v2015
    %6558 = vmatprep.subr.bf16.mxu0 0
    %6559 = vmatpush1.bf16.msra.mxu0 0
    %6560 = vmatprep.subr.bf16.mxu0 0
    %6561 = vmatpush1.bf16.msra.mxu0 0
    %6562 = vmatprep.subr.bf16.mxu0 0
    %6563 = vmatpush1.bf16.msra.mxu0 0
    %6564 = vmatprep.subr.bf16.mxu0 0
    %6565 = vmatpush1.bf16.msra.mxu0 0
    %6566 = vmatprep.subr.bf16.mxu0 0
    %6567 = vmatpush1.bf16.msra.mxu0 0
    %6568 = vmatprep.subr.bf16.mxu0 0
    %6569 = vmatpush1.bf16.msra.mxu0 0
    %6570 = vmatprep.subr.bf16.mxu0 0
    %6571 = vmatpush1.bf16.msra.mxu0 0
    %6572 = vmatprep.subr.bf16.mxu0 0
    %6573 = vmatpush1.bf16.msra.mxu0 0
    %6574 = vmatprep.mubr.bf16.mxu0 0
    %6575 = vmatmul.mubr.bf16.gmra.mrb[0].mxu0 %v6500
    %v6576 = vpop.f32.mrb[0].mxu0
    %v6577 = vadd.f32 0.0, %v6576
    %v6578 = vpop.f32.mrb[0].mxu0
    %v6579 = vpop.f32.mrb[0].mxu0
    %v6580 = vadd.f32 0.0, %v6579
    %v6581 = vpop.f32.mrb[0].mxu0
    %6582 = vdwg.mxu0
    %v6583 = vmax.f32 %v6536, %v6577
    %v6584 = vmax.f32 %v6539, %v6580
    %v6585 = vld [vmem:[#allocation21] sm:$0x1]
    %v6586 = vpack.c.bf16 %v6584, %v6583
    %v6587 = vld [vmem:[#allocation18] sm:$0xf]
    %v6588 = vld [vmem:[#allocation18 + $0x4] sm:$0xf]
    %v6589 = vld [vmem:[#allocation18 + $0x8] sm:$0xf]
    %v6590 = vld [vmem:[#allocation18 + $0xc] sm:$0xf]
    %v6591 = vld [vmem:[#allocation18 + $0x10] sm:$0xf]
    %v6592 = vld [vmem:[#allocation18 + $0x14] sm:$0xf]
    %v6593 = vld [vmem:[#allocation18 + $0x18] sm:$0xf]
    %v6594 = vld [vmem:[#allocation18 + $0x1c] sm:$0xf]
    %v6603 = vunpack.c.l.b16 %v6587
    %v6604 = vunpack.c.l.b16 %v6588
    %v6605 = vunpack.c.l.b16 %v6589
    %v6606 = vunpack.c.l.b16 %v6590
    %v6607 = vunpack.c.l.b16 %v6591
    %v6608 = vunpack.c.l.b16 %v6592
    %v6609 = vunpack.c.l.b16 %v6593
    %v6610 = vunpack.c.l.b16 %v6594
    %v6611 = vpack.c.b16 %v6604, %v6603
    %v6612 = vpack.c.b16 %v6606, %v6605
    %v6613 = vpack.c.b16 %v6608, %v6607
    %v6614 = vpack.c.b16 %v6610, %v6609
    %v6620 = vsel %vm2101, %v6586, 0
    %6622 = vmatprep.subr.bf16.mxu0 0
    %6623 = vmatpush1.bf16.msra.mxu0 %v6611
    %6624 = vmatprep.subr.bf16.mxu0 0
    %6625 = vmatpush1.bf16.msra.mxu0 %v6612
    %6626 = vmatprep.subr.bf16.mxu0 0
    %6627 = vmatpush1.bf16.msra.mxu0 %v6613
    %6628 = vmatprep.subr.bf16.mxu0 0
    %6629 = vmatpush1.bf16.msra.mxu0 %v6614
    %6630 = vmatprep.subr.bf16.mxu0 0
    %6631 = vmatpush1.bf16.msra.mxu0 0
    %6632 = vmatprep.subr.bf16.mxu0 0
    %6633 = vmatpush1.bf16.msra.mxu0 0
    %6634 = vmatprep.subr.bf16.mxu0 0
    %6635 = vmatpush1.bf16.msra.mxu0 0
    %6636 = vmatprep.subr.bf16.mxu0 0
    %6637 = vmatpush1.bf16.msra.mxu0 0
    %6638 = vmatprep.subr.bf16.mxu0 0
    %6639 = vmatpush1.bf16.msra.mxu0 0
    %6640 = vmatprep.subr.bf16.mxu0 0
    %6641 = vmatpush1.bf16.msra.mxu0 0
    %6642 = vmatprep.subr.bf16.mxu0 0
    %6643 = vmatpush1.bf16.msra.mxu0 0
    %6644 = vmatprep.subr.bf16.mxu0 0
    %6645 = vmatpush1.bf16.msra.mxu0 0
    %6646 = vmatprep.subr.bf16.mxu0 0
    %6647 = vmatpush1.bf16.msra.mxu0 0
    %6648 = vmatprep.subr.bf16.mxu0 0
    %6649 = vmatpush1.bf16.msra.mxu0 0
    %6650 = vmatprep.subr.bf16.mxu0 0
    %6651 = vmatpush1.bf16.msra.mxu0 0
    %6652 = vmatprep.subr.bf16.mxu0 0
    %6653 = vmatpush1.bf16.msra.mxu0 0
    %6654 = vmatprep.mubr.bf16.mxu0 0
    %6655 = vmatmul.mubr.bf16.gmra.mrb[0].mxu0 %v6620
    %v6656 = vpop.f32.mrb[0].mxu0
    %v6657 = vadd.f32 0.0, %v6656
    %v6658 = vpop.f32.mrb[0].mxu0
    %v6659 = vpop.f32.mrb[0].mxu0
    %v6660 = vadd.f32 0.0, %v6659
    %v6661 = vpop.f32.mrb[0].mxu0
    %6662 = vdwg.mxu0
    %s6663 = scalar_lea.vmem [#allocation18], 32
    %v6664 = vld [vmem:[%s6663] sm:$0xf]
    %v6665 = vld [vmem:[%s6663 + $0x4] sm:$0xf]
    %v6666 = vld [vmem:[%s6663 + $0x8] sm:$0xf]
    %v6667 = vld [vmem:[%s6663 + $0xc] sm:$0xf]
    %v6668 = vld [vmem:[%s6663 + $0x10] sm:$0xf]
    %v6669 = vld [vmem:[%s6663 + $0x14] sm:$0xf]
    %v6670 = vld [vmem:[%s6663 + $0x18] sm:$0xf]
    %v6671 = vld [vmem:[%s6663 + $0x1c] sm:$0xf]
    %s6672 = scalar_lea.vmem [#allocation18], 64
    %v6673 = vld [vmem:[%s6672] sm:$0xf]
    %v6674 = vld [vmem:[%s6672 + $0x4] sm:$0xf]
    %v6675 = vld [vmem:[%s6672 + $0x8] sm:$0xf]
    %v6676 = vld [vmem:[%s6672 + $0xc] sm:$0xf]
    %v6677 = vld [vmem:[%s6672 + $0x10] sm:$0xf]
    %v6678 = vld [vmem:[%s6672 + $0x14] sm:$0xf]
    %v6679 = vld [vmem:[%s6672 + $0x18] sm:$0xf]
    %v6680 = vld [vmem:[%s6672 + $0x1c] sm:$0xf]
    %v6689 = vunpack.c.l.b16 %v6673
    %v6690 = vunpack.c.l.b16 %v6674
    %v6691 = vunpack.c.l.b16 %v6675
    %v6692 = vunpack.c.l.b16 %v6676
    %v6693 = vunpack.c.l.b16 %v6677
    %v6694 = vunpack.c.l.b16 %v6678
    %v6695 = vunpack.c.l.b16 %v6679
    %v6696 = vunpack.c.l.b16 %v6680
    %v6697 = vpack.c.b16 %v6690, %v6689
    %v6698 = vpack.c.b16 %v6692, %v6691
    %v6699 = vpack.c.b16 %v6694, %v6693
    %v6700 = vpack.c.b16 %v6696, %v6695
    %6705 = vmatprep.subr.bf16.mxu0 0
    %6706 = vmatpush1.bf16.msra.mxu0 %v6697
    %6707 = vmatprep.subr.bf16.mxu0 0
    %6708 = vmatpush1.bf16.msra.mxu0 %v6698
    %6709 = vmatprep.subr.bf16.mxu0 0
    %6710 = vmatpush1.bf16.msra.mxu0 %v6699
    %6711 = vmatprep.subr.bf16.mxu0 0
    %6712 = vmatpush1.bf16.msra.mxu0 %v6700
    %6713 = vmatprep.subr.bf16.mxu0 0
    %6714 = vmatpush1.bf16.msra.mxu0 0
    %6715 = vmatprep.subr.bf16.mxu0 0
    %6716 = vmatpush1.bf16.msra.mxu0 0
    %6717 = vmatprep.subr.bf16.mxu0 0
    %6718 = vmatpush1.bf16.msra.mxu0 0
    %6719 = vmatprep.subr.bf16.mxu0 0
    %6720 = vmatpush1.bf16.msra.mxu0 0
    %6721 = vmatprep.subr.bf16.mxu0 0
    %6722 = vmatpush1.bf16.msra.mxu0 0
    %6723 = vmatprep.subr.bf16.mxu0 0
    %6724 = vmatpush1.bf16.msra.mxu0 0
    %6725 = vmatprep.subr.bf16.mxu0 0
    %6726 = vmatpush1.bf16.msra.mxu0 0
    %6727 = vmatprep.subr.bf16.mxu0 0
    %6728 = vmatpush1.bf16.msra.mxu0 0
    %6729 = vmatprep.subr.bf16.mxu0 0
    %6730 = vmatpush1.bf16.msra.mxu0 0
    %6731 = vmatprep.subr.bf16.mxu0 0
    %6732 = vmatpush1.bf16.msra.mxu0 0
    %6733 = vmatprep.subr.bf16.mxu0 0
    %6734 = vmatpush1.bf16.msra.mxu0 0
    %6735 = vmatprep.subr.bf16.mxu0 0
    %6736 = vmatpush1.bf16.msra.mxu0 0
    %6737 = vmatprep.mubr.bf16.mxu0 0
    %6738 = vmatmul.mubr.bf16.gmra.mrb[0].mxu0 %v6620
    %v6739 = vpop.f32.mrb[0].mxu0
    %v6740 = vadd.f32 0.0, %v6739
    %v6741 = vpop.f32.mrb[0].mxu0
    %v6742 = vpop.f32.mrb[0].mxu0
    %v6743 = vadd.f32 0.0, %v6742
    %v6744 = vpop.f32.mrb[0].mxu0
    %6745 = vdwg.mxu0
    %v6746 = vrot.slane %v6657, 7
    %v6747 = vrot.slane %v6660, 7
    %v6748 = vsel %vm762, %v6746, %v6747
    %v6749 = vsel %vm762, %v6747, %v6746
    %v6750 = vrot.slane %v6740, 1
    %v6751 = vrot.slane %v6743, 1
    %v6752 = vsel %vm771, %v6750, %v6751
    %v6753 = vsel %vm771, %v6751, %v6750
    %v6754 = vmul.f32 %v2240, %v6749
    %v6755 = vmul.f32 %v2245, %v6748
    %v6764 = vunpack.c.l.b16 %v6664
    %v6765 = vunpack.c.l.b16 %v6665
    %v6766 = vunpack.c.l.b16 %v6666
    %v6767 = vunpack.c.l.b16 %v6667
    %v6768 = vunpack.c.l.b16 %v6668
    %v6769 = vunpack.c.l.b16 %v6669
    %v6770 = vunpack.c.l.b16 %v6670
    %v6771 = vunpack.c.l.b16 %v6671
    %v6772 = vpack.c.b16 %v6765, %v6764
    %v6773 = vpack.c.b16 %v6767, %v6766
    %v6774 = vpack.c.b16 %v6769, %v6768
    %v6775 = vpack.c.b16 %v6771, %v6770
    %6780 = vmatprep.subr.bf16.mxu0 0
    %6781 = vmatpush1.bf16.msra.mxu0 %v6772
    %6782 = vmatprep.subr.bf16.mxu0 0
    %6783 = vmatpush1.bf16.msra.mxu0 %v6773
    %6784 = vmatprep.subr.bf16.mxu0 0
    %6785 = vmatpush1.bf16.msra.mxu0 %v6774
    %6786 = vmatprep.subr.bf16.mxu0 0
    %6787 = vmatpush1.bf16.msra.mxu0 %v6775
    %6788 = vmatprep.subr.bf16.mxu0 0
    %6789 = vmatpush1.bf16.msra.mxu0 0
    %6790 = vmatprep.subr.bf16.mxu0 0
    %6791 = vmatpush1.bf16.msra.mxu0 0
    %6792 = vmatprep.subr.bf16.mxu0 0
    %6793 = vmatpush1.bf16.msra.mxu0 0
    %6794 = vmatprep.subr.bf16.mxu0 0
    %6795 = vmatpush1.bf16.msra.mxu0 0
    %6796 = vmatprep.subr.bf16.mxu0 0
    %6797 = vmatpush1.bf16.msra.mxu0 0
    %6798 = vmatprep.subr.bf16.mxu0 0
    %6799 = vmatpush1.bf16.msra.mxu0 0
    %6800 = vmatprep.subr.bf16.mxu0 0
    %6801 = vmatpush1.bf16.msra.mxu0 0
    %6802 = vmatprep.subr.bf16.mxu0 0
    %6803 = vmatpush1.bf16.msra.mxu0 0
    %6804 = vmatprep.subr.bf16.mxu0 0
    %6805 = vmatpush1.bf16.msra.mxu0 0
    %6806 = vmatprep.subr.bf16.mxu0 0
    %6807 = vmatpush1.bf16.msra.mxu0 0
    %6808 = vmatprep.subr.bf16.mxu0 0
    %6809 = vmatpush1.bf16.msra.mxu0 0
    %6810 = vmatprep.subr.bf16.mxu0 0
    %6811 = vmatpush1.bf16.msra.mxu0 0
    %6812 = vmatprep.mubr.bf16.mxu0 0
    %6813 = vmatmul.mubr.bf16.gmra.mrb[0].mxu0 %v6620
    %v6814 = vpop.f32.mrb[0].mxu0
    %v6815 = vadd.f32 %v6754, %v6814
    %v6816 = vpop.f32.mrb[0].mxu0
    %v6817 = vpop.f32.mrb[0].mxu0
    %v6818 = vadd.f32 %v6755, %v6817
    %v6819 = vpop.f32.mrb[0].mxu0
    %6820 = vdwg.mxu0
    %v6821 = vmul.f32 %v2317, %v6752
    %v6822 = vmul.f32 %v2322, %v6753
    %v6823 = vadd.f32 %v6815, %v6821
    %v6824 = vadd.f32 %v6818, %v6822
    %v6826 = vlaneseq
    %v6827 = vshrl.u32 %v6826, 7
    %v6828 = vsub.s32 0, %v6827
    %v6829 = vrot.slane %v6585, %v6828
    %v6831 = vadd.f32 %v6823, %v6829
    %v6832 = vadd.f32 %v6824, %v6829
    %v6833 = vmax.f32 %v6831, 0.0
    %v6834 = vmax.f32 %v6832, 0.0
    %v6835 = vld [vmem:[%s69] sm:$0x1]
    %s6836 = scalar_lea.vmem %s69, 1
    %v6837 = vld [vmem:[%s6836] sm:$0x1]
    %v6838 = vsel %vm2101, %v6833, 0.0
    %v6839 = vsel %vm2101, %v6834, 0.0
    %v6840 = vadd.f32 %v6838, %v6839
    %v6841 = vrot.slane %v6840, 4
    %v6842 = vadd.f32 %v6840, %v6841
    %v6843 = vrot.slane %v6842, 2
    %v6844 = vadd.f32 %v6842, %v6843
    %v6845 = vrot.slane %v6844, 1
    %v6846 = vadd.f32 %v6844, %v6845
    %v6847 = vmul.f32 %v6833, %v6833
    %v6848 = vmul.f32 %v6834, %v6834
    %v6849 = vsel %vm2101, %v6847, 0.0
    %v6850 = vsel %vm2101, %v6848, 0.0
    %v6851 = vadd.f32 %v6849, %v6850
    %v6852 = vrot.slane %v6851, 4
    %v6853 = vadd.f32 %v6851, %v6852
    %v6854 = vrot.slane %v6853, 2
    %v6855 = vadd.f32 %v6853, %v6854
    %v6856 = vrot.slane %v6855, 1
    %v6857 = vadd.f32 %v6855, %v6856
    %v6858 = vpack.c.bf16 %v6846, %v6846
    %v6860 = vsel %vm2101, %v6858, 0
    %6862 = vmatprep.subr.bf16.mxu0 0
    %6863 = vmatpush1.bf16.msra.mxu0 %v2378
    %6864 = vmatprep.subr.bf16.mxu0 0
    %6865 = vmatpush1.bf16.msra.mxu0 %v2379
    %6866 = vmatprep.subr.bf16.mxu0 0
    %6867 = vmatpush1.bf16.msra.mxu0 %v2380
    %6868 = vmatprep.subr.bf16.mxu0 0
    %6869 = vmatpush1.bf16.msra.mxu0 %v2381
    %6870 = vmatprep.subr.bf16.mxu0 0
    %6871 = vmatpush1.bf16.msra.mxu0 0
    %6872 = vmatprep.subr.bf16.mxu0 0
    %6873 = vmatpush1.bf16.msra.mxu0 0
    %6874 = vmatprep.subr.bf16.mxu0 0
    %6875 = vmatpush1.bf16.msra.mxu0 0
    %6876 = vmatprep.subr.bf16.mxu0 0
    %6877 = vmatpush1.bf16.msra.mxu0 0
    %6878 = vmatprep.subr.bf16.mxu0 0
    %6879 = vmatpush1.bf16.msra.mxu0 0
    %6880 = vmatprep.subr.bf16.mxu0 0
    %6881 = vmatpush1.bf16.msra.mxu0 0
    %6882 = vmatprep.subr.bf16.mxu0 0
    %6883 = vmatpush1.bf16.msra.mxu0 0
    %6884 = vmatprep.subr.bf16.mxu0 0
    %6885 = vmatpush1.bf16.msra.mxu0 0
    %6886 = vmatprep.subr.bf16.mxu0 0
    %6887 = vmatpush1.bf16.msra.mxu0 0
    %6888 = vmatprep.subr.bf16.mxu0 0
    %6889 = vmatpush1.bf16.msra.mxu0 0
    %6890 = vmatprep.subr.bf16.mxu0 0
    %6891 = vmatpush1.bf16.msra.mxu0 0
    %6892 = vmatprep.subr.bf16.mxu0 0
    %6893 = vmatpush1.bf16.msra.mxu0 0
    %6894 = vmatprep.mubr.bf16.mxu0 0
    %6895 = vmatmul.mubr.bf16.gmra.mrb[0].mxu0 %v6860
    %v6896 = vpop.f32.mrb[0].mxu0
    %v6897 = vadd.f32 0.0, %v6896
    %v6898 = vpop.f32.mrb[0].mxu0
    %v6899 = vpop.f32.mrb[0].mxu0
    %v6900 = vpop.f32.mrb[0].mxu0
    %6901 = vdwg.mxu0
    %v6902 = vpack.c.bf16 %v6857, %v6857
    %v6904 = vsel %vm2101, %v6902, 0
    %6906 = vmatprep.subr.bf16.mxu0 0
    %6907 = vmatpush1.bf16.msra.mxu0 %v2378
    %6908 = vmatprep.subr.bf16.mxu0 0
    %6909 = vmatpush1.bf16.msra.mxu0 %v2379
    %6910 = vmatprep.subr.bf16.mxu0 0
    %6911 = vmatpush1.bf16.msra.mxu0 %v2380
    %6912 = vmatprep.subr.bf16.mxu0 0
    %6913 = vmatpush1.bf16.msra.mxu0 %v2381
    %6914 = vmatprep.subr.bf16.mxu0 0
    %6915 = vmatpush1.bf16.msra.mxu0 0
    %6916 = vmatprep.subr.bf16.mxu0 0
    %6917 = vmatpush1.bf16.msra.mxu0 0
    %6918 = vmatprep.subr.bf16.mxu0 0
    %6919 = vmatpush1.bf16.msra.mxu0 0
    %6920 = vmatprep.subr.bf16.mxu0 0
    %6921 = vmatpush1.bf16.msra.mxu0 0
    %6922 = vmatprep.subr.bf16.mxu0 0
    %6923 = vmatpush1.bf16.msra.mxu0 0
    %6924 = vmatprep.subr.bf16.mxu0 0
    %6925 = vmatpush1.bf16.msra.mxu0 0
    %6926 = vmatprep.subr.bf16.mxu0 0
    %6927 = vmatpush1.bf16.msra.mxu0 0
    %6928 = vmatprep.subr.bf16.mxu0 0
    %6929 = vmatpush1.bf16.msra.mxu0 0
    %6930 = vmatprep.subr.bf16.mxu0 0
    %6931 = vmatpush1.bf16.msra.mxu0 0
    %6932 = vmatprep.subr.bf16.mxu0 0
    %6933 = vmatpush1.bf16.msra.mxu0 0
    %6934 = vmatprep.subr.bf16.mxu0 0
    %6935 = vmatpush1.bf16.msra.mxu0 0
    %6936 = vmatprep.subr.bf16.mxu0 0
    %6937 = vmatpush1.bf16.msra.mxu0 0
    %6938 = vmatprep.mubr.bf16.mxu0 0
    %6939 = vmatmul.mubr.bf16.gmra.mrb[0].mxu0 %v6904
    %v6940 = vpop.f32.mrb[0].mxu0
    %v6941 = vadd.f32 0.0, %v6940
    %v6942 = vpop.f32.mrb[0].mxu0
    %v6943 = vpop.f32.mrb[0].mxu0
    %v6944 = vpop.f32.mrb[0].mxu0
    %6945 = vdwg.mxu0
    %v6946 = vmul.f32 %v6897, 0.0078125
    %v6947 = vmul.f32 %v6941, 0.0078125
    %v6948 = vmul.f32 %v6946, %v6946
    %v6949 = vsub.f32 %v6947, %v6948
    %v6950 = vmax.f32 %v6949, 0.0
    %v6951 = vadd.f32 %v6950, 1e-05
    %v6952 = vrsqrt.pop %v6951
    %v6953 = vmul.f32 %v6835, %v6952
    %v6954 = vmul.f32 %v6946, %v6953
    %v6955 = vsub.f32 %v6837, %v6954
    %v6956 = vpack.c.bf16 %v6953, %v6953
    %v6958 = vsel %vm1105, %v6956, 0
    %6960 = vmatprep.subr.bf16.mxu0 0
    %6961 = vmatpush1.bf16.msra.mxu0 %v2488
    %6962 = vmatprep.subr.bf16.mxu0 0
    %6963 = vmatpush1.bf16.msra.mxu0 0
    %6964 = vmatprep.subr.bf16.mxu0 0
    %6965 = vmatpush1.bf16.msra.mxu0 0
    %6966 = vmatprep.subr.bf16.mxu0 0
    %6967 = vmatpush1.bf16.msra.mxu0 0
    %6968 = vmatprep.subr.bf16.mxu0 0
    %6969 = vmatpush1.bf16.msra.mxu0 0
    %6970 = vmatprep.subr.bf16.mxu0 0
    %6971 = vmatpush1.bf16.msra.mxu0 0
    %6972 = vmatprep.subr.bf16.mxu0 0
    %6973 = vmatpush1.bf16.msra.mxu0 0
    %6974 = vmatprep.subr.bf16.mxu0 0
    %6975 = vmatpush1.bf16.msra.mxu0 0
    %6976 = vmatprep.subr.bf16.mxu0 0
    %6977 = vmatpush1.bf16.msra.mxu0 0
    %6978 = vmatprep.subr.bf16.mxu0 0
    %6979 = vmatpush1.bf16.msra.mxu0 0
    %6980 = vmatprep.subr.bf16.mxu0 0
    %6981 = vmatpush1.bf16.msra.mxu0 0
    %6982 = vmatprep.subr.bf16.mxu0 0
    %6983 = vmatpush1.bf16.msra.mxu0 0
    %6984 = vmatprep.subr.bf16.mxu0 0
    %6985 = vmatpush1.bf16.msra.mxu0 0
    %6986 = vmatprep.subr.bf16.mxu0 0
    %6987 = vmatpush1.bf16.msra.mxu0 0
    %6988 = vmatprep.subr.bf16.mxu0 0
    %6989 = vmatpush1.bf16.msra.mxu0 0
    %6990 = vmatprep.subr.bf16.mxu0 0
    %6991 = vmatpush1.bf16.msra.mxu0 0
    %6992 = vmatprep.mubr.bf16.mxu0 0
    %6993 = vmatmul.mubr.bf16.gmra.mrb[0].mxu0 %v6958
    %v6994 = vpop.f32.mrb[0].mxu0
    %v6995 = vadd.f32 0.0, %v6994
    %v6996 = vpop.f32.mrb[0].mxu0
    %v6997 = vpop.f32.mrb[0].mxu0
    %v6998 = vpop.f32.mrb[0].mxu0
    %6999 = vdwg.mxu0
    %v7000 = vpack.c.bf16 %v6955, %v6955
    %v7002 = vsel %vm1105, %v7000, 0
    %7004 = vmatprep.subr.bf16.mxu0 0
    %7005 = vmatpush1.bf16.msra.mxu0 %v2488
    %7006 = vmatprep.subr.bf16.mxu0 0
    %7007 = vmatpush1.bf16.msra.mxu0 0
    %7008 = vmatprep.subr.bf16.mxu0 0
    %7009 = vmatpush1.bf16.msra.mxu0 0
    %7010 = vmatprep.subr.bf16.mxu0 0
    %7011 = vmatpush1.bf16.msra.mxu0 0
    %7012 = vmatprep.subr.bf16.mxu0 0
    %7013 = vmatpush1.bf16.msra.mxu0 0
    %7014 = vmatprep.subr.bf16.mxu0 0
    %7015 = vmatpush1.bf16.msra.mxu0 0
    %7016 = vmatprep.subr.bf16.mxu0 0
    %7017 = vmatpush1.bf16.msra.mxu0 0
    %7018 = vmatprep.subr.bf16.mxu0 0
    %7019 = vmatpush1.bf16.msra.mxu0 0
    %7020 = vmatprep.subr.bf16.mxu0 0
    %7021 = vmatpush1.bf16.msra.mxu0 0
    %7022 = vmatprep.subr.bf16.mxu0 0
    %7023 = vmatpush1.bf16.msra.mxu0 0
    %7024 = vmatprep.subr.bf16.mxu0 0
    %7025 = vmatpush1.bf16.msra.mxu0 0
    %7026 = vmatprep.subr.bf16.mxu0 0
    %7027 = vmatpush1.bf16.msra.mxu0 0
    %7028 = vmatprep.subr.bf16.mxu0 0
    %7029 = vmatpush1.bf16.msra.mxu0 0
    %7030 = vmatprep.subr.bf16.mxu0 0
    %7031 = vmatpush1.bf16.msra.mxu0 0
    %7032 = vmatprep.subr.bf16.mxu0 0
    %7033 = vmatpush1.bf16.msra.mxu0 0
    %7034 = vmatprep.subr.bf16.mxu0 0
    %7035 = vmatpush1.bf16.msra.mxu0 0
    %7036 = vmatprep.mubr.bf16.mxu0 0
    %7037 = vmatmul.mubr.bf16.gmra.mrb[0].mxu0 %v7002
    %v7038 = vpop.f32.mrb[0].mxu0
    %v7039 = vadd.f32 0.0, %v7038
    %v7040 = vpop.f32.mrb[0].mxu0
    %v7041 = vpop.f32.mrb[0].mxu0
    %v7042 = vpop.f32.mrb[0].mxu0
    %7043 = vdwg.mxu0
    %v7044 = vlaneseq
    %v7045 = vshrl.u32 %v7044, 7
    %v7046 = vsub.s32 0, %v7045
    %v7047 = vrot.slane %v6995, %v7046
    %v7048 = vmul.f32 %v6833, %v7047
    %v7049 = vmul.f32 %v6834, %v7047
    %v7050 = vlaneseq
    %v7051 = vshrl.u32 %v7050, 7
    %v7052 = vsub.s32 0, %v7051
    %v7053 = vrot.slane %v7039, %v7052
    %v7054 = vadd.f32 %v7048, %v7053
    %v7055 = vadd.f32 %v7049, %v7053
    %s7056 = scalar_lea.vmem [#allocation21], 1
    %v7057 = vld [vmem:[%s7056] sm:$0x1]
    %v7058 = vpack.c.bf16 %v7055, %v7054
    %v7059 = vld [vmem:[#allocation19] sm:$0xf]
    %v7060 = vld [vmem:[#allocation19 + $0x4] sm:$0xf]
    %v7061 = vld [vmem:[#allocation19 + $0x8] sm:$0xf]
    %v7062 = vld [vmem:[#allocation19 + $0xc] sm:$0xf]
    %v7063 = vld [vmem:[#allocation19 + $0x10] sm:$0xf]
    %v7064 = vld [vmem:[#allocation19 + $0x14] sm:$0xf]
    %v7065 = vld [vmem:[#allocation19 + $0x18] sm:$0xf]
    %v7066 = vld [vmem:[#allocation19 + $0x1c] sm:$0xf]
    %v7075 = vunpack.c.l.b16 %v7059
    %v7076 = vunpack.c.l.b16 %v7060
    %v7077 = vunpack.c.l.b16 %v7061
    %v7078 = vunpack.c.l.b16 %v7062
    %v7079 = vunpack.c.l.b16 %v7063
    %v7080 = vunpack.c.l.b16 %v7064
    %v7081 = vunpack.c.l.b16 %v7065
    %v7082 = vunpack.c.l.b16 %v7066
    %v7083 = vpack.c.b16 %v7076, %v7075
    %v7084 = vpack.c.b16 %v7078, %v7077
    %v7085 = vpack.c.b16 %v7080, %v7079
    %v7086 = vpack.c.b16 %v7082, %v7081
    %v7092 = vsel %vm2101, %v7058, 0
    %7094 = vmatprep.subr.bf16.mxu0 0
    %7095 = vmatpush1.bf16.msra.mxu0 %v7083
    %7096 = vmatprep.subr.bf16.mxu0 0
    %7097 = vmatpush1.bf16.msra.mxu0 %v7084
    %7098 = vmatprep.subr.bf16.mxu0 0
    %7099 = vmatpush1.bf16.msra.mxu0 %v7085
    %7100 = vmatprep.subr.bf16.mxu0 0
    %7101 = vmatpush1.bf16.msra.mxu0 %v7086
    %7102 = vmatprep.subr.bf16.mxu0 0
    %7103 = vmatpush1.bf16.msra.mxu0 0
    %7104 = vmatprep.subr.bf16.mxu0 0
    %7105 = vmatpush1.bf16.msra.mxu0 0
    %7106 = vmatprep.subr.bf16.mxu0 0
    %7107 = vmatpush1.bf16.msra.mxu0 0
    %7108 = vmatprep.subr.bf16.mxu0 0
    %7109 = vmatpush1.bf16.msra.mxu0 0
    %7110 = vmatprep.subr.bf16.mxu0 0
    %7111 = vmatpush1.bf16.msra.mxu0 0
    %7112 = vmatprep.subr.bf16.mxu0 0
    %7113 = vmatpush1.bf16.msra.mxu0 0
    %7114 = vmatprep.subr.bf16.mxu0 0
    %7115 = vmatpush1.bf16.msra.mxu0 0
    %7116 = vmatprep.subr.bf16.mxu0 0
    %7117 = vmatpush1.bf16.msra.mxu0 0
    %7118 = vmatprep.subr.bf16.mxu0 0
    %7119 = vmatpush1.bf16.msra.mxu0 0
    %7120 = vmatprep.subr.bf16.mxu0 0
    %7121 = vmatpush1.bf16.msra.mxu0 0
    %7122 = vmatprep.subr.bf16.mxu0 0
    %7123 = vmatpush1.bf16.msra.mxu0 0
    %7124 = vmatprep.subr.bf16.mxu0 0
    %7125 = vmatpush1.bf16.msra.mxu0 0
    %7126 = vmatprep.mubr.bf16.mxu0 0
    %7127 = vmatmul.mubr.bf16.gmra.mrb[0].mxu0 %v7092
    %v7128 = vpop.f32.mrb[0].mxu0
    %v7129 = vadd.f32 0.0, %v7128
    %v7130 = vpop.f32.mrb[0].mxu0
    %v7131 = vpop.f32.mrb[0].mxu0
    %v7132 = vadd.f32 0.0, %v7131
    %v7133 = vpop.f32.mrb[0].mxu0
    %7134 = vdwg.mxu0
    %s7135 = scalar_lea.vmem [#allocation19], 32
    %v7136 = vld [vmem:[%s7135] sm:$0xf]
    %v7137 = vld [vmem:[%s7135 + $0x4] sm:$0xf]
    %v7138 = vld [vmem:[%s7135 + $0x8] sm:$0xf]
    %v7139 = vld [vmem:[%s7135 + $0xc] sm:$0xf]
    %v7140 = vld [vmem:[%s7135 + $0x10] sm:$0xf]
    %v7141 = vld [vmem:[%s7135 + $0x14] sm:$0xf]
    %v7142 = vld [vmem:[%s7135 + $0x18] sm:$0xf]
    %v7143 = vld [vmem:[%s7135 + $0x1c] sm:$0xf]
    %s7144 = scalar_lea.vmem [#allocation19], 64
    %v7145 = vld [vmem:[%s7144] sm:$0xf]
    %v7146 = vld [vmem:[%s7144 + $0x4] sm:$0xf]
    %v7147 = vld [vmem:[%s7144 + $0x8] sm:$0xf]
    %v7148 = vld [vmem:[%s7144 + $0xc] sm:$0xf]
    %v7149 = vld [vmem:[%s7144 + $0x10] sm:$0xf]
    %v7150 = vld [vmem:[%s7144 + $0x14] sm:$0xf]
    %v7151 = vld [vmem:[%s7144 + $0x18] sm:$0xf]
    %v7152 = vld [vmem:[%s7144 + $0x1c] sm:$0xf]
    %v7161 = vunpack.c.l.b16 %v7145
    %v7162 = vunpack.c.l.b16 %v7146
    %v7163 = vunpack.c.l.b16 %v7147
    %v7164 = vunpack.c.l.b16 %v7148
    %v7165 = vunpack.c.l.b16 %v7149
    %v7166 = vunpack.c.l.b16 %v7150
    %v7167 = vunpack.c.l.b16 %v7151
    %v7168 = vunpack.c.l.b16 %v7152
    %v7169 = vpack.c.b16 %v7162, %v7161
    %v7170 = vpack.c.b16 %v7164, %v7163
    %v7171 = vpack.c.b16 %v7166, %v7165
    %v7172 = vpack.c.b16 %v7168, %v7167
    %7177 = vmatprep.subr.bf16.mxu0 0
    %7178 = vmatpush1.bf16.msra.mxu0 %v7169
    %7179 = vmatprep.subr.bf16.mxu0 0
    %7180 = vmatpush1.bf16.msra.mxu0 %v7170
    %7181 = vmatprep.subr.bf16.mxu0 0
    %7182 = vmatpush1.bf16.msra.mxu0 %v7171
    %7183 = vmatprep.subr.bf16.mxu0 0
    %7184 = vmatpush1.bf16.msra.mxu0 %v7172
    %7185 = vmatprep.subr.bf16.mxu0 0
    %7186 = vmatpush1.bf16.msra.mxu0 0
    %7187 = vmatprep.subr.bf16.mxu0 0
    %7188 = vmatpush1.bf16.msra.mxu0 0
    %7189 = vmatprep.subr.bf16.mxu0 0
    %7190 = vmatpush1.bf16.msra.mxu0 0
    %7191 = vmatprep.subr.bf16.mxu0 0
    %7192 = vmatpush1.bf16.msra.mxu0 0
    %7193 = vmatprep.subr.bf16.mxu0 0
    %7194 = vmatpush1.bf16.msra.mxu0 0
    %7195 = vmatprep.subr.bf16.mxu0 0
    %7196 = vmatpush1.bf16.msra.mxu0 0
    %7197 = vmatprep.subr.bf16.mxu0 0
    %7198 = vmatpush1.bf16.msra.mxu0 0
    %7199 = vmatprep.subr.bf16.mxu0 0
    %7200 = vmatpush1.bf16.msra.mxu0 0
    %7201 = vmatprep.subr.bf16.mxu0 0
    %7202 = vmatpush1.bf16.msra.mxu0 0
    %7203 = vmatprep.subr.bf16.mxu0 0
    %7204 = vmatpush1.bf16.msra.mxu0 0
    %7205 = vmatprep.subr.bf16.mxu0 0
    %7206 = vmatpush1.bf16.msra.mxu0 0
    %7207 = vmatprep.subr.bf16.mxu0 0
    %7208 = vmatpush1.bf16.msra.mxu0 0
    %7209 = vmatprep.mubr.bf16.mxu0 0
    %7210 = vmatmul.mubr.bf16.gmra.mrb[0].mxu0 %v7092
    %v7211 = vpop.f32.mrb[0].mxu0
    %v7212 = vadd.f32 0.0, %v7211
    %v7213 = vpop.f32.mrb[0].mxu0
    %v7214 = vpop.f32.mrb[0].mxu0
    %v7215 = vadd.f32 0.0, %v7214
    %v7216 = vpop.f32.mrb[0].mxu0
    %7217 = vdwg.mxu0
    %v7218 = vrot.slane %v7129, 7
    %v7219 = vrot.slane %v7132, 7
    %v7220 = vsel %vm762, %v7218, %v7219
    %v7221 = vsel %vm762, %v7219, %v7218
    %v7222 = vrot.slane %v7212, 1
    %v7223 = vrot.slane %v7215, 1
    %v7224 = vsel %vm771, %v7222, %v7223
    %v7225 = vsel %vm771, %v7223, %v7222
    %v7226 = vmul.f32 %v2240, %v7221
    %v7227 = vmul.f32 %v2245, %v7220
    %v7236 = vunpack.c.l.b16 %v7136
    %v7237 = vunpack.c.l.b16 %v7137
    %v7238 = vunpack.c.l.b16 %v7138
    %v7239 = vunpack.c.l.b16 %v7139
    %v7240 = vunpack.c.l.b16 %v7140
    %v7241 = vunpack.c.l.b16 %v7141
    %v7242 = vunpack.c.l.b16 %v7142
    %v7243 = vunpack.c.l.b16 %v7143
    %v7244 = vpack.c.b16 %v7237, %v7236
    %v7245 = vpack.c.b16 %v7239, %v7238
    %v7246 = vpack.c.b16 %v7241, %v7240
    %v7247 = vpack.c.b16 %v7243, %v7242
    %7252 = vmatprep.subr.bf16.mxu0 0
    %7253 = vmatpush1.bf16.msra.mxu0 %v7244
    %7254 = vmatprep.subr.bf16.mxu0 0
    %7255 = vmatpush1.bf16.msra.mxu0 %v7245
    %7256 = vmatprep.subr.bf16.mxu0 0
    %7257 = vmatpush1.bf16.msra.mxu0 %v7246
    %7258 = vmatprep.subr.bf16.mxu0 0
    %7259 = vmatpush1.bf16.msra.mxu0 %v7247
    %7260 = vmatprep.subr.bf16.mxu0 0
    %7261 = vmatpush1.bf16.msra.mxu0 0
    %7262 = vmatprep.subr.bf16.mxu0 0
    %7263 = vmatpush1.bf16.msra.mxu0 0
    %7264 = vmatprep.subr.bf16.mxu0 0
    %7265 = vmatpush1.bf16.msra.mxu0 0
    %7266 = vmatprep.subr.bf16.mxu0 0
    %7267 = vmatpush1.bf16.msra.mxu0 0
    %7268 = vmatprep.subr.bf16.mxu0 0
    %7269 = vmatpush1.bf16.msra.mxu0 0
    %7270 = vmatprep.subr.bf16.mxu0 0
    %7271 = vmatpush1.bf16.msra.mxu0 0
    %7272 = vmatprep.subr.bf16.mxu0 0
    %7273 = vmatpush1.bf16.msra.mxu0 0
    %7274 = vmatprep.subr.bf16.mxu0 0
    %7275 = vmatpush1.bf16.msra.mxu0 0
    %7276 = vmatprep.subr.bf16.mxu0 0
    %7277 = vmatpush1.bf16.msra.mxu0 0
    %7278 = vmatprep.subr.bf16.mxu0 0
    %7279 = vmatpush1.bf16.msra.mxu0 0
    %7280 = vmatprep.subr.bf16.mxu0 0
    %7281 = vmatpush1.bf16.msra.mxu0 0
    %7282 = vmatprep.subr.bf16.mxu0 0
    %7283 = vmatpush1.bf16.msra.mxu0 0
    %7284 = vmatprep.mubr.bf16.mxu0 0
    %7285 = vmatmul.mubr.bf16.gmra.mrb[0].mxu0 %v7092
    %v7286 = vpop.f32.mrb[0].mxu0
    %v7287 = vadd.f32 %v7226, %v7286
    %v7288 = vpop.f32.mrb[0].mxu0
    %v7289 = vpop.f32.mrb[0].mxu0
    %v7290 = vadd.f32 %v7227, %v7289
    %v7291 = vpop.f32.mrb[0].mxu0
    %7292 = vdwg.mxu0
    %v7293 = vmul.f32 %v2317, %v7224
    %v7294 = vmul.f32 %v2322, %v7225
    %v7295 = vadd.f32 %v7287, %v7293
    %v7296 = vadd.f32 %v7290, %v7294
    %v7298 = vlaneseq
    %v7299 = vshrl.u32 %v7298, 7
    %v7300 = vsub.s32 0, %v7299
    %v7301 = vrot.slane %v7057, %v7300
    %v7303 = vadd.f32 %v7295, %v7301
    %v7304 = vadd.f32 %v7296, %v7301
    %v7305 = vmax.f32 %v7303, 0.0
    %v7306 = vmax.f32 %v7304, 0.0
    %s7307 = scalar_lea.vmem %s69, 2
    %v7308 = vld [vmem:[%s7307] sm:$0x1]
    %s7309 = scalar_lea.vmem %s69, 3
    %v7310 = vld [vmem:[%s7309] sm:$0x1]
    %v7311 = vsel %vm2101, %v7305, 0.0
    %v7312 = vsel %vm2101, %v7306, 0.0
    %v7313 = vadd.f32 %v7311, %v7312
    %v7314 = vrot.slane %v7313, 4
    %v7315 = vadd.f32 %v7313, %v7314
    %v7316 = vrot.slane %v7315, 2
    %v7317 = vadd.f32 %v7315, %v7316
    %v7318 = vrot.slane %v7317, 1
    %v7319 = vadd.f32 %v7317, %v7318
    %v7320 = vmul.f32 %v7305, %v7305
    %v7321 = vmul.f32 %v7306, %v7306
    %v7322 = vsel %vm2101, %v7320, 0.0
    %v7323 = vsel %vm2101, %v7321, 0.0
    %v7324 = vadd.f32 %v7322, %v7323
    %v7325 = vrot.slane %v7324, 4
    %v7326 = vadd.f32 %v7324, %v7325
    %v7327 = vrot.slane %v7326, 2
    %v7328 = vadd.f32 %v7326, %v7327
    %v7329 = vrot.slane %v7328, 1
    %v7330 = vadd.f32 %v7328, %v7329
    %v7331 = vpack.c.bf16 %v7319, %v7319
    %v7333 = vsel %vm2101, %v7331, 0
    %7335 = vmatprep.subr.bf16.mxu0 0
    %7336 = vmatpush1.bf16.msra.mxu0 %v2378
    %7337 = vmatprep.subr.bf16.mxu0 0
    %7338 = vmatpush1.bf16.msra.mxu0 %v2379
    %7339 = vmatprep.subr.bf16.mxu0 0
    %7340 = vmatpush1.bf16.msra.mxu0 %v2380
    %7341 = vmatprep.subr.bf16.mxu0 0
    %7342 = vmatpush1.bf16.msra.mxu0 %v2381
    %7343 = vmatprep.subr.bf16.mxu0 0
    %7344 = vmatpush1.bf16.msra.mxu0 0
    %7345 = vmatprep.subr.bf16.mxu0 0
    %7346 = vmatpush1.bf16.msra.mxu0 0
    %7347 = vmatprep.subr.bf16.mxu0 0
    %7348 = vmatpush1.bf16.msra.mxu0 0
    %7349 = vmatprep.subr.bf16.mxu0 0
    %7350 = vmatpush1.bf16.msra.mxu0 0
    %7351 = vmatprep.subr.bf16.mxu0 0
    %7352 = vmatpush1.bf16.msra.mxu0 0
    %7353 = vmatprep.subr.bf16.mxu0 0
    %7354 = vmatpush1.bf16.msra.mxu0 0
    %7355 = vmatprep.subr.bf16.mxu0 0
    %7356 = vmatpush1.bf16.msra.mxu0 0
    %7357 = vmatprep.subr.bf16.mxu0 0
    %7358 = vmatpush1.bf16.msra.mxu0 0
    %7359 = vmatprep.subr.bf16.mxu0 0
    %7360 = vmatpush1.bf16.msra.mxu0 0
    %7361 = vmatprep.subr.bf16.mxu0 0
    %7362 = vmatpush1.bf16.msra.mxu0 0
    %7363 = vmatprep.subr.bf16.mxu0 0
    %7364 = vmatpush1.bf16.msra.mxu0 0
    %7365 = vmatprep.subr.bf16.mxu0 0
    %7366 = vmatpush1.bf16.msra.mxu0 0
    %7367 = vmatprep.mubr.bf16.mxu0 0
    %7368 = vmatmul.mubr.bf16.gmra.mrb[0].mxu0 %v7333
    %v7369 = vpop.f32.mrb[0].mxu0
    %v7370 = vadd.f32 0.0, %v7369
    %v7371 = vpop.f32.mrb[0].mxu0
    %v7372 = vpop.f32.mrb[0].mxu0
    %v7373 = vpop.f32.mrb[0].mxu0
    %7374 = vdwg.mxu0
    %v7375 = vpack.c.bf16 %v7330, %v7330
    %v7377 = vsel %vm2101, %v7375, 0
    %7379 = vmatprep.subr.bf16.mxu0 0
    %7380 = vmatpush1.bf16.msra.mxu0 %v2378
    %7381 = vmatprep.subr.bf16.mxu0 0
    %7382 = vmatpush1.bf16.msra.mxu0 %v2379
    %7383 = vmatprep.subr.bf16.mxu0 0
    %7384 = vmatpush1.bf16.msra.mxu0 %v2380
    %7385 = vmatprep.subr.bf16.mxu0 0
    %7386 = vmatpush1.bf16.msra.mxu0 %v2381
    %7387 = vmatprep.subr.bf16.mxu0 0
    %7388 = vmatpush1.bf16.msra.mxu0 0
    %7389 = vmatprep.subr.bf16.mxu0 0
    %7390 = vmatpush1.bf16.msra.mxu0 0
    %7391 = vmatprep.subr.bf16.mxu0 0
    %7392 = vmatpush1.bf16.msra.mxu0 0
    %7393 = vmatprep.subr.bf16.mxu0 0
    %7394 = vmatpush1.bf16.msra.mxu0 0
    %7395 = vmatprep.subr.bf16.mxu0 0
    %7396 = vmatpush1.bf16.msra.mxu0 0
    %7397 = vmatprep.subr.bf16.mxu0 0
    %7398 = vmatpush1.bf16.msra.mxu0 0
    %7399 = vmatprep.subr.bf16.mxu0 0
    %7400 = vmatpush1.bf16.msra.mxu0 0
    %7401 = vmatprep.subr.bf16.mxu0 0
    %7402 = vmatpush1.bf16.msra.mxu0 0
    %7403 = vmatprep.subr.bf16.mxu0 0
    %7404 = vmatpush1.bf16.msra.mxu0 0
    %7405 = vmatprep.subr.bf16.mxu0 0
    %7406 = vmatpush1.bf16.msra.mxu0 0
    %7407 = vmatprep.subr.bf16.mxu0 0
    %7408 = vmatpush1.bf16.msra.mxu0 0
    %7409 = vmatprep.subr.bf16.mxu0 0
    %7410 = vmatpush1.bf16.msra.mxu0 0
    %7411 = vmatprep.mubr.bf16.mxu0 0
    %7412 = vmatmul.mubr.bf16.gmra.mrb[0].mxu0 %v7377
    %v7413 = vpop.f32.mrb[0].mxu0
    %v7414 = vadd.f32 0.0, %v7413
    %v7415 = vpop.f32.mrb[0].mxu0
    %v7416 = vpop.f32.mrb[0].mxu0
    %v7417 = vpop.f32.mrb[0].mxu0
    %7418 = vdwg.mxu0
    %v7419 = vmul.f32 %v7370, 0.0078125
    %v7420 = vmul.f32 %v7414, 0.0078125
    %v7421 = vmul.f32 %v7419, %v7419
    %v7422 = vsub.f32 %v7420, %v7421
    %v7423 = vmax.f32 %v7422, 0.0
    %v7424 = vadd.f32 %v7423, 1e-05
    %v7425 = vrsqrt.pop %v7424
    %v7426 = vmul.f32 %v7308, %v7425
    %v7427 = vmul.f32 %v7419, %v7426
    %v7428 = vsub.f32 %v7310, %v7427
    %v7429 = vpack.c.bf16 %v7426, %v7426
    %v7431 = vsel %vm1105, %v7429, 0
    %7433 = vmatprep.subr.bf16.mxu0 0
    %7434 = vmatpush1.bf16.msra.mxu0 %v2488
    %7435 = vmatprep.subr.bf16.mxu0 0
    %7436 = vmatpush1.bf16.msra.mxu0 0
    %7437 = vmatprep.subr.bf16.mxu0 0
    %7438 = vmatpush1.bf16.msra.mxu0 0
    %7439 = vmatprep.subr.bf16.mxu0 0
    %7440 = vmatpush1.bf16.msra.mxu0 0
    %7441 = vmatprep.subr.bf16.mxu0 0
    %7442 = vmatpush1.bf16.msra.mxu0 0
    %7443 = vmatprep.subr.bf16.mxu0 0
    %7444 = vmatpush1.bf16.msra.mxu0 0
    %7445 = vmatprep.subr.bf16.mxu0 0
    %7446 = vmatpush1.bf16.msra.mxu0 0
    %7447 = vmatprep.subr.bf16.mxu0 0
    %7448 = vmatpush1.bf16.msra.mxu0 0
    %7449 = vmatprep.subr.bf16.mxu0 0
    %7450 = vmatpush1.bf16.msra.mxu0 0
    %7451 = vmatprep.subr.bf16.mxu0 0
    %7452 = vmatpush1.bf16.msra.mxu0 0
    %7453 = vmatprep.subr.bf16.mxu0 0
    %7454 = vmatpush1.bf16.msra.mxu0 0
    %7455 = vmatprep.subr.bf16.mxu0 0
    %7456 = vmatpush1.bf16.msra.mxu0 0
    %7457 = vmatprep.subr.bf16.mxu0 0
    %7458 = vmatpush1.bf16.msra.mxu0 0
    %7459 = vmatprep.subr.bf16.mxu0 0
    %7460 = vmatpush1.bf16.msra.mxu0 0
    %7461 = vmatprep.subr.bf16.mxu0 0
    %7462 = vmatpush1.bf16.msra.mxu0 0
    %7463 = vmatprep.subr.bf16.mxu0 0
    %7464 = vmatpush1.bf16.msra.mxu0 0
    %7465 = vmatprep.mubr.bf16.mxu0 0
    %7466 = vmatmul.mubr.bf16.gmra.mrb[0].mxu0 %v7431
    %v7467 = vpop.f32.mrb[0].mxu0
    %v7468 = vadd.f32 0.0, %v7467
    %v7469 = vpop.f32.mrb[0].mxu0
    %v7470 = vpop.f32.mrb[0].mxu0
    %v7471 = vpop.f32.mrb[0].mxu0
    %7472 = vdwg.mxu0
    %v7473 = vpack.c.bf16 %v7428, %v7428
    %v7475 = vsel %vm1105, %v7473, 0
    %7477 = vmatprep.subr.bf16.mxu0 0
    %7478 = vmatpush1.bf16.msra.mxu0 %v2488
    %7479 = vmatprep.subr.bf16.mxu0 0
    %7480 = vmatpush1.bf16.msra.mxu0 0
    %7481 = vmatprep.subr.bf16.mxu0 0
    %7482 = vmatpush1.bf16.msra.mxu0 0
    %7483 = vmatprep.subr.bf16.mxu0 0
    %7484 = vmatpush1.bf16.msra.mxu0 0
    %7485 = vmatprep.subr.bf16.mxu0 0
    %7486 = vmatpush1.bf16.msra.mxu0 0
    %7487 = vmatprep.subr.bf16.mxu0 0
    %7488 = vmatpush1.bf16.msra.mxu0 0
    %7489 = vmatprep.subr.bf16.mxu0 0
    %7490 = vmatpush1.bf16.msra.mxu0 0
    %7491 = vmatprep.subr.bf16.mxu0 0
    %7492 = vmatpush1.bf16.msra.mxu0 0
    %7493 = vmatprep.subr.bf16.mxu0 0
    %7494 = vmatpush1.bf16.msra.mxu0 0
    %7495 = vmatprep.subr.bf16.mxu0 0
    %7496 = vmatpush1.bf16.msra.mxu0 0
    %7497 = vmatprep.subr.bf16.mxu0 0
    %7498 = vmatpush1.bf16.msra.mxu0 0
    %7499 = vmatprep.subr.bf16.mxu0 0
    %7500 = vmatpush1.bf16.msra.mxu0 0
    %7501 = vmatprep.subr.bf16.mxu0 0
    %7502 = vmatpush1.bf16.msra.mxu0 0
    %7503 = vmatprep.subr.bf16.mxu0 0
    %7504 = vmatpush1.bf16.msra.mxu0 0
    %7505 = vmatprep.subr.bf16.mxu0 0
    %7506 = vmatpush1.bf16.msra.mxu0 0
    %7507 = vmatprep.subr.bf16.mxu0 0
    %7508 = vmatpush1.bf16.msra.mxu0 0
    %7509 = vmatprep.mubr.bf16.mxu0 0
    %7510 = vmatmul.mubr.bf16.gmra.mrb[0].mxu0 %v7475
    %v7511 = vpop.f32.mrb[0].mxu0
    %v7512 = vadd.f32 0.0, %v7511
    %v7513 = vpop.f32.mrb[0].mxu0
    %v7514 = vpop.f32.mrb[0].mxu0
    %v7515 = vpop.f32.mrb[0].mxu0
    %7516 = vdwg.mxu0
    %v7517 = vlaneseq
    %v7518 = vshrl.u32 %v7517, 7
    %v7519 = vsub.s32 0, %v7518
    %v7520 = vrot.slane %v7468, %v7519
    %v7521 = vmul.f32 %v7305, %v7520
    %v7522 = vmul.f32 %v7306, %v7520
    %v7523 = vlaneseq
    %v7524 = vshrl.u32 %v7523, 7
    %v7525 = vsub.s32 0, %v7524
    %v7526 = vrot.slane %v7512, %v7525
    %v7527 = vadd.f32 %v7521, %v7526
    %v7528 = vadd.f32 %v7522, %v7526
    %v7529 = vpack.c.bf16 %v7528, %v7527
    %v7530 = vld [vmem:[#allocation24] sm:$0x1]
    %v7531 = vld [vmem:[#allocation22] sm:$0xf]
    %v7532 = vld [vmem:[#allocation22 + $0x4] sm:$0xf]
    %v7533 = vld [vmem:[#allocation22 + $0x8] sm:$0xf]
    %v7534 = vld [vmem:[#allocation22 + $0xc] sm:$0xf]
    %v7535 = vld [vmem:[#allocation22 + $0x10] sm:$0xf]
    %v7536 = vld [vmem:[#allocation22 + $0x14] sm:$0xf]
    %v7537 = vld [vmem:[#allocation22 + $0x18] sm:$0xf]
    %v7538 = vld [vmem:[#allocation22 + $0x1c] sm:$0xf]
    %v7547 = vunpack.c.l.b16 %v7531
    %v7548 = vunpack.c.l.b16 %v7532
    %v7549 = vunpack.c.l.b16 %v7533
    %v7550 = vunpack.c.l.b16 %v7534
    %v7551 = vunpack.c.l.b16 %v7535
    %v7552 = vunpack.c.l.b16 %v7536
    %v7553 = vunpack.c.l.b16 %v7537
    %v7554 = vunpack.c.l.b16 %v7538
    %v7555 = vpack.c.b16 %v7548, %v7547
    %v7556 = vpack.c.b16 %v7550, %v7549
    %v7557 = vpack.c.b16 %v7552, %v7551
    %v7558 = vpack.c.b16 %v7554, %v7553
    %v7564 = vsel %vm2101, %v7529, 0
    %7566 = vmatprep.subr.bf16.mxu0 0
    %7567 = vmatpush1.bf16.msra.mxu0 %v7555
    %7568 = vmatprep.subr.bf16.mxu0 0
    %7569 = vmatpush1.bf16.msra.mxu0 %v7556
    %7570 = vmatprep.subr.bf16.mxu0 0
    %7571 = vmatpush1.bf16.msra.mxu0 %v7557
    %7572 = vmatprep.subr.bf16.mxu0 0
    %7573 = vmatpush1.bf16.msra.mxu0 %v7558
    %7574 = vmatprep.subr.bf16.mxu0 0
    %7575 = vmatpush1.bf16.msra.mxu0 0
    %7576 = vmatprep.subr.bf16.mxu0 0
    %7577 = vmatpush1.bf16.msra.mxu0 0
    %7578 = vmatprep.subr.bf16.mxu0 0
    %7579 = vmatpush1.bf16.msra.mxu0 0
    %7580 = vmatprep.subr.bf16.mxu0 0
    %7581 = vmatpush1.bf16.msra.mxu0 0
    %7582 = vmatprep.subr.bf16.mxu0 0
    %7583 = vmatpush1.bf16.msra.mxu0 0
    %7584 = vmatprep.subr.bf16.mxu0 0
    %7585 = vmatpush1.bf16.msra.mxu0 0
    %7586 = vmatprep.subr.bf16.mxu0 0
    %7587 = vmatpush1.bf16.msra.mxu0 0
    %7588 = vmatprep.subr.bf16.mxu0 0
    %7589 = vmatpush1.bf16.msra.mxu0 0
    %7590 = vmatprep.subr.bf16.mxu0 0
    %7591 = vmatpush1.bf16.msra.mxu0 0
    %7592 = vmatprep.subr.bf16.mxu0 0
    %7593 = vmatpush1.bf16.msra.mxu0 0
    %7594 = vmatprep.subr.bf16.mxu0 0
    %7595 = vmatpush1.bf16.msra.mxu0 0
    %7596 = vmatprep.subr.bf16.mxu0 0
    %7597 = vmatpush1.bf16.msra.mxu0 0
    %7598 = vmatprep.mubr.bf16.mxu0 0
    %7599 = vmatmul.mubr.bf16.gmra.mrb[0].mxu0 %v7564
    %v7600 = vpop.f32.mrb[0].mxu0
    %v7601 = vadd.f32 0.0, %v7600
    %v7602 = vpop.f32.mrb[0].mxu0
    %v7603 = vpop.f32.mrb[0].mxu0
    %v7604 = vadd.f32 0.0, %v7603
    %v7605 = vpop.f32.mrb[0].mxu0
    %7606 = vdwg.mxu0
    %v7607 = vpack.c.bf16 %v7604, %v7601
    %7608 = vmatprep.subr.bf16.mxu0 0
    %7609 = vmatpush1.bf16.msra.mxu0 %v7607
    %7610 = vmatprep.subr.bf16.mxu0 0
    %7611 = vmatpush1.bf16.msra.mxu0 0
    %7612 = vmatprep.subr.bf16.mxu0 0
    %7613 = vmatpush1.bf16.msra.mxu0 0
    %7614 = vmatprep.subr.bf16.mxu0 0
    %7615 = vmatpush1.bf16.msra.mxu0 0
    %7616 = vmatprep.subr.bf16.mxu0 0
    %7617 = vmatpush1.bf16.msra.mxu0 0
    %7618 = vmatprep.subr.bf16.mxu0 0
    %7619 = vmatpush1.bf16.msra.mxu0 0
    %7620 = vmatprep.subr.bf16.mxu0 0
    %7621 = vmatpush1.bf16.msra.mxu0 0
    %7622 = vmatprep.subr.bf16.mxu0 0
    %7623 = vmatpush1.bf16.msra.mxu0 0
    %7624 = vmatprep.subr.bf16.mxu0 0
    %7625 = vmatpush1.bf16.msra.mxu0 0
    %7626 = vmatprep.subr.bf16.mxu0 0
    %7627 = vmatpush1.bf16.msra.mxu0 0
    %7628 = vmatprep.subr.bf16.mxu0 0
    %7629 = vmatpush1.bf16.msra.mxu0 0
    %7630 = vmatprep.subr.bf16.mxu0 0
    %7631 = vmatpush1.bf16.msra.mxu0 0
    %7632 = vmatprep.subr.bf16.mxu0 0
    %7633 = vmatpush1.bf16.msra.mxu0 0
    %7634 = vmatprep.subr.bf16.mxu0 0
    %7635 = vmatpush1.bf16.msra.mxu0 0
    %7636 = vmatprep.subr.bf16.mxu0 0
    %7637 = vmatpush1.bf16.msra.mxu0 0
    %7638 = vmatprep.subr.bf16.mxu0 0
    %7639 = vmatpush1.bf16.msra.mxu0 0
    %7640 = vmatprep.mubr.bf16.mxu0 0
    %7641 = vmatmul.mubr.bf16.gmra.mrb[0].mxu0 %v3154
    %v7642 = vpop.f32.mrb[0].mxu0
    %v7643 = vadd.f32 0.0, %v7642
    %v7644 = vpop.f32.mrb[0].mxu0
    %v7645 = vpop.f32.mrb[0].mxu0
    %v7646 = vadd.f32 0.0, %v7645
    %v7647 = vpop.f32.mrb[0].mxu0
    %7648 = vmatprep.mubr.bf16.mxu0 0
    %7649 = vmatmul.mubr.bf16.gmra.mrb[0].mxu0 %v3157
    %v7650 = vpop.f32.mrb[0].mxu0
    %v7651 = vadd.f32 0.0, %v7650
    %v7652 = vpop.f32.mrb[0].mxu0
    %v7653 = vpop.f32.mrb[0].mxu0
    %v7654 = vadd.f32 0.0, %v7653
    %v7655 = vpop.f32.mrb[0].mxu0
    %7656 = vdwg.mxu0
    %v7658 = vlaneseq
    %v7659 = vshrl.u32 %v7658, 7
    %v7660 = vsub.s32 0, %v7659
    %v7661 = vrot.slane %v7530, %v7660
    %v7663 = vadd.f32 %v7661, %v7643
    %v7664 = vadd.f32 %v7661, %v7646
    %v7665 = vadd.f32 %v7661, %v7651
    %v7666 = vadd.f32 %v7661, %v7654
    %s7667 = scalar_lea.vmem [#allocation22], 32
    %v7668 = vld [vmem:[%s7667] sm:$0xf]
    %v7669 = vld [vmem:[%s7667 + $0x4] sm:$0xf]
    %v7670 = vld [vmem:[%s7667 + $0x8] sm:$0xf]
    %v7671 = vld [vmem:[%s7667 + $0xc] sm:$0xf]
    %v7672 = vld [vmem:[%s7667 + $0x10] sm:$0xf]
    %v7673 = vld [vmem:[%s7667 + $0x14] sm:$0xf]
    %v7674 = vld [vmem:[%s7667 + $0x18] sm:$0xf]
    %v7675 = vld [vmem:[%s7667 + $0x1c] sm:$0xf]
    %v7684 = vunpack.c.l.b16 %v7668
    %v7685 = vunpack.c.l.b16 %v7669
    %v7686 = vunpack.c.l.b16 %v7670
    %v7687 = vunpack.c.l.b16 %v7671
    %v7688 = vunpack.c.l.b16 %v7672
    %v7689 = vunpack.c.l.b16 %v7673
    %v7690 = vunpack.c.l.b16 %v7674
    %v7691 = vunpack.c.l.b16 %v7675
    %v7692 = vpack.c.b16 %v7685, %v7684
    %v7693 = vpack.c.b16 %v7687, %v7686
    %v7694 = vpack.c.b16 %v7689, %v7688
    %v7695 = vpack.c.b16 %v7691, %v7690
    %7700 = vmatprep.subr.bf16.mxu0 0
    %7701 = vmatpush1.bf16.msra.mxu0 %v7692
    %7702 = vmatprep.subr.bf16.mxu0 0
    %7703 = vmatpush1.bf16.msra.mxu0 %v7693
    %7704 = vmatprep.subr.bf16.mxu0 0
    %7705 = vmatpush1.bf16.msra.mxu0 %v7694
    %7706 = vmatprep.subr.bf16.mxu0 0
    %7707 = vmatpush1.bf16.msra.mxu0 %v7695
    %7708 = vmatprep.subr.bf16.mxu0 0
    %7709 = vmatpush1.bf16.msra.mxu0 0
    %7710 = vmatprep.subr.bf16.mxu0 0
    %7711 = vmatpush1.bf16.msra.mxu0 0
    %7712 = vmatprep.subr.bf16.mxu0 0
    %7713 = vmatpush1.bf16.msra.mxu0 0
    %7714 = vmatprep.subr.bf16.mxu0 0
    %7715 = vmatpush1.bf16.msra.mxu0 0
    %7716 = vmatprep.subr.bf16.mxu0 0
    %7717 = vmatpush1.bf16.msra.mxu0 0
    %7718 = vmatprep.subr.bf16.mxu0 0
    %7719 = vmatpush1.bf16.msra.mxu0 0
    %7720 = vmatprep.subr.bf16.mxu0 0
    %7721 = vmatpush1.bf16.msra.mxu0 0
    %7722 = vmatprep.subr.bf16.mxu0 0
    %7723 = vmatpush1.bf16.msra.mxu0 0
    %7724 = vmatprep.subr.bf16.mxu0 0
    %7725 = vmatpush1.bf16.msra.mxu0 0
    %7726 = vmatprep.subr.bf16.mxu0 0
    %7727 = vmatpush1.bf16.msra.mxu0 0
    %7728 = vmatprep.subr.bf16.mxu0 0
    %7729 = vmatpush1.bf16.msra.mxu0 0
    %7730 = vmatprep.subr.bf16.mxu0 0
    %7731 = vmatpush1.bf16.msra.mxu0 0
    %7732 = vmatprep.mubr.bf16.mxu0 0
    %7733 = vmatmul.mubr.bf16.gmra.mrb[0].mxu0 %v7564
    %v7734 = vpop.f32.mrb[0].mxu0
    %v7735 = vadd.f32 0.0, %v7734
    %v7736 = vpop.f32.mrb[0].mxu0
    %v7737 = vpop.f32.mrb[0].mxu0
    %v7738 = vadd.f32 0.0, %v7737
    %v7739 = vpop.f32.mrb[0].mxu0
    %7740 = vdwg.mxu0
    %v7741 = vpack.c.bf16 %v7738, %v7735
    %7742 = vmatprep.subr.bf16.mxu0 0
    %7743 = vmatpush1.bf16.msra.mxu0 %v7741
    %7744 = vmatprep.subr.bf16.mxu0 0
    %7745 = vmatpush1.bf16.msra.mxu0 0
    %7746 = vmatprep.subr.bf16.mxu0 0
    %7747 = vmatpush1.bf16.msra.mxu0 0
    %7748 = vmatprep.subr.bf16.mxu0 0
    %7749 = vmatpush1.bf16.msra.mxu0 0
    %7750 = vmatprep.subr.bf16.mxu0 0
    %7751 = vmatpush1.bf16.msra.mxu0 0
    %7752 = vmatprep.subr.bf16.mxu0 0
    %7753 = vmatpush1.bf16.msra.mxu0 0
    %7754 = vmatprep.subr.bf16.mxu0 0
    %7755 = vmatpush1.bf16.msra.mxu0 0
    %7756 = vmatprep.subr.bf16.mxu0 0
    %7757 = vmatpush1.bf16.msra.mxu0 0
    %7758 = vmatprep.subr.bf16.mxu0 0
    %7759 = vmatpush1.bf16.msra.mxu0 0
    %7760 = vmatprep.subr.bf16.mxu0 0
    %7761 = vmatpush1.bf16.msra.mxu0 0
    %7762 = vmatprep.subr.bf16.mxu0 0
    %7763 = vmatpush1.bf16.msra.mxu0 0
    %7764 = vmatprep.subr.bf16.mxu0 0
    %7765 = vmatpush1.bf16.msra.mxu0 0
    %7766 = vmatprep.subr.bf16.mxu0 0
    %7767 = vmatpush1.bf16.msra.mxu0 0
    %7768 = vmatprep.subr.bf16.mxu0 0
    %7769 = vmatpush1.bf16.msra.mxu0 0
    %7770 = vmatprep.subr.bf16.mxu0 0
    %7771 = vmatpush1.bf16.msra.mxu0 0
    %7772 = vmatprep.subr.bf16.mxu0 0
    %7773 = vmatpush1.bf16.msra.mxu0 0
    %7774 = vmatprep.mubr.bf16.mxu0 0
    %7775 = vmatmul.mubr.bf16.gmra.mrb[0].mxu0 %v3309
    %v7776 = vpop.f32.mrb[0].mxu0
    %v7777 = vadd.f32 0.0, %v7776
    %v7778 = vpop.f32.mrb[0].mxu0
    %v7779 = vpop.f32.mrb[0].mxu0
    %v7780 = vadd.f32 0.0, %v7779
    %v7781 = vpop.f32.mrb[0].mxu0
    %7782 = vmatprep.mubr.bf16.mxu0 0
    %7783 = vmatmul.mubr.bf16.gmra.mrb[0].mxu0 %v3312
    %v7784 = vpop.f32.mrb[0].mxu0
    %v7785 = vadd.f32 0.0, %v7784
    %v7786 = vpop.f32.mrb[0].mxu0
    %v7787 = vpop.f32.mrb[0].mxu0
    %v7788 = vadd.f32 0.0, %v7787
    %v7789 = vpop.f32.mrb[0].mxu0
    %7790 = vdwg.mxu0
    %v7791 = vadd.f32 %v7663, %v7777
    %v7792 = vadd.f32 %v7664, %v7780
    %v7793 = vadd.f32 %v7665, %v7785
    %v7794 = vadd.f32 %v7666, %v7788
    %s7795 = scalar_lea.vmem [#allocation22], 64
    %v7796 = vld [vmem:[%s7795] sm:$0xf]
    %v7797 = vld [vmem:[%s7795 + $0x4] sm:$0xf]
    %v7798 = vld [vmem:[%s7795 + $0x8] sm:$0xf]
    %v7799 = vld [vmem:[%s7795 + $0xc] sm:$0xf]
    %v7800 = vld [vmem:[%s7795 + $0x10] sm:$0xf]
    %v7801 = vld [vmem:[%s7795 + $0x14] sm:$0xf]
    %v7802 = vld [vmem:[%s7795 + $0x18] sm:$0xf]
    %v7803 = vld [vmem:[%s7795 + $0x1c] sm:$0xf]
    %v7812 = vunpack.c.l.b16 %v7796
    %v7813 = vunpack.c.l.b16 %v7797
    %v7814 = vunpack.c.l.b16 %v7798
    %v7815 = vunpack.c.l.b16 %v7799
    %v7816 = vunpack.c.l.b16 %v7800
    %v7817 = vunpack.c.l.b16 %v7801
    %v7818 = vunpack.c.l.b16 %v7802
    %v7819 = vunpack.c.l.b16 %v7803
    %v7820 = vpack.c.b16 %v7813, %v7812
    %v7821 = vpack.c.b16 %v7815, %v7814
    %v7822 = vpack.c.b16 %v7817, %v7816
    %v7823 = vpack.c.b16 %v7819, %v7818
    %7828 = vmatprep.subr.bf16.mxu0 0
    %7829 = vmatpush1.bf16.msra.mxu0 %v7820
    %7830 = vmatprep.subr.bf16.mxu0 0
    %7831 = vmatpush1.bf16.msra.mxu0 %v7821
    %7832 = vmatprep.subr.bf16.mxu0 0
    %7833 = vmatpush1.bf16.msra.mxu0 %v7822
    %7834 = vmatprep.subr.bf16.mxu0 0
    %7835 = vmatpush1.bf16.msra.mxu0 %v7823
    %7836 = vmatprep.subr.bf16.mxu0 0
    %7837 = vmatpush1.bf16.msra.mxu0 0
    %7838 = vmatprep.subr.bf16.mxu0 0
    %7839 = vmatpush1.bf16.msra.mxu0 0
    %7840 = vmatprep.subr.bf16.mxu0 0
    %7841 = vmatpush1.bf16.msra.mxu0 0
    %7842 = vmatprep.subr.bf16.mxu0 0
    %7843 = vmatpush1.bf16.msra.mxu0 0
    %7844 = vmatprep.subr.bf16.mxu0 0
    %7845 = vmatpush1.bf16.msra.mxu0 0
    %7846 = vmatprep.subr.bf16.mxu0 0
    %7847 = vmatpush1.bf16.msra.mxu0 0
    %7848 = vmatprep.subr.bf16.mxu0 0
    %7849 = vmatpush1.bf16.msra.mxu0 0
    %7850 = vmatprep.subr.bf16.mxu0 0
    %7851 = vmatpush1.bf16.msra.mxu0 0
    %7852 = vmatprep.subr.bf16.mxu0 0
    %7853 = vmatpush1.bf16.msra.mxu0 0
    %7854 = vmatprep.subr.bf16.mxu0 0
    %7855 = vmatpush1.bf16.msra.mxu0 0
    %7856 = vmatprep.subr.bf16.mxu0 0
    %7857 = vmatpush1.bf16.msra.mxu0 0
    %7858 = vmatprep.subr.bf16.mxu0 0
    %7859 = vmatpush1.bf16.msra.mxu0 0
    %7860 = vmatprep.mubr.bf16.mxu0 0
    %7861 = vmatmul.mubr.bf16.gmra.mrb[0].mxu0 %v7564
    %v7862 = vpop.f32.mrb[0].mxu0
    %v7863 = vadd.f32 0.0, %v7862
    %v7864 = vpop.f32.mrb[0].mxu0
    %v7865 = vpop.f32.mrb[0].mxu0
    %v7866 = vadd.f32 0.0, %v7865
    %v7867 = vpop.f32.mrb[0].mxu0
    %7868 = vdwg.mxu0
    %v7869 = vpack.c.bf16 %v7866, %v7863
    %7870 = vmatprep.subr.bf16.mxu0 0
    %7871 = vmatpush1.bf16.msra.mxu0 %v7869
    %7872 = vmatprep.subr.bf16.mxu0 0
    %7873 = vmatpush1.bf16.msra.mxu0 0
    %7874 = vmatprep.subr.bf16.mxu0 0
    %7875 = vmatpush1.bf16.msra.mxu0 0
    %7876 = vmatprep.subr.bf16.mxu0 0
    %7877 = vmatpush1.bf16.msra.mxu0 0
    %7878 = vmatprep.subr.bf16.mxu0 0
    %7879 = vmatpush1.bf16.msra.mxu0 0
    %7880 = vmatprep.subr.bf16.mxu0 0
    %7881 = vmatpush1.bf16.msra.mxu0 0
    %7882 = vmatprep.subr.bf16.mxu0 0
    %7883 = vmatpush1.bf16.msra.mxu0 0
    %7884 = vmatprep.subr.bf16.mxu0 0
    %7885 = vmatpush1.bf16.msra.mxu0 0
    %7886 = vmatprep.subr.bf16.mxu0 0
    %7887 = vmatpush1.bf16.msra.mxu0 0
    %7888 = vmatprep.subr.bf16.mxu0 0
    %7889 = vmatpush1.bf16.msra.mxu0 0
    %7890 = vmatprep.subr.bf16.mxu0 0
    %7891 = vmatpush1.bf16.msra.mxu0 0
    %7892 = vmatprep.subr.bf16.mxu0 0
    %7893 = vmatpush1.bf16.msra.mxu0 0
    %7894 = vmatprep.subr.bf16.mxu0 0
    %7895 = vmatpush1.bf16.msra.mxu0 0
    %7896 = vmatprep.subr.bf16.mxu0 0
    %7897 = vmatpush1.bf16.msra.mxu0 0
    %7898 = vmatprep.subr.bf16.mxu0 0
    %7899 = vmatpush1.bf16.msra.mxu0 0
    %7900 = vmatprep.subr.bf16.mxu0 0
    %7901 = vmatpush1.bf16.msra.mxu0 0
    %7902 = vmatprep.mubr.bf16.mxu0 0
    %7903 = vmatmul.mubr.bf16.gmra.mrb[0].mxu0 %v3458
    %v7904 = vpop.f32.mrb[0].mxu0
    %v7905 = vadd.f32 0.0, %v7904
    %v7906 = vpop.f32.mrb[0].mxu0
    %v7907 = vpop.f32.mrb[0].mxu0
    %v7908 = vadd.f32 0.0, %v7907
    %v7909 = vpop.f32.mrb[0].mxu0
    %7910 = vmatprep.mubr.bf16.mxu0 0
    %7911 = vmatmul.mubr.bf16.gmra.mrb[0].mxu0 %v3461
    %v7912 = vpop.f32.mrb[0].mxu0
    %v7913 = vadd.f32 0.0, %v7912
    %v7914 = vpop.f32.mrb[0].mxu0
    %v7915 = vpop.f32.mrb[0].mxu0
    %v7916 = vadd.f32 0.0, %v7915
    %v7917 = vpop.f32.mrb[0].mxu0
    %7918 = vdwg.mxu0
    %v7919 = vadd.f32 %v7791, %v7905
    %v7920 = vadd.f32 %v7792, %v7908
    %v7921 = vadd.f32 %v7793, %v7913
    %v7922 = vadd.f32 %v7794, %v7916
    %v7923 = vpack.c.bf16 %v6442, %v6441
    %v7924 = vpack.c.bf16 %v6444, %v6443
    %v7925 = vpack.c.bf16 %v7920, %v7919
    %v7926 = vpack.c.bf16 %v7922, %v7921
    %v7927 = vld [vmem:[%s75] sm:$0xf]
    %v7928 = vld [vmem:[%s75 + $0x4] sm:$0xf]
    %v7929 = vld [vmem:[%s75 + $0x8] sm:$0xf]
    %v7930 = vld [vmem:[%s75 + $0xc] sm:$0xf]
    %v7931 = vld [vmem:[%s75 + $0x10] sm:$0xf]
    %v7932 = vld [vmem:[%s75 + $0x14] sm:$0xf]
    %v7933 = vld [vmem:[%s75 + $0x18] sm:$0xf]
    %v7934 = vld [vmem:[%s75 + $0x1c] sm:$0xf]
    %v7935 = vld [vmem:[%s75 + $0x20] sm:$0xf]
    %v7936 = vld [vmem:[%s75 + $0x24] sm:$0xf]
    %v7937 = vld [vmem:[%s75 + $0x28] sm:$0xf]
    %v7938 = vld [vmem:[%s75 + $0x2c] sm:$0xf]
    %v7939 = vld [vmem:[%s75 + $0x30] sm:$0xf]
    %v7940 = vld [vmem:[%s75 + $0x34] sm:$0xf]
    %v7941 = vld [vmem:[%s75 + $0x38] sm:$0xf]
    %v7942 = vld [vmem:[%s75 + $0x3c] sm:$0xf]
    %v7943 = vld [vmem:[%s77] sm:$0xf]
    %v7944 = vld [vmem:[%s77 + $0x4] sm:$0xf]
    %v7945 = vld [vmem:[%s77 + $0x8] sm:$0xf]
    %v7946 = vld [vmem:[%s77 + $0xc] sm:$0xf]
    %v7947 = vld [vmem:[%s77 + $0x10] sm:$0xf]
    %v7948 = vld [vmem:[%s77 + $0x14] sm:$0xf]
    %v7949 = vld [vmem:[%s77 + $0x18] sm:$0xf]
    %v7950 = vld [vmem:[%s77 + $0x1c] sm:$0xf]
    %v7951 = vld [vmem:[%s77 + $0x20] sm:$0xf]
    %v7952 = vld [vmem:[%s77 + $0x24] sm:$0xf]
    %v7953 = vld [vmem:[%s77 + $0x28] sm:$0xf]
    %v7954 = vld [vmem:[%s77 + $0x2c] sm:$0xf]
    %v7955 = vld [vmem:[%s77 + $0x30] sm:$0xf]
    %v7956 = vld [vmem:[%s77 + $0x34] sm:$0xf]
    %v7957 = vld [vmem:[%s77 + $0x38] sm:$0xf]
    %v7958 = vld [vmem:[%s77 + $0x3c] sm:$0xf]
    %v7975 = vunpack.c.l.b16 %v7943
    %v7976 = vunpack.c.l.b16 %v7944
    %v7977 = vunpack.c.l.b16 %v7945
    %v7978 = vunpack.c.l.b16 %v7946
    %v7979 = vunpack.c.l.b16 %v7947
    %v7980 = vunpack.c.l.b16 %v7948
    %v7981 = vunpack.c.l.b16 %v7949
    %v7982 = vunpack.c.l.b16 %v7950
    %v7983 = vunpack.c.l.b16 %v7951
    %v7984 = vunpack.c.l.b16 %v7952
    %v7985 = vunpack.c.l.b16 %v7953
    %v7986 = vunpack.c.l.b16 %v7954
    %v7987 = vunpack.c.l.b16 %v7955
    %v7988 = vunpack.c.l.b16 %v7956
    %v7989 = vunpack.c.l.b16 %v7957
    %v7990 = vunpack.c.l.b16 %v7958
    %v7991 = vpack.c.b16 %v7976, %v7975
    %v7992 = vpack.c.b16 %v7978, %v7977
    %v7993 = vpack.c.b16 %v7980, %v7979
    %v7994 = vpack.c.b16 %v7982, %v7981
    %v7995 = vpack.c.b16 %v7984, %v7983
    %v7996 = vpack.c.b16 %v7986, %v7985
    %v7997 = vpack.c.b16 %v7988, %v7987
    %v7998 = vpack.c.b16 %v7990, %v7989
    %8007 = vmatprep.subr.bf16.mxu0 0
    %8008 = vmatpush1.bf16.msra.mxu0 %v7991
    %8009 = vmatprep.subr.bf16.mxu0 0
    %8010 = vmatpush1.bf16.msra.mxu0 %v7992
    %8011 = vmatprep.subr.bf16.mxu0 0
    %8012 = vmatpush1.bf16.msra.mxu0 %v7993
    %8013 = vmatprep.subr.bf16.mxu0 0
    %8014 = vmatpush1.bf16.msra.mxu0 %v7994
    %8015 = vmatprep.subr.bf16.mxu0 0
    %8016 = vmatpush1.bf16.msra.mxu0 %v7995
    %8017 = vmatprep.subr.bf16.mxu0 0
    %8018 = vmatpush1.bf16.msra.mxu0 %v7996
    %8019 = vmatprep.subr.bf16.mxu0 0
    %8020 = vmatpush1.bf16.msra.mxu0 %v7997
    %8021 = vmatprep.subr.bf16.mxu0 0
    %8022 = vmatpush1.bf16.msra.mxu0 %v7998
    %8023 = vmatprep.subr.bf16.mxu0 0
    %8024 = vmatpush1.bf16.msra.mxu0 0
    %8025 = vmatprep.subr.bf16.mxu0 0
    %8026 = vmatpush1.bf16.msra.mxu0 0
    %8027 = vmatprep.subr.bf16.mxu0 0
    %8028 = vmatpush1.bf16.msra.mxu0 0
    %8029 = vmatprep.subr.bf16.mxu0 0
    %8030 = vmatpush1.bf16.msra.mxu0 0
    %8031 = vmatprep.subr.bf16.mxu0 0
    %8032 = vmatpush1.bf16.msra.mxu0 0
    %8033 = vmatprep.subr.bf16.mxu0 0
    %8034 = vmatpush1.bf16.msra.mxu0 0
    %8035 = vmatprep.subr.bf16.mxu0 0
    %8036 = vmatpush1.bf16.msra.mxu0 0
    %8037 = vmatprep.subr.bf16.mxu0 0
    %8038 = vmatpush1.bf16.msra.mxu0 0
    %8039 = vmatprep.mubr.bf16.mxu0 0
    %8040 = vmatmul.mubr.bf16.gmra.mrb[0].mxu0 %v7925
    %v8041 = vpop.f32.mrb[0].mxu0
    %v8042 = vadd.f32 0.0, %v8041
    %v8043 = vpop.f32.mrb[0].mxu0
    %v8044 = vpop.f32.mrb[0].mxu0
    %v8045 = vadd.f32 0.0, %v8044
    %v8046 = vpop.f32.mrb[0].mxu0
    %8047 = vmatprep.mubr.bf16.mxu0 0
    %8048 = vmatmul.mubr.bf16.gmra.mrb[0].mxu0 %v7926
    %v8049 = vpop.f32.mrb[0].mxu0
    %v8050 = vadd.f32 0.0, %v8049
    %v8051 = vpop.f32.mrb[0].mxu0
    %v8052 = vpop.f32.mrb[0].mxu0
    %v8053 = vadd.f32 0.0, %v8052
    %v8054 = vpop.f32.mrb[0].mxu0
    %8055 = vdwg.mxu0
    %v8072 = vunpack.c.l.b16 %v7927
    %v8073 = vunpack.c.l.b16 %v7928
    %v8074 = vunpack.c.l.b16 %v7929
    %v8075 = vunpack.c.l.b16 %v7930
    %v8076 = vunpack.c.l.b16 %v7931
    %v8077 = vunpack.c.l.b16 %v7932
    %v8078 = vunpack.c.l.b16 %v7933
    %v8079 = vunpack.c.l.b16 %v7934
    %v8080 = vunpack.c.l.b16 %v7935
    %v8081 = vunpack.c.l.b16 %v7936
    %v8082 = vunpack.c.l.b16 %v7937
    %v8083 = vunpack.c.l.b16 %v7938
    %v8084 = vunpack.c.l.b16 %v7939
    %v8085 = vunpack.c.l.b16 %v7940
    %v8086 = vunpack.c.l.b16 %v7941
    %v8087 = vunpack.c.l.b16 %v7942
    %v8088 = vpack.c.b16 %v8073, %v8072
    %v8089 = vpack.c.b16 %v8075, %v8074
    %v8090 = vpack.c.b16 %v8077, %v8076
    %v8091 = vpack.c.b16 %v8079, %v8078
    %v8092 = vpack.c.b16 %v8081, %v8080
    %v8093 = vpack.c.b16 %v8083, %v8082
    %v8094 = vpack.c.b16 %v8085, %v8084
    %v8095 = vpack.c.b16 %v8087, %v8086
    %8104 = vmatprep.subr.bf16.mxu0 0
    %8105 = vmatpush1.bf16.msra.mxu0 %v8088
    %8106 = vmatprep.subr.bf16.mxu0 0
    %8107 = vmatpush1.bf16.msra.mxu0 %v8089
    %8108 = vmatprep.subr.bf16.mxu0 0
    %8109 = vmatpush1.bf16.msra.mxu0 %v8090
    %8110 = vmatprep.subr.bf16.mxu0 0
    %8111 = vmatpush1.bf16.msra.mxu0 %v8091
    %8112 = vmatprep.subr.bf16.mxu0 0
    %8113 = vmatpush1.bf16.msra.mxu0 %v8092
    %8114 = vmatprep.subr.bf16.mxu0 0
    %8115 = vmatpush1.bf16.msra.mxu0 %v8093
    %8116 = vmatprep.subr.bf16.mxu0 0
    %8117 = vmatpush1.bf16.msra.mxu0 %v8094
    %8118 = vmatprep.subr.bf16.mxu0 0
    %8119 = vmatpush1.bf16.msra.mxu0 %v8095
    %8120 = vmatprep.subr.bf16.mxu0 0
    %8121 = vmatpush1.bf16.msra.mxu0 0
    %8122 = vmatprep.subr.bf16.mxu0 0
    %8123 = vmatpush1.bf16.msra.mxu0 0
    %8124 = vmatprep.subr.bf16.mxu0 0
    %8125 = vmatpush1.bf16.msra.mxu0 0
    %8126 = vmatprep.subr.bf16.mxu0 0
    %8127 = vmatpush1.bf16.msra.mxu0 0
    %8128 = vmatprep.subr.bf16.mxu0 0
    %8129 = vmatpush1.bf16.msra.mxu0 0
    %8130 = vmatprep.subr.bf16.mxu0 0
    %8131 = vmatpush1.bf16.msra.mxu0 0
    %8132 = vmatprep.subr.bf16.mxu0 0
    %8133 = vmatpush1.bf16.msra.mxu0 0
    %8134 = vmatprep.subr.bf16.mxu0 0
    %8135 = vmatpush1.bf16.msra.mxu0 0
    %8136 = vmatprep.mubr.bf16.mxu0 0
    %8137 = vmatmul.mubr.bf16.gmra.mrb[0].mxu0 %v7923
    %v8138 = vpop.f32.mrb[0].mxu0
    %v8139 = vadd.f32 %v8042, %v8138
    %v8140 = vpop.f32.mrb[0].mxu0
    %v8141 = vpop.f32.mrb[0].mxu0
    %v8142 = vadd.f32 %v8045, %v8141
    %v8143 = vpop.f32.mrb[0].mxu0
    %8144 = vmatprep.mubr.bf16.mxu0 0
    %8145 = vmatmul.mubr.bf16.gmra.mrb[0].mxu0 %v7924
    %v8146 = vpop.f32.mrb[0].mxu0
    %v8147 = vadd.f32 %v8050, %v8146
    %v8148 = vpop.f32.mrb[0].mxu0
    %v8149 = vpop.f32.mrb[0].mxu0
    %v8150 = vadd.f32 %v8053, %v8149
    %v8151 = vpop.f32.mrb[0].mxu0
    %8152 = vdwg.mxu0
    %s8153 = scalar_lea.vmem %s75, 64
    %v8154 = vld [vmem:[%s8153] sm:$0xf]
    %v8155 = vld [vmem:[%s8153 + $0x4] sm:$0xf]
    %v8156 = vld [vmem:[%s8153 + $0x8] sm:$0xf]
    %v8157 = vld [vmem:[%s8153 + $0xc] sm:$0xf]
    %v8158 = vld [vmem:[%s8153 + $0x10] sm:$0xf]
    %v8159 = vld [vmem:[%s8153 + $0x14] sm:$0xf]
    %v8160 = vld [vmem:[%s8153 + $0x18] sm:$0xf]
    %v8161 = vld [vmem:[%s8153 + $0x1c] sm:$0xf]
    %v8162 = vld [vmem:[%s8153 + $0x20] sm:$0xf]
    %v8163 = vld [vmem:[%s8153 + $0x24] sm:$0xf]
    %v8164 = vld [vmem:[%s8153 + $0x28] sm:$0xf]
    %v8165 = vld [vmem:[%s8153 + $0x2c] sm:$0xf]
    %v8166 = vld [vmem:[%s8153 + $0x30] sm:$0xf]
    %v8167 = vld [vmem:[%s8153 + $0x34] sm:$0xf]
    %v8168 = vld [vmem:[%s8153 + $0x38] sm:$0xf]
    %v8169 = vld [vmem:[%s8153 + $0x3c] sm:$0xf]
    %s8170 = scalar_lea.vmem %s77, 64
    %v8171 = vld [vmem:[%s8170] sm:$0xf]
    %v8172 = vld [vmem:[%s8170 + $0x4] sm:$0xf]
    %v8173 = vld [vmem:[%s8170 + $0x8] sm:$0xf]
    %v8174 = vld [vmem:[%s8170 + $0xc] sm:$0xf]
    %v8175 = vld [vmem:[%s8170 + $0x10] sm:$0xf]
    %v8176 = vld [vmem:[%s8170 + $0x14] sm:$0xf]
    %v8177 = vld [vmem:[%s8170 + $0x18] sm:$0xf]
    %v8178 = vld [vmem:[%s8170 + $0x1c] sm:$0xf]
    %v8179 = vld [vmem:[%s8170 + $0x20] sm:$0xf]
    %v8180 = vld [vmem:[%s8170 + $0x24] sm:$0xf]
    %v8181 = vld [vmem:[%s8170 + $0x28] sm:$0xf]
    %v8182 = vld [vmem:[%s8170 + $0x2c] sm:$0xf]
    %v8183 = vld [vmem:[%s8170 + $0x30] sm:$0xf]
    %v8184 = vld [vmem:[%s8170 + $0x34] sm:$0xf]
    %v8185 = vld [vmem:[%s8170 + $0x38] sm:$0xf]
    %v8186 = vld [vmem:[%s8170 + $0x3c] sm:$0xf]
    %v8203 = vunpack.c.l.b16 %v8171
    %v8204 = vunpack.c.l.b16 %v8172
    %v8205 = vunpack.c.l.b16 %v8173
    %v8206 = vunpack.c.l.b16 %v8174
    %v8207 = vunpack.c.l.b16 %v8175
    %v8208 = vunpack.c.l.b16 %v8176
    %v8209 = vunpack.c.l.b16 %v8177
    %v8210 = vunpack.c.l.b16 %v8178
    %v8211 = vunpack.c.l.b16 %v8179
    %v8212 = vunpack.c.l.b16 %v8180
    %v8213 = vunpack.c.l.b16 %v8181
    %v8214 = vunpack.c.l.b16 %v8182
    %v8215 = vunpack.c.l.b16 %v8183
    %v8216 = vunpack.c.l.b16 %v8184
    %v8217 = vunpack.c.l.b16 %v8185
    %v8218 = vunpack.c.l.b16 %v8186
    %v8219 = vpack.c.b16 %v8204, %v8203
    %v8220 = vpack.c.b16 %v8206, %v8205
    %v8221 = vpack.c.b16 %v8208, %v8207
    %v8222 = vpack.c.b16 %v8210, %v8209
    %v8223 = vpack.c.b16 %v8212, %v8211
    %v8224 = vpack.c.b16 %v8214, %v8213
    %v8225 = vpack.c.b16 %v8216, %v8215
    %v8226 = vpack.c.b16 %v8218, %v8217
    %8235 = vmatprep.subr.bf16.mxu0 0
    %8236 = vmatpush1.bf16.msra.mxu0 %v8219
    %8237 = vmatprep.subr.bf16.mxu0 0
    %8238 = vmatpush1.bf16.msra.mxu0 %v8220
    %8239 = vmatprep.subr.bf16.mxu0 0
    %8240 = vmatpush1.bf16.msra.mxu0 %v8221
    %8241 = vmatprep.subr.bf16.mxu0 0
    %8242 = vmatpush1.bf16.msra.mxu0 %v8222
    %8243 = vmatprep.subr.bf16.mxu0 0
    %8244 = vmatpush1.bf16.msra.mxu0 %v8223
    %8245 = vmatprep.subr.bf16.mxu0 0
    %8246 = vmatpush1.bf16.msra.mxu0 %v8224
    %8247 = vmatprep.subr.bf16.mxu0 0
    %8248 = vmatpush1.bf16.msra.mxu0 %v8225
    %8249 = vmatprep.subr.bf16.mxu0 0
    %8250 = vmatpush1.bf16.msra.mxu0 %v8226
    %8251 = vmatprep.subr.bf16.mxu0 0
    %8252 = vmatpush1.bf16.msra.mxu0 0
    %8253 = vmatprep.subr.bf16.mxu0 0
    %8254 = vmatpush1.bf16.msra.mxu0 0
    %8255 = vmatprep.subr.bf16.mxu0 0
    %8256 = vmatpush1.bf16.msra.mxu0 0
    %8257 = vmatprep.subr.bf16.mxu0 0
    %8258 = vmatpush1.bf16.msra.mxu0 0
    %8259 = vmatprep.subr.bf16.mxu0 0
    %8260 = vmatpush1.bf16.msra.mxu0 0
    %8261 = vmatprep.subr.bf16.mxu0 0
    %8262 = vmatpush1.bf16.msra.mxu0 0
    %8263 = vmatprep.subr.bf16.mxu0 0
    %8264 = vmatpush1.bf16.msra.mxu0 0
    %8265 = vmatprep.subr.bf16.mxu0 0
    %8266 = vmatpush1.bf16.msra.mxu0 0
    %8267 = vmatprep.mubr.bf16.mxu0 0
    %8268 = vmatmul.mubr.bf16.gmra.mrb[0].mxu0 %v7925
    %v8269 = vpop.f32.mrb[0].mxu0
    %v8270 = vadd.f32 0.0, %v8269
    %v8271 = vpop.f32.mrb[0].mxu0
    %v8272 = vpop.f32.mrb[0].mxu0
    %v8273 = vadd.f32 0.0, %v8272
    %v8274 = vpop.f32.mrb[0].mxu0
    %8275 = vmatprep.mubr.bf16.mxu0 0
    %8276 = vmatmul.mubr.bf16.gmra.mrb[0].mxu0 %v7926
    %v8277 = vpop.f32.mrb[0].mxu0
    %v8278 = vadd.f32 0.0, %v8277
    %v8279 = vpop.f32.mrb[0].mxu0
    %v8280 = vpop.f32.mrb[0].mxu0
    %v8281 = vadd.f32 0.0, %v8280
    %v8282 = vpop.f32.mrb[0].mxu0
    %8283 = vdwg.mxu0
    %v8300 = vunpack.c.l.b16 %v8154
    %v8301 = vunpack.c.l.b16 %v8155
    %v8302 = vunpack.c.l.b16 %v8156
    %v8303 = vunpack.c.l.b16 %v8157
    %v8304 = vunpack.c.l.b16 %v8158
    %v8305 = vunpack.c.l.b16 %v8159
    %v8306 = vunpack.c.l.b16 %v8160
    %v8307 = vunpack.c.l.b16 %v8161
    %v8308 = vunpack.c.l.b16 %v8162
    %v8309 = vunpack.c.l.b16 %v8163
    %v8310 = vunpack.c.l.b16 %v8164
    %v8311 = vunpack.c.l.b16 %v8165
    %v8312 = vunpack.c.l.b16 %v8166
    %v8313 = vunpack.c.l.b16 %v8167
    %v8314 = vunpack.c.l.b16 %v8168
    %v8315 = vunpack.c.l.b16 %v8169
    %v8316 = vpack.c.b16 %v8301, %v8300
    %v8317 = vpack.c.b16 %v8303, %v8302
    %v8318 = vpack.c.b16 %v8305, %v8304
    %v8319 = vpack.c.b16 %v8307, %v8306
    %v8320 = vpack.c.b16 %v8309, %v8308
    %v8321 = vpack.c.b16 %v8311, %v8310
    %v8322 = vpack.c.b16 %v8313, %v8312
    %v8323 = vpack.c.b16 %v8315, %v8314
    %8332 = vmatprep.subr.bf16.mxu0 0
    %8333 = vmatpush1.bf16.msra.mxu0 %v8316
    %8334 = vmatprep.subr.bf16.mxu0 0
    %8335 = vmatpush1.bf16.msra.mxu0 %v8317
    %8336 = vmatprep.subr.bf16.mxu0 0
    %8337 = vmatpush1.bf16.msra.mxu0 %v8318
    %8338 = vmatprep.subr.bf16.mxu0 0
    %8339 = vmatpush1.bf16.msra.mxu0 %v8319
    %8340 = vmatprep.subr.bf16.mxu0 0
    %8341 = vmatpush1.bf16.msra.mxu0 %v8320
    %8342 = vmatprep.subr.bf16.mxu0 0
    %8343 = vmatpush1.bf16.msra.mxu0 %v8321
    %8344 = vmatprep.subr.bf16.mxu0 0
    %8345 = vmatpush1.bf16.msra.mxu0 %v8322
    %8346 = vmatprep.subr.bf16.mxu0 0
    %8347 = vmatpush1.bf16.msra.mxu0 %v8323
    %8348 = vmatprep.subr.bf16.mxu0 0
    %8349 = vmatpush1.bf16.msra.mxu0 0
    %8350 = vmatprep.subr.bf16.mxu0 0
    %8351 = vmatpush1.bf16.msra.mxu0 0
    %8352 = vmatprep.subr.bf16.mxu0 0
    %8353 = vmatpush1.bf16.msra.mxu0 0
    %8354 = vmatprep.subr.bf16.mxu0 0
    %8355 = vmatpush1.bf16.msra.mxu0 0
    %8356 = vmatprep.subr.bf16.mxu0 0
    %8357 = vmatpush1.bf16.msra.mxu0 0
    %8358 = vmatprep.subr.bf16.mxu0 0
    %8359 = vmatpush1.bf16.msra.mxu0 0
    %8360 = vmatprep.subr.bf16.mxu0 0
    %8361 = vmatpush1.bf16.msra.mxu0 0
    %8362 = vmatprep.subr.bf16.mxu0 0
    %8363 = vmatpush1.bf16.msra.mxu0 0
    %8364 = vmatprep.mubr.bf16.mxu0 0
    %8365 = vmatmul.mubr.bf16.gmra.mrb[0].mxu0 %v7923
    %v8366 = vpop.f32.mrb[0].mxu0
    %v8367 = vadd.f32 %v8270, %v8366
    %v8368 = vpop.f32.mrb[0].mxu0
    %v8369 = vpop.f32.mrb[0].mxu0
    %v8370 = vadd.f32 %v8273, %v8369
    %v8371 = vpop.f32.mrb[0].mxu0
    %8372 = vmatprep.mubr.bf16.mxu0 0
    %8373 = vmatmul.mubr.bf16.gmra.mrb[0].mxu0 %v7924
    %v8374 = vpop.f32.mrb[0].mxu0
    %v8375 = vadd.f32 %v8278, %v8374
    %v8376 = vpop.f32.mrb[0].mxu0
    %v8377 = vpop.f32.mrb[0].mxu0
    %v8378 = vadd.f32 %v8281, %v8377
    %v8379 = vpop.f32.mrb[0].mxu0
    %8380 = vdwg.mxu0
    %s8381 = scalar_lea.vmem %s75, 128
    %v8382 = vld [vmem:[%s8381] sm:$0xf]
    %v8383 = vld [vmem:[%s8381 + $0x4] sm:$0xf]
    %v8384 = vld [vmem:[%s8381 + $0x8] sm:$0xf]
    %v8385 = vld [vmem:[%s8381 + $0xc] sm:$0xf]
    %v8386 = vld [vmem:[%s8381 + $0x10] sm:$0xf]
    %v8387 = vld [vmem:[%s8381 + $0x14] sm:$0xf]
    %v8388 = vld [vmem:[%s8381 + $0x18] sm:$0xf]
    %v8389 = vld [vmem:[%s8381 + $0x1c] sm:$0xf]
    %v8390 = vld [vmem:[%s8381 + $0x20] sm:$0xf]
    %v8391 = vld [vmem:[%s8381 + $0x24] sm:$0xf]
    %v8392 = vld [vmem:[%s8381 + $0x28] sm:$0xf]
    %v8393 = vld [vmem:[%s8381 + $0x2c] sm:$0xf]
    %v8394 = vld [vmem:[%s8381 + $0x30] sm:$0xf]
    %v8395 = vld [vmem:[%s8381 + $0x34] sm:$0xf]
    %v8396 = vld [vmem:[%s8381 + $0x38] sm:$0xf]
    %v8397 = vld [vmem:[%s8381 + $0x3c] sm:$0xf]
    %s8398 = scalar_lea.vmem %s77, 128
    %v8399 = vld [vmem:[%s8398] sm:$0xf]
    %v8400 = vld [vmem:[%s8398 + $0x4] sm:$0xf]
    %v8401 = vld [vmem:[%s8398 + $0x8] sm:$0xf]
    %v8402 = vld [vmem:[%s8398 + $0xc] sm:$0xf]
    %v8403 = vld [vmem:[%s8398 + $0x10] sm:$0xf]
    %v8404 = vld [vmem:[%s8398 + $0x14] sm:$0xf]
    %v8405 = vld [vmem:[%s8398 + $0x18] sm:$0xf]
    %v8406 = vld [vmem:[%s8398 + $0x1c] sm:$0xf]
    %v8407 = vld [vmem:[%s8398 + $0x20] sm:$0xf]
    %v8408 = vld [vmem:[%s8398 + $0x24] sm:$0xf]
    %v8409 = vld [vmem:[%s8398 + $0x28] sm:$0xf]
    %v8410 = vld [vmem:[%s8398 + $0x2c] sm:$0xf]
    %v8411 = vld [vmem:[%s8398 + $0x30] sm:$0xf]
    %v8412 = vld [vmem:[%s8398 + $0x34] sm:$0xf]
    %v8413 = vld [vmem:[%s8398 + $0x38] sm:$0xf]
    %v8414 = vld [vmem:[%s8398 + $0x3c] sm:$0xf]
    %v8431 = vunpack.c.l.b16 %v8399
    %v8432 = vunpack.c.l.b16 %v8400
    %v8433 = vunpack.c.l.b16 %v8401
    %v8434 = vunpack.c.l.b16 %v8402
    %v8435 = vunpack.c.l.b16 %v8403
    %v8436 = vunpack.c.l.b16 %v8404
    %v8437 = vunpack.c.l.b16 %v8405
    %v8438 = vunpack.c.l.b16 %v8406
    %v8439 = vunpack.c.l.b16 %v8407
    %v8440 = vunpack.c.l.b16 %v8408
    %v8441 = vunpack.c.l.b16 %v8409
    %v8442 = vunpack.c.l.b16 %v8410
    %v8443 = vunpack.c.l.b16 %v8411
    %v8444 = vunpack.c.l.b16 %v8412
    %v8445 = vunpack.c.l.b16 %v8413
    %v8446 = vunpack.c.l.b16 %v8414
    %v8447 = vpack.c.b16 %v8432, %v8431
    %v8448 = vpack.c.b16 %v8434, %v8433
    %v8449 = vpack.c.b16 %v8436, %v8435
    %v8450 = vpack.c.b16 %v8438, %v8437
    %v8451 = vpack.c.b16 %v8440, %v8439
    %v8452 = vpack.c.b16 %v8442, %v8441
    %v8453 = vpack.c.b16 %v8444, %v8443
    %v8454 = vpack.c.b16 %v8446, %v8445
    %8463 = vmatprep.subr.bf16.mxu0 0
    %8464 = vmatpush1.bf16.msra.mxu0 %v8447
    %8465 = vmatprep.subr.bf16.mxu0 0
    %8466 = vmatpush1.bf16.msra.mxu0 %v8448
    %8467 = vmatprep.subr.bf16.mxu0 0
    %8468 = vmatpush1.bf16.msra.mxu0 %v8449
    %8469 = vmatprep.subr.bf16.mxu0 0
    %8470 = vmatpush1.bf16.msra.mxu0 %v8450
    %8471 = vmatprep.subr.bf16.mxu0 0
    %8472 = vmatpush1.bf16.msra.mxu0 %v8451
    %8473 = vmatprep.subr.bf16.mxu0 0
    %8474 = vmatpush1.bf16.msra.mxu0 %v8452
    %8475 = vmatprep.subr.bf16.mxu0 0
    %8476 = vmatpush1.bf16.msra.mxu0 %v8453
    %8477 = vmatprep.subr.bf16.mxu0 0
    %8478 = vmatpush1.bf16.msra.mxu0 %v8454
    %8479 = vmatprep.subr.bf16.mxu0 0
    %8480 = vmatpush1.bf16.msra.mxu0 0
    %8481 = vmatprep.subr.bf16.mxu0 0
    %8482 = vmatpush1.bf16.msra.mxu0 0
    %8483 = vmatprep.subr.bf16.mxu0 0
    %8484 = vmatpush1.bf16.msra.mxu0 0
    %8485 = vmatprep.subr.bf16.mxu0 0
    %8486 = vmatpush1.bf16.msra.mxu0 0
    %8487 = vmatprep.subr.bf16.mxu0 0
    %8488 = vmatpush1.bf16.msra.mxu0 0
    %8489 = vmatprep.subr.bf16.mxu0 0
    %8490 = vmatpush1.bf16.msra.mxu0 0
    %8491 = vmatprep.subr.bf16.mxu0 0
    %8492 = vmatpush1.bf16.msra.mxu0 0
    %8493 = vmatprep.subr.bf16.mxu0 0
    %8494 = vmatpush1.bf16.msra.mxu0 0
    %8495 = vmatprep.mubr.bf16.mxu0 0
    %8496 = vmatmul.mubr.bf16.gmra.mrb[0].mxu0 %v7925
    %v8497 = vpop.f32.mrb[0].mxu0
    %v8498 = vadd.f32 0.0, %v8497
    %v8499 = vpop.f32.mrb[0].mxu0
    %v8500 = vpop.f32.mrb[0].mxu0
    %v8501 = vadd.f32 0.0, %v8500
    %v8502 = vpop.f32.mrb[0].mxu0
    %8503 = vmatprep.mubr.bf16.mxu0 0
    %8504 = vmatmul.mubr.bf16.gmra.mrb[0].mxu0 %v7926
    %v8505 = vpop.f32.mrb[0].mxu0
    %v8506 = vadd.f32 0.0, %v8505
    %v8507 = vpop.f32.mrb[0].mxu0
    %v8508 = vpop.f32.mrb[0].mxu0
    %v8509 = vadd.f32 0.0, %v8508
    %v8510 = vpop.f32.mrb[0].mxu0
    %8511 = vdwg.mxu0
    %v8528 = vunpack.c.l.b16 %v8382
    %v8529 = vunpack.c.l.b16 %v8383
    %v8530 = vunpack.c.l.b16 %v8384
    %v8531 = vunpack.c.l.b16 %v8385
    %v8532 = vunpack.c.l.b16 %v8386
    %v8533 = vunpack.c.l.b16 %v8387
    %v8534 = vunpack.c.l.b16 %v8388
    %v8535 = vunpack.c.l.b16 %v8389
    %v8536 = vunpack.c.l.b16 %v8390
    %v8537 = vunpack.c.l.b16 %v8391
    %v8538 = vunpack.c.l.b16 %v8392
    %v8539 = vunpack.c.l.b16 %v8393
    %v8540 = vunpack.c.l.b16 %v8394
    %v8541 = vunpack.c.l.b16 %v8395
    %v8542 = vunpack.c.l.b16 %v8396
    %v8543 = vunpack.c.l.b16 %v8397
    %v8544 = vpack.c.b16 %v8529, %v8528
    %v8545 = vpack.c.b16 %v8531, %v8530
    %v8546 = vpack.c.b16 %v8533, %v8532
    %v8547 = vpack.c.b16 %v8535, %v8534
    %v8548 = vpack.c.b16 %v8537, %v8536
    %v8549 = vpack.c.b16 %v8539, %v8538
    %v8550 = vpack.c.b16 %v8541, %v8540
    %v8551 = vpack.c.b16 %v8543, %v8542
    %8560 = vmatprep.subr.bf16.mxu0 0
    %8561 = vmatpush1.bf16.msra.mxu0 %v8544
    %8562 = vmatprep.subr.bf16.mxu0 0
    %8563 = vmatpush1.bf16.msra.mxu0 %v8545
    %8564 = vmatprep.subr.bf16.mxu0 0
    %8565 = vmatpush1.bf16.msra.mxu0 %v8546
    %8566 = vmatprep.subr.bf16.mxu0 0
    %8567 = vmatpush1.bf16.msra.mxu0 %v8547
    %8568 = vmatprep.subr.bf16.mxu0 0
    %8569 = vmatpush1.bf16.msra.mxu0 %v8548
    %8570 = vmatprep.subr.bf16.mxu0 0
    %8571 = vmatpush1.bf16.msra.mxu0 %v8549
    %8572 = vmatprep.subr.bf16.mxu0 0
    %8573 = vmatpush1.bf16.msra.mxu0 %v8550
    %8574 = vmatprep.subr.bf16.mxu0 0
    %8575 = vmatpush1.bf16.msra.mxu0 %v8551
    %8576 = vmatprep.subr.bf16.mxu0 0
    %8577 = vmatpush1.bf16.msra.mxu0 0
    %8578 = vmatprep.subr.bf16.mxu0 0
    %8579 = vmatpush1.bf16.msra.mxu0 0
    %8580 = vmatprep.subr.bf16.mxu0 0
    %8581 = vmatpush1.bf16.msra.mxu0 0
    %8582 = vmatprep.subr.bf16.mxu0 0
    %8583 = vmatpush1.bf16.msra.mxu0 0
    %8584 = vmatprep.subr.bf16.mxu0 0
    %8585 = vmatpush1.bf16.msra.mxu0 0
    %8586 = vmatprep.subr.bf16.mxu0 0
    %8587 = vmatpush1.bf16.msra.mxu0 0
    %8588 = vmatprep.subr.bf16.mxu0 0
    %8589 = vmatpush1.bf16.msra.mxu0 0
    %8590 = vmatprep.subr.bf16.mxu0 0
    %8591 = vmatpush1.bf16.msra.mxu0 0
    %8592 = vmatprep.mubr.bf16.mxu0 0
    %8593 = vmatmul.mubr.bf16.gmra.mrb[0].mxu0 %v7923
    %v8594 = vpop.f32.mrb[0].mxu0
    %v8595 = vadd.f32 %v8498, %v8594
    %v8596 = vpop.f32.mrb[0].mxu0
    %v8597 = vpop.f32.mrb[0].mxu0
    %v8598 = vadd.f32 %v8501, %v8597
    %v8599 = vpop.f32.mrb[0].mxu0
    %8600 = vmatprep.mubr.bf16.mxu0 0
    %8601 = vmatmul.mubr.bf16.gmra.mrb[0].mxu0 %v7924
    %v8602 = vpop.f32.mrb[0].mxu0
    %v8603 = vadd.f32 %v8506, %v8602
    %v8604 = vpop.f32.mrb[0].mxu0
    %v8605 = vpop.f32.mrb[0].mxu0
    %v8606 = vadd.f32 %v8509, %v8605
    %v8607 = vpop.f32.mrb[0].mxu0
    %8608 = vdwg.mxu0
    %v8609 = vrot.slane %v8139, 7
    %v8610 = vrot.slane %v8142, 7
    %v8611 = vrot.slane %v8147, 7
    %v8612 = vrot.slane %v8150, 7
    %v8613 = vsel %vm762, %v8611, %v8612
    %v8614 = vsel %vm762, %v8610, %v8611
    %v8615 = vsel %vm762, %v8609, %v8610
    %v8616 = vsel %vm762, %v8612, %v8609
    %v8617 = vmul.f32 %v779, %v8616
    %v8618 = vmul.f32 %v784, %v8615
    %v8619 = vmul.f32 %v789, %v8614
    %v8620 = vmul.f32 %v794, %v8613
    %v8621 = vadd.f32 %v8367, %v8617
    %v8622 = vadd.f32 %v8370, %v8618
    %v8623 = vadd.f32 %v8375, %v8619
    %v8624 = vadd.f32 %v8378, %v8620
    %v8625 = vrot.slane %v8595, 1
    %v8626 = vrot.slane %v8598, 1
    %v8627 = vrot.slane %v8603, 1
    %v8628 = vrot.slane %v8606, 1
    %v8629 = vsel %vm771, %v8627, %v8628
    %v8630 = vsel %vm771, %v8626, %v8627
    %v8631 = vsel %vm771, %v8625, %v8626
    %v8632 = vsel %vm771, %v8628, %v8625
    %v8633 = vmul.f32 %v900, %v8631
    %v8634 = vmul.f32 %v905, %v8630
    %v8635 = vmul.f32 %v910, %v8629
    %v8636 = vmul.f32 %v915, %v8632
    %v8637 = vadd.f32 %v8621, %v8633
    %v8638 = vadd.f32 %v8622, %v8634
    %v8639 = vadd.f32 %v8623, %v8635
    %v8640 = vadd.f32 %v8624, %v8636
    %v8641 = vld [vmem:[#allocation25] sm:$0x1]
    %v8643 = vlaneseq
    %v8644 = vshrl.u32 %v8643, 7
    %v8645 = vsub.s32 0, %v8644
    %v8646 = vrot.slane %v8641, %v8645
    %v8648 = vadd.f32 %v8637, %v8646
    %v8649 = vadd.f32 %v8638, %v8646
    %v8650 = vadd.f32 %v8639, %v8646
    %v8651 = vadd.f32 %v8640, %v8646
    %v8652 = vmax.f32 %v8648, 0.0
    %v8653 = vmax.f32 %v8649, 0.0
    %v8654 = vmax.f32 %v8650, 0.0
    %v8655 = vmax.f32 %v8651, 0.0
    %v8656 = vld [vmem:[#allocation27] sm:$0x1]
    %s8657 = scalar_lea.vmem [#allocation27], 1
    %v8658 = vld [vmem:[%s8657] sm:$0x1]
    %v8659 = vadd.f32 %v8652, %v8653
    %v8660 = vadd.f32 %v8659, %v8654
    %v8661 = vadd.f32 %v8660, %v8655
    %v8662 = vrot.slane %v8661, 4
    %v8663 = vadd.f32 %v8661, %v8662
    %v8664 = vrot.slane %v8663, 2
    %v8665 = vadd.f32 %v8663, %v8664
    %v8666 = vrot.slane %v8665, 1
    %v8667 = vadd.f32 %v8665, %v8666
    %v8668 = vmul.f32 %v8652, %v8652
    %v8669 = vmul.f32 %v8653, %v8653
    %v8670 = vmul.f32 %v8654, %v8654
    %v8671 = vmul.f32 %v8655, %v8655
    %v8672 = vadd.f32 %v8668, %v8669
    %v8673 = vadd.f32 %v8672, %v8670
    %v8674 = vadd.f32 %v8673, %v8671
    %v8675 = vrot.slane %v8674, 4
    %v8676 = vadd.f32 %v8674, %v8675
    %v8677 = vrot.slane %v8676, 2
    %v8678 = vadd.f32 %v8676, %v8677
    %v8679 = vrot.slane %v8678, 1
    %v8680 = vadd.f32 %v8678, %v8679
    %v8681 = vpack.c.bf16 %v8667, %v8667
    %8682 = vmatprep.subr.bf16.mxu0 0
    %8683 = vmatpush1.bf16.msra.mxu0 %v997
    %8684 = vmatprep.subr.bf16.mxu0 0
    %8685 = vmatpush1.bf16.msra.mxu0 %v998
    %8686 = vmatprep.subr.bf16.mxu0 0
    %8687 = vmatpush1.bf16.msra.mxu0 %v999
    %8688 = vmatprep.subr.bf16.mxu0 0
    %8689 = vmatpush1.bf16.msra.mxu0 %v1000
    %8690 = vmatprep.subr.bf16.mxu0 0
    %8691 = vmatpush1.bf16.msra.mxu0 %v1001
    %8692 = vmatprep.subr.bf16.mxu0 0
    %8693 = vmatpush1.bf16.msra.mxu0 %v1002
    %8694 = vmatprep.subr.bf16.mxu0 0
    %8695 = vmatpush1.bf16.msra.mxu0 %v1003
    %8696 = vmatprep.subr.bf16.mxu0 0
    %8697 = vmatpush1.bf16.msra.mxu0 %v1004
    %8698 = vmatprep.subr.bf16.mxu0 0
    %8699 = vmatpush1.bf16.msra.mxu0 0
    %8700 = vmatprep.subr.bf16.mxu0 0
    %8701 = vmatpush1.bf16.msra.mxu0 0
    %8702 = vmatprep.subr.bf16.mxu0 0
    %8703 = vmatpush1.bf16.msra.mxu0 0
    %8704 = vmatprep.subr.bf16.mxu0 0
    %8705 = vmatpush1.bf16.msra.mxu0 0
    %8706 = vmatprep.subr.bf16.mxu0 0
    %8707 = vmatpush1.bf16.msra.mxu0 0
    %8708 = vmatprep.subr.bf16.mxu0 0
    %8709 = vmatpush1.bf16.msra.mxu0 0
    %8710 = vmatprep.subr.bf16.mxu0 0
    %8711 = vmatpush1.bf16.msra.mxu0 0
    %8712 = vmatprep.subr.bf16.mxu0 0
    %8713 = vmatpush1.bf16.msra.mxu0 0
    %8714 = vmatprep.mubr.bf16.mxu0 0
    %8715 = vmatmul.mubr.bf16.gmra.mrb[0].mxu0 %v8681
    %v8716 = vpop.f32.mrb[0].mxu0
    %v8717 = vadd.f32 0.0, %v8716
    %v8718 = vpop.f32.mrb[0].mxu0
    %v8719 = vpop.f32.mrb[0].mxu0
    %v8720 = vpop.f32.mrb[0].mxu0
    %8721 = vdwg.mxu0
    %v8722 = vpack.c.bf16 %v8680, %v8680
    %8723 = vmatprep.subr.bf16.mxu0 0
    %8724 = vmatpush1.bf16.msra.mxu0 %v997
    %8725 = vmatprep.subr.bf16.mxu0 0
    %8726 = vmatpush1.bf16.msra.mxu0 %v998
    %8727 = vmatprep.subr.bf16.mxu0 0
    %8728 = vmatpush1.bf16.msra.mxu0 %v999
    %8729 = vmatprep.subr.bf16.mxu0 0
    %8730 = vmatpush1.bf16.msra.mxu0 %v1000
    %8731 = vmatprep.subr.bf16.mxu0 0
    %8732 = vmatpush1.bf16.msra.mxu0 %v1001
    %8733 = vmatprep.subr.bf16.mxu0 0
    %8734 = vmatpush1.bf16.msra.mxu0 %v1002
    %8735 = vmatprep.subr.bf16.mxu0 0
    %8736 = vmatpush1.bf16.msra.mxu0 %v1003
    %8737 = vmatprep.subr.bf16.mxu0 0
    %8738 = vmatpush1.bf16.msra.mxu0 %v1004
    %8739 = vmatprep.subr.bf16.mxu0 0
    %8740 = vmatpush1.bf16.msra.mxu0 0
    %8741 = vmatprep.subr.bf16.mxu0 0
    %8742 = vmatpush1.bf16.msra.mxu0 0
    %8743 = vmatprep.subr.bf16.mxu0 0
    %8744 = vmatpush1.bf16.msra.mxu0 0
    %8745 = vmatprep.subr.bf16.mxu0 0
    %8746 = vmatpush1.bf16.msra.mxu0 0
    %8747 = vmatprep.subr.bf16.mxu0 0
    %8748 = vmatpush1.bf16.msra.mxu0 0
    %8749 = vmatprep.subr.bf16.mxu0 0
    %8750 = vmatpush1.bf16.msra.mxu0 0
    %8751 = vmatprep.subr.bf16.mxu0 0
    %8752 = vmatpush1.bf16.msra.mxu0 0
    %8753 = vmatprep.subr.bf16.mxu0 0
    %8754 = vmatpush1.bf16.msra.mxu0 0
    %8755 = vmatprep.mubr.bf16.mxu0 0
    %8756 = vmatmul.mubr.bf16.gmra.mrb[0].mxu0 %v8722
    %v8757 = vpop.f32.mrb[0].mxu0
    %v8758 = vadd.f32 0.0, %v8757
    %v8759 = vpop.f32.mrb[0].mxu0
    %v8760 = vpop.f32.mrb[0].mxu0
    %v8761 = vpop.f32.mrb[0].mxu0
    %8762 = vdwg.mxu0
    %v8763 = vmul.f32 %v8717, 0.001953125
    %v8764 = vmul.f32 %v8758, 0.001953125
    %v8765 = vmul.f32 %v8763, %v8763
    %v8766 = vsub.f32 %v8764, %v8765
    %v8767 = vmax.f32 %v8766, 0.0
    %v8768 = vadd.f32 %v8767, 1e-05
    %v8769 = vrsqrt.pop %v8768
    %v8770 = vmul.f32 %v8656, %v8769
    %v8771 = vmul.f32 %v8763, %v8770
    %v8772 = vsub.f32 %v8658, %v8771
    %v8773 = vpack.c.bf16 %v8770, %v8770
    %v8775 = vsel %vm1105, %v8773, 0
    %8777 = vmatprep.subr.bf16.mxu0 0
    %8778 = vmatpush1.bf16.msra.mxu0 %v1111
    %8779 = vmatprep.subr.bf16.mxu0 0
    %8780 = vmatpush1.bf16.msra.mxu0 0
    %8781 = vmatprep.subr.bf16.mxu0 0
    %8782 = vmatpush1.bf16.msra.mxu0 0
    %8783 = vmatprep.subr.bf16.mxu0 0
    %8784 = vmatpush1.bf16.msra.mxu0 0
    %8785 = vmatprep.subr.bf16.mxu0 0
    %8786 = vmatpush1.bf16.msra.mxu0 0
    %8787 = vmatprep.subr.bf16.mxu0 0
    %8788 = vmatpush1.bf16.msra.mxu0 0
    %8789 = vmatprep.subr.bf16.mxu0 0
    %8790 = vmatpush1.bf16.msra.mxu0 0
    %8791 = vmatprep.subr.bf16.mxu0 0
    %8792 = vmatpush1.bf16.msra.mxu0 0
    %8793 = vmatprep.subr.bf16.mxu0 0
    %8794 = vmatpush1.bf16.msra.mxu0 0
    %8795 = vmatprep.subr.bf16.mxu0 0
    %8796 = vmatpush1.bf16.msra.mxu0 0
    %8797 = vmatprep.subr.bf16.mxu0 0
    %8798 = vmatpush1.bf16.msra.mxu0 0
    %8799 = vmatprep.subr.bf16.mxu0 0
    %8800 = vmatpush1.bf16.msra.mxu0 0
    %8801 = vmatprep.subr.bf16.mxu0 0
    %8802 = vmatpush1.bf16.msra.mxu0 0
    %8803 = vmatprep.subr.bf16.mxu0 0
    %8804 = vmatpush1.bf16.msra.mxu0 0
    %8805 = vmatprep.subr.bf16.mxu0 0
    %8806 = vmatpush1.bf16.msra.mxu0 0
    %8807 = vmatprep.subr.bf16.mxu0 0
    %8808 = vmatpush1.bf16.msra.mxu0 0
    %8809 = vmatprep.mubr.bf16.mxu0 0
    %8810 = vmatmul.mubr.bf16.gmra.mrb[0].mxu0 %v8775
    %v8811 = vpop.f32.mrb[0].mxu0
    %v8812 = vadd.f32 0.0, %v8811
    %v8813 = vpop.f32.mrb[0].mxu0
    %v8814 = vpop.f32.mrb[0].mxu0
    %v8815 = vpop.f32.mrb[0].mxu0
    %8816 = vdwg.mxu0
    %v8817 = vpack.c.bf16 %v8772, %v8772
    %v8819 = vsel %vm1105, %v8817, 0
    %8821 = vmatprep.subr.bf16.mxu0 0
    %8822 = vmatpush1.bf16.msra.mxu0 %v1111
    %8823 = vmatprep.subr.bf16.mxu0 0
    %8824 = vmatpush1.bf16.msra.mxu0 0
    %8825 = vmatprep.subr.bf16.mxu0 0
    %8826 = vmatpush1.bf16.msra.mxu0 0
    %8827 = vmatprep.subr.bf16.mxu0 0
    %8828 = vmatpush1.bf16.msra.mxu0 0
    %8829 = vmatprep.subr.bf16.mxu0 0
    %8830 = vmatpush1.bf16.msra.mxu0 0
    %8831 = vmatprep.subr.bf16.mxu0 0
    %8832 = vmatpush1.bf16.msra.mxu0 0
    %8833 = vmatprep.subr.bf16.mxu0 0
    %8834 = vmatpush1.bf16.msra.mxu0 0
    %8835 = vmatprep.subr.bf16.mxu0 0
    %8836 = vmatpush1.bf16.msra.mxu0 0
    %8837 = vmatprep.subr.bf16.mxu0 0
    %8838 = vmatpush1.bf16.msra.mxu0 0
    %8839 = vmatprep.subr.bf16.mxu0 0
    %8840 = vmatpush1.bf16.msra.mxu0 0
    %8841 = vmatprep.subr.bf16.mxu0 0
    %8842 = vmatpush1.bf16.msra.mxu0 0
    %8843 = vmatprep.subr.bf16.mxu0 0
    %8844 = vmatpush1.bf16.msra.mxu0 0
    %8845 = vmatprep.subr.bf16.mxu0 0
    %8846 = vmatpush1.bf16.msra.mxu0 0
    %8847 = vmatprep.subr.bf16.mxu0 0
    %8848 = vmatpush1.bf16.msra.mxu0 0
    %8849 = vmatprep.subr.bf16.mxu0 0
    %8850 = vmatpush1.bf16.msra.mxu0 0
    %8851 = vmatprep.subr.bf16.mxu0 0
    %8852 = vmatpush1.bf16.msra.mxu0 0
    %8853 = vmatprep.mubr.bf16.mxu0 0
    %8854 = vmatmul.mubr.bf16.gmra.mrb[0].mxu0 %v8819
    %v8855 = vpop.f32.mrb[0].mxu0
    %v8856 = vadd.f32 0.0, %v8855
    %v8857 = vpop.f32.mrb[0].mxu0
    %v8858 = vpop.f32.mrb[0].mxu0
    %v8859 = vpop.f32.mrb[0].mxu0
    %8860 = vdwg.mxu0
    %v8861 = vlaneseq
    %v8862 = vshrl.u32 %v8861, 7
    %v8863 = vsub.s32 0, %v8862
    %v8864 = vrot.slane %v8812, %v8863
    %v8865 = vmul.f32 %v8652, %v8864
    %v8866 = vmul.f32 %v8653, %v8864
    %v8867 = vmul.f32 %v8654, %v8864
    %v8868 = vmul.f32 %v8655, %v8864
    %v8869 = vlaneseq
    %v8870 = vshrl.u32 %v8869, 7
    %v8871 = vsub.s32 0, %v8870
    %v8872 = vrot.slane %v8856, %v8871
    %v8873 = vadd.f32 %v8865, %v8872
    %v8874 = vadd.f32 %v8866, %v8872
    %v8875 = vadd.f32 %v8867, %v8872
    %v8876 = vadd.f32 %v8868, %v8872
    %s8877 = scalar_lea.vmem [#allocation25], 1
    %v8878 = vld [vmem:[%s8877] sm:$0x1]
    %v8879 = vpack.c.bf16 %v8874, %v8873
    %v8880 = vpack.c.bf16 %v8876, %v8875
    %v8881 = vld [vmem:[%s79] sm:$0xf]
    %v8882 = vld [vmem:[%s79 + $0x4] sm:$0xf]
    %v8883 = vld [vmem:[%s79 + $0x8] sm:$0xf]
    %v8884 = vld [vmem:[%s79 + $0xc] sm:$0xf]
    %v8885 = vld [vmem:[%s79 + $0x10] sm:$0xf]
    %v8886 = vld [vmem:[%s79 + $0x14] sm:$0xf]
    %v8887 = vld [vmem:[%s79 + $0x18] sm:$0xf]
    %v8888 = vld [vmem:[%s79 + $0x1c] sm:$0xf]
    %v8889 = vld [vmem:[%s79 + $0x20] sm:$0xf]
    %v8890 = vld [vmem:[%s79 + $0x24] sm:$0xf]
    %v8891 = vld [vmem:[%s79 + $0x28] sm:$0xf]
    %v8892 = vld [vmem:[%s79 + $0x2c] sm:$0xf]
    %v8893 = vld [vmem:[%s79 + $0x30] sm:$0xf]
    %v8894 = vld [vmem:[%s79 + $0x34] sm:$0xf]
    %v8895 = vld [vmem:[%s79 + $0x38] sm:$0xf]
    %v8896 = vld [vmem:[%s79 + $0x3c] sm:$0xf]
    %v8913 = vunpack.c.l.b16 %v8881
    %v8914 = vunpack.c.l.b16 %v8882
    %v8915 = vunpack.c.l.b16 %v8883
    %v8916 = vunpack.c.l.b16 %v8884
    %v8917 = vunpack.c.l.b16 %v8885
    %v8918 = vunpack.c.l.b16 %v8886
    %v8919 = vunpack.c.l.b16 %v8887
    %v8920 = vunpack.c.l.b16 %v8888
    %v8921 = vunpack.c.l.b16 %v8889
    %v8922 = vunpack.c.l.b16 %v8890
    %v8923 = vunpack.c.l.b16 %v8891
    %v8924 = vunpack.c.l.b16 %v8892
    %v8925 = vunpack.c.l.b16 %v8893
    %v8926 = vunpack.c.l.b16 %v8894
    %v8927 = vunpack.c.l.b16 %v8895
    %v8928 = vunpack.c.l.b16 %v8896
    %v8929 = vpack.c.b16 %v8914, %v8913
    %v8930 = vpack.c.b16 %v8916, %v8915
    %v8931 = vpack.c.b16 %v8918, %v8917
    %v8932 = vpack.c.b16 %v8920, %v8919
    %v8933 = vpack.c.b16 %v8922, %v8921
    %v8934 = vpack.c.b16 %v8924, %v8923
    %v8935 = vpack.c.b16 %v8926, %v8925
    %v8936 = vpack.c.b16 %v8928, %v8927
    %8945 = vmatprep.subr.bf16.mxu0 0
    %8946 = vmatpush1.bf16.msra.mxu0 %v8929
    %8947 = vmatprep.subr.bf16.mxu0 0
    %8948 = vmatpush1.bf16.msra.mxu0 %v8930
    %8949 = vmatprep.subr.bf16.mxu0 0
    %8950 = vmatpush1.bf16.msra.mxu0 %v8931
    %8951 = vmatprep.subr.bf16.mxu0 0
    %8952 = vmatpush1.bf16.msra.mxu0 %v8932
    %8953 = vmatprep.subr.bf16.mxu0 0
    %8954 = vmatpush1.bf16.msra.mxu0 %v8933
    %8955 = vmatprep.subr.bf16.mxu0 0
    %8956 = vmatpush1.bf16.msra.mxu0 %v8934
    %8957 = vmatprep.subr.bf16.mxu0 0
    %8958 = vmatpush1.bf16.msra.mxu0 %v8935
    %8959 = vmatprep.subr.bf16.mxu0 0
    %8960 = vmatpush1.bf16.msra.mxu0 %v8936
    %8961 = vmatprep.subr.bf16.mxu0 0
    %8962 = vmatpush1.bf16.msra.mxu0 0
    %8963 = vmatprep.subr.bf16.mxu0 0
    %8964 = vmatpush1.bf16.msra.mxu0 0
    %8965 = vmatprep.subr.bf16.mxu0 0
    %8966 = vmatpush1.bf16.msra.mxu0 0
    %8967 = vmatprep.subr.bf16.mxu0 0
    %8968 = vmatpush1.bf16.msra.mxu0 0
    %8969 = vmatprep.subr.bf16.mxu0 0
    %8970 = vmatpush1.bf16.msra.mxu0 0
    %8971 = vmatprep.subr.bf16.mxu0 0
    %8972 = vmatpush1.bf16.msra.mxu0 0
    %8973 = vmatprep.subr.bf16.mxu0 0
    %8974 = vmatpush1.bf16.msra.mxu0 0
    %8975 = vmatprep.subr.bf16.mxu0 0
    %8976 = vmatpush1.bf16.msra.mxu0 0
    %8977 = vmatprep.mubr.bf16.mxu0 0
    %8978 = vmatmul.mubr.bf16.gmra.mrb[0].mxu0 %v8879
    %v8979 = vpop.f32.mrb[0].mxu0
    %v8980 = vadd.f32 0.0, %v8979
    %v8981 = vpop.f32.mrb[0].mxu0
    %v8982 = vpop.f32.mrb[0].mxu0
    %v8983 = vadd.f32 0.0, %v8982
    %v8984 = vpop.f32.mrb[0].mxu0
    %8985 = vmatprep.mubr.bf16.mxu0 0
    %8986 = vmatmul.mubr.bf16.gmra.mrb[0].mxu0 %v8880
    %v8987 = vpop.f32.mrb[0].mxu0
    %v8988 = vadd.f32 0.0, %v8987
    %v8989 = vpop.f32.mrb[0].mxu0
    %v8990 = vpop.f32.mrb[0].mxu0
    %v8991 = vadd.f32 0.0, %v8990
    %v8992 = vpop.f32.mrb[0].mxu0
    %8993 = vdwg.mxu0
    %s8994 = scalar_lea.vmem %s79, 64
    %v8995 = vld [vmem:[%s8994] sm:$0xf]
    %v8996 = vld [vmem:[%s8994 + $0x4] sm:$0xf]
    %v8997 = vld [vmem:[%s8994 + $0x8] sm:$0xf]
    %v8998 = vld [vmem:[%s8994 + $0xc] sm:$0xf]
    %v8999 = vld [vmem:[%s8994 + $0x10] sm:$0xf]
    %v9000 = vld [vmem:[%s8994 + $0x14] sm:$0xf]
    %v9001 = vld [vmem:[%s8994 + $0x18] sm:$0xf]
    %v9002 = vld [vmem:[%s8994 + $0x1c] sm:$0xf]
    %v9003 = vld [vmem:[%s8994 + $0x20] sm:$0xf]
    %v9004 = vld [vmem:[%s8994 + $0x24] sm:$0xf]
    %v9005 = vld [vmem:[%s8994 + $0x28] sm:$0xf]
    %v9006 = vld [vmem:[%s8994 + $0x2c] sm:$0xf]
    %v9007 = vld [vmem:[%s8994 + $0x30] sm:$0xf]
    %v9008 = vld [vmem:[%s8994 + $0x34] sm:$0xf]
    %v9009 = vld [vmem:[%s8994 + $0x38] sm:$0xf]
    %v9010 = vld [vmem:[%s8994 + $0x3c] sm:$0xf]
    %s9011 = scalar_lea.vmem %s79, 128
    %v9012 = vld [vmem:[%s9011] sm:$0xf]
    %v9013 = vld [vmem:[%s9011 + $0x4] sm:$0xf]
    %v9014 = vld [vmem:[%s9011 + $0x8] sm:$0xf]
    %v9015 = vld [vmem:[%s9011 + $0xc] sm:$0xf]
    %v9016 = vld [vmem:[%s9011 + $0x10] sm:$0xf]
    %v9017 = vld [vmem:[%s9011 + $0x14] sm:$0xf]
    %v9018 = vld [vmem:[%s9011 + $0x18] sm:$0xf]
    %v9019 = vld [vmem:[%s9011 + $0x1c] sm:$0xf]
    %v9020 = vld [vmem:[%s9011 + $0x20] sm:$0xf]
    %v9021 = vld [vmem:[%s9011 + $0x24] sm:$0xf]
    %v9022 = vld [vmem:[%s9011 + $0x28] sm:$0xf]
    %v9023 = vld [vmem:[%s9011 + $0x2c] sm:$0xf]
    %v9024 = vld [vmem:[%s9011 + $0x30] sm:$0xf]
    %v9025 = vld [vmem:[%s9011 + $0x34] sm:$0xf]
    %v9026 = vld [vmem:[%s9011 + $0x38] sm:$0xf]
    %v9027 = vld [vmem:[%s9011 + $0x3c] sm:$0xf]
    %v9044 = vunpack.c.l.b16 %v9012
    %v9045 = vunpack.c.l.b16 %v9013
    %v9046 = vunpack.c.l.b16 %v9014
    %v9047 = vunpack.c.l.b16 %v9015
    %v9048 = vunpack.c.l.b16 %v9016
    %v9049 = vunpack.c.l.b16 %v9017
    %v9050 = vunpack.c.l.b16 %v9018
    %v9051 = vunpack.c.l.b16 %v9019
    %v9052 = vunpack.c.l.b16 %v9020
    %v9053 = vunpack.c.l.b16 %v9021
    %v9054 = vunpack.c.l.b16 %v9022
    %v9055 = vunpack.c.l.b16 %v9023
    %v9056 = vunpack.c.l.b16 %v9024
    %v9057 = vunpack.c.l.b16 %v9025
    %v9058 = vunpack.c.l.b16 %v9026
    %v9059 = vunpack.c.l.b16 %v9027
    %v9060 = vpack.c.b16 %v9045, %v9044
    %v9061 = vpack.c.b16 %v9047, %v9046
    %v9062 = vpack.c.b16 %v9049, %v9048
    %v9063 = vpack.c.b16 %v9051, %v9050
    %v9064 = vpack.c.b16 %v9053, %v9052
    %v9065 = vpack.c.b16 %v9055, %v9054
    %v9066 = vpack.c.b16 %v9057, %v9056
    %v9067 = vpack.c.b16 %v9059, %v9058
    %9076 = vmatprep.subr.bf16.mxu0 0
    %9077 = vmatpush1.bf16.msra.mxu0 %v9060
    %9078 = vmatprep.subr.bf16.mxu0 0
    %9079 = vmatpush1.bf16.msra.mxu0 %v9061
    %9080 = vmatprep.subr.bf16.mxu0 0
    %9081 = vmatpush1.bf16.msra.mxu0 %v9062
    %9082 = vmatprep.subr.bf16.mxu0 0
    %9083 = vmatpush1.bf16.msra.mxu0 %v9063
    %9084 = vmatprep.subr.bf16.mxu0 0
    %9085 = vmatpush1.bf16.msra.mxu0 %v9064
    %9086 = vmatprep.subr.bf16.mxu0 0
    %9087 = vmatpush1.bf16.msra.mxu0 %v9065
    %9088 = vmatprep.subr.bf16.mxu0 0
    %9089 = vmatpush1.bf16.msra.mxu0 %v9066
    %9090 = vmatprep.subr.bf16.mxu0 0
    %9091 = vmatpush1.bf16.msra.mxu0 %v9067
    %9092 = vmatprep.subr.bf16.mxu0 0
    %9093 = vmatpush1.bf16.msra.mxu0 0
    %9094 = vmatprep.subr.bf16.mxu0 0
    %9095 = vmatpush1.bf16.msra.mxu0 0
    %9096 = vmatprep.subr.bf16.mxu0 0
    %9097 = vmatpush1.bf16.msra.mxu0 0
    %9098 = vmatprep.subr.bf16.mxu0 0
    %9099 = vmatpush1.bf16.msra.mxu0 0
    %9100 = vmatprep.subr.bf16.mxu0 0
    %9101 = vmatpush1.bf16.msra.mxu0 0
    %9102 = vmatprep.subr.bf16.mxu0 0
    %9103 = vmatpush1.bf16.msra.mxu0 0
    %9104 = vmatprep.subr.bf16.mxu0 0
    %9105 = vmatpush1.bf16.msra.mxu0 0
    %9106 = vmatprep.subr.bf16.mxu0 0
    %9107 = vmatpush1.bf16.msra.mxu0 0
    %9108 = vmatprep.mubr.bf16.mxu0 0
    %9109 = vmatmul.mubr.bf16.gmra.mrb[0].mxu0 %v8879
    %v9110 = vpop.f32.mrb[0].mxu0
    %v9111 = vadd.f32 0.0, %v9110
    %v9112 = vpop.f32.mrb[0].mxu0
    %v9113 = vpop.f32.mrb[0].mxu0
    %v9114 = vadd.f32 0.0, %v9113
    %v9115 = vpop.f32.mrb[0].mxu0
    %9116 = vmatprep.mubr.bf16.mxu0 0
    %9117 = vmatmul.mubr.bf16.gmra.mrb[0].mxu0 %v8880
    %v9118 = vpop.f32.mrb[0].mxu0
    %v9119 = vadd.f32 0.0, %v9118
    %v9120 = vpop.f32.mrb[0].mxu0
    %v9121 = vpop.f32.mrb[0].mxu0
    %v9122 = vadd.f32 0.0, %v9121
    %v9123 = vpop.f32.mrb[0].mxu0
    %9124 = vdwg.mxu0
    %v9125 = vrot.slane %v8980, 7
    %v9126 = vrot.slane %v8983, 7
    %v9127 = vrot.slane %v8988, 7
    %v9128 = vrot.slane %v8991, 7
    %v9129 = vsel %vm762, %v9127, %v9128
    %v9130 = vsel %vm762, %v9126, %v9127
    %v9131 = vsel %vm762, %v9125, %v9126
    %v9132 = vsel %vm762, %v9128, %v9125
    %v9133 = vrot.slane %v9111, 1
    %v9134 = vrot.slane %v9114, 1
    %v9135 = vrot.slane %v9119, 1
    %v9136 = vrot.slane %v9122, 1
    %v9137 = vsel %vm771, %v9135, %v9136
    %v9138 = vsel %vm771, %v9134, %v9135
    %v9139 = vsel %vm771, %v9133, %v9134
    %v9140 = vsel %vm771, %v9136, %v9133
    %v9141 = vmul.f32 %v779, %v9132
    %v9142 = vmul.f32 %v784, %v9131
    %v9143 = vmul.f32 %v789, %v9130
    %v9144 = vmul.f32 %v794, %v9129
    %v9161 = vunpack.c.l.b16 %v8995
    %v9162 = vunpack.c.l.b16 %v8996
    %v9163 = vunpack.c.l.b16 %v8997
    %v9164 = vunpack.c.l.b16 %v8998
    %v9165 = vunpack.c.l.b16 %v8999
    %v9166 = vunpack.c.l.b16 %v9000
    %v9167 = vunpack.c.l.b16 %v9001
    %v9168 = vunpack.c.l.b16 %v9002
    %v9169 = vunpack.c.l.b16 %v9003
    %v9170 = vunpack.c.l.b16 %v9004
    %v9171 = vunpack.c.l.b16 %v9005
    %v9172 = vunpack.c.l.b16 %v9006
    %v9173 = vunpack.c.l.b16 %v9007
    %v9174 = vunpack.c.l.b16 %v9008
    %v9175 = vunpack.c.l.b16 %v9009
    %v9176 = vunpack.c.l.b16 %v9010
    %v9177 = vpack.c.b16 %v9162, %v9161
    %v9178 = vpack.c.b16 %v9164, %v9163
    %v9179 = vpack.c.b16 %v9166, %v9165
    %v9180 = vpack.c.b16 %v9168, %v9167
    %v9181 = vpack.c.b16 %v9170, %v9169
    %v9182 = vpack.c.b16 %v9172, %v9171
    %v9183 = vpack.c.b16 %v9174, %v9173
    %v9184 = vpack.c.b16 %v9176, %v9175
    %9193 = vmatprep.subr.bf16.mxu0 0
    %9194 = vmatpush1.bf16.msra.mxu0 %v9177
    %9195 = vmatprep.subr.bf16.mxu0 0
    %9196 = vmatpush1.bf16.msra.mxu0 %v9178
    %9197 = vmatprep.subr.bf16.mxu0 0
    %9198 = vmatpush1.bf16.msra.mxu0 %v9179
    %9199 = vmatprep.subr.bf16.mxu0 0
    %9200 = vmatpush1.bf16.msra.mxu0 %v9180
    %9201 = vmatprep.subr.bf16.mxu0 0
    %9202 = vmatpush1.bf16.msra.mxu0 %v9181
    %9203 = vmatprep.subr.bf16.mxu0 0
    %9204 = vmatpush1.bf16.msra.mxu0 %v9182
    %9205 = vmatprep.subr.bf16.mxu0 0
    %9206 = vmatpush1.bf16.msra.mxu0 %v9183
    %9207 = vmatprep.subr.bf16.mxu0 0
    %9208 = vmatpush1.bf16.msra.mxu0 %v9184
    %9209 = vmatprep.subr.bf16.mxu0 0
    %9210 = vmatpush1.bf16.msra.mxu0 0
    %9211 = vmatprep.subr.bf16.mxu0 0
    %9212 = vmatpush1.bf16.msra.mxu0 0
    %9213 = vmatprep.subr.bf16.mxu0 0
    %9214 = vmatpush1.bf16.msra.mxu0 0
    %9215 = vmatprep.subr.bf16.mxu0 0
    %9216 = vmatpush1.bf16.msra.mxu0 0
    %9217 = vmatprep.subr.bf16.mxu0 0
    %9218 = vmatpush1.bf16.msra.mxu0 0
    %9219 = vmatprep.subr.bf16.mxu0 0
    %9220 = vmatpush1.bf16.msra.mxu0 0
    %9221 = vmatprep.subr.bf16.mxu0 0
    %9222 = vmatpush1.bf16.msra.mxu0 0
    %9223 = vmatprep.subr.bf16.mxu0 0
    %9224 = vmatpush1.bf16.msra.mxu0 0
    %9225 = vmatprep.mubr.bf16.mxu0 0
    %9226 = vmatmul.mubr.bf16.gmra.mrb[0].mxu0 %v8879
    %v9227 = vpop.f32.mrb[0].mxu0
    %v9228 = vadd.f32 %v9141, %v9227
    %v9229 = vpop.f32.mrb[0].mxu0
    %v9230 = vpop.f32.mrb[0].mxu0
    %v9231 = vadd.f32 %v9142, %v9230
    %v9232 = vpop.f32.mrb[0].mxu0
    %9233 = vmatprep.mubr.bf16.mxu0 0
    %9234 = vmatmul.mubr.bf16.gmra.mrb[0].mxu0 %v8880
    %v9235 = vpop.f32.mrb[0].mxu0
    %v9236 = vadd.f32 %v9143, %v9235
    %v9237 = vpop.f32.mrb[0].mxu0
    %v9238 = vpop.f32.mrb[0].mxu0
    %v9239 = vadd.f32 %v9144, %v9238
    %v9240 = vpop.f32.mrb[0].mxu0
    %9241 = vdwg.mxu0
    %v9242 = vmul.f32 %v900, %v9139
    %v9243 = vmul.f32 %v905, %v9138
    %v9244 = vmul.f32 %v910, %v9137
    %v9245 = vmul.f32 %v915, %v9140
    %v9246 = vadd.f32 %v9228, %v9242
    %v9247 = vadd.f32 %v9231, %v9243
    %v9248 = vadd.f32 %v9236, %v9244
    %v9249 = vadd.f32 %v9239, %v9245
    %v9251 = vlaneseq
    %v9252 = vshrl.u32 %v9251, 7
    %v9253 = vsub.s32 0, %v9252
    %v9254 = vrot.slane %v8878, %v9253
    %v9256 = vadd.f32 %v9246, %v9254
    %v9257 = vadd.f32 %v9247, %v9254
    %v9258 = vadd.f32 %v9248, %v9254
    %v9259 = vadd.f32 %v9249, %v9254
    %v9260 = vmax.f32 %v9256, 0.0
    %v9261 = vmax.f32 %v9257, 0.0
    %v9262 = vmax.f32 %v9258, 0.0
    %v9263 = vmax.f32 %v9259, 0.0
    %s9264 = scalar_lea.vmem [#allocation27], 2
    %v9265 = vld [vmem:[%s9264] sm:$0x1]
    %s9266 = scalar_lea.vmem [#allocation27], 3
    %v9267 = vld [vmem:[%s9266] sm:$0x1]
    %v9268 = vadd.f32 %v9260, %v9261
    %v9269 = vadd.f32 %v9268, %v9262
    %v9270 = vadd.f32 %v9269, %v9263
    %v9271 = vrot.slane %v9270, 4
    %v9272 = vadd.f32 %v9270, %v9271
    %v9273 = vrot.slane %v9272, 2
    %v9274 = vadd.f32 %v9272, %v9273
    %v9275 = vrot.slane %v9274, 1
    %v9276 = vadd.f32 %v9274, %v9275
    %v9277 = vmul.f32 %v9260, %v9260
    %v9278 = vmul.f32 %v9261, %v9261
    %v9279 = vmul.f32 %v9262, %v9262
    %v9280 = vmul.f32 %v9263, %v9263
    %v9281 = vadd.f32 %v9277, %v9278
    %v9282 = vadd.f32 %v9281, %v9279
    %v9283 = vadd.f32 %v9282, %v9280
    %v9284 = vrot.slane %v9283, 4
    %v9285 = vadd.f32 %v9283, %v9284
    %v9286 = vrot.slane %v9285, 2
    %v9287 = vadd.f32 %v9285, %v9286
    %v9288 = vrot.slane %v9287, 1
    %v9289 = vadd.f32 %v9287, %v9288
    %v9290 = vpack.c.bf16 %v9276, %v9276
    %9291 = vmatprep.subr.bf16.mxu0 0
    %9292 = vmatpush1.bf16.msra.mxu0 %v997
    %9293 = vmatprep.subr.bf16.mxu0 0
    %9294 = vmatpush1.bf16.msra.mxu0 %v998
    %9295 = vmatprep.subr.bf16.mxu0 0
    %9296 = vmatpush1.bf16.msra.mxu0 %v999
    %9297 = vmatprep.subr.bf16.mxu0 0
    %9298 = vmatpush1.bf16.msra.mxu0 %v1000
    %9299 = vmatprep.subr.bf16.mxu0 0
    %9300 = vmatpush1.bf16.msra.mxu0 %v1001
    %9301 = vmatprep.subr.bf16.mxu0 0
    %9302 = vmatpush1.bf16.msra.mxu0 %v1002
    %9303 = vmatprep.subr.bf16.mxu0 0
    %9304 = vmatpush1.bf16.msra.mxu0 %v1003
    %9305 = vmatprep.subr.bf16.mxu0 0
    %9306 = vmatpush1.bf16.msra.mxu0 %v1004
    %9307 = vmatprep.subr.bf16.mxu0 0
    %9308 = vmatpush1.bf16.msra.mxu0 0
    %9309 = vmatprep.subr.bf16.mxu0 0
    %9310 = vmatpush1.bf16.msra.mxu0 0
    %9311 = vmatprep.subr.bf16.mxu0 0
    %9312 = vmatpush1.bf16.msra.mxu0 0
    %9313 = vmatprep.subr.bf16.mxu0 0
    %9314 = vmatpush1.bf16.msra.mxu0 0
    %9315 = vmatprep.subr.bf16.mxu0 0
    %9316 = vmatpush1.bf16.msra.mxu0 0
    %9317 = vmatprep.subr.bf16.mxu0 0
    %9318 = vmatpush1.bf16.msra.mxu0 0
    %9319 = vmatprep.subr.bf16.mxu0 0
    %9320 = vmatpush1.bf16.msra.mxu0 0
    %9321 = vmatprep.subr.bf16.mxu0 0
    %9322 = vmatpush1.bf16.msra.mxu0 0
    %9323 = vmatprep.mubr.bf16.mxu0 0
    %9324 = vmatmul.mubr.bf16.gmra.mrb[0].mxu0 %v9290
    %v9325 = vpop.f32.mrb[0].mxu0
    %v9326 = vadd.f32 0.0, %v9325
    %v9327 = vpop.f32.mrb[0].mxu0
    %v9328 = vpop.f32.mrb[0].mxu0
    %v9329 = vpop.f32.mrb[0].mxu0
    %9330 = vdwg.mxu0
    %v9331 = vpack.c.bf16 %v9289, %v9289
    %9332 = vmatprep.subr.bf16.mxu0 0
    %9333 = vmatpush1.bf16.msra.mxu0 %v997
    %9334 = vmatprep.subr.bf16.mxu0 0
    %9335 = vmatpush1.bf16.msra.mxu0 %v998
    %9336 = vmatprep.subr.bf16.mxu0 0
    %9337 = vmatpush1.bf16.msra.mxu0 %v999
    %9338 = vmatprep.subr.bf16.mxu0 0
    %9339 = vmatpush1.bf16.msra.mxu0 %v1000
    %9340 = vmatprep.subr.bf16.mxu0 0
    %9341 = vmatpush1.bf16.msra.mxu0 %v1001
    %9342 = vmatprep.subr.bf16.mxu0 0
    %9343 = vmatpush1.bf16.msra.mxu0 %v1002
    %9344 = vmatprep.subr.bf16.mxu0 0
    %9345 = vmatpush1.bf16.msra.mxu0 %v1003
    %9346 = vmatprep.subr.bf16.mxu0 0
    %9347 = vmatpush1.bf16.msra.mxu0 %v1004
    %9348 = vmatprep.subr.bf16.mxu0 0
    %9349 = vmatpush1.bf16.msra.mxu0 0
    %9350 = vmatprep.subr.bf16.mxu0 0
    %9351 = vmatpush1.bf16.msra.mxu0 0
    %9352 = vmatprep.subr.bf16.mxu0 0
    %9353 = vmatpush1.bf16.msra.mxu0 0
    %9354 = vmatprep.subr.bf16.mxu0 0
    %9355 = vmatpush1.bf16.msra.mxu0 0
    %9356 = vmatprep.subr.bf16.mxu0 0
    %9357 = vmatpush1.bf16.msra.mxu0 0
    %9358 = vmatprep.subr.bf16.mxu0 0
    %9359 = vmatpush1.bf16.msra.mxu0 0
    %9360 = vmatprep.subr.bf16.mxu0 0
    %9361 = vmatpush1.bf16.msra.mxu0 0
    %9362 = vmatprep.subr.bf16.mxu0 0
    %9363 = vmatpush1.bf16.msra.mxu0 0
    %9364 = vmatprep.mubr.bf16.mxu0 0
    %9365 = vmatmul.mubr.bf16.gmra.mrb[0].mxu0 %v9331
    %v9366 = vpop.f32.mrb[0].mxu0
    %v9367 = vadd.f32 0.0, %v9366
    %v9368 = vpop.f32.mrb[0].mxu0
    %v9369 = vpop.f32.mrb[0].mxu0
    %v9370 = vpop.f32.mrb[0].mxu0
    %9371 = vdwg.mxu0
    %v9372 = vmul.f32 %v9326, 0.001953125
    %v9373 = vmul.f32 %v9367, 0.001953125
    %v9374 = vmul.f32 %v9372, %v9372
    %v9375 = vsub.f32 %v9373, %v9374
    %v9376 = vmax.f32 %v9375, 0.0
    %v9377 = vadd.f32 %v9376, 1e-05
    %v9378 = vrsqrt.pop %v9377
    %v9379 = vmul.f32 %v9265, %v9378
    %v9380 = vmul.f32 %v9372, %v9379
    %v9381 = vsub.f32 %v9267, %v9380
    %v9382 = vpack.c.bf16 %v9379, %v9379
    %v9384 = vsel %vm1105, %v9382, 0
    %9386 = vmatprep.subr.bf16.mxu0 0
    %9387 = vmatpush1.bf16.msra.mxu0 %v1111
    %9388 = vmatprep.subr.bf16.mxu0 0
    %9389 = vmatpush1.bf16.msra.mxu0 0
    %9390 = vmatprep.subr.bf16.mxu0 0
    %9391 = vmatpush1.bf16.msra.mxu0 0
    %9392 = vmatprep.subr.bf16.mxu0 0
    %9393 = vmatpush1.bf16.msra.mxu0 0
    %9394 = vmatprep.subr.bf16.mxu0 0
    %9395 = vmatpush1.bf16.msra.mxu0 0
    %9396 = vmatprep.subr.bf16.mxu0 0
    %9397 = vmatpush1.bf16.msra.mxu0 0
    %9398 = vmatprep.subr.bf16.mxu0 0
    %9399 = vmatpush1.bf16.msra.mxu0 0
    %9400 = vmatprep.subr.bf16.mxu0 0
    %9401 = vmatpush1.bf16.msra.mxu0 0
    %9402 = vmatprep.subr.bf16.mxu0 0
    %9403 = vmatpush1.bf16.msra.mxu0 0
    %9404 = vmatprep.subr.bf16.mxu0 0
    %9405 = vmatpush1.bf16.msra.mxu0 0
    %9406 = vmatprep.subr.bf16.mxu0 0
    %9407 = vmatpush1.bf16.msra.mxu0 0
    %9408 = vmatprep.subr.bf16.mxu0 0
    %9409 = vmatpush1.bf16.msra.mxu0 0
    %9410 = vmatprep.subr.bf16.mxu0 0
    %9411 = vmatpush1.bf16.msra.mxu0 0
    %9412 = vmatprep.subr.bf16.mxu0 0
    %9413 = vmatpush1.bf16.msra.mxu0 0
    %9414 = vmatprep.subr.bf16.mxu0 0
    %9415 = vmatpush1.bf16.msra.mxu0 0
    %9416 = vmatprep.subr.bf16.mxu0 0
    %9417 = vmatpush1.bf16.msra.mxu0 0
    %9418 = vmatprep.mubr.bf16.mxu0 0
    %9419 = vmatmul.mubr.bf16.gmra.mrb[0].mxu0 %v9384
    %v9420 = vpop.f32.mrb[0].mxu0
    %v9421 = vadd.f32 0.0, %v9420
    %v9422 = vpop.f32.mrb[0].mxu0
    %v9423 = vpop.f32.mrb[0].mxu0
    %v9424 = vpop.f32.mrb[0].mxu0
    %9425 = vdwg.mxu0
    %v9426 = vpack.c.bf16 %v9381, %v9381
    %v9428 = vsel %vm1105, %v9426, 0
    %9430 = vmatprep.subr.bf16.mxu0 0
    %9431 = vmatpush1.bf16.msra.mxu0 %v1111
    %9432 = vmatprep.subr.bf16.mxu0 0
    %9433 = vmatpush1.bf16.msra.mxu0 0
    %9434 = vmatprep.subr.bf16.mxu0 0
    %9435 = vmatpush1.bf16.msra.mxu0 0
    %9436 = vmatprep.subr.bf16.mxu0 0
    %9437 = vmatpush1.bf16.msra.mxu0 0
    %9438 = vmatprep.subr.bf16.mxu0 0
    %9439 = vmatpush1.bf16.msra.mxu0 0
    %9440 = vmatprep.subr.bf16.mxu0 0
    %9441 = vmatpush1.bf16.msra.mxu0 0
    %9442 = vmatprep.subr.bf16.mxu0 0
    %9443 = vmatpush1.bf16.msra.mxu0 0
    %9444 = vmatprep.subr.bf16.mxu0 0
    %9445 = vmatpush1.bf16.msra.mxu0 0
    %9446 = vmatprep.subr.bf16.mxu0 0
    %9447 = vmatpush1.bf16.msra.mxu0 0
    %9448 = vmatprep.subr.bf16.mxu0 0
    %9449 = vmatpush1.bf16.msra.mxu0 0
    %9450 = vmatprep.subr.bf16.mxu0 0
    %9451 = vmatpush1.bf16.msra.mxu0 0
    %9452 = vmatprep.subr.bf16.mxu0 0
    %9453 = vmatpush1.bf16.msra.mxu0 0
    %9454 = vmatprep.subr.bf16.mxu0 0
    %9455 = vmatpush1.bf16.msra.mxu0 0
    %9456 = vmatprep.subr.bf16.mxu0 0
    %9457 = vmatpush1.bf16.msra.mxu0 0
    %9458 = vmatprep.subr.bf16.mxu0 0
    %9459 = vmatpush1.bf16.msra.mxu0 0
    %9460 = vmatprep.subr.bf16.mxu0 0
    %9461 = vmatpush1.bf16.msra.mxu0 0
    %9462 = vmatprep.mubr.bf16.mxu0 0
    %9463 = vmatmul.mubr.bf16.gmra.mrb[0].mxu0 %v9428
    %v9464 = vpop.f32.mrb[0].mxu0
    %v9465 = vadd.f32 0.0, %v9464
    %v9466 = vpop.f32.mrb[0].mxu0
    %v9467 = vpop.f32.mrb[0].mxu0
    %v9468 = vpop.f32.mrb[0].mxu0
    %9469 = vdwg.mxu0
    %v9470 = vlaneseq
    %v9471 = vshrl.u32 %v9470, 7
    %v9472 = vsub.s32 0, %v9471
    %v9473 = vrot.slane %v9421, %v9472
    %v9474 = vmul.f32 %v9260, %v9473
    %v9475 = vmul.f32 %v9261, %v9473
    %v9476 = vmul.f32 %v9262, %v9473
    %v9477 = vmul.f32 %v9263, %v9473
    %v9478 = vlaneseq
    %v9479 = vshrl.u32 %v9478, 7
    %v9480 = vsub.s32 0, %v9479
    %v9481 = vrot.slane %v9465, %v9480
    %v9482 = vadd.f32 %v9474, %v9481
    %v9483 = vadd.f32 %v9475, %v9481
    %v9484 = vadd.f32 %v9476, %v9481
    %v9485 = vadd.f32 %v9477, %v9481
    %v9486 = vpack.c.bf16 %v9483, %v9482
    %v9487 = vpack.c.bf16 %v9485, %v9484
    %v9488 = vld [vmem:[#allocation28] sm:$0xf]
    %v9489 = vld [vmem:[#allocation28 + $0x4] sm:$0xf]
    %v9490 = vld [vmem:[#allocation28 + $0x8] sm:$0xf]
    %v9491 = vld [vmem:[#allocation28 + $0xc] sm:$0xf]
    %v9492 = vld [vmem:[#allocation28 + $0x10] sm:$0xf]
    %v9493 = vld [vmem:[#allocation28 + $0x14] sm:$0xf]
    %v9494 = vld [vmem:[#allocation28 + $0x18] sm:$0xf]
    %v9495 = vld [vmem:[#allocation28 + $0x1c] sm:$0xf]
    %v9496 = vld [vmem:[#allocation28 + $0x20] sm:$0xf]
    %v9497 = vld [vmem:[#allocation28 + $0x24] sm:$0xf]
    %v9498 = vld [vmem:[#allocation28 + $0x28] sm:$0xf]
    %v9499 = vld [vmem:[#allocation28 + $0x2c] sm:$0xf]
    %v9500 = vld [vmem:[#allocation28 + $0x30] sm:$0xf]
    %v9501 = vld [vmem:[#allocation28 + $0x34] sm:$0xf]
    %v9502 = vld [vmem:[#allocation28 + $0x38] sm:$0xf]
    %v9503 = vld [vmem:[#allocation28 + $0x3c] sm:$0xf]
    %v9504 = vld [vmem:[#allocation30] sm:$0x1]
    %v9506 = vlaneseq
    %v9507 = vshrl.u32 %v9506, 7
    %v9508 = vsub.s32 0, %v9507
    %v9509 = vrot.slane %v9504, %v9508
    %v9527 = vunpack.c.l.b16 %v9488
    %v9528 = vunpack.c.l.b16 %v9489
    %v9529 = vunpack.c.l.b16 %v9490
    %v9530 = vunpack.c.l.b16 %v9491
    %v9531 = vunpack.c.l.b16 %v9492
    %v9532 = vunpack.c.l.b16 %v9493
    %v9533 = vunpack.c.l.b16 %v9494
    %v9534 = vunpack.c.l.b16 %v9495
    %v9535 = vunpack.c.l.b16 %v9496
    %v9536 = vunpack.c.l.b16 %v9497
    %v9537 = vunpack.c.l.b16 %v9498
    %v9538 = vunpack.c.l.b16 %v9499
    %v9539 = vunpack.c.l.b16 %v9500
    %v9540 = vunpack.c.l.b16 %v9501
    %v9541 = vunpack.c.l.b16 %v9502
    %v9542 = vunpack.c.l.b16 %v9503
    %v9543 = vpack.c.b16 %v9528, %v9527
    %v9544 = vpack.c.b16 %v9530, %v9529
    %v9545 = vpack.c.b16 %v9532, %v9531
    %v9546 = vpack.c.b16 %v9534, %v9533
    %v9547 = vpack.c.b16 %v9536, %v9535
    %v9548 = vpack.c.b16 %v9538, %v9537
    %v9549 = vpack.c.b16 %v9540, %v9539
    %v9550 = vpack.c.b16 %v9542, %v9541
    %9559 = vmatprep.subr.bf16.mxu0 0
    %9560 = vmatpush1.bf16.msra.mxu0 %v9543
    %9561 = vmatprep.subr.bf16.mxu0 0
    %9562 = vmatpush1.bf16.msra.mxu0 %v9544
    %9563 = vmatprep.subr.bf16.mxu0 0
    %9564 = vmatpush1.bf16.msra.mxu0 %v9545
    %9565 = vmatprep.subr.bf16.mxu0 0
    %9566 = vmatpush1.bf16.msra.mxu0 %v9546
    %9567 = vmatprep.subr.bf16.mxu0 0
    %9568 = vmatpush1.bf16.msra.mxu0 %v9547
    %9569 = vmatprep.subr.bf16.mxu0 0
    %9570 = vmatpush1.bf16.msra.mxu0 %v9548
    %9571 = vmatprep.subr.bf16.mxu0 0
    %9572 = vmatpush1.bf16.msra.mxu0 %v9549
    %9573 = vmatprep.subr.bf16.mxu0 0
    %9574 = vmatpush1.bf16.msra.mxu0 %v9550
    %9575 = vmatprep.subr.bf16.mxu0 0
    %9576 = vmatpush1.bf16.msra.mxu0 0
    %9577 = vmatprep.subr.bf16.mxu0 0
    %9578 = vmatpush1.bf16.msra.mxu0 0
    %9579 = vmatprep.subr.bf16.mxu0 0
    %9580 = vmatpush1.bf16.msra.mxu0 0
    %9581 = vmatprep.subr.bf16.mxu0 0
    %9582 = vmatpush1.bf16.msra.mxu0 0
    %9583 = vmatprep.subr.bf16.mxu0 0
    %9584 = vmatpush1.bf16.msra.mxu0 0
    %9585 = vmatprep.subr.bf16.mxu0 0
    %9586 = vmatpush1.bf16.msra.mxu0 0
    %9587 = vmatprep.subr.bf16.mxu0 0
    %9588 = vmatpush1.bf16.msra.mxu0 0
    %9589 = vmatprep.subr.bf16.mxu0 0
    %9590 = vmatpush1.bf16.msra.mxu0 0
    %9591 = vmatprep.mubr.bf16.mxu0 0
    %9592 = vmatmul.mubr.bf16.gmra.mrb[0].mxu0 %v9486
    %v9593 = vpop.f32.mrb[0].mxu0
    %v9594 = vadd.f32 %v9509, %v9593
    %v9595 = vpop.f32.mrb[0].mxu0
    %v9596 = vpop.f32.mrb[0].mxu0
    %v9597 = vadd.f32 %v9509, %v9596
    %v9598 = vpop.f32.mrb[0].mxu0
    %9599 = vmatprep.mubr.bf16.mxu0 0
    %9600 = vmatmul.mubr.bf16.gmra.mrb[0].mxu0 %v9487
    %v9601 = vpop.f32.mrb[0].mxu0
    %v9602 = vadd.f32 %v9509, %v9601
    %v9603 = vpop.f32.mrb[0].mxu0
    %v9604 = vpop.f32.mrb[0].mxu0
    %v9605 = vadd.f32 %v9509, %v9604
    %v9606 = vpop.f32.mrb[0].mxu0
    %9607 = vdwg.mxu0
    %9608 = vst [vmem:[%s89] sm:$0xff] %v9594
    %9609 = vst [vmem:[%s89 + $0x8] sm:$0xff] %v9597
    %9610 = vst [vmem:[%s89 + $0x10] sm:$0xff] %v9602
    %9611 = vst [vmem:[%s89 + $0x18] sm:$0xff] %v9605
    // Predicated region
    $region254: #{wnet_forward.1} parent=1 // pred_check
      _
    $region255: #{wnet_forward.1} parent=1 // pred_check_branch
      %9613 = sbr.rel (0) target = $region257
    $region256: #{wnet_forward.1} parent=1 // pred_region
      _
    $region257: #{wnet_forward.1} parent=1 // pred_fallthru
      _
    // Predicated region
    $region258: #{wnet_forward.1} parent=1 // pred_check
      _
    $region259: #{wnet_forward.1} parent=1 // pred_check_branch
      %9615 = sbr.rel (0) target = $region261
    $region260: #{wnet_forward.1} parent=1 // pred_region
      _
    $region261: #{wnet_forward.1} parent=1 // pred_fallthru
      _
    %9616 = vsyncpa [#allocation3], 1
    %9617 = vsyncpa [#allocation5], 1
    %9618 = vsyncpa [#allocation8], 1
    %9619 = vsyncpa [#allocation11], 1
    %9620 = vsyncpa [#allocation14], 1
    %9621 = vsyncpa [#allocation17], 1
    %9622 = vsyncpa [#allocation20], 1
    %9623 = vsyncpa [#allocation23], 1
    %9624 = vsyncpa [#allocation26], 1
    %9625 = vsyncpa [#allocation29], 1

</llo_original>
